<compile_context>
chip_gen: v7x
topology: tpu7x:2x2x1
jax: 0.10.0
libtpu: 0.0.40
codegen_flags: <defaults>
</compile_context>

<pallas_src>
import jax
import jax.numpy as jnp
from jax.experimental import pallas as pl
from jax.experimental.pallas import tpu as pltpu

D_IN = 28 * 28   # 784
D_H1 = 400
D_H2 = 256

# total MAC elements of all four layers (used for cost estimate / sizing)
_W_ELEMS = D_IN * D_H1 + D_H1 * D_H2 + D_H2 * D_H1 + D_H1 * D_IN   # 832_000
_OUT_ELEMS_PER_ROW = D_H1 + D_H2 + D_H1 + D_IN                      # 1840


def _round_up(n, m):
    return ((n + m - 1) // m) * m


def autoencoder_kernel(x_ref,
                       w1_ref, b1_ref,
                       w2_ref, b2_ref,
                       w3_ref, b3_ref,
                       w4_ref, b4_ref,
                       o_ref):
    def layer(h_bf16, w_ref, b_ref):
        # bf16 x bf16 -> f32 accumulation on the MXU, bias add + sigmoid in f32.
        z = jnp.dot(h_bf16, w_ref[...],
                    preferred_element_type=jnp.float32) + b_ref[...]
        # exp -> EUP, approx reciprocal -> EUP (keeps the VPU free).
        return pl.reciprocal(1.0 + jnp.exp(-z), approx=True)

    x = x_ref[...]                                        # bf16 [TB, 784]
    h1 = layer(x, w1_ref, b1_ref)                         # f32  [TB, 400]
    h2 = layer(h1.astype(jnp.bfloat16), w2_ref, b2_ref)   # f32  [TB, 256]
    h3 = layer(h2.astype(jnp.bfloat16), w3_ref, b3_ref)   # f32  [TB, 400]
    h4 = layer(h3.astype(jnp.bfloat16), w4_ref, b4_ref)   # f32  [TB, 784]
    o_ref[...] = h4.astype(o_ref.dtype)


def autoencoder_forward(x, params, *, tb=None):
    """x: [B, 784] float32. params: dict w1..w4 ([in,out]) / b1..b4 ([1,out]).

    Returns sigmoid-activated reconstruction, [B, 784] float32.
    """
    B, D = x.shape
    assert D == D_IN

    # Batch tile: as large as reasonable (<=256), multiple of 8 (sublane).
    if tb is None:
        tb = min(256, _round_up(max(B, 1), 8))
    assert tb % 8 == 0
    b_pad = _round_up(B, tb)

    # bf16 inputs / weights for the MXU; biases stay f32 (added post-accum).
    xb = x.astype(jnp.bfloat16)
    if b_pad != B:
        xb = jnp.pad(xb, ((0, b_pad - B), (0, 0)))
    w1 = params["w1"].astype(jnp.bfloat16)
    w2 = params["w2"].astype(jnp.bfloat16)
    w3 = params["w3"].astype(jnp.bfloat16)
    w4 = params["w4"].astype(jnp.bfloat16)
    b1, b2, b3, b4 = params["b1"], params["b2"], params["b3"], params["b4"]

    def resident(shape):
        # Whole-array block with a constant index_map: stays in VMEM and is
        # never re-fetched across batch tiles.
        return pl.BlockSpec(shape, lambda i: (0, 0))

    grid = (b_pad // tb,)
    in_specs = [
        pl.BlockSpec((tb, D_IN), lambda i: (i, 0)),          # x tile
        resident((D_IN, D_H1)), resident((1, D_H1)),         # fc1
        resident((D_H1, D_H2)), resident((1, D_H2)),         # fc2
        resident((D_H2, D_H1)), resident((1, D_H1)),         # fc3
        resident((D_H1, D_IN)), resident((1, D_IN)),         # fc4
    ]
    out_spec = pl.BlockSpec((tb, D_IN), lambda i: (i, 0))

    weight_bytes = 2 * _W_ELEMS                      # bf16 weights
    bias_bytes = 4 * _OUT_ELEMS_PER_ROW
    cost = pl.CostEstimate(
        flops=2 * b_pad * _W_ELEMS,
        transcendentals=b_pad * _OUT_ELEMS_PER_ROW,
        bytes_accessed=b_pad * D_IN * (2 + 4) + weight_bytes + bias_bytes,
    )

    out = pl.pallas_call(
        autoencoder_kernel,
        out_shape=jax.ShapeDtypeStruct((b_pad, D_IN), jnp.float32),
        grid_spec=pltpu.PrefetchScalarGridSpec(
            num_scalar_prefetch=0,
            grid=grid,
            in_specs=in_specs,
            out_specs=out_spec,
        ),
        compiler_params=pltpu.CompilerParams(
            dimension_semantics=("parallel",),
            vmem_limit_bytes=32 * 1024 * 1024,
        ),
        cost_estimate=cost,
    )(xb, w1, b1, w2, b2, w3, b3, w4, b4)

    return out[:B]


def init_params(key):
    """Deterministic init mimicking PyTorch Linear default (U[-1/sqrt(fan_in), +])."""
    dims = [(D_IN, D_H1), (D_H1, D_H2), (D_H2, D_H1), (D_H1, D_IN)]
    params = {}
    keys = jax.random.split(key, 2 * len(dims))
    for idx, (fan_in, fan_out) in enumerate(dims):
        bound = 1.0 / jnp.sqrt(fan_in)
        w = jax.random.uniform(keys[2 * idx], (fan_in, fan_out),
                               jnp.float32, -bound, bound)
        b = jax.random.uniform(keys[2 * idx + 1], (1, fan_out),
                               jnp.float32, -bound, bound)
        params[f"w{idx + 1}"] = w
        params[f"b{idx + 1}"] = b
    return params


def reference_forward(x, p):
    # Pure f32 reference of the PyTorch module's forward.
    h = jax.nn.sigmoid(x @ p["w1"] + p["b1"])
    h = jax.nn.sigmoid(h @ p["w2"] + p["b2"])
    h = jax.nn.sigmoid(h @ p["w3"] + p["b3"])
    h = jax.nn.sigmoid(h @ p["w4"] + p["b4"])
    return h


if __name__ == "__main__":
    key = jax.random.PRNGKey(0)
    pkey, xkey = jax.random.split(key)
    params = init_params(pkey)

    # Small deterministic example; B not a multiple of the tile so the
    # batch-padding + multi-step ("parallel") grid path is exercised.
    B = 200
    x = jax.random.uniform(xkey, (B, D_IN), jnp.float32)

    out = autoencoder_forward(x, params, tb=128)
    out = jax.block_until_ready(out)

    ref = reference_forward(x, params)
    assert out.shape == (B, D_IN)
    max_err = float(jnp.max(jnp.abs(out - ref)))
    # bf16 matmuls (f32 accumulate) + approx EUP reciprocal vs pure-f32 ref:
    # outputs are sigmoids in [0,1]; observed error is ~1e-3, bound is generous.
    assert max_err < 2e-2, f"mismatch vs reference: max abs err {max_err}"

    print("KERNEL_OK")
</pallas_src>

<mosaic_0001>
module attributes {stable_mosaic.version = 11 : i64} {
  func.func @autoencoder_kernel(%arg0: i32, %arg1: memref<128x784xbf16, #tpu.memory_space<vmem>>, %arg2: memref<784x400xbf16, #tpu.memory_space<vmem>>, %arg3: memref<1x400xf32, #tpu.memory_space<vmem>>, %arg4: memref<400x256xbf16, #tpu.memory_space<vmem>>, %arg5: memref<1x256xf32, #tpu.memory_space<vmem>>, %arg6: memref<256x400xbf16, #tpu.memory_space<vmem>>, %arg7: memref<1x400xf32, #tpu.memory_space<vmem>>, %arg8: memref<400x784xbf16, #tpu.memory_space<vmem>>, %arg9: memref<1x784xf32, #tpu.memory_space<vmem>>, %arg10: memref<128x784xf32, #tpu.memory_space<vmem>>) attributes {dimension_semantics = [#tpu.dimension_semantics<parallel>], iteration_bounds = array<i64: 2>, scalar_prefetch = 0 : i64, scratch_operands = 0 : i64, tpu.core_type = #tpu.core_type<tc>, window_params = [{transform_indices = @transform_0, window_bounds = array<i64: 128, 784>}, {pipeline_mode = #tpu.pipeline_mode<synchronous>, transform_indices = @transform_1, window_bounds = array<i64: 784, 400>}, {pipeline_mode = #tpu.pipeline_mode<synchronous>, transform_indices = @transform_2, window_bounds = array<i64: 1, 400>}, {pipeline_mode = #tpu.pipeline_mode<synchronous>, transform_indices = @transform_3, window_bounds = array<i64: 400, 256>}, {pipeline_mode = #tpu.pipeline_mode<synchronous>, transform_indices = @transform_4, window_bounds = array<i64: 1, 256>}, {pipeline_mode = #tpu.pipeline_mode<synchronous>, transform_indices = @transform_5, window_bounds = array<i64: 256, 400>}, {pipeline_mode = #tpu.pipeline_mode<synchronous>, transform_indices = @transform_6, window_bounds = array<i64: 1, 400>}, {pipeline_mode = #tpu.pipeline_mode<synchronous>, transform_indices = @transform_7, window_bounds = array<i64: 400, 784>}, {pipeline_mode = #tpu.pipeline_mode<synchronous>, transform_indices = @transform_8, window_bounds = array<i64: 1, 784>}, {transform_indices = @transform_9, window_bounds = array<i64: 128, 784>}]} {
    %c0 = arith.constant 0 : index
    %c0_0 = arith.constant 0 : index
    %0 = vector.load %arg1[%c0, %c0_0] : memref<128x784xbf16, #tpu.memory_space<vmem>>, vector<128x784xbf16>
    %c0_1 = arith.constant 0 : index
    %c0_2 = arith.constant 0 : index
    %1 = vector.load %arg2[%c0_1, %c0_2] : memref<784x400xbf16, #tpu.memory_space<vmem>>, vector<784x400xbf16>
    %cst = arith.constant dense<0.000000e+00> : vector<128x400xf32>
    %2 = tpu.matmul %0, %1, %cst {dimension_numbers = #tpu.dot_dimension_numbers<[1], [0], [0], [1], [0, 0, 1, 1], [], []>} : vector<128x784xbf16>, vector<784x400xbf16>, vector<128x400xf32> -> vector<128x400xf32>
    %c0_3 = arith.constant 0 : index
    %c0_4 = arith.constant 0 : index
    %3 = vector.load %arg3[%c0_3, %c0_4] : memref<1x400xf32, #tpu.memory_space<vmem>>, vector<1x400xf32>
    %4 = vector.broadcast %3 : vector<1x400xf32> to vector<128x400xf32>
    %5 = arith.addf %2, %4 : vector<128x400xf32>
    %cst_5 = arith.constant 0.000000e+00 : f32
    %6 = vector.broadcast %cst_5 : f32 to vector<128x400xf32>
    %7 = arith.subf %6, %5 : vector<128x400xf32>
    %8 = math.exp %7 : vector<128x400xf32>
    %cst_6 = arith.constant 1.000000e+00 : f32
    %9 = vector.broadcast %cst_6 : f32 to vector<128x400xf32>
    %10 = arith.addf %9, %8 : vector<128x400xf32>
    %11 = tpu.reciprocal %10 {approx = true} : vector<128x400xf32> -> vector<128x400xf32>
    %12 = arith.truncf %11 : vector<128x400xf32> to vector<128x400xbf16>
    %c0_7 = arith.constant 0 : index
    %c0_8 = arith.constant 0 : index
    %13 = vector.load %arg4[%c0_7, %c0_8] : memref<400x256xbf16, #tpu.memory_space<vmem>>, vector<400x256xbf16>
    %cst_9 = arith.constant dense<0.000000e+00> : vector<128x256xf32>
    %14 = tpu.matmul %12, %13, %cst_9 {dimension_numbers = #tpu.dot_dimension_numbers<[1], [0], [0], [1], [0, 0, 1, 1], [], []>} : vector<128x400xbf16>, vector<400x256xbf16>, vector<128x256xf32> -> vector<128x256xf32>
    %c0_10 = arith.constant 0 : index
    %c0_11 = arith.constant 0 : index
    %15 = vector.load %arg5[%c0_10, %c0_11] : memref<1x256xf32, #tpu.memory_space<vmem>>, vector<1x256xf32>
    %16 = vector.broadcast %15 : vector<1x256xf32> to vector<128x256xf32>
    %17 = arith.addf %14, %16 : vector<128x256xf32>
    %cst_12 = arith.constant 0.000000e+00 : f32
    %18 = vector.broadcast %cst_12 : f32 to vector<128x256xf32>
    %19 = arith.subf %18, %17 : vector<128x256xf32>
    %20 = math.exp %19 : vector<128x256xf32>
    %cst_13 = arith.constant 1.000000e+00 : f32
    %21 = vector.broadcast %cst_13 : f32 to vector<128x256xf32>
    %22 = arith.addf %21, %20 : vector<128x256xf32>
    %23 = tpu.reciprocal %22 {approx = true} : vector<128x256xf32> -> vector<128x256xf32>
    %24 = arith.truncf %23 : vector<128x256xf32> to vector<128x256xbf16>
    %c0_14 = arith.constant 0 : index
    %c0_15 = arith.constant 0 : index
    %25 = vector.load %arg6[%c0_14, %c0_15] : memref<256x400xbf16, #tpu.memory_space<vmem>>, vector<256x400xbf16>
    %cst_16 = arith.constant dense<0.000000e+00> : vector<128x400xf32>
    %26 = tpu.matmul %24, %25, %cst_16 {dimension_numbers = #tpu.dot_dimension_numbers<[1], [0], [0], [1], [0, 0, 1, 1], [], []>} : vector<128x256xbf16>, vector<256x400xbf16>, vector<128x400xf32> -> vector<128x400xf32>
    %c0_17 = arith.constant 0 : index
    %c0_18 = arith.constant 0 : index
    %27 = vector.load %arg7[%c0_17, %c0_18] : memref<1x400xf32, #tpu.memory_space<vmem>>, vector<1x400xf32>
    %28 = vector.broadcast %27 : vector<1x400xf32> to vector<128x400xf32>
    %29 = arith.addf %26, %28 : vector<128x400xf32>
    %cst_19 = arith.constant 0.000000e+00 : f32
    %30 = vector.broadcast %cst_19 : f32 to vector<128x400xf32>
    %31 = arith.subf %30, %29 : vector<128x400xf32>
    %32 = math.exp %31 : vector<128x400xf32>
    %cst_20 = arith.constant 1.000000e+00 : f32
    %33 = vector.broadcast %cst_20 : f32 to vector<128x400xf32>
    %34 = arith.addf %33, %32 : vector<128x400xf32>
    %35 = tpu.reciprocal %34 {approx = true} : vector<128x400xf32> -> vector<128x400xf32>
    %36 = arith.truncf %35 : vector<128x400xf32> to vector<128x400xbf16>
    %c0_21 = arith.constant 0 : index
    %c0_22 = arith.constant 0 : index
    %37 = vector.load %arg8[%c0_21, %c0_22] : memref<400x784xbf16, #tpu.memory_space<vmem>>, vector<400x784xbf16>
    %cst_23 = arith.constant dense<0.000000e+00> : vector<128x784xf32>
    %38 = tpu.matmul %36, %37, %cst_23 {dimension_numbers = #tpu.dot_dimension_numbers<[1], [0], [0], [1], [0, 0, 1, 1], [], []>} : vector<128x400xbf16>, vector<400x784xbf16>, vector<128x784xf32> -> vector<128x784xf32>
    %c0_24 = arith.constant 0 : index
    %c0_25 = arith.constant 0 : index
    %39 = vector.load %arg9[%c0_24, %c0_25] : memref<1x784xf32, #tpu.memory_space<vmem>>, vector<1x784xf32>
    %40 = vector.broadcast %39 : vector<1x784xf32> to vector<128x784xf32>
    %41 = arith.addf %38, %40 : vector<128x784xf32>
    %cst_26 = arith.constant 0.000000e+00 : f32
    %42 = vector.broadcast %cst_26 : f32 to vector<128x784xf32>
    %43 = arith.subf %42, %41 : vector<128x784xf32>
    %44 = math.exp %43 : vector<128x784xf32>
    %cst_27 = arith.constant 1.000000e+00 : f32
    %45 = vector.broadcast %cst_27 : f32 to vector<128x784xf32>
    %46 = arith.addf %45, %44 : vector<128x784xf32>
    %47 = tpu.reciprocal %46 {approx = true} : vector<128x784xf32> -> vector<128x784xf32>
    %c0_28 = arith.constant 0 : index
    %c0_29 = arith.constant 0 : index
    %48 = vector.load %arg10[%c0_28, %c0_29] : memref<128x784xf32, #tpu.memory_space<vmem>>, vector<128x784xf32>
    tpu.vector_store %arg10[%c0_28, %c0_29], %47 {strides = array<i32>} : memref<128x784xf32, #tpu.memory_space<vmem>>, vector<128x784xf32>,
    return
  }
  func.func @transform_0(%arg0: i32) -> (i32, i32) {
    %c0_i32 = arith.constant 0 : i32
    %c0_i32_0 = arith.constant 0 : i32
    return %arg0, %c0_i32 : i32, i32
  }
  func.func @transform_1(%arg0: i32) -> (i32, i32) {
    %c0_i32 = arith.constant 0 : i32
    %c0_i32_0 = arith.constant 0 : i32
    %c0_i32_1 = arith.constant 0 : i32
    return %c0_i32, %c0_i32_0 : i32, i32
  }
  func.func @transform_2(%arg0: i32) -> (i32, i32) {
    %c0_i32 = arith.constant 0 : i32
    %c0_i32_0 = arith.constant 0 : i32
    %c0_i32_1 = arith.constant 0 : i32
    return %c0_i32, %c0_i32_0 : i32, i32
  }
  func.func @transform_3(%arg0: i32) -> (i32, i32) {
    %c0_i32 = arith.constant 0 : i32
    %c0_i32_0 = arith.constant 0 : i32
    %c0_i32_1 = arith.constant 0 : i32
    return %c0_i32, %c0_i32_0 : i32, i32
  }
  func.func @transform_4(%arg0: i32) -> (i32, i32) {
    %c0_i32 = arith.constant 0 : i32
    %c0_i32_0 = arith.constant 0 : i32
    %c0_i32_1 = arith.constant 0 : i32
    return %c0_i32, %c0_i32_0 : i32, i32
  }
  func.func @transform_5(%arg0: i32) -> (i32, i32) {
    %c0_i32 = arith.constant 0 : i32
    %c0_i32_0 = arith.constant 0 : i32
    %c0_i32_1 = arith.constant 0 : i32
    return %c0_i32, %c0_i32_0 : i32, i32
  }
  func.func @transform_6(%arg0: i32) -> (i32, i32) {
    %c0_i32 = arith.constant 0 : i32
    %c0_i32_0 = arith.constant 0 : i32
    %c0_i32_1 = arith.constant 0 : i32
    return %c0_i32, %c0_i32_0 : i32, i32
  }
  func.func @transform_7(%arg0: i32) -> (i32, i32) {
    %c0_i32 = arith.constant 0 : i32
    %c0_i32_0 = arith.constant 0 : i32
    %c0_i32_1 = arith.constant 0 : i32
    return %c0_i32, %c0_i32_0 : i32, i32
  }
  func.func @transform_8(%arg0: i32) -> (i32, i32) {
    %c0_i32 = arith.constant 0 : i32
    %c0_i32_0 = arith.constant 0 : i32
    %c0_i32_1 = arith.constant 0 : i32
    return %c0_i32, %c0_i32_0 : i32, i32
  }
  func.func @transform_9(%arg0: i32) -> (i32, i32) {
    %c0_i32 = arith.constant 0 : i32
    %c0_i32_0 = arith.constant 0 : i32
    return %arg0, %c0_i32 : i32, i32
  }
}

</mosaic_0001>

<llo_original>
// kernel: tpu_custom_call.1
$region0: #{tpu_custom_call.1}
  #allocation0 [shape = 'u32[]', space=smem, size = 0x4, offset = 0x4, fixed_abs, tag = 'smem constant byte address 0x4 - core index']
  #allocation1 [shape = 'u32[144,128]{1,0:T(1,128)}', space=vmem, size = 0x12000, scoped, tag = 'internal scratch']
  %s0 = inlined_call_operand.vmem [shape: bf16[256,784], index: 0, kind: input, shape index: {}]
  %s1 = inlined_call_operand.vmem [shape: bf16[784,400], index: 1, kind: input, shape index: {}]
  %s2 = inlined_call_operand.vmem [shape: f32[1,400], index: 2, kind: input, shape index: {}]
  %s3 = inlined_call_operand.vmem [shape: bf16[400,256], index: 3, kind: input, shape index: {}]
  %s4 = inlined_call_operand.vmem [shape: f32[1,256], index: 4, kind: input, shape index: {}]
  %s5 = inlined_call_operand.vmem [shape: bf16[256,400], index: 5, kind: input, shape index: {}]
  %s6 = inlined_call_operand.vmem [shape: f32[1,400], index: 6, kind: input, shape index: {}]
  %s7 = inlined_call_operand.vmem [shape: bf16[400,784], index: 7, kind: input, shape index: {}]
  %s8 = inlined_call_operand.vmem [shape: f32[1,784], index: 8, kind: input, shape index: {}]
  %s9 = inlined_call_operand.vmem [shape: f32[256,784], index: 9, kind: output, shape index: {}]
  %s10 = sld [smem:[#allocation0]]
  $region69: #{tpu_custom_call.1} parent=0
    _
  %s12 = ssub.s32 1, %s10
  %s13 = scalar_select 0, %s12, %s10
  loop: start=0, step=1, limit=4
  $region2: #{tpu_custom_call.1} parent=0 // loop_pre_header
    _
  $region3: #{tpu_custom_call.1} parent=0 // loop_header
    %s15 = sphi 0, %s19
    %p16 = scmp.ge.s32.totalorder %s15, 4
    %s25 = sphi 0, %s27
    %s28 = sphi 0, %s25
    %s29 = sphi 0, %s28
    %s45 = sphi 0, %s29
    %s49 = sphi 0, %s49
    %s51 = sphi 0, %s49
    %s52 = sphi 0, %s51
    %s66 = sphi 0, %s52
    %s70 = sphi 0, %s70
    %s72 = sphi 0, %s70
    %s73 = sphi 0, %s72
    %s87 = sphi 0, %s73
    %s91 = sphi 0, %s91
    %s93 = sphi 0, %s91
    %s94 = sphi 0, %s93
    %s108 = sphi 0, %s94
    %s112 = sphi 0, %s112
    %s114 = sphi 0, %s112
    %s115 = sphi 0, %s114
    %s129 = sphi 0, %s115
    %s133 = sphi 0, %s133
    %s135 = sphi 0, %s133
    %s136 = sphi 0, %s135
    %s150 = sphi 0, %s136
    %s154 = sphi 0, %s154
    %s156 = sphi 0, %s154
    %s157 = sphi 0, %s156
    %s171 = sphi 0, %s157
    %s175 = sphi 0, %s175
    %s177 = sphi 0, %s175
    %s178 = sphi 0, %s177
    %s192 = sphi 0, %s178
    %s196 = sphi 0, %s196
    %s198 = sphi 0, %s196
    %s199 = sphi 0, %s198
    %s213 = sphi 0, %s199
    %s219 = sphi 0, %s221
    %s222 = sphi 0, %s219
    %s223 = sphi 0, %s222
    %s239 = sphi 0, %s223
  $region4: #{tpu_custom_call.1} parent=0 // loop_header_branch
    %18 = sbr.rel (%p16) target = $region8
  $region5: #{tpu_custom_call.1} parent=0 // loop_body
    %s20 = ssub.s32 %s15, 1
    %s21 = ssub.s32 %s15, 2
    %s22 = sadd.s32 %s15, 1
    %s23 = ssub.s32 %s15, %s22
    %p24 = scmp.eq.s32.totalorder %s23, 0
    %s26 = sadd.s32 %s25, 1
    %s27 = scalar_select %p24, %s25, %s26
    %p30 = pneg %p24
    %p31 = scmp.eq.s32.totalorder %s15, 1
    %p32 = por %p30, %p31
    %p33 = scmp.ne.s32.totalorder %s25, %s28
    %p34 = scmp.eq.s32.totalorder %s15, 0
    %p35 = por %p33, %p34
    %p36 = scmp.ne.s32.totalorder %s25, %s28
    %p37 = scmp.eq.s32.totalorder %s20, 1
    %p38 = por %p36, %p37
    %p39 = scmp.ne.s32.totalorder %s28, %s29
    %p40 = scmp.eq.s32.totalorder %s20, 0
    %p41 = por %p39, %p40
    %p42 = scmp.ne.s32.totalorder %s28, %s29
    %p43 = scmp.eq.s32.totalorder %s21, 1
    %p44 = por %p42, %p43
    %p46 = scmp.ne.s32.totalorder %s29, %s45
    %p47 = scmp.eq.s32.totalorder %s21, 0
    %p48 = por %p46, %p47
    %s50 = sadd.s32 %s49, 1
    %p53 = scmp.eq.s32.totalorder %s15, 1
    %p54 = scmp.ne.s32.totalorder %s49, %s51
    %p55 = scmp.eq.s32.totalorder %s15, 0
    %p56 = por %p54, %p55
    %p57 = scmp.ne.s32.totalorder %s49, %s51
    %p58 = scmp.eq.s32.totalorder %s20, 1
    %p59 = por %p57, %p58
    %p60 = scmp.ne.s32.totalorder %s51, %s52
    %p61 = scmp.eq.s32.totalorder %s20, 0
    %p62 = por %p60, %p61
    %p63 = scmp.ne.s32.totalorder %s51, %s52
    %p64 = scmp.eq.s32.totalorder %s21, 1
    %p65 = por %p63, %p64
    %p67 = scmp.ne.s32.totalorder %s52, %s66
    %p68 = scmp.eq.s32.totalorder %s21, 0
    %p69 = por %p67, %p68
    %s71 = sadd.s32 %s70, 1
    %p74 = scmp.eq.s32.totalorder %s15, 1
    %p75 = scmp.ne.s32.totalorder %s70, %s72
    %p76 = scmp.eq.s32.totalorder %s15, 0
    %p77 = por %p75, %p76
    %p78 = scmp.ne.s32.totalorder %s70, %s72
    %p79 = scmp.eq.s32.totalorder %s20, 1
    %p80 = por %p78, %p79
    %p81 = scmp.ne.s32.totalorder %s72, %s73
    %p82 = scmp.eq.s32.totalorder %s20, 0
    %p83 = por %p81, %p82
    %p84 = scmp.ne.s32.totalorder %s72, %s73
    %p85 = scmp.eq.s32.totalorder %s21, 1
    %p86 = por %p84, %p85
    %p88 = scmp.ne.s32.totalorder %s73, %s87
    %p89 = scmp.eq.s32.totalorder %s21, 0
    %p90 = por %p88, %p89
    %s92 = sadd.s32 %s91, 1
    %p95 = scmp.eq.s32.totalorder %s15, 1
    %p96 = scmp.ne.s32.totalorder %s91, %s93
    %p97 = scmp.eq.s32.totalorder %s15, 0
    %p98 = por %p96, %p97
    %p99 = scmp.ne.s32.totalorder %s91, %s93
    %p100 = scmp.eq.s32.totalorder %s20, 1
    %p101 = por %p99, %p100
    %p102 = scmp.ne.s32.totalorder %s93, %s94
    %p103 = scmp.eq.s32.totalorder %s20, 0
    %p104 = por %p102, %p103
    %p105 = scmp.ne.s32.totalorder %s93, %s94
    %p106 = scmp.eq.s32.totalorder %s21, 1
    %p107 = por %p105, %p106
    %p109 = scmp.ne.s32.totalorder %s94, %s108
    %p110 = scmp.eq.s32.totalorder %s21, 0
    %p111 = por %p109, %p110
    %s113 = sadd.s32 %s112, 1
    %p116 = scmp.eq.s32.totalorder %s15, 1
    %p117 = scmp.ne.s32.totalorder %s112, %s114
    %p118 = scmp.eq.s32.totalorder %s15, 0
    %p119 = por %p117, %p118
    %p120 = scmp.ne.s32.totalorder %s112, %s114
    %p121 = scmp.eq.s32.totalorder %s20, 1
    %p122 = por %p120, %p121
    %p123 = scmp.ne.s32.totalorder %s114, %s115
    %p124 = scmp.eq.s32.totalorder %s20, 0
    %p125 = por %p123, %p124
    %p126 = scmp.ne.s32.totalorder %s114, %s115
    %p127 = scmp.eq.s32.totalorder %s21, 1
    %p128 = por %p126, %p127
    %p130 = scmp.ne.s32.totalorder %s115, %s129
    %p131 = scmp.eq.s32.totalorder %s21, 0
    %p132 = por %p130, %p131
    %s134 = sadd.s32 %s133, 1
    %p137 = scmp.eq.s32.totalorder %s15, 1
    %p138 = scmp.ne.s32.totalorder %s133, %s135
    %p139 = scmp.eq.s32.totalorder %s15, 0
    %p140 = por %p138, %p139
    %p141 = scmp.ne.s32.totalorder %s133, %s135
    %p142 = scmp.eq.s32.totalorder %s20, 1
    %p143 = por %p141, %p142
    %p144 = scmp.ne.s32.totalorder %s135, %s136
    %p145 = scmp.eq.s32.totalorder %s20, 0
    %p146 = por %p144, %p145
    %p147 = scmp.ne.s32.totalorder %s135, %s136
    %p148 = scmp.eq.s32.totalorder %s21, 1
    %p149 = por %p147, %p148
    %p151 = scmp.ne.s32.totalorder %s136, %s150
    %p152 = scmp.eq.s32.totalorder %s21, 0
    %p153 = por %p151, %p152
    %s155 = sadd.s32 %s154, 1
    %p158 = scmp.eq.s32.totalorder %s15, 1
    %p159 = scmp.ne.s32.totalorder %s154, %s156
    %p160 = scmp.eq.s32.totalorder %s15, 0
    %p161 = por %p159, %p160
    %p162 = scmp.ne.s32.totalorder %s154, %s156
    %p163 = scmp.eq.s32.totalorder %s20, 1
    %p164 = por %p162, %p163
    %p165 = scmp.ne.s32.totalorder %s156, %s157
    %p166 = scmp.eq.s32.totalorder %s20, 0
    %p167 = por %p165, %p166
    %p168 = scmp.ne.s32.totalorder %s156, %s157
    %p169 = scmp.eq.s32.totalorder %s21, 1
    %p170 = por %p168, %p169
    %p172 = scmp.ne.s32.totalorder %s157, %s171
    %p173 = scmp.eq.s32.totalorder %s21, 0
    %p174 = por %p172, %p173
    %s176 = sadd.s32 %s175, 1
    %p179 = scmp.eq.s32.totalorder %s15, 1
    %p180 = scmp.ne.s32.totalorder %s175, %s177
    %p181 = scmp.eq.s32.totalorder %s15, 0
    %p182 = por %p180, %p181
    %p183 = scmp.ne.s32.totalorder %s175, %s177
    %p184 = scmp.eq.s32.totalorder %s20, 1
    %p185 = por %p183, %p184
    %p186 = scmp.ne.s32.totalorder %s177, %s178
    %p187 = scmp.eq.s32.totalorder %s20, 0
    %p188 = por %p186, %p187
    %p189 = scmp.ne.s32.totalorder %s177, %s178
    %p190 = scmp.eq.s32.totalorder %s21, 1
    %p191 = por %p189, %p190
    %p193 = scmp.ne.s32.totalorder %s178, %s192
    %p194 = scmp.eq.s32.totalorder %s21, 0
    %p195 = por %p193, %p194
    %s197 = sadd.s32 %s196, 1
    %p200 = scmp.eq.s32.totalorder %s15, 1
    %p201 = scmp.ne.s32.totalorder %s196, %s198
    %p202 = scmp.eq.s32.totalorder %s15, 0
    %p203 = por %p201, %p202
    %p204 = scmp.ne.s32.totalorder %s196, %s198
    %p205 = scmp.eq.s32.totalorder %s20, 1
    %p206 = por %p204, %p205
    %p207 = scmp.ne.s32.totalorder %s198, %s199
    %p208 = scmp.eq.s32.totalorder %s20, 0
    %p209 = por %p207, %p208
    %p210 = scmp.ne.s32.totalorder %s198, %s199
    %p211 = scmp.eq.s32.totalorder %s21, 1
    %p212 = por %p210, %p211
    %p214 = scmp.ne.s32.totalorder %s199, %s213
    %p215 = scmp.eq.s32.totalorder %s21, 0
    %p216 = por %p214, %p215
    %s217 = ssub.s32 %s15, %s22
    %p218 = scmp.eq.s32.totalorder %s217, 0
    %s220 = sadd.s32 %s219, 1
    %s221 = scalar_select %p218, %s219, %s220
    %p224 = pneg %p218
    %p225 = scmp.eq.s32.totalorder %s15, 1
    %p226 = por %p224, %p225
    %p227 = scmp.ne.s32.totalorder %s219, %s222
    %p228 = scmp.eq.s32.totalorder %s15, 0
    %p229 = por %p227, %p228
    %p230 = scmp.ne.s32.totalorder %s219, %s222
    %p231 = scmp.eq.s32.totalorder %s20, 1
    %p232 = por %p230, %p231
    %p233 = scmp.ne.s32.totalorder %s222, %s223
    %p234 = scmp.eq.s32.totalorder %s20, 0
    %p235 = por %p233, %p234
    %p236 = scmp.ne.s32.totalorder %s222, %s223
    %p237 = scmp.eq.s32.totalorder %s21, 1
    %p238 = por %p236, %p237
    %p240 = scmp.ne.s32.totalorder %s223, %s239
    %p241 = scmp.eq.s32.totalorder %s21, 0
    %p242 = por %p240, %p241
    %p243 = scmp.le.s32.totalorder 1, %s15
    %p244 = scmp.lt.s32.totalorder %s15, 3
    %p245 = pnand %p243, %p244
    %p246 = pneg %p245
    // Predicated region
    $region9: #{tpu_custom_call.1} parent=5 // pred_check
      _
    $region10: #{tpu_custom_call.1} parent=5 // pred_check_branch
      %248 = sbr.rel (%p245) target = $region12
    $region11: #{tpu_custom_call.1} parent=5 // pred_region
      %s249 = ssub.s32 %s15, 1
      // Predicated region
      $region13: #{tpu_custom_call.1} parent=11 // pred_check
        %p250 = pneg %p62
      $region14: #{tpu_custom_call.1} parent=11 // pred_check_branch
        %252 = sbr.rel (%p250) target = $region16
      $region15: #{tpu_custom_call.1} parent=11 // pred_region
        _
      $region16: #{tpu_custom_call.1} parent=11 // pred_fallthru
        _
      // Predicated region
      $region17: #{tpu_custom_call.1} parent=11 // pred_check
        %p253 = pneg %p83
      $region18: #{tpu_custom_call.1} parent=11 // pred_check_branch
        %255 = sbr.rel (%p253) target = $region20
      $region19: #{tpu_custom_call.1} parent=11 // pred_region
        _
      $region20: #{tpu_custom_call.1} parent=11 // pred_fallthru
        _
      // Predicated region
      $region21: #{tpu_custom_call.1} parent=11 // pred_check
        %p256 = pneg %p104
      $region22: #{tpu_custom_call.1} parent=11 // pred_check_branch
        %258 = sbr.rel (%p256) target = $region24
      $region23: #{tpu_custom_call.1} parent=11 // pred_region
        _
      $region24: #{tpu_custom_call.1} parent=11 // pred_fallthru
        _
      // Predicated region
      $region25: #{tpu_custom_call.1} parent=11 // pred_check
        %p259 = pneg %p125
      $region26: #{tpu_custom_call.1} parent=11 // pred_check_branch
        %261 = sbr.rel (%p259) target = $region28
      $region27: #{tpu_custom_call.1} parent=11 // pred_region
        _
      $region28: #{tpu_custom_call.1} parent=11 // pred_fallthru
        _
      // Predicated region
      $region29: #{tpu_custom_call.1} parent=11 // pred_check
        %p262 = pneg %p146
      $region30: #{tpu_custom_call.1} parent=11 // pred_check_branch
        %264 = sbr.rel (%p262) target = $region32
      $region31: #{tpu_custom_call.1} parent=11 // pred_region
        _
      $region32: #{tpu_custom_call.1} parent=11 // pred_fallthru
        _
      // Predicated region
      $region33: #{tpu_custom_call.1} parent=11 // pred_check
        %p265 = pneg %p167
      $region34: #{tpu_custom_call.1} parent=11 // pred_check_branch
        %267 = sbr.rel (%p265) target = $region36
      $region35: #{tpu_custom_call.1} parent=11 // pred_region
        _
      $region36: #{tpu_custom_call.1} parent=11 // pred_fallthru
        _
      // Predicated region
      $region37: #{tpu_custom_call.1} parent=11 // pred_check
        %p268 = pneg %p188
      $region38: #{tpu_custom_call.1} parent=11 // pred_check_branch
        %270 = sbr.rel (%p268) target = $region40
      $region39: #{tpu_custom_call.1} parent=11 // pred_region
        _
      $region40: #{tpu_custom_call.1} parent=11 // pred_fallthru
        _
      // Predicated region
      $region41: #{tpu_custom_call.1} parent=11 // pred_check
        %p271 = pneg %p209
      $region42: #{tpu_custom_call.1} parent=11 // pred_check_branch
        %273 = sbr.rel (%p271) target = $region44
      $region43: #{tpu_custom_call.1} parent=11 // pred_region
        _
      $region44: #{tpu_custom_call.1} parent=11 // pred_fallthru
        _
    $region12: #{tpu_custom_call.1} parent=5 // pred_fallthru
      _
    %p274 = scmp.lt.s32.totalorder %s15, 2
    // Predicated region
    $region45: #{tpu_custom_call.1} parent=5 // pred_check
      %p275 = pneg %p274
    $region46: #{tpu_custom_call.1} parent=5 // pred_check_branch
      %277 = sbr.rel (%p275) target = $region48
    $region47: #{tpu_custom_call.1} parent=5 // pred_region
      // Predicated region
      $region49: #{tpu_custom_call.1} parent=47 // pred_check
        %p278 = pneg %p35
      $region50: #{tpu_custom_call.1} parent=47 // pred_check_branch
        %280 = sbr.rel (%p278) target = $region52
      $region51: #{tpu_custom_call.1} parent=47 // pred_region
        %s281 = smul.u32 16, %s15
        %p282 = scmp.lt.s32.totalorder %s281, 31
        %s283 = scalar_select %p282, %s281, 31
        %s284 = smul.addr %s283, 7
        %s285 = smul.addr %s284, 4
        %s286 = scalar_lea.vmem %s0, %s285
        %s287 = smul.u32 16, %s15
      $region52: #{tpu_custom_call.1} parent=47 // pred_fallthru
        _
    $region48: #{tpu_custom_call.1} parent=5 // pred_fallthru
      _
    %p288 = scmp.le.s32.totalorder 1, %s15
    %p289 = scmp.lt.s32.totalorder %s15, 3
    %p290 = pnand %p288, %p289
    %p291 = pneg %p290
    // Predicated region
    $region53: #{tpu_custom_call.1} parent=5 // pred_check
      _
    $region54: #{tpu_custom_call.1} parent=5 // pred_check_branch
      %293 = sbr.rel (%p290) target = $region56
    $region55: #{tpu_custom_call.1} parent=5 // pred_region
      %s294 = ssub.s32 %s15, 1
      %s295 = smul.u32 16, %s20
      %p296 = scmp.lt.s32.totalorder %s295, 31
      %s297 = scalar_select %p296, %s295, 31
      %s298 = smul.addr %s297, 7
      %s299 = smul.addr %s298, 4
      %s300 = scalar_lea.vmem %s0, %s299
      %p301 = pneg %p41
      %p302 = pneg %p38
      %p303 = pneg %p62
      %p304 = pneg %p59
      %p305 = pneg %p83
      %p306 = pneg %p80
      %p307 = pneg %p104
      %p308 = pneg %p101
      %p309 = pneg %p125
      %p310 = pneg %p122
      %p311 = pneg %p146
      %p312 = pneg %p143
      %p313 = pneg %p167
      %p314 = pneg %p164
      %p315 = pneg %p188
      %p316 = pneg %p185
      %p317 = pneg %p209
      %p318 = pneg %p206
      %p319 = pneg %p235
      %p320 = pneg %p232
      %s321 = smul.u32 16, %s20
      %p322 = scmp.lt.s32.totalorder %s321, 31
      %s323 = scalar_select %p322, %s321, 31
      %s324 = smul.addr %s323, 7
      %s325 = smul.addr %s324, 8
      %s326 = scalar_lea.vmem %s9, %s325
      %s327 = smul.u32 16, %s20
      %p328 = scmp.lt.s32.totalorder %s327, 31
      %s329 = scalar_select %p328, %s327, 31
      %s330 = smul.addr %s329, 7
      %s331 = smul.addr %s330, 4
      %s332 = scalar_lea.vmem %s0, %s331
      %s333 = smul.u32 16, %s20
      %s334 = smul.u32 16, %s20
      %p335 = scmp.lt.s32.totalorder %s334, 31
      %s336 = scalar_select %p335, %s334, 31
      %s337 = smul.addr %s336, 7
      %s338 = smul.addr %s337, 8
      %s339 = scalar_lea.vmem %s9, %s338
      %s340 = smul.u32 16, %s20
      %v342 = vld [vmem:[%s332] sm:$0xff]
      %v343 = vld [vmem:[%s332 + $0x8] sm:$0xff]
      %v344 = vld [vmem:[%s332 + $0x10] sm:$0xff]
      %v345 = vld [vmem:[%s332 + $0x18] sm:$0xf]
      %v346 = vld [vmem:[%s332 + $0x1c] sm:$0xff]
      %v347 = vld [vmem:[%s332 + $0x24] sm:$0xff]
      %v348 = vld [vmem:[%s332 + $0x2c] sm:$0xff]
      %v349 = vld [vmem:[%s332 + $0x34] sm:$0xf]
      %v350 = vld [vmem:[%s332 + $0x38] sm:$0xff]
      %v351 = vld [vmem:[%s332 + $0x40] sm:$0xff]
      %v352 = vld [vmem:[%s332 + $0x48] sm:$0xff]
      %v353 = vld [vmem:[%s332 + $0x50] sm:$0xf]
      %v354 = vld [vmem:[%s332 + $0x54] sm:$0xff]
      %v355 = vld [vmem:[%s332 + $0x5c] sm:$0xff]
      %v356 = vld [vmem:[%s332 + $0x64] sm:$0xff]
      %v357 = vld [vmem:[%s332 + $0x6c] sm:$0xf]
      %v358 = vld [vmem:[%s332 + $0x70] sm:$0xff]
      %v359 = vld [vmem:[%s332 + $0x78] sm:$0xff]
      %v360 = vld [vmem:[%s332 + $0x80] sm:$0xff]
      %v361 = vld [vmem:[%s332 + $0x88] sm:$0xf]
      %v362 = vld [vmem:[%s332 + $0x8c] sm:$0xff]
      %v363 = vld [vmem:[%s332 + $0x94] sm:$0xff]
      %v364 = vld [vmem:[%s332 + $0x9c] sm:$0xff]
      %v365 = vld [vmem:[%s332 + $0xa4] sm:$0xf]
      %v366 = vld [vmem:[%s332 + $0xa8] sm:$0xff]
      %v367 = vld [vmem:[%s332 + $0xb0] sm:$0xff]
      %v368 = vld [vmem:[%s332 + $0xb8] sm:$0xff]
      %v369 = vld [vmem:[%s332 + $0xc0] sm:$0xf]
      %v370 = vld [vmem:[%s332 + $0xc4] sm:$0xff]
      %v371 = vld [vmem:[%s332 + $0xcc] sm:$0xff]
      %v372 = vld [vmem:[%s332 + $0xd4] sm:$0xff]
      %v373 = vld [vmem:[%s332 + $0xdc] sm:$0xf]
      %v374 = vld [vmem:[%s332 + $0xe0] sm:$0xff]
      %v375 = vld [vmem:[%s332 + $0xe8] sm:$0xff]
      %v376 = vld [vmem:[%s332 + $0xf0] sm:$0xff]
      %v377 = vld [vmem:[%s332 + $0xf8] sm:$0xf]
      %v378 = vld [vmem:[%s332 + $0xfc] sm:$0xff]
      %v379 = vld [vmem:[%s332 + $0x104] sm:$0xff]
      %v380 = vld [vmem:[%s332 + $0x10c] sm:$0xff]
      %v381 = vld [vmem:[%s332 + $0x114] sm:$0xf]
      %v382 = vld [vmem:[%s332 + $0x118] sm:$0xff]
      %v383 = vld [vmem:[%s332 + $0x120] sm:$0xff]
      %v384 = vld [vmem:[%s332 + $0x128] sm:$0xff]
      %v385 = vld [vmem:[%s332 + $0x130] sm:$0xf]
      %v386 = vld [vmem:[%s332 + $0x134] sm:$0xff]
      %v387 = vld [vmem:[%s332 + $0x13c] sm:$0xff]
      %v388 = vld [vmem:[%s332 + $0x144] sm:$0xff]
      %v389 = vld [vmem:[%s332 + $0x14c] sm:$0xf]
      %v390 = vld [vmem:[%s332 + $0x150] sm:$0xff]
      %v391 = vld [vmem:[%s332 + $0x158] sm:$0xff]
      %v392 = vld [vmem:[%s332 + $0x160] sm:$0xff]
      %v393 = vld [vmem:[%s332 + $0x168] sm:$0xf]
      %v394 = vld [vmem:[%s332 + $0x16c] sm:$0xff]
      %v395 = vld [vmem:[%s332 + $0x174] sm:$0xff]
      %v396 = vld [vmem:[%s332 + $0x17c] sm:$0xff]
      %v397 = vld [vmem:[%s332 + $0x184] sm:$0xf]
      %v398 = vld [vmem:[%s332 + $0x188] sm:$0xff]
      %v399 = vld [vmem:[%s332 + $0x190] sm:$0xff]
      %v400 = vld [vmem:[%s332 + $0x198] sm:$0xff]
      %v401 = vld [vmem:[%s332 + $0x1a0] sm:$0xf]
      %v402 = vld [vmem:[%s332 + $0x1a4] sm:$0xff]
      %v403 = vld [vmem:[%s332 + $0x1ac] sm:$0xff]
      %v404 = vld [vmem:[%s332 + $0x1b4] sm:$0xff]
      %v405 = vld [vmem:[%s332 + $0x1bc] sm:$0xf]
      %v406 = vld [vmem:[%s1] sm:$0xff]
      %v407 = vld [vmem:[%s1 + $0x8] sm:$0xff]
      %v408 = vld [vmem:[%s1 + $0x10] sm:$0xff]
      %v409 = vld [vmem:[%s1 + $0x18] sm:$0xff]
      %v410 = vld [vmem:[%s1 + $0x20] sm:$0xff]
      %v411 = vld [vmem:[%s1 + $0x28] sm:$0xff]
      %v412 = vld [vmem:[%s1 + $0x30] sm:$0xff]
      %v413 = vld [vmem:[%s1 + $0x38] sm:$0xff]
      %v414 = vld [vmem:[%s1 + $0x40] sm:$0xff]
      %v415 = vld [vmem:[%s1 + $0x48] sm:$0xff]
      %v416 = vld [vmem:[%s1 + $0x50] sm:$0xff]
      %v417 = vld [vmem:[%s1 + $0x58] sm:$0xff]
      %v418 = vld [vmem:[%s1 + $0x60] sm:$0xff]
      %v419 = vld [vmem:[%s1 + $0x68] sm:$0xff]
      %v420 = vld [vmem:[%s1 + $0x70] sm:$0xff]
      %v421 = vld [vmem:[%s1 + $0x78] sm:$0xff]
      %v422 = vld [vmem:[%s1 + $0x80] sm:$0xff]
      %v423 = vld [vmem:[%s1 + $0x88] sm:$0xff]
      %v424 = vld [vmem:[%s1 + $0x90] sm:$0xff]
      %v425 = vld [vmem:[%s1 + $0x98] sm:$0xff]
      %v426 = vld [vmem:[%s1 + $0xa0] sm:$0xff]
      %v427 = vld [vmem:[%s1 + $0xa8] sm:$0xff]
      %v428 = vld [vmem:[%s1 + $0xb0] sm:$0xff]
      %v429 = vld [vmem:[%s1 + $0xb8] sm:$0xff]
      %v430 = vld [vmem:[%s1 + $0xc0] sm:$0xff]
      %v431 = vld [vmem:[%s1 + $0xc8] sm:$0xff]
      %v432 = vld [vmem:[%s1 + $0xd0] sm:$0xff]
      %v433 = vld [vmem:[%s1 + $0xd8] sm:$0xff]
      %v434 = vld [vmem:[%s1 + $0xe0] sm:$0xff]
      %v435 = vld [vmem:[%s1 + $0xe8] sm:$0xff]
      %v436 = vld [vmem:[%s1 + $0xf0] sm:$0xff]
      %v437 = vld [vmem:[%s1 + $0xf8] sm:$0xff]
      %v438 = vld [vmem:[%s1 + $0x100] sm:$0xff]
      %v439 = vld [vmem:[%s1 + $0x108] sm:$0xff]
      %v440 = vld [vmem:[%s1 + $0x110] sm:$0xff]
      %v441 = vld [vmem:[%s1 + $0x118] sm:$0xff]
      %v442 = vld [vmem:[%s1 + $0x120] sm:$0xff]
      %v443 = vld [vmem:[%s1 + $0x128] sm:$0xff]
      %v444 = vld [vmem:[%s1 + $0x130] sm:$0xff]
      %v445 = vld [vmem:[%s1 + $0x138] sm:$0xff]
      %v446 = vld [vmem:[%s1 + $0x140] sm:$0xff]
      %v447 = vld [vmem:[%s1 + $0x148] sm:$0xff]
      %v448 = vld [vmem:[%s1 + $0x150] sm:$0xff]
      %v449 = vld [vmem:[%s1 + $0x158] sm:$0xff]
      %v450 = vld [vmem:[%s1 + $0x160] sm:$0xff]
      %v451 = vld [vmem:[%s1 + $0x168] sm:$0xff]
      %v452 = vld [vmem:[%s1 + $0x170] sm:$0xff]
      %v453 = vld [vmem:[%s1 + $0x178] sm:$0xff]
      %v454 = vld [vmem:[%s1 + $0x180] sm:$0xff]
      %v455 = vld [vmem:[%s1 + $0x188] sm:$0xff]
      %v456 = vld [vmem:[%s1 + $0x190] sm:$0xff]
      %v457 = vld [vmem:[%s1 + $0x198] sm:$0xff]
      %v458 = vld [vmem:[%s1 + $0x1a0] sm:$0xff]
      %v459 = vld [vmem:[%s1 + $0x1a8] sm:$0xff]
      %v460 = vld [vmem:[%s1 + $0x1b0] sm:$0xff]
      %v461 = vld [vmem:[%s1 + $0x1b8] sm:$0xff]
      %v462 = vld [vmem:[%s1 + $0x1c0] sm:$0xff]
      %v463 = vld [vmem:[%s1 + $0x1c8] sm:$0xff]
      %v464 = vld [vmem:[%s1 + $0x1d0] sm:$0xff]
      %v465 = vld [vmem:[%s1 + $0x1d8] sm:$0xff]
      %v466 = vld [vmem:[%s1 + $0x1e0] sm:$0xff]
      %v467 = vld [vmem:[%s1 + $0x1e8] sm:$0xff]
      %v468 = vld [vmem:[%s1 + $0x1f0] sm:$0xff]
      %v469 = vld [vmem:[%s1 + $0x1f8] sm:$0xff]
      %v470 = vld [vmem:[%s1 + $0x200] sm:$0xff]
      %v471 = vld [vmem:[%s1 + $0x208] sm:$0xff]
      %v472 = vld [vmem:[%s1 + $0x210] sm:$0xff]
      %v473 = vld [vmem:[%s1 + $0x218] sm:$0xff]
      %v474 = vld [vmem:[%s1 + $0x220] sm:$0xff]
      %v475 = vld [vmem:[%s1 + $0x228] sm:$0xff]
      %v476 = vld [vmem:[%s1 + $0x230] sm:$0xff]
      %v477 = vld [vmem:[%s1 + $0x238] sm:$0xff]
      %v478 = vld [vmem:[%s1 + $0x240] sm:$0xff]
      %v479 = vld [vmem:[%s1 + $0x248] sm:$0xff]
      %v480 = vld [vmem:[%s1 + $0x250] sm:$0xff]
      %v481 = vld [vmem:[%s1 + $0x258] sm:$0xff]
      %v482 = vld [vmem:[%s1 + $0x260] sm:$0xff]
      %v483 = vld [vmem:[%s1 + $0x268] sm:$0xff]
      %v484 = vld [vmem:[%s1 + $0x270] sm:$0xff]
      %v485 = vld [vmem:[%s1 + $0x278] sm:$0xff]
      %v486 = vld [vmem:[%s1 + $0x280] sm:$0xff]
      %v487 = vld [vmem:[%s1 + $0x288] sm:$0xff]
      %v488 = vld [vmem:[%s1 + $0x290] sm:$0xff]
      %v489 = vld [vmem:[%s1 + $0x298] sm:$0xff]
      %v490 = vld [vmem:[%s1 + $0x2a0] sm:$0xff]
      %v491 = vld [vmem:[%s1 + $0x2a8] sm:$0xff]
      %v492 = vld [vmem:[%s1 + $0x2b0] sm:$0xff]
      %v493 = vld [vmem:[%s1 + $0x2b8] sm:$0xff]
      %v494 = vld [vmem:[%s1 + $0x2c0] sm:$0xff]
      %v495 = vld [vmem:[%s1 + $0x2c8] sm:$0xff]
      %v496 = vld [vmem:[%s1 + $0x2d0] sm:$0xff]
      %v497 = vld [vmem:[%s1 + $0x2d8] sm:$0xff]
      %v498 = vld [vmem:[%s1 + $0x2e0] sm:$0xff]
      %v499 = vld [vmem:[%s1 + $0x2e8] sm:$0xff]
      %v500 = vld [vmem:[%s1 + $0x2f0] sm:$0xff]
      %v501 = vld [vmem:[%s1 + $0x2f8] sm:$0xff]
      %v502 = vld [vmem:[%s1 + $0x300] sm:$0xff]
      %v503 = vld [vmem:[%s1 + $0x308] sm:$0xff]
      %v504 = vld [vmem:[%s1 + $0x310] sm:$0xff]
      %v505 = vld [vmem:[%s1 + $0x318] sm:$0xff]
      %v506 = vld [vmem:[%s1 + $0x320] sm:$0xff]
      %v507 = vld [vmem:[%s1 + $0x328] sm:$0xff]
      %v508 = vld [vmem:[%s1 + $0x330] sm:$0xff]
      %v509 = vld [vmem:[%s1 + $0x338] sm:$0xff]
      %v510 = vld [vmem:[%s1 + $0x340] sm:$0xff]
      %v511 = vld [vmem:[%s1 + $0x348] sm:$0xff]
      %v512 = vld [vmem:[%s1 + $0x350] sm:$0xff]
      %v513 = vld [vmem:[%s1 + $0x358] sm:$0xff]
      %v514 = vld [vmem:[%s1 + $0x360] sm:$0xff]
      %v515 = vld [vmem:[%s1 + $0x368] sm:$0xff]
      %v516 = vld [vmem:[%s1 + $0x370] sm:$0xff]
      %v517 = vld [vmem:[%s1 + $0x378] sm:$0xff]
      %v518 = vld [vmem:[%s1 + $0x380] sm:$0xff]
      %v519 = vld [vmem:[%s1 + $0x388] sm:$0xff]
      %v520 = vld [vmem:[%s1 + $0x390] sm:$0xff]
      %v521 = vld [vmem:[%s1 + $0x398] sm:$0xff]
      %v522 = vld [vmem:[%s1 + $0x3a0] sm:$0xff]
      %v523 = vld [vmem:[%s1 + $0x3a8] sm:$0xff]
      %v524 = vld [vmem:[%s1 + $0x3b0] sm:$0xff]
      %v525 = vld [vmem:[%s1 + $0x3b8] sm:$0xff]
      %v526 = vld [vmem:[%s1 + $0x3c0] sm:$0xff]
      %v527 = vld [vmem:[%s1 + $0x3c8] sm:$0xff]
      %v528 = vld [vmem:[%s1 + $0x3d0] sm:$0xff]
      %v529 = vld [vmem:[%s1 + $0x3d8] sm:$0xff]
      %v530 = vld [vmem:[%s1 + $0x3e0] sm:$0xff]
      %v531 = vld [vmem:[%s1 + $0x3e8] sm:$0xff]
      %v532 = vld [vmem:[%s1 + $0x3f0] sm:$0xff]
      %v533 = vld [vmem:[%s1 + $0x3f8] sm:$0xff]
      %v534 = vld [vmem:[%s1 + $0x400] sm:$0xff]
      %v535 = vld [vmem:[%s1 + $0x408] sm:$0xff]
      %v536 = vld [vmem:[%s1 + $0x410] sm:$0xff]
      %v537 = vld [vmem:[%s1 + $0x418] sm:$0xff]
      %v538 = vld [vmem:[%s1 + $0x420] sm:$0xff]
      %v539 = vld [vmem:[%s1 + $0x428] sm:$0xff]
      %v540 = vld [vmem:[%s1 + $0x430] sm:$0xff]
      %v541 = vld [vmem:[%s1 + $0x438] sm:$0xff]
      %v542 = vld [vmem:[%s1 + $0x440] sm:$0xff]
      %v543 = vld [vmem:[%s1 + $0x448] sm:$0xff]
      %v544 = vld [vmem:[%s1 + $0x450] sm:$0xff]
      %v545 = vld [vmem:[%s1 + $0x458] sm:$0xff]
      %v546 = vld [vmem:[%s1 + $0x460] sm:$0xff]
      %v547 = vld [vmem:[%s1 + $0x468] sm:$0xff]
      %v548 = vld [vmem:[%s1 + $0x470] sm:$0xff]
      %v549 = vld [vmem:[%s1 + $0x478] sm:$0xff]
      %v550 = vld [vmem:[%s1 + $0x480] sm:$0xff]
      %v551 = vld [vmem:[%s1 + $0x488] sm:$0xff]
      %v552 = vld [vmem:[%s1 + $0x490] sm:$0xff]
      %v553 = vld [vmem:[%s1 + $0x498] sm:$0xff]
      %v554 = vld [vmem:[%s1 + $0x4a0] sm:$0xff]
      %v555 = vld [vmem:[%s1 + $0x4a8] sm:$0xff]
      %v556 = vld [vmem:[%s1 + $0x4b0] sm:$0xff]
      %v557 = vld [vmem:[%s1 + $0x4b8] sm:$0xff]
      %v558 = vld [vmem:[%s1 + $0x4c0] sm:$0xff]
      %v559 = vld [vmem:[%s1 + $0x4c8] sm:$0xff]
      %v560 = vld [vmem:[%s1 + $0x4d0] sm:$0xff]
      %v561 = vld [vmem:[%s1 + $0x4d8] sm:$0xff]
      %v562 = vld [vmem:[%s1 + $0x4e0] sm:$0xff]
      %v563 = vld [vmem:[%s1 + $0x4e8] sm:$0xff]
      %v564 = vld [vmem:[%s1 + $0x4f0] sm:$0xff]
      %v565 = vld [vmem:[%s1 + $0x4f8] sm:$0xff]
      %v566 = vld [vmem:[%s1 + $0x500] sm:$0xff]
      %v567 = vld [vmem:[%s1 + $0x508] sm:$0xff]
      %v568 = vld [vmem:[%s1 + $0x510] sm:$0xff]
      %v569 = vld [vmem:[%s1 + $0x518] sm:$0xff]
      %v570 = vld [vmem:[%s1 + $0x520] sm:$0xff]
      %v571 = vld [vmem:[%s1 + $0x528] sm:$0xff]
      %v572 = vld [vmem:[%s1 + $0x530] sm:$0xff]
      %v573 = vld [vmem:[%s1 + $0x538] sm:$0xff]
      %v574 = vld [vmem:[%s1 + $0x540] sm:$0xff]
      %v575 = vld [vmem:[%s1 + $0x548] sm:$0xff]
      %v576 = vld [vmem:[%s1 + $0x550] sm:$0xff]
      %v577 = vld [vmem:[%s1 + $0x558] sm:$0xff]
      %v578 = vld [vmem:[%s1 + $0x560] sm:$0xff]
      %v579 = vld [vmem:[%s1 + $0x568] sm:$0xff]
      %v580 = vld [vmem:[%s1 + $0x570] sm:$0xff]
      %v581 = vld [vmem:[%s1 + $0x578] sm:$0xff]
      %v582 = vld [vmem:[%s1 + $0x580] sm:$0xff]
      %v583 = vld [vmem:[%s1 + $0x588] sm:$0xff]
      %v584 = vld [vmem:[%s1 + $0x590] sm:$0xff]
      %v585 = vld [vmem:[%s1 + $0x598] sm:$0xff]
      %v586 = vld [vmem:[%s1 + $0x5a0] sm:$0xff]
      %v587 = vld [vmem:[%s1 + $0x5a8] sm:$0xff]
      %v588 = vld [vmem:[%s1 + $0x5b0] sm:$0xff]
      %v589 = vld [vmem:[%s1 + $0x5b8] sm:$0xff]
      %v590 = vld [vmem:[%s1 + $0x5c0] sm:$0xff]
      %v591 = vld [vmem:[%s1 + $0x5c8] sm:$0xff]
      %v592 = vld [vmem:[%s1 + $0x5d0] sm:$0xff]
      %v593 = vld [vmem:[%s1 + $0x5d8] sm:$0xff]
      %v594 = vld [vmem:[%s1 + $0x5e0] sm:$0xff]
      %v595 = vld [vmem:[%s1 + $0x5e8] sm:$0xff]
      %v596 = vld [vmem:[%s1 + $0x5f0] sm:$0xff]
      %v597 = vld [vmem:[%s1 + $0x5f8] sm:$0xff]
      %v598 = vld [vmem:[%s1 + $0x600] sm:$0xff]
      %v599 = vld [vmem:[%s1 + $0x608] sm:$0xff]
      %v600 = vld [vmem:[%s1 + $0x610] sm:$0xff]
      %v601 = vld [vmem:[%s1 + $0x618] sm:$0xff]
      %v602 = vld [vmem:[%s2] sm:$0xf]
      %v604 = vlaneseq
      %v605 = vshrl.u32 %v604, 7
      %v606 = vsub.s32 0, %v605
      %v607 = vrot.slane %v602, %v606
      %v608 = vlaneseq
      %v609 = vshrl.u32 %v608, 7
      %v610 = vsub.s32 1, %v609
      %v611 = vrot.slane %v602, %v610
      %v612 = vlaneseq
      %v613 = vshrl.u32 %v612, 7
      %v614 = vsub.s32 2, %v613
      %v615 = vrot.slane %v602, %v614
      %v616 = vlaneseq
      %v617 = vshrl.u32 %v616, 7
      %v618 = vsub.s32 3, %v617
      %v619 = vrot.slane %v602, %v618
      %v688 = vunpack.c.l.b16 %v342
      %v689 = vunpack.c.h.b16 %v342
      %v690 = vunpack.c.l.b16 %v343
      %v691 = vunpack.c.h.b16 %v343
      %v692 = vunpack.c.l.b16 %v344
      %v693 = vunpack.c.h.b16 %v344
      %v694 = vunpack.c.l.b16 %v345
      %v695 = vunpack.c.l.b16 %v346
      %v696 = vunpack.c.h.b16 %v346
      %v697 = vunpack.c.l.b16 %v347
      %v698 = vunpack.c.h.b16 %v347
      %v699 = vunpack.c.l.b16 %v348
      %v700 = vunpack.c.h.b16 %v348
      %v701 = vunpack.c.l.b16 %v349
      %v702 = vunpack.c.l.b16 %v350
      %v703 = vunpack.c.h.b16 %v350
      %v704 = vunpack.c.l.b16 %v351
      %v705 = vunpack.c.h.b16 %v351
      %v706 = vunpack.c.l.b16 %v352
      %v707 = vunpack.c.h.b16 %v352
      %v708 = vunpack.c.l.b16 %v353
      %v709 = vunpack.c.l.b16 %v354
      %v710 = vunpack.c.h.b16 %v354
      %v711 = vunpack.c.l.b16 %v355
      %v712 = vunpack.c.h.b16 %v355
      %v713 = vunpack.c.l.b16 %v356
      %v714 = vunpack.c.h.b16 %v356
      %v715 = vunpack.c.l.b16 %v357
      %v716 = vunpack.c.l.b16 %v358
      %v717 = vunpack.c.h.b16 %v358
      %v718 = vunpack.c.l.b16 %v359
      %v719 = vunpack.c.h.b16 %v359
      %v720 = vunpack.c.l.b16 %v360
      %v721 = vunpack.c.h.b16 %v360
      %v722 = vunpack.c.l.b16 %v361
      %v723 = vunpack.c.l.b16 %v362
      %v724 = vunpack.c.h.b16 %v362
      %v725 = vunpack.c.l.b16 %v363
      %v726 = vunpack.c.h.b16 %v363
      %v727 = vunpack.c.l.b16 %v364
      %v728 = vunpack.c.h.b16 %v364
      %v729 = vunpack.c.l.b16 %v365
      %v730 = vunpack.c.l.b16 %v366
      %v731 = vunpack.c.h.b16 %v366
      %v732 = vunpack.c.l.b16 %v367
      %v733 = vunpack.c.h.b16 %v367
      %v734 = vunpack.c.l.b16 %v368
      %v735 = vunpack.c.h.b16 %v368
      %v736 = vunpack.c.l.b16 %v369
      %v737 = vunpack.c.l.b16 %v370
      %v738 = vunpack.c.h.b16 %v370
      %v739 = vunpack.c.l.b16 %v371
      %v740 = vunpack.c.h.b16 %v371
      %v741 = vunpack.c.l.b16 %v372
      %v742 = vunpack.c.h.b16 %v372
      %v743 = vunpack.c.l.b16 %v373
      %v744 = vunpack.c.l.b16 %v374
      %v745 = vunpack.c.h.b16 %v374
      %v746 = vunpack.c.l.b16 %v375
      %v747 = vunpack.c.h.b16 %v375
      %v748 = vunpack.c.l.b16 %v376
      %v749 = vunpack.c.h.b16 %v376
      %v750 = vunpack.c.l.b16 %v377
      %v751 = vunpack.c.l.b16 %v378
      %v752 = vunpack.c.h.b16 %v378
      %v753 = vunpack.c.l.b16 %v379
      %v754 = vunpack.c.h.b16 %v379
      %v755 = vunpack.c.l.b16 %v380
      %v756 = vunpack.c.h.b16 %v380
      %v757 = vunpack.c.l.b16 %v381
      %v758 = vunpack.c.l.b16 %v382
      %v759 = vunpack.c.h.b16 %v382
      %v760 = vunpack.c.l.b16 %v383
      %v761 = vunpack.c.h.b16 %v383
      %v762 = vunpack.c.l.b16 %v384
      %v763 = vunpack.c.h.b16 %v384
      %v764 = vunpack.c.l.b16 %v385
      %v765 = vunpack.c.l.b16 %v386
      %v766 = vunpack.c.h.b16 %v386
      %v767 = vunpack.c.l.b16 %v387
      %v768 = vunpack.c.h.b16 %v387
      %v769 = vunpack.c.l.b16 %v388
      %v770 = vunpack.c.h.b16 %v388
      %v771 = vunpack.c.l.b16 %v389
      %v772 = vunpack.c.l.b16 %v390
      %v773 = vunpack.c.h.b16 %v390
      %v774 = vunpack.c.l.b16 %v391
      %v775 = vunpack.c.h.b16 %v391
      %v776 = vunpack.c.l.b16 %v392
      %v777 = vunpack.c.h.b16 %v392
      %v778 = vunpack.c.l.b16 %v393
      %v779 = vunpack.c.l.b16 %v394
      %v780 = vunpack.c.h.b16 %v394
      %v781 = vunpack.c.l.b16 %v395
      %v782 = vunpack.c.h.b16 %v395
      %v783 = vunpack.c.l.b16 %v396
      %v784 = vunpack.c.h.b16 %v396
      %v785 = vunpack.c.l.b16 %v397
      %v786 = vunpack.c.l.b16 %v398
      %v787 = vunpack.c.h.b16 %v398
      %v788 = vunpack.c.l.b16 %v399
      %v789 = vunpack.c.h.b16 %v399
      %v790 = vunpack.c.l.b16 %v400
      %v791 = vunpack.c.h.b16 %v400
      %v792 = vunpack.c.l.b16 %v401
      %v793 = vunpack.c.l.b16 %v402
      %v794 = vunpack.c.h.b16 %v402
      %v795 = vunpack.c.l.b16 %v403
      %v796 = vunpack.c.h.b16 %v403
      %v797 = vunpack.c.l.b16 %v404
      %v798 = vunpack.c.h.b16 %v404
      %v799 = vunpack.c.l.b16 %v405
      %v800 = vpack.c.b16 %v695, %v688
      %v801 = vpack.c.b16 %v696, %v689
      %v802 = vpack.c.b16 %v697, %v690
      %v803 = vpack.c.b16 %v698, %v691
      %v804 = vpack.c.b16 %v699, %v692
      %v805 = vpack.c.b16 %v700, %v693
      %v806 = vpack.c.b16 %v701, %v694
      %v807 = vpack.c.b16 %v709, %v702
      %v808 = vpack.c.b16 %v710, %v703
      %v809 = vpack.c.b16 %v711, %v704
      %v810 = vpack.c.b16 %v712, %v705
      %v811 = vpack.c.b16 %v713, %v706
      %v812 = vpack.c.b16 %v714, %v707
      %v813 = vpack.c.b16 %v715, %v708
      %v814 = vpack.c.b16 %v723, %v716
      %v815 = vpack.c.b16 %v724, %v717
      %v816 = vpack.c.b16 %v725, %v718
      %v817 = vpack.c.b16 %v726, %v719
      %v818 = vpack.c.b16 %v727, %v720
      %v819 = vpack.c.b16 %v728, %v721
      %v820 = vpack.c.b16 %v729, %v722
      %v821 = vpack.c.b16 %v737, %v730
      %v822 = vpack.c.b16 %v738, %v731
      %v823 = vpack.c.b16 %v739, %v732
      %v824 = vpack.c.b16 %v740, %v733
      %v825 = vpack.c.b16 %v741, %v734
      %v826 = vpack.c.b16 %v742, %v735
      %v827 = vpack.c.b16 %v743, %v736
      %v828 = vpack.c.b16 %v751, %v744
      %v829 = vpack.c.b16 %v752, %v745
      %v830 = vpack.c.b16 %v753, %v746
      %v831 = vpack.c.b16 %v754, %v747
      %v832 = vpack.c.b16 %v755, %v748
      %v833 = vpack.c.b16 %v756, %v749
      %v834 = vpack.c.b16 %v757, %v750
      %v835 = vpack.c.b16 %v765, %v758
      %v836 = vpack.c.b16 %v766, %v759
      %v837 = vpack.c.b16 %v767, %v760
      %v838 = vpack.c.b16 %v768, %v761
      %v839 = vpack.c.b16 %v769, %v762
      %v840 = vpack.c.b16 %v770, %v763
      %v841 = vpack.c.b16 %v771, %v764
      %v842 = vpack.c.b16 %v779, %v772
      %v843 = vpack.c.b16 %v780, %v773
      %v844 = vpack.c.b16 %v781, %v774
      %v845 = vpack.c.b16 %v782, %v775
      %v846 = vpack.c.b16 %v783, %v776
      %v847 = vpack.c.b16 %v784, %v777
      %v848 = vpack.c.b16 %v785, %v778
      %v849 = vpack.c.b16 %v793, %v786
      %v850 = vpack.c.b16 %v794, %v787
      %v851 = vpack.c.b16 %v795, %v788
      %v852 = vpack.c.b16 %v796, %v789
      %v853 = vpack.c.b16 %v797, %v790
      %v854 = vpack.c.b16 %v798, %v791
      %v855 = vpack.c.b16 %v799, %v792
      %v1100 = vunpack.c.l.b16 %v406
      %v1101 = vunpack.c.h.b16 %v406
      %v1102 = vunpack.c.l.b16 %v407
      %v1103 = vunpack.c.h.b16 %v407
      %v1104 = vunpack.c.l.b16 %v408
      %v1105 = vunpack.c.h.b16 %v408
      %v1106 = vunpack.c.l.b16 %v409
      %v1107 = vunpack.c.h.b16 %v409
      %v1108 = vunpack.c.l.b16 %v410
      %v1109 = vunpack.c.h.b16 %v410
      %v1110 = vunpack.c.l.b16 %v411
      %v1111 = vunpack.c.h.b16 %v411
      %v1112 = vunpack.c.l.b16 %v412
      %v1113 = vunpack.c.h.b16 %v412
      %v1114 = vunpack.c.l.b16 %v413
      %v1115 = vunpack.c.h.b16 %v413
      %v1116 = vunpack.c.l.b16 %v414
      %v1117 = vunpack.c.h.b16 %v414
      %v1118 = vunpack.c.l.b16 %v415
      %v1119 = vunpack.c.h.b16 %v415
      %v1120 = vunpack.c.l.b16 %v416
      %v1121 = vunpack.c.h.b16 %v416
      %v1122 = vunpack.c.l.b16 %v417
      %v1123 = vunpack.c.h.b16 %v417
      %v1124 = vunpack.c.l.b16 %v418
      %v1125 = vunpack.c.h.b16 %v418
      %v1126 = vunpack.c.l.b16 %v419
      %v1127 = vunpack.c.h.b16 %v419
      %v1128 = vunpack.c.l.b16 %v420
      %v1129 = vunpack.c.h.b16 %v420
      %v1130 = vunpack.c.l.b16 %v421
      %v1131 = vunpack.c.h.b16 %v421
      %v1132 = vunpack.c.l.b16 %v422
      %v1133 = vunpack.c.h.b16 %v422
      %v1134 = vunpack.c.l.b16 %v423
      %v1135 = vunpack.c.h.b16 %v423
      %v1136 = vunpack.c.l.b16 %v424
      %v1137 = vunpack.c.h.b16 %v424
      %v1138 = vunpack.c.l.b16 %v425
      %v1139 = vunpack.c.h.b16 %v425
      %v1140 = vunpack.c.l.b16 %v426
      %v1141 = vunpack.c.h.b16 %v426
      %v1142 = vunpack.c.l.b16 %v427
      %v1143 = vunpack.c.h.b16 %v427
      %v1144 = vunpack.c.l.b16 %v428
      %v1145 = vunpack.c.h.b16 %v428
      %v1146 = vunpack.c.l.b16 %v429
      %v1147 = vunpack.c.h.b16 %v429
      %v1148 = vunpack.c.l.b16 %v430
      %v1149 = vunpack.c.h.b16 %v430
      %v1150 = vunpack.c.l.b16 %v431
      %v1151 = vunpack.c.h.b16 %v431
      %v1152 = vunpack.c.l.b16 %v432
      %v1153 = vunpack.c.h.b16 %v432
      %v1154 = vunpack.c.l.b16 %v433
      %v1155 = vunpack.c.h.b16 %v433
      %v1156 = vunpack.c.l.b16 %v434
      %v1157 = vunpack.c.h.b16 %v434
      %v1158 = vunpack.c.l.b16 %v435
      %v1159 = vunpack.c.h.b16 %v435
      %v1160 = vunpack.c.l.b16 %v436
      %v1161 = vunpack.c.h.b16 %v436
      %v1162 = vunpack.c.l.b16 %v437
      %v1163 = vunpack.c.h.b16 %v437
      %v1164 = vunpack.c.l.b16 %v438
      %v1165 = vunpack.c.h.b16 %v438
      %v1166 = vunpack.c.l.b16 %v439
      %v1167 = vunpack.c.h.b16 %v439
      %v1168 = vunpack.c.l.b16 %v440
      %v1169 = vunpack.c.h.b16 %v440
      %v1170 = vunpack.c.l.b16 %v441
      %v1171 = vunpack.c.h.b16 %v441
      %v1172 = vunpack.c.l.b16 %v442
      %v1173 = vunpack.c.h.b16 %v442
      %v1174 = vunpack.c.l.b16 %v443
      %v1175 = vunpack.c.h.b16 %v443
      %v1176 = vunpack.c.l.b16 %v444
      %v1177 = vunpack.c.h.b16 %v444
      %v1178 = vunpack.c.l.b16 %v445
      %v1179 = vunpack.c.h.b16 %v445
      %v1180 = vunpack.c.l.b16 %v446
      %v1181 = vunpack.c.h.b16 %v446
      %v1182 = vunpack.c.l.b16 %v447
      %v1183 = vunpack.c.h.b16 %v447
      %v1184 = vunpack.c.l.b16 %v448
      %v1185 = vunpack.c.h.b16 %v448
      %v1186 = vunpack.c.l.b16 %v449
      %v1187 = vunpack.c.h.b16 %v449
      %v1188 = vunpack.c.l.b16 %v450
      %v1189 = vunpack.c.h.b16 %v450
      %v1190 = vunpack.c.l.b16 %v451
      %v1191 = vunpack.c.h.b16 %v451
      %v1192 = vunpack.c.l.b16 %v452
      %v1193 = vunpack.c.h.b16 %v452
      %v1194 = vunpack.c.l.b16 %v453
      %v1195 = vunpack.c.h.b16 %v453
      %v1196 = vunpack.c.l.b16 %v454
      %v1197 = vunpack.c.h.b16 %v454
      %v1198 = vunpack.c.l.b16 %v455
      %v1199 = vunpack.c.h.b16 %v455
      %v1200 = vunpack.c.l.b16 %v456
      %v1201 = vunpack.c.h.b16 %v456
      %v1202 = vunpack.c.l.b16 %v457
      %v1203 = vunpack.c.h.b16 %v457
      %v1204 = vunpack.c.l.b16 %v458
      %v1205 = vunpack.c.h.b16 %v458
      %v1206 = vunpack.c.l.b16 %v459
      %v1207 = vunpack.c.h.b16 %v459
      %v1208 = vunpack.c.l.b16 %v460
      %v1209 = vunpack.c.h.b16 %v460
      %v1210 = vunpack.c.l.b16 %v461
      %v1211 = vunpack.c.h.b16 %v461
      %v1212 = vunpack.c.l.b16 %v462
      %v1213 = vunpack.c.h.b16 %v462
      %v1214 = vunpack.c.l.b16 %v463
      %v1215 = vunpack.c.h.b16 %v463
      %v1216 = vunpack.c.l.b16 %v464
      %v1217 = vunpack.c.h.b16 %v464
      %v1218 = vunpack.c.l.b16 %v465
      %v1219 = vunpack.c.h.b16 %v465
      %v1220 = vunpack.c.l.b16 %v466
      %v1221 = vunpack.c.h.b16 %v466
      %v1222 = vunpack.c.l.b16 %v467
      %v1223 = vunpack.c.h.b16 %v467
      %v1224 = vunpack.c.l.b16 %v468
      %v1225 = vunpack.c.h.b16 %v468
      %v1226 = vunpack.c.l.b16 %v469
      %v1227 = vunpack.c.h.b16 %v469
      %v1228 = vunpack.c.l.b16 %v470
      %v1229 = vunpack.c.h.b16 %v470
      %v1230 = vunpack.c.l.b16 %v471
      %v1231 = vunpack.c.h.b16 %v471
      %v1232 = vunpack.c.l.b16 %v472
      %v1233 = vunpack.c.h.b16 %v472
      %v1234 = vunpack.c.l.b16 %v473
      %v1235 = vunpack.c.h.b16 %v473
      %v1236 = vunpack.c.l.b16 %v474
      %v1237 = vunpack.c.h.b16 %v474
      %v1238 = vunpack.c.l.b16 %v475
      %v1239 = vunpack.c.h.b16 %v475
      %v1240 = vunpack.c.l.b16 %v476
      %v1241 = vunpack.c.h.b16 %v476
      %v1242 = vunpack.c.l.b16 %v477
      %v1243 = vunpack.c.h.b16 %v477
      %v1244 = vunpack.c.l.b16 %v478
      %v1245 = vunpack.c.h.b16 %v478
      %v1246 = vunpack.c.l.b16 %v479
      %v1247 = vunpack.c.h.b16 %v479
      %v1248 = vunpack.c.l.b16 %v480
      %v1249 = vunpack.c.h.b16 %v480
      %v1250 = vunpack.c.l.b16 %v481
      %v1251 = vunpack.c.h.b16 %v481
      %v1252 = vunpack.c.l.b16 %v482
      %v1253 = vunpack.c.h.b16 %v482
      %v1254 = vunpack.c.l.b16 %v483
      %v1255 = vunpack.c.h.b16 %v483
      %v1256 = vunpack.c.l.b16 %v484
      %v1257 = vunpack.c.h.b16 %v484
      %v1258 = vunpack.c.l.b16 %v485
      %v1259 = vunpack.c.h.b16 %v485
      %v1260 = vunpack.c.l.b16 %v486
      %v1261 = vunpack.c.h.b16 %v486
      %v1262 = vunpack.c.l.b16 %v487
      %v1263 = vunpack.c.h.b16 %v487
      %v1264 = vunpack.c.l.b16 %v488
      %v1265 = vunpack.c.h.b16 %v488
      %v1266 = vunpack.c.l.b16 %v489
      %v1267 = vunpack.c.h.b16 %v489
      %v1268 = vunpack.c.l.b16 %v490
      %v1269 = vunpack.c.h.b16 %v490
      %v1270 = vunpack.c.l.b16 %v491
      %v1271 = vunpack.c.h.b16 %v491
      %v1272 = vunpack.c.l.b16 %v492
      %v1273 = vunpack.c.h.b16 %v492
      %v1274 = vunpack.c.l.b16 %v493
      %v1275 = vunpack.c.h.b16 %v493
      %v1276 = vunpack.c.l.b16 %v494
      %v1277 = vunpack.c.h.b16 %v494
      %v1278 = vunpack.c.l.b16 %v495
      %v1279 = vunpack.c.h.b16 %v495
      %v1280 = vunpack.c.l.b16 %v496
      %v1281 = vunpack.c.h.b16 %v496
      %v1282 = vunpack.c.l.b16 %v497
      %v1283 = vunpack.c.h.b16 %v497
      %v1284 = vunpack.c.l.b16 %v498
      %v1285 = vunpack.c.h.b16 %v498
      %v1286 = vunpack.c.l.b16 %v499
      %v1287 = vunpack.c.h.b16 %v499
      %v1288 = vunpack.c.l.b16 %v500
      %v1289 = vunpack.c.h.b16 %v500
      %v1290 = vunpack.c.l.b16 %v501
      %v1291 = vunpack.c.h.b16 %v501
      %v1292 = vunpack.c.l.b16 %v502
      %v1293 = vunpack.c.h.b16 %v502
      %v1294 = vunpack.c.l.b16 %v503
      %v1295 = vunpack.c.h.b16 %v503
      %v1296 = vunpack.c.l.b16 %v504
      %v1297 = vunpack.c.h.b16 %v504
      %v1298 = vunpack.c.l.b16 %v505
      %v1299 = vunpack.c.h.b16 %v505
      %v1300 = vunpack.c.l.b16 %v506
      %v1301 = vunpack.c.h.b16 %v506
      %v1302 = vunpack.c.l.b16 %v507
      %v1303 = vunpack.c.h.b16 %v507
      %v1304 = vunpack.c.l.b16 %v508
      %v1305 = vunpack.c.h.b16 %v508
      %v1306 = vunpack.c.l.b16 %v509
      %v1307 = vunpack.c.h.b16 %v509
      %v1308 = vunpack.c.l.b16 %v510
      %v1309 = vunpack.c.h.b16 %v510
      %v1310 = vunpack.c.l.b16 %v511
      %v1311 = vunpack.c.h.b16 %v511
      %v1312 = vunpack.c.l.b16 %v512
      %v1313 = vunpack.c.h.b16 %v512
      %v1314 = vunpack.c.l.b16 %v513
      %v1315 = vunpack.c.h.b16 %v513
      %v1316 = vunpack.c.l.b16 %v514
      %v1317 = vunpack.c.h.b16 %v514
      %v1318 = vunpack.c.l.b16 %v515
      %v1319 = vunpack.c.h.b16 %v515
      %v1320 = vunpack.c.l.b16 %v516
      %v1321 = vunpack.c.h.b16 %v516
      %v1322 = vunpack.c.l.b16 %v517
      %v1323 = vunpack.c.h.b16 %v517
      %v1324 = vunpack.c.l.b16 %v518
      %v1325 = vunpack.c.h.b16 %v518
      %v1326 = vunpack.c.l.b16 %v519
      %v1327 = vunpack.c.h.b16 %v519
      %v1328 = vunpack.c.l.b16 %v520
      %v1329 = vunpack.c.h.b16 %v520
      %v1330 = vunpack.c.l.b16 %v521
      %v1331 = vunpack.c.h.b16 %v521
      %v1332 = vunpack.c.l.b16 %v522
      %v1333 = vunpack.c.h.b16 %v522
      %v1334 = vunpack.c.l.b16 %v523
      %v1335 = vunpack.c.h.b16 %v523
      %v1336 = vunpack.c.l.b16 %v524
      %v1337 = vunpack.c.h.b16 %v524
      %v1338 = vunpack.c.l.b16 %v525
      %v1339 = vunpack.c.h.b16 %v525
      %v1340 = vunpack.c.l.b16 %v526
      %v1341 = vunpack.c.h.b16 %v526
      %v1342 = vunpack.c.l.b16 %v527
      %v1343 = vunpack.c.h.b16 %v527
      %v1344 = vunpack.c.l.b16 %v528
      %v1345 = vunpack.c.h.b16 %v528
      %v1346 = vunpack.c.l.b16 %v529
      %v1347 = vunpack.c.h.b16 %v529
      %v1348 = vunpack.c.l.b16 %v530
      %v1349 = vunpack.c.h.b16 %v530
      %v1350 = vunpack.c.l.b16 %v531
      %v1351 = vunpack.c.h.b16 %v531
      %v1352 = vunpack.c.l.b16 %v532
      %v1353 = vunpack.c.h.b16 %v532
      %v1354 = vunpack.c.l.b16 %v533
      %v1355 = vunpack.c.h.b16 %v533
      %v1356 = vunpack.c.l.b16 %v534
      %v1357 = vunpack.c.h.b16 %v534
      %v1358 = vunpack.c.l.b16 %v535
      %v1359 = vunpack.c.h.b16 %v535
      %v1360 = vunpack.c.l.b16 %v536
      %v1361 = vunpack.c.h.b16 %v536
      %v1362 = vunpack.c.l.b16 %v537
      %v1363 = vunpack.c.h.b16 %v537
      %v1364 = vunpack.c.l.b16 %v538
      %v1365 = vunpack.c.h.b16 %v538
      %v1366 = vunpack.c.l.b16 %v539
      %v1367 = vunpack.c.h.b16 %v539
      %v1368 = vunpack.c.l.b16 %v540
      %v1369 = vunpack.c.h.b16 %v540
      %v1370 = vunpack.c.l.b16 %v541
      %v1371 = vunpack.c.h.b16 %v541
      %v1372 = vunpack.c.l.b16 %v542
      %v1373 = vunpack.c.h.b16 %v542
      %v1374 = vunpack.c.l.b16 %v543
      %v1375 = vunpack.c.h.b16 %v543
      %v1376 = vunpack.c.l.b16 %v544
      %v1377 = vunpack.c.h.b16 %v544
      %v1378 = vunpack.c.l.b16 %v545
      %v1379 = vunpack.c.h.b16 %v545
      %v1380 = vunpack.c.l.b16 %v546
      %v1381 = vunpack.c.h.b16 %v546
      %v1382 = vunpack.c.l.b16 %v547
      %v1383 = vunpack.c.h.b16 %v547
      %v1384 = vunpack.c.l.b16 %v548
      %v1385 = vunpack.c.h.b16 %v548
      %v1386 = vunpack.c.l.b16 %v549
      %v1387 = vunpack.c.h.b16 %v549
      %v1388 = vunpack.c.l.b16 %v550
      %v1389 = vunpack.c.h.b16 %v550
      %v1390 = vunpack.c.l.b16 %v551
      %v1391 = vunpack.c.h.b16 %v551
      %v1392 = vunpack.c.l.b16 %v552
      %v1393 = vunpack.c.h.b16 %v552
      %v1394 = vunpack.c.l.b16 %v553
      %v1395 = vunpack.c.h.b16 %v553
      %v1396 = vunpack.c.l.b16 %v554
      %v1397 = vunpack.c.h.b16 %v554
      %v1398 = vunpack.c.l.b16 %v555
      %v1399 = vunpack.c.h.b16 %v555
      %v1400 = vunpack.c.l.b16 %v556
      %v1401 = vunpack.c.h.b16 %v556
      %v1402 = vunpack.c.l.b16 %v557
      %v1403 = vunpack.c.h.b16 %v557
      %v1404 = vunpack.c.l.b16 %v558
      %v1405 = vunpack.c.h.b16 %v558
      %v1406 = vunpack.c.l.b16 %v559
      %v1407 = vunpack.c.h.b16 %v559
      %v1408 = vunpack.c.l.b16 %v560
      %v1409 = vunpack.c.h.b16 %v560
      %v1410 = vunpack.c.l.b16 %v561
      %v1411 = vunpack.c.h.b16 %v561
      %v1412 = vunpack.c.l.b16 %v562
      %v1413 = vunpack.c.h.b16 %v562
      %v1414 = vunpack.c.l.b16 %v563
      %v1415 = vunpack.c.h.b16 %v563
      %v1416 = vunpack.c.l.b16 %v564
      %v1417 = vunpack.c.h.b16 %v564
      %v1418 = vunpack.c.l.b16 %v565
      %v1419 = vunpack.c.h.b16 %v565
      %v1420 = vunpack.c.l.b16 %v566
      %v1421 = vunpack.c.h.b16 %v566
      %v1422 = vunpack.c.l.b16 %v567
      %v1423 = vunpack.c.h.b16 %v567
      %v1424 = vunpack.c.l.b16 %v568
      %v1425 = vunpack.c.h.b16 %v568
      %v1426 = vunpack.c.l.b16 %v569
      %v1427 = vunpack.c.h.b16 %v569
      %v1428 = vunpack.c.l.b16 %v570
      %v1429 = vunpack.c.h.b16 %v570
      %v1430 = vunpack.c.l.b16 %v571
      %v1431 = vunpack.c.h.b16 %v571
      %v1432 = vunpack.c.l.b16 %v572
      %v1433 = vunpack.c.h.b16 %v572
      %v1434 = vunpack.c.l.b16 %v573
      %v1435 = vunpack.c.h.b16 %v573
      %v1436 = vunpack.c.l.b16 %v574
      %v1437 = vunpack.c.h.b16 %v574
      %v1438 = vunpack.c.l.b16 %v575
      %v1439 = vunpack.c.h.b16 %v575
      %v1440 = vunpack.c.l.b16 %v576
      %v1441 = vunpack.c.h.b16 %v576
      %v1442 = vunpack.c.l.b16 %v577
      %v1443 = vunpack.c.h.b16 %v577
      %v1444 = vunpack.c.l.b16 %v578
      %v1445 = vunpack.c.h.b16 %v578
      %v1446 = vunpack.c.l.b16 %v579
      %v1447 = vunpack.c.h.b16 %v579
      %v1448 = vunpack.c.l.b16 %v580
      %v1449 = vunpack.c.h.b16 %v580
      %v1450 = vunpack.c.l.b16 %v581
      %v1451 = vunpack.c.h.b16 %v581
      %v1452 = vunpack.c.l.b16 %v582
      %v1453 = vunpack.c.h.b16 %v582
      %v1454 = vunpack.c.l.b16 %v583
      %v1455 = vunpack.c.h.b16 %v583
      %v1456 = vunpack.c.l.b16 %v584
      %v1457 = vunpack.c.h.b16 %v584
      %v1458 = vunpack.c.l.b16 %v585
      %v1459 = vunpack.c.h.b16 %v585
      %v1460 = vunpack.c.l.b16 %v586
      %v1461 = vunpack.c.h.b16 %v586
      %v1462 = vunpack.c.l.b16 %v587
      %v1463 = vunpack.c.h.b16 %v587
      %v1464 = vunpack.c.l.b16 %v588
      %v1465 = vunpack.c.h.b16 %v588
      %v1466 = vunpack.c.l.b16 %v589
      %v1467 = vunpack.c.h.b16 %v589
      %v1468 = vunpack.c.l.b16 %v590
      %v1469 = vunpack.c.h.b16 %v590
      %v1470 = vunpack.c.l.b16 %v591
      %v1471 = vunpack.c.h.b16 %v591
      %v1472 = vunpack.c.l.b16 %v592
      %v1473 = vunpack.c.h.b16 %v592
      %v1474 = vunpack.c.l.b16 %v593
      %v1475 = vunpack.c.h.b16 %v593
      %v1476 = vunpack.c.l.b16 %v594
      %v1477 = vunpack.c.h.b16 %v594
      %v1478 = vunpack.c.l.b16 %v595
      %v1479 = vunpack.c.h.b16 %v595
      %v1480 = vunpack.c.l.b16 %v596
      %v1481 = vunpack.c.h.b16 %v596
      %v1482 = vunpack.c.l.b16 %v597
      %v1483 = vunpack.c.h.b16 %v597
      %v1484 = vunpack.c.l.b16 %v598
      %v1485 = vunpack.c.h.b16 %v598
      %v1486 = vunpack.c.l.b16 %v599
      %v1487 = vunpack.c.h.b16 %v599
      %v1488 = vunpack.c.l.b16 %v600
      %v1489 = vunpack.c.h.b16 %v600
      %v1490 = vunpack.c.l.b16 %v601
      %v1491 = vunpack.c.h.b16 %v601
      %v1492 = vpack.c.b16 %v1104, %v1100
      %v1493 = vpack.c.b16 %v1105, %v1101
      %v1494 = vpack.c.b16 %v1106, %v1102
      %v1495 = vpack.c.b16 %v1107, %v1103
      %v1496 = vpack.c.b16 %v1112, %v1108
      %v1497 = vpack.c.b16 %v1113, %v1109
      %v1498 = vpack.c.b16 %v1114, %v1110
      %v1499 = vpack.c.b16 %v1115, %v1111
      %v1500 = vpack.c.b16 %v1120, %v1116
      %v1501 = vpack.c.b16 %v1121, %v1117
      %v1502 = vpack.c.b16 %v1122, %v1118
      %v1503 = vpack.c.b16 %v1123, %v1119
      %v1504 = vpack.c.b16 %v1128, %v1124
      %v1505 = vpack.c.b16 %v1129, %v1125
      %v1506 = vpack.c.b16 %v1130, %v1126
      %v1507 = vpack.c.b16 %v1131, %v1127
      %v1508 = vpack.c.b16 %v1136, %v1132
      %v1509 = vpack.c.b16 %v1137, %v1133
      %v1510 = vpack.c.b16 %v1138, %v1134
      %v1511 = vpack.c.b16 %v1139, %v1135
      %v1512 = vpack.c.b16 %v1144, %v1140
      %v1513 = vpack.c.b16 %v1145, %v1141
      %v1514 = vpack.c.b16 %v1146, %v1142
      %v1515 = vpack.c.b16 %v1147, %v1143
      %v1516 = vpack.c.b16 %v1152, %v1148
      %v1517 = vpack.c.b16 %v1153, %v1149
      %v1518 = vpack.c.b16 %v1154, %v1150
      %v1519 = vpack.c.b16 %v1155, %v1151
      %v1520 = vpack.c.b16 %v1160, %v1156
      %v1521 = vpack.c.b16 %v1161, %v1157
      %v1522 = vpack.c.b16 %v1162, %v1158
      %v1523 = vpack.c.b16 %v1163, %v1159
      %v1524 = vpack.c.b16 %v1168, %v1164
      %v1525 = vpack.c.b16 %v1169, %v1165
      %v1526 = vpack.c.b16 %v1170, %v1166
      %v1527 = vpack.c.b16 %v1171, %v1167
      %v1528 = vpack.c.b16 %v1176, %v1172
      %v1529 = vpack.c.b16 %v1177, %v1173
      %v1530 = vpack.c.b16 %v1178, %v1174
      %v1531 = vpack.c.b16 %v1179, %v1175
      %v1532 = vpack.c.b16 %v1184, %v1180
      %v1533 = vpack.c.b16 %v1185, %v1181
      %v1534 = vpack.c.b16 %v1186, %v1182
      %v1535 = vpack.c.b16 %v1187, %v1183
      %v1536 = vpack.c.b16 %v1192, %v1188
      %v1537 = vpack.c.b16 %v1193, %v1189
      %v1538 = vpack.c.b16 %v1194, %v1190
      %v1539 = vpack.c.b16 %v1195, %v1191
      %v1540 = vpack.c.b16 %v1200, %v1196
      %v1541 = vpack.c.b16 %v1201, %v1197
      %v1542 = vpack.c.b16 %v1202, %v1198
      %v1543 = vpack.c.b16 %v1203, %v1199
      %v1544 = vpack.c.b16 %v1208, %v1204
      %v1545 = vpack.c.b16 %v1209, %v1205
      %v1546 = vpack.c.b16 %v1210, %v1206
      %v1547 = vpack.c.b16 %v1211, %v1207
      %v1548 = vpack.c.b16 %v1216, %v1212
      %v1549 = vpack.c.b16 %v1217, %v1213
      %v1550 = vpack.c.b16 %v1218, %v1214
      %v1551 = vpack.c.b16 %v1219, %v1215
      %v1552 = vpack.c.b16 %v1224, %v1220
      %v1553 = vpack.c.b16 %v1225, %v1221
      %v1554 = vpack.c.b16 %v1226, %v1222
      %v1555 = vpack.c.b16 %v1227, %v1223
      %v1556 = vpack.c.b16 %v1232, %v1228
      %v1557 = vpack.c.b16 %v1233, %v1229
      %v1558 = vpack.c.b16 %v1234, %v1230
      %v1559 = vpack.c.b16 %v1235, %v1231
      %v1560 = vpack.c.b16 %v1240, %v1236
      %v1561 = vpack.c.b16 %v1241, %v1237
      %v1562 = vpack.c.b16 %v1242, %v1238
      %v1563 = vpack.c.b16 %v1243, %v1239
      %v1564 = vpack.c.b16 %v1248, %v1244
      %v1565 = vpack.c.b16 %v1249, %v1245
      %v1566 = vpack.c.b16 %v1250, %v1246
      %v1567 = vpack.c.b16 %v1251, %v1247
      %v1568 = vpack.c.b16 %v1256, %v1252
      %v1569 = vpack.c.b16 %v1257, %v1253
      %v1570 = vpack.c.b16 %v1258, %v1254
      %v1571 = vpack.c.b16 %v1259, %v1255
      %v1572 = vpack.c.b16 %v1264, %v1260
      %v1573 = vpack.c.b16 %v1265, %v1261
      %v1574 = vpack.c.b16 %v1266, %v1262
      %v1575 = vpack.c.b16 %v1267, %v1263
      %v1576 = vpack.c.b16 %v1272, %v1268
      %v1577 = vpack.c.b16 %v1273, %v1269
      %v1578 = vpack.c.b16 %v1274, %v1270
      %v1579 = vpack.c.b16 %v1275, %v1271
      %v1580 = vpack.c.b16 %v1280, %v1276
      %v1581 = vpack.c.b16 %v1281, %v1277
      %v1582 = vpack.c.b16 %v1282, %v1278
      %v1583 = vpack.c.b16 %v1283, %v1279
      %v1584 = vpack.c.b16 %v1288, %v1284
      %v1585 = vpack.c.b16 %v1289, %v1285
      %v1586 = vpack.c.b16 %v1290, %v1286
      %v1587 = vpack.c.b16 %v1291, %v1287
      %v1588 = vpack.c.b16 %v1296, %v1292
      %v1589 = vpack.c.b16 %v1297, %v1293
      %v1590 = vpack.c.b16 %v1298, %v1294
      %v1591 = vpack.c.b16 %v1299, %v1295
      %v1592 = vpack.c.b16 %v1304, %v1300
      %v1593 = vpack.c.b16 %v1305, %v1301
      %v1594 = vpack.c.b16 %v1306, %v1302
      %v1595 = vpack.c.b16 %v1307, %v1303
      %v1596 = vpack.c.b16 %v1312, %v1308
      %v1597 = vpack.c.b16 %v1313, %v1309
      %v1598 = vpack.c.b16 %v1314, %v1310
      %v1599 = vpack.c.b16 %v1315, %v1311
      %v1600 = vpack.c.b16 %v1320, %v1316
      %v1601 = vpack.c.b16 %v1321, %v1317
      %v1602 = vpack.c.b16 %v1322, %v1318
      %v1603 = vpack.c.b16 %v1323, %v1319
      %v1604 = vpack.c.b16 %v1328, %v1324
      %v1605 = vpack.c.b16 %v1329, %v1325
      %v1606 = vpack.c.b16 %v1330, %v1326
      %v1607 = vpack.c.b16 %v1331, %v1327
      %v1608 = vpack.c.b16 %v1336, %v1332
      %v1609 = vpack.c.b16 %v1337, %v1333
      %v1610 = vpack.c.b16 %v1338, %v1334
      %v1611 = vpack.c.b16 %v1339, %v1335
      %v1612 = vpack.c.b16 %v1344, %v1340
      %v1613 = vpack.c.b16 %v1345, %v1341
      %v1614 = vpack.c.b16 %v1346, %v1342
      %v1615 = vpack.c.b16 %v1347, %v1343
      %v1616 = vpack.c.b16 %v1352, %v1348
      %v1617 = vpack.c.b16 %v1353, %v1349
      %v1618 = vpack.c.b16 %v1354, %v1350
      %v1619 = vpack.c.b16 %v1355, %v1351
      %v1620 = vpack.c.b16 %v1360, %v1356
      %v1621 = vpack.c.b16 %v1361, %v1357
      %v1622 = vpack.c.b16 %v1362, %v1358
      %v1623 = vpack.c.b16 %v1363, %v1359
      %v1624 = vpack.c.b16 %v1368, %v1364
      %v1625 = vpack.c.b16 %v1369, %v1365
      %v1626 = vpack.c.b16 %v1370, %v1366
      %v1627 = vpack.c.b16 %v1371, %v1367
      %v1628 = vpack.c.b16 %v1376, %v1372
      %v1629 = vpack.c.b16 %v1377, %v1373
      %v1630 = vpack.c.b16 %v1378, %v1374
      %v1631 = vpack.c.b16 %v1379, %v1375
      %v1632 = vpack.c.b16 %v1384, %v1380
      %v1633 = vpack.c.b16 %v1385, %v1381
      %v1634 = vpack.c.b16 %v1386, %v1382
      %v1635 = vpack.c.b16 %v1387, %v1383
      %v1636 = vpack.c.b16 %v1392, %v1388
      %v1637 = vpack.c.b16 %v1393, %v1389
      %v1638 = vpack.c.b16 %v1394, %v1390
      %v1639 = vpack.c.b16 %v1395, %v1391
      %v1640 = vpack.c.b16 %v1400, %v1396
      %v1641 = vpack.c.b16 %v1401, %v1397
      %v1642 = vpack.c.b16 %v1402, %v1398
      %v1643 = vpack.c.b16 %v1403, %v1399
      %v1644 = vpack.c.b16 %v1408, %v1404
      %v1645 = vpack.c.b16 %v1409, %v1405
      %v1646 = vpack.c.b16 %v1410, %v1406
      %v1647 = vpack.c.b16 %v1411, %v1407
      %v1648 = vpack.c.b16 %v1416, %v1412
      %v1649 = vpack.c.b16 %v1417, %v1413
      %v1650 = vpack.c.b16 %v1418, %v1414
      %v1651 = vpack.c.b16 %v1419, %v1415
      %v1652 = vpack.c.b16 %v1424, %v1420
      %v1653 = vpack.c.b16 %v1425, %v1421
      %v1654 = vpack.c.b16 %v1426, %v1422
      %v1655 = vpack.c.b16 %v1427, %v1423
      %v1656 = vpack.c.b16 %v1432, %v1428
      %v1657 = vpack.c.b16 %v1433, %v1429
      %v1658 = vpack.c.b16 %v1434, %v1430
      %v1659 = vpack.c.b16 %v1435, %v1431
      %v1660 = vpack.c.b16 %v1440, %v1436
      %v1661 = vpack.c.b16 %v1441, %v1437
      %v1662 = vpack.c.b16 %v1442, %v1438
      %v1663 = vpack.c.b16 %v1443, %v1439
      %v1664 = vpack.c.b16 %v1448, %v1444
      %v1665 = vpack.c.b16 %v1449, %v1445
      %v1666 = vpack.c.b16 %v1450, %v1446
      %v1667 = vpack.c.b16 %v1451, %v1447
      %v1668 = vpack.c.b16 %v1456, %v1452
      %v1669 = vpack.c.b16 %v1457, %v1453
      %v1670 = vpack.c.b16 %v1458, %v1454
      %v1671 = vpack.c.b16 %v1459, %v1455
      %v1672 = vpack.c.b16 %v1464, %v1460
      %v1673 = vpack.c.b16 %v1465, %v1461
      %v1674 = vpack.c.b16 %v1466, %v1462
      %v1675 = vpack.c.b16 %v1467, %v1463
      %v1676 = vpack.c.b16 %v1472, %v1468
      %v1677 = vpack.c.b16 %v1473, %v1469
      %v1678 = vpack.c.b16 %v1474, %v1470
      %v1679 = vpack.c.b16 %v1475, %v1471
      %v1680 = vpack.c.b16 %v1480, %v1476
      %v1681 = vpack.c.b16 %v1481, %v1477
      %v1682 = vpack.c.b16 %v1482, %v1478
      %v1683 = vpack.c.b16 %v1483, %v1479
      %v1684 = vpack.c.b16 %v1488, %v1484
      %v1685 = vpack.c.b16 %v1489, %v1485
      %v1686 = vpack.c.b16 %v1490, %v1486
      %v1687 = vpack.c.b16 %v1491, %v1487
      %vm1884 = vcmask 130048
      %v1886 = vsel %vm1884, %v806, 0
      %v1889 = vsel %vm1884, %v813, 0
      %v1892 = vsel %vm1884, %v820, 0
      %v1895 = vsel %vm1884, %v827, 0
      %v1898 = vsel %vm1884, %v834, 0
      %v1901 = vsel %vm1884, %v841, 0
      %v1904 = vsel %vm1884, %v848, 0
      %v1907 = vsel %vm1884, %v855, 0
      %1909 = vmatprep.subr.bf16.mxu0 %v1493
      %1910 = vmatpush1.bf16.msra.mxu0 %v1492
      %1911 = vmatprep.subr.bf16.mxu0 %v1497
      %1912 = vmatpush1.bf16.msra.mxu0 %v1496
      %1913 = vmatprep.subr.bf16.mxu0 %v1501
      %1914 = vmatpush1.bf16.msra.mxu0 %v1500
      %1915 = vmatprep.subr.bf16.mxu0 %v1505
      %1916 = vmatpush1.bf16.msra.mxu0 %v1504
      %1917 = vmatprep.subr.bf16.mxu0 %v1509
      %1918 = vmatpush1.bf16.msra.mxu0 %v1508
      %1919 = vmatprep.subr.bf16.mxu0 %v1513
      %1920 = vmatpush1.bf16.msra.mxu0 %v1512
      %1921 = vmatprep.subr.bf16.mxu0 %v1517
      %1922 = vmatpush1.bf16.msra.mxu0 %v1516
      %1923 = vmatprep.subr.bf16.mxu0 %v1521
      %1924 = vmatpush1.bf16.msra.mxu0 %v1520
      %1925 = vmatprep.subr.bf16.mxu0 %v1525
      %1926 = vmatpush1.bf16.msra.mxu0 %v1524
      %1927 = vmatprep.subr.bf16.mxu0 %v1529
      %1928 = vmatpush1.bf16.msra.mxu0 %v1528
      %1929 = vmatprep.subr.bf16.mxu0 %v1533
      %1930 = vmatpush1.bf16.msra.mxu0 %v1532
      %1931 = vmatprep.subr.bf16.mxu0 %v1537
      %1932 = vmatpush1.bf16.msra.mxu0 %v1536
      %1933 = vmatprep.subr.bf16.mxu0 %v1541
      %1934 = vmatpush1.bf16.msra.mxu0 %v1540
      %1935 = vmatprep.subr.bf16.mxu0 %v1545
      %1936 = vmatpush1.bf16.msra.mxu0 %v1544
      %1937 = vmatprep.subr.bf16.mxu0 %v1549
      %1938 = vmatpush1.bf16.msra.mxu0 %v1548
      %1939 = vmatprep.subr.bf16.mxu0 %v1553
      %1940 = vmatpush1.bf16.msra.mxu0 %v1552
      %1941 = vmatprep.mubr.bf16.mxu0 %v801
      %1942 = vmatmul.mubr.bf16.gmra.mrb[0].mxu0 %v800
      %v1943 = vpop.f32.mrb[0].mxu0
      %v1944 = vadd.f32 %v607, %v1943
      %v1945 = vpop.f32.mrb[0].mxu0
      %v1946 = vadd.f32 %v611, %v1945
      %v1947 = vpop.f32.mrb[0].mxu0
      %v1948 = vadd.f32 %v607, %v1947
      %v1949 = vpop.f32.mrb[0].mxu0
      %v1950 = vadd.f32 %v611, %v1949
      %1951 = vmatprep.mubr.bf16.mxu0 %v808
      %1952 = vmatmul.mubr.bf16.gmra.mrb[0].mxu0 %v807
      %v1953 = vpop.f32.mrb[0].mxu0
      %v1954 = vadd.f32 %v607, %v1953
      %v1955 = vpop.f32.mrb[0].mxu0
      %v1956 = vadd.f32 %v611, %v1955
      %v1957 = vpop.f32.mrb[0].mxu0
      %v1958 = vadd.f32 %v607, %v1957
      %v1959 = vpop.f32.mrb[0].mxu0
      %v1960 = vadd.f32 %v611, %v1959
      %1961 = vmatprep.mubr.bf16.mxu0 %v815
      %1962 = vmatmul.mubr.bf16.gmra.mrb[0].mxu0 %v814
      %v1963 = vpop.f32.mrb[0].mxu0
      %v1964 = vadd.f32 %v607, %v1963
      %v1965 = vpop.f32.mrb[0].mxu0
      %v1966 = vadd.f32 %v611, %v1965
      %v1967 = vpop.f32.mrb[0].mxu0
      %v1968 = vadd.f32 %v607, %v1967
      %v1969 = vpop.f32.mrb[0].mxu0
      %v1970 = vadd.f32 %v611, %v1969
      %1971 = vmatprep.mubr.bf16.mxu0 %v822
      %1972 = vmatmul.mubr.bf16.gmra.mrb[0].mxu0 %v821
      %v1973 = vpop.f32.mrb[0].mxu0
      %v1974 = vadd.f32 %v607, %v1973
      %v1975 = vpop.f32.mrb[0].mxu0
      %v1976 = vadd.f32 %v611, %v1975
      %v1977 = vpop.f32.mrb[0].mxu0
      %v1978 = vadd.f32 %v607, %v1977
      %v1979 = vpop.f32.mrb[0].mxu0
      %v1980 = vadd.f32 %v611, %v1979
      %1981 = vmatprep.mubr.bf16.mxu0 %v829
      %1982 = vmatmul.mubr.bf16.gmra.mrb[0].mxu0 %v828
      %v1983 = vpop.f32.mrb[0].mxu0
      %v1984 = vadd.f32 %v607, %v1983
      %v1985 = vpop.f32.mrb[0].mxu0
      %v1986 = vadd.f32 %v611, %v1985
      %v1987 = vpop.f32.mrb[0].mxu0
      %v1988 = vadd.f32 %v607, %v1987
      %v1989 = vpop.f32.mrb[0].mxu0
      %v1990 = vadd.f32 %v611, %v1989
      %1991 = vmatprep.mubr.bf16.mxu0 %v836
      %1992 = vmatmul.mubr.bf16.gmra.mrb[0].mxu0 %v835
      %v1993 = vpop.f32.mrb[0].mxu0
      %v1994 = vadd.f32 %v607, %v1993
      %v1995 = vpop.f32.mrb[0].mxu0
      %v1996 = vadd.f32 %v611, %v1995
      %v1997 = vpop.f32.mrb[0].mxu0
      %v1998 = vadd.f32 %v607, %v1997
      %v1999 = vpop.f32.mrb[0].mxu0
      %v2000 = vadd.f32 %v611, %v1999
      %2001 = vmatprep.mubr.bf16.mxu0 %v843
      %2002 = vmatmul.mubr.bf16.gmra.mrb[0].mxu0 %v842
      %v2003 = vpop.f32.mrb[0].mxu0
      %v2004 = vadd.f32 %v607, %v2003
      %v2005 = vpop.f32.mrb[0].mxu0
      %v2006 = vadd.f32 %v611, %v2005
      %v2007 = vpop.f32.mrb[0].mxu0
      %v2008 = vadd.f32 %v607, %v2007
      %v2009 = vpop.f32.mrb[0].mxu0
      %v2010 = vadd.f32 %v611, %v2009
      %2011 = vmatprep.mubr.bf16.mxu0 %v850
      %2012 = vmatmul.mubr.bf16.gmra.mrb[0].mxu0 %v849
      %v2013 = vpop.f32.mrb[0].mxu0
      %v2014 = vadd.f32 %v607, %v2013
      %v2015 = vpop.f32.mrb[0].mxu0
      %v2016 = vadd.f32 %v611, %v2015
      %v2017 = vpop.f32.mrb[0].mxu0
      %v2018 = vadd.f32 %v607, %v2017
      %v2019 = vpop.f32.mrb[0].mxu0
      %v2020 = vadd.f32 %v611, %v2019
      %2021 = vdwg.mxu0
      %2022 = vmatprep.subr.bf16.mxu0 %v1557
      %2023 = vmatpush1.bf16.msra.mxu0 %v1556
      %2024 = vmatprep.subr.bf16.mxu0 %v1561
      %2025 = vmatpush1.bf16.msra.mxu0 %v1560
      %2026 = vmatprep.subr.bf16.mxu0 %v1565
      %2027 = vmatpush1.bf16.msra.mxu0 %v1564
      %2028 = vmatprep.subr.bf16.mxu0 %v1569
      %2029 = vmatpush1.bf16.msra.mxu0 %v1568
      %2030 = vmatprep.subr.bf16.mxu0 %v1573
      %2031 = vmatpush1.bf16.msra.mxu0 %v1572
      %2032 = vmatprep.subr.bf16.mxu0 %v1577
      %2033 = vmatpush1.bf16.msra.mxu0 %v1576
      %2034 = vmatprep.subr.bf16.mxu0 %v1581
      %2035 = vmatpush1.bf16.msra.mxu0 %v1580
      %2036 = vmatprep.subr.bf16.mxu0 %v1585
      %2037 = vmatpush1.bf16.msra.mxu0 %v1584
      %2038 = vmatprep.subr.bf16.mxu0 %v1589
      %2039 = vmatpush1.bf16.msra.mxu0 %v1588
      %2040 = vmatprep.subr.bf16.mxu0 %v1593
      %2041 = vmatpush1.bf16.msra.mxu0 %v1592
      %2042 = vmatprep.subr.bf16.mxu0 %v1597
      %2043 = vmatpush1.bf16.msra.mxu0 %v1596
      %2044 = vmatprep.subr.bf16.mxu0 %v1601
      %2045 = vmatpush1.bf16.msra.mxu0 %v1600
      %2046 = vmatprep.subr.bf16.mxu0 %v1605
      %2047 = vmatpush1.bf16.msra.mxu0 %v1604
      %2048 = vmatprep.subr.bf16.mxu0 %v1609
      %2049 = vmatpush1.bf16.msra.mxu0 %v1608
      %2050 = vmatprep.subr.bf16.mxu0 %v1613
      %2051 = vmatpush1.bf16.msra.mxu0 %v1612
      %2052 = vmatprep.subr.bf16.mxu0 %v1617
      %2053 = vmatpush1.bf16.msra.mxu0 %v1616
      %2054 = vmatprep.mubr.bf16.mxu0 %v803
      %2055 = vmatmul.mubr.bf16.gmra.mrb[0].mxu0 %v802
      %v2056 = vpop.f32.mrb[0].mxu0
      %v2057 = vadd.f32 %v1944, %v2056
      %v2058 = vpop.f32.mrb[0].mxu0
      %v2059 = vadd.f32 %v1946, %v2058
      %v2060 = vpop.f32.mrb[0].mxu0
      %v2061 = vadd.f32 %v1948, %v2060
      %v2062 = vpop.f32.mrb[0].mxu0
      %v2063 = vadd.f32 %v1950, %v2062
      %2064 = vmatprep.mubr.bf16.mxu0 %v810
      %2065 = vmatmul.mubr.bf16.gmra.mrb[0].mxu0 %v809
      %v2066 = vpop.f32.mrb[0].mxu0
      %v2067 = vadd.f32 %v1954, %v2066
      %v2068 = vpop.f32.mrb[0].mxu0
      %v2069 = vadd.f32 %v1956, %v2068
      %v2070 = vpop.f32.mrb[0].mxu0
      %v2071 = vadd.f32 %v1958, %v2070
      %v2072 = vpop.f32.mrb[0].mxu0
      %v2073 = vadd.f32 %v1960, %v2072
      %2074 = vmatprep.mubr.bf16.mxu0 %v817
      %2075 = vmatmul.mubr.bf16.gmra.mrb[0].mxu0 %v816
      %v2076 = vpop.f32.mrb[0].mxu0
      %v2077 = vadd.f32 %v1964, %v2076
      %v2078 = vpop.f32.mrb[0].mxu0
      %v2079 = vadd.f32 %v1966, %v2078
      %v2080 = vpop.f32.mrb[0].mxu0
      %v2081 = vadd.f32 %v1968, %v2080
      %v2082 = vpop.f32.mrb[0].mxu0
      %v2083 = vadd.f32 %v1970, %v2082
      %2084 = vmatprep.mubr.bf16.mxu0 %v824
      %2085 = vmatmul.mubr.bf16.gmra.mrb[0].mxu0 %v823
      %v2086 = vpop.f32.mrb[0].mxu0
      %v2087 = vadd.f32 %v1974, %v2086
      %v2088 = vpop.f32.mrb[0].mxu0
      %v2089 = vadd.f32 %v1976, %v2088
      %v2090 = vpop.f32.mrb[0].mxu0
      %v2091 = vadd.f32 %v1978, %v2090
      %v2092 = vpop.f32.mrb[0].mxu0
      %v2093 = vadd.f32 %v1980, %v2092
      %2094 = vmatprep.mubr.bf16.mxu0 %v831
      %2095 = vmatmul.mubr.bf16.gmra.mrb[0].mxu0 %v830
      %v2096 = vpop.f32.mrb[0].mxu0
      %v2097 = vadd.f32 %v1984, %v2096
      %v2098 = vpop.f32.mrb[0].mxu0
      %v2099 = vadd.f32 %v1986, %v2098
      %v2100 = vpop.f32.mrb[0].mxu0
      %v2101 = vadd.f32 %v1988, %v2100
      %v2102 = vpop.f32.mrb[0].mxu0
      %v2103 = vadd.f32 %v1990, %v2102
      %2104 = vmatprep.mubr.bf16.mxu0 %v838
      %2105 = vmatmul.mubr.bf16.gmra.mrb[0].mxu0 %v837
      %v2106 = vpop.f32.mrb[0].mxu0
      %v2107 = vadd.f32 %v1994, %v2106
      %v2108 = vpop.f32.mrb[0].mxu0
      %v2109 = vadd.f32 %v1996, %v2108
      %v2110 = vpop.f32.mrb[0].mxu0
      %v2111 = vadd.f32 %v1998, %v2110
      %v2112 = vpop.f32.mrb[0].mxu0
      %v2113 = vadd.f32 %v2000, %v2112
      %2114 = vmatprep.mubr.bf16.mxu0 %v845
      %2115 = vmatmul.mubr.bf16.gmra.mrb[0].mxu0 %v844
      %v2116 = vpop.f32.mrb[0].mxu0
      %v2117 = vadd.f32 %v2004, %v2116
      %v2118 = vpop.f32.mrb[0].mxu0
      %v2119 = vadd.f32 %v2006, %v2118
      %v2120 = vpop.f32.mrb[0].mxu0
      %v2121 = vadd.f32 %v2008, %v2120
      %v2122 = vpop.f32.mrb[0].mxu0
      %v2123 = vadd.f32 %v2010, %v2122
      %2124 = vmatprep.mubr.bf16.mxu0 %v852
      %2125 = vmatmul.mubr.bf16.gmra.mrb[0].mxu0 %v851
      %v2126 = vpop.f32.mrb[0].mxu0
      %v2127 = vadd.f32 %v2014, %v2126
      %v2128 = vpop.f32.mrb[0].mxu0
      %v2129 = vadd.f32 %v2016, %v2128
      %v2130 = vpop.f32.mrb[0].mxu0
      %v2131 = vadd.f32 %v2018, %v2130
      %v2132 = vpop.f32.mrb[0].mxu0
      %v2133 = vadd.f32 %v2020, %v2132
      %2134 = vdwg.mxu0
      %2135 = vmatprep.subr.bf16.mxu0 %v1621
      %2136 = vmatpush1.bf16.msra.mxu0 %v1620
      %2137 = vmatprep.subr.bf16.mxu0 %v1625
      %2138 = vmatpush1.bf16.msra.mxu0 %v1624
      %2139 = vmatprep.subr.bf16.mxu0 %v1629
      %2140 = vmatpush1.bf16.msra.mxu0 %v1628
      %2141 = vmatprep.subr.bf16.mxu0 %v1633
      %2142 = vmatpush1.bf16.msra.mxu0 %v1632
      %2143 = vmatprep.subr.bf16.mxu0 %v1637
      %2144 = vmatpush1.bf16.msra.mxu0 %v1636
      %2145 = vmatprep.subr.bf16.mxu0 %v1641
      %2146 = vmatpush1.bf16.msra.mxu0 %v1640
      %2147 = vmatprep.subr.bf16.mxu0 %v1645
      %2148 = vmatpush1.bf16.msra.mxu0 %v1644
      %2149 = vmatprep.subr.bf16.mxu0 %v1649
      %2150 = vmatpush1.bf16.msra.mxu0 %v1648
      %2151 = vmatprep.subr.bf16.mxu0 %v1653
      %2152 = vmatpush1.bf16.msra.mxu0 %v1652
      %2153 = vmatprep.subr.bf16.mxu0 %v1657
      %2154 = vmatpush1.bf16.msra.mxu0 %v1656
      %2155 = vmatprep.subr.bf16.mxu0 %v1661
      %2156 = vmatpush1.bf16.msra.mxu0 %v1660
      %2157 = vmatprep.subr.bf16.mxu0 %v1665
      %2158 = vmatpush1.bf16.msra.mxu0 %v1664
      %2159 = vmatprep.subr.bf16.mxu0 %v1669
      %2160 = vmatpush1.bf16.msra.mxu0 %v1668
      %2161 = vmatprep.subr.bf16.mxu0 %v1673
      %2162 = vmatpush1.bf16.msra.mxu0 %v1672
      %2163 = vmatprep.subr.bf16.mxu0 %v1677
      %2164 = vmatpush1.bf16.msra.mxu0 %v1676
      %2165 = vmatprep.subr.bf16.mxu0 %v1681
      %2166 = vmatpush1.bf16.msra.mxu0 %v1680
      %2167 = vmatprep.mubr.bf16.mxu0 %v805
      %2168 = vmatmul.mubr.bf16.gmra.mrb[0].mxu0 %v804
      %v2169 = vpop.f32.mrb[0].mxu0
      %v2170 = vadd.f32 %v2057, %v2169
      %v2171 = vpop.f32.mrb[0].mxu0
      %v2172 = vadd.f32 %v2059, %v2171
      %v2173 = vpop.f32.mrb[0].mxu0
      %v2174 = vadd.f32 %v2061, %v2173
      %v2175 = vpop.f32.mrb[0].mxu0
      %v2176 = vadd.f32 %v2063, %v2175
      %2177 = vmatprep.mubr.bf16.mxu0 %v812
      %2178 = vmatmul.mubr.bf16.gmra.mrb[0].mxu0 %v811
      %v2179 = vpop.f32.mrb[0].mxu0
      %v2180 = vadd.f32 %v2067, %v2179
      %v2181 = vpop.f32.mrb[0].mxu0
      %v2182 = vadd.f32 %v2069, %v2181
      %v2183 = vpop.f32.mrb[0].mxu0
      %v2184 = vadd.f32 %v2071, %v2183
      %v2185 = vpop.f32.mrb[0].mxu0
      %v2186 = vadd.f32 %v2073, %v2185
      %2187 = vmatprep.mubr.bf16.mxu0 %v819
      %2188 = vmatmul.mubr.bf16.gmra.mrb[0].mxu0 %v818
      %v2189 = vpop.f32.mrb[0].mxu0
      %v2190 = vadd.f32 %v2077, %v2189
      %v2191 = vpop.f32.mrb[0].mxu0
      %v2192 = vadd.f32 %v2079, %v2191
      %v2193 = vpop.f32.mrb[0].mxu0
      %v2194 = vadd.f32 %v2081, %v2193
      %v2195 = vpop.f32.mrb[0].mxu0
      %v2196 = vadd.f32 %v2083, %v2195
      %2197 = vmatprep.mubr.bf16.mxu0 %v826
      %2198 = vmatmul.mubr.bf16.gmra.mrb[0].mxu0 %v825
      %v2199 = vpop.f32.mrb[0].mxu0
      %v2200 = vadd.f32 %v2087, %v2199
      %v2201 = vpop.f32.mrb[0].mxu0
      %v2202 = vadd.f32 %v2089, %v2201
      %v2203 = vpop.f32.mrb[0].mxu0
      %v2204 = vadd.f32 %v2091, %v2203
      %v2205 = vpop.f32.mrb[0].mxu0
      %v2206 = vadd.f32 %v2093, %v2205
      %2207 = vmatprep.mubr.bf16.mxu0 %v833
      %2208 = vmatmul.mubr.bf16.gmra.mrb[0].mxu0 %v832
      %v2209 = vpop.f32.mrb[0].mxu0
      %v2210 = vadd.f32 %v2097, %v2209
      %v2211 = vpop.f32.mrb[0].mxu0
      %v2212 = vadd.f32 %v2099, %v2211
      %v2213 = vpop.f32.mrb[0].mxu0
      %v2214 = vadd.f32 %v2101, %v2213
      %v2215 = vpop.f32.mrb[0].mxu0
      %v2216 = vadd.f32 %v2103, %v2215
      %2217 = vmatprep.mubr.bf16.mxu0 %v840
      %2218 = vmatmul.mubr.bf16.gmra.mrb[0].mxu0 %v839
      %v2219 = vpop.f32.mrb[0].mxu0
      %v2220 = vadd.f32 %v2107, %v2219
      %v2221 = vpop.f32.mrb[0].mxu0
      %v2222 = vadd.f32 %v2109, %v2221
      %v2223 = vpop.f32.mrb[0].mxu0
      %v2224 = vadd.f32 %v2111, %v2223
      %v2225 = vpop.f32.mrb[0].mxu0
      %v2226 = vadd.f32 %v2113, %v2225
      %2227 = vmatprep.mubr.bf16.mxu0 %v847
      %2228 = vmatmul.mubr.bf16.gmra.mrb[0].mxu0 %v846
      %v2229 = vpop.f32.mrb[0].mxu0
      %v2230 = vadd.f32 %v2117, %v2229
      %v2231 = vpop.f32.mrb[0].mxu0
      %v2232 = vadd.f32 %v2119, %v2231
      %v2233 = vpop.f32.mrb[0].mxu0
      %v2234 = vadd.f32 %v2121, %v2233
      %v2235 = vpop.f32.mrb[0].mxu0
      %v2236 = vadd.f32 %v2123, %v2235
      %2237 = vmatprep.mubr.bf16.mxu0 %v854
      %2238 = vmatmul.mubr.bf16.gmra.mrb[0].mxu0 %v853
      %v2239 = vpop.f32.mrb[0].mxu0
      %v2240 = vadd.f32 %v2127, %v2239
      %v2241 = vpop.f32.mrb[0].mxu0
      %v2242 = vadd.f32 %v2129, %v2241
      %v2243 = vpop.f32.mrb[0].mxu0
      %v2244 = vadd.f32 %v2131, %v2243
      %v2245 = vpop.f32.mrb[0].mxu0
      %v2246 = vadd.f32 %v2133, %v2245
      %2247 = vdwg.mxu0
      %2248 = vmatprep.subr.bf16.mxu0 %v1685
      %2249 = vmatpush1.bf16.msra.mxu0 %v1684
      %2250 = vmatprep.subr.bf16.mxu0 0
      %2251 = vmatpush1.bf16.msra.mxu0 0
      %2252 = vmatprep.subr.bf16.mxu0 0
      %2253 = vmatpush1.bf16.msra.mxu0 0
      %2254 = vmatprep.subr.bf16.mxu0 0
      %2255 = vmatpush1.bf16.msra.mxu0 0
      %2256 = vmatprep.subr.bf16.mxu0 0
      %2257 = vmatpush1.bf16.msra.mxu0 0
      %2258 = vmatprep.subr.bf16.mxu0 0
      %2259 = vmatpush1.bf16.msra.mxu0 0
      %2260 = vmatprep.subr.bf16.mxu0 0
      %2261 = vmatpush1.bf16.msra.mxu0 0
      %2262 = vmatprep.subr.bf16.mxu0 0
      %2263 = vmatpush1.bf16.msra.mxu0 0
      %2264 = vmatprep.subr.bf16.mxu0 0
      %2265 = vmatpush1.bf16.msra.mxu0 0
      %2266 = vmatprep.subr.bf16.mxu0 0
      %2267 = vmatpush1.bf16.msra.mxu0 0
      %2268 = vmatprep.subr.bf16.mxu0 0
      %2269 = vmatpush1.bf16.msra.mxu0 0
      %2270 = vmatprep.subr.bf16.mxu0 0
      %2271 = vmatpush1.bf16.msra.mxu0 0
      %2272 = vmatprep.subr.bf16.mxu0 0
      %2273 = vmatpush1.bf16.msra.mxu0 0
      %2274 = vmatprep.subr.bf16.mxu0 0
      %2275 = vmatpush1.bf16.msra.mxu0 0
      %2276 = vmatprep.subr.bf16.mxu0 0
      %2277 = vmatpush1.bf16.msra.mxu0 0
      %2278 = vmatprep.subr.bf16.mxu0 0
      %2279 = vmatpush1.bf16.msra.mxu0 0
      %2280 = vmatprep.mubr.bf16.mxu0 0
      %2281 = vmatmul.mubr.bf16.gmra.mrb[0].mxu0 %v1886
      %v2282 = vpop.f32.mrb[0].mxu0
      %v2283 = vadd.f32 %v2170, %v2282
      %v2284 = vpop.f32.mrb[0].mxu0
      %v2285 = vadd.f32 %v2172, %v2284
      %v2286 = vpop.f32.mrb[0].mxu0
      %v2287 = vadd.f32 %v2174, %v2286
      %v2288 = vpop.f32.mrb[0].mxu0
      %v2289 = vadd.f32 %v2176, %v2288
      %2290 = vmatprep.mubr.bf16.mxu0 0
      %2291 = vmatmul.mubr.bf16.gmra.mrb[0].mxu0 %v1889
      %v2292 = vpop.f32.mrb[0].mxu0
      %v2293 = vadd.f32 %v2180, %v2292
      %v2294 = vpop.f32.mrb[0].mxu0
      %v2295 = vadd.f32 %v2182, %v2294
      %v2296 = vpop.f32.mrb[0].mxu0
      %v2297 = vadd.f32 %v2184, %v2296
      %v2298 = vpop.f32.mrb[0].mxu0
      %v2299 = vadd.f32 %v2186, %v2298
      %2300 = vmatprep.mubr.bf16.mxu0 0
      %2301 = vmatmul.mubr.bf16.gmra.mrb[0].mxu0 %v1892
      %v2302 = vpop.f32.mrb[0].mxu0
      %v2303 = vadd.f32 %v2190, %v2302
      %v2304 = vpop.f32.mrb[0].mxu0
      %v2305 = vadd.f32 %v2192, %v2304
      %v2306 = vpop.f32.mrb[0].mxu0
      %v2307 = vadd.f32 %v2194, %v2306
      %v2308 = vpop.f32.mrb[0].mxu0
      %v2309 = vadd.f32 %v2196, %v2308
      %2310 = vmatprep.mubr.bf16.mxu0 0
      %2311 = vmatmul.mubr.bf16.gmra.mrb[0].mxu0 %v1895
      %v2312 = vpop.f32.mrb[0].mxu0
      %v2313 = vadd.f32 %v2200, %v2312
      %v2314 = vpop.f32.mrb[0].mxu0
      %v2315 = vadd.f32 %v2202, %v2314
      %v2316 = vpop.f32.mrb[0].mxu0
      %v2317 = vadd.f32 %v2204, %v2316
      %v2318 = vpop.f32.mrb[0].mxu0
      %v2319 = vadd.f32 %v2206, %v2318
      %2320 = vmatprep.mubr.bf16.mxu0 0
      %2321 = vmatmul.mubr.bf16.gmra.mrb[0].mxu0 %v1898
      %v2322 = vpop.f32.mrb[0].mxu0
      %v2323 = vadd.f32 %v2210, %v2322
      %v2324 = vpop.f32.mrb[0].mxu0
      %v2325 = vadd.f32 %v2212, %v2324
      %v2326 = vpop.f32.mrb[0].mxu0
      %v2327 = vadd.f32 %v2214, %v2326
      %v2328 = vpop.f32.mrb[0].mxu0
      %v2329 = vadd.f32 %v2216, %v2328
      %2330 = vmatprep.mubr.bf16.mxu0 0
      %2331 = vmatmul.mubr.bf16.gmra.mrb[0].mxu0 %v1901
      %v2332 = vpop.f32.mrb[0].mxu0
      %v2333 = vadd.f32 %v2220, %v2332
      %v2334 = vpop.f32.mrb[0].mxu0
      %v2335 = vadd.f32 %v2222, %v2334
      %v2336 = vpop.f32.mrb[0].mxu0
      %v2337 = vadd.f32 %v2224, %v2336
      %v2338 = vpop.f32.mrb[0].mxu0
      %v2339 = vadd.f32 %v2226, %v2338
      %2340 = vmatprep.mubr.bf16.mxu0 0
      %2341 = vmatmul.mubr.bf16.gmra.mrb[0].mxu0 %v1904
      %v2342 = vpop.f32.mrb[0].mxu0
      %v2343 = vadd.f32 %v2230, %v2342
      %v2344 = vpop.f32.mrb[0].mxu0
      %v2345 = vadd.f32 %v2232, %v2344
      %v2346 = vpop.f32.mrb[0].mxu0
      %v2347 = vadd.f32 %v2234, %v2346
      %v2348 = vpop.f32.mrb[0].mxu0
      %v2349 = vadd.f32 %v2236, %v2348
      %2350 = vmatprep.mubr.bf16.mxu0 0
      %2351 = vmatmul.mubr.bf16.gmra.mrb[0].mxu0 %v1907
      %v2352 = vpop.f32.mrb[0].mxu0
      %v2353 = vadd.f32 %v2240, %v2352
      %v2354 = vpop.f32.mrb[0].mxu0
      %v2355 = vadd.f32 %v2242, %v2354
      %v2356 = vpop.f32.mrb[0].mxu0
      %v2357 = vadd.f32 %v2244, %v2356
      %v2358 = vpop.f32.mrb[0].mxu0
      %v2359 = vadd.f32 %v2246, %v2358
      %2360 = vdwg.mxu0
      %2361 = vmatprep.subr.bf16.mxu0 %v1495
      %2362 = vmatpush1.bf16.msra.mxu0 %v1494
      %2363 = vmatprep.subr.bf16.mxu0 %v1499
      %2364 = vmatpush1.bf16.msra.mxu0 %v1498
      %2365 = vmatprep.subr.bf16.mxu0 %v1503
      %2366 = vmatpush1.bf16.msra.mxu0 %v1502
      %2367 = vmatprep.subr.bf16.mxu0 %v1507
      %2368 = vmatpush1.bf16.msra.mxu0 %v1506
      %2369 = vmatprep.subr.bf16.mxu0 %v1511
      %2370 = vmatpush1.bf16.msra.mxu0 %v1510
      %2371 = vmatprep.subr.bf16.mxu0 %v1515
      %2372 = vmatpush1.bf16.msra.mxu0 %v1514
      %2373 = vmatprep.subr.bf16.mxu0 %v1519
      %2374 = vmatpush1.bf16.msra.mxu0 %v1518
      %2375 = vmatprep.subr.bf16.mxu0 %v1523
      %2376 = vmatpush1.bf16.msra.mxu0 %v1522
      %2377 = vmatprep.subr.bf16.mxu0 %v1527
      %2378 = vmatpush1.bf16.msra.mxu0 %v1526
      %2379 = vmatprep.subr.bf16.mxu0 %v1531
      %2380 = vmatpush1.bf16.msra.mxu0 %v1530
      %2381 = vmatprep.subr.bf16.mxu0 %v1535
      %2382 = vmatpush1.bf16.msra.mxu0 %v1534
      %2383 = vmatprep.subr.bf16.mxu0 %v1539
      %2384 = vmatpush1.bf16.msra.mxu0 %v1538
      %2385 = vmatprep.subr.bf16.mxu0 %v1543
      %2386 = vmatpush1.bf16.msra.mxu0 %v1542
      %2387 = vmatprep.subr.bf16.mxu0 %v1547
      %2388 = vmatpush1.bf16.msra.mxu0 %v1546
      %2389 = vmatprep.subr.bf16.mxu0 %v1551
      %2390 = vmatpush1.bf16.msra.mxu0 %v1550
      %2391 = vmatprep.subr.bf16.mxu0 %v1555
      %2392 = vmatpush1.bf16.msra.mxu0 %v1554
      %2393 = vmatprep.mubr.bf16.mxu0 %v801
      %2394 = vmatmul.mubr.bf16.gmra.mrb[0].mxu0 %v800
      %v2395 = vpop.f32.mrb[0].mxu0
      %v2396 = vadd.f32 %v615, %v2395
      %v2397 = vpop.f32.mrb[0].mxu0
      %v2398 = vadd.f32 %v619, %v2397
      %v2399 = vpop.f32.mrb[0].mxu0
      %v2400 = vadd.f32 %v615, %v2399
      %v2401 = vpop.f32.mrb[0].mxu0
      %v2402 = vadd.f32 %v619, %v2401
      %2403 = vmatprep.mubr.bf16.mxu0 %v808
      %2404 = vmatmul.mubr.bf16.gmra.mrb[0].mxu0 %v807
      %v2405 = vpop.f32.mrb[0].mxu0
      %v2406 = vadd.f32 %v615, %v2405
      %v2407 = vpop.f32.mrb[0].mxu0
      %v2408 = vadd.f32 %v619, %v2407
      %v2409 = vpop.f32.mrb[0].mxu0
      %v2410 = vadd.f32 %v615, %v2409
      %v2411 = vpop.f32.mrb[0].mxu0
      %v2412 = vadd.f32 %v619, %v2411
      %2413 = vmatprep.mubr.bf16.mxu0 %v815
      %2414 = vmatmul.mubr.bf16.gmra.mrb[0].mxu0 %v814
      %v2415 = vpop.f32.mrb[0].mxu0
      %v2416 = vadd.f32 %v615, %v2415
      %v2417 = vpop.f32.mrb[0].mxu0
      %v2418 = vadd.f32 %v619, %v2417
      %v2419 = vpop.f32.mrb[0].mxu0
      %v2420 = vadd.f32 %v615, %v2419
      %v2421 = vpop.f32.mrb[0].mxu0
      %v2422 = vadd.f32 %v619, %v2421
      %2423 = vmatprep.mubr.bf16.mxu0 %v822
      %2424 = vmatmul.mubr.bf16.gmra.mrb[0].mxu0 %v821
      %v2425 = vpop.f32.mrb[0].mxu0
      %v2426 = vadd.f32 %v615, %v2425
      %v2427 = vpop.f32.mrb[0].mxu0
      %v2428 = vadd.f32 %v619, %v2427
      %v2429 = vpop.f32.mrb[0].mxu0
      %v2430 = vadd.f32 %v615, %v2429
      %v2431 = vpop.f32.mrb[0].mxu0
      %v2432 = vadd.f32 %v619, %v2431
      %2433 = vmatprep.mubr.bf16.mxu0 %v829
      %2434 = vmatmul.mubr.bf16.gmra.mrb[0].mxu0 %v828
      %v2435 = vpop.f32.mrb[0].mxu0
      %v2436 = vadd.f32 %v615, %v2435
      %v2437 = vpop.f32.mrb[0].mxu0
      %v2438 = vadd.f32 %v619, %v2437
      %v2439 = vpop.f32.mrb[0].mxu0
      %v2440 = vadd.f32 %v615, %v2439
      %v2441 = vpop.f32.mrb[0].mxu0
      %v2442 = vadd.f32 %v619, %v2441
      %2443 = vmatprep.mubr.bf16.mxu0 %v836
      %2444 = vmatmul.mubr.bf16.gmra.mrb[0].mxu0 %v835
      %v2445 = vpop.f32.mrb[0].mxu0
      %v2446 = vadd.f32 %v615, %v2445
      %v2447 = vpop.f32.mrb[0].mxu0
      %v2448 = vadd.f32 %v619, %v2447
      %v2449 = vpop.f32.mrb[0].mxu0
      %v2450 = vadd.f32 %v615, %v2449
      %v2451 = vpop.f32.mrb[0].mxu0
      %v2452 = vadd.f32 %v619, %v2451
      %2453 = vmatprep.mubr.bf16.mxu0 %v843
      %2454 = vmatmul.mubr.bf16.gmra.mrb[0].mxu0 %v842
      %v2455 = vpop.f32.mrb[0].mxu0
      %v2456 = vadd.f32 %v615, %v2455
      %v2457 = vpop.f32.mrb[0].mxu0
      %v2458 = vadd.f32 %v619, %v2457
      %v2459 = vpop.f32.mrb[0].mxu0
      %v2460 = vadd.f32 %v615, %v2459
      %v2461 = vpop.f32.mrb[0].mxu0
      %v2462 = vadd.f32 %v619, %v2461
      %2463 = vmatprep.mubr.bf16.mxu0 %v850
      %2464 = vmatmul.mubr.bf16.gmra.mrb[0].mxu0 %v849
      %v2465 = vpop.f32.mrb[0].mxu0
      %v2466 = vadd.f32 %v615, %v2465
      %v2467 = vpop.f32.mrb[0].mxu0
      %v2468 = vadd.f32 %v619, %v2467
      %v2469 = vpop.f32.mrb[0].mxu0
      %v2470 = vadd.f32 %v615, %v2469
      %v2471 = vpop.f32.mrb[0].mxu0
      %v2472 = vadd.f32 %v619, %v2471
      %2473 = vdwg.mxu0
      %2474 = vmatprep.subr.bf16.mxu0 %v1559
      %2475 = vmatpush1.bf16.msra.mxu0 %v1558
      %2476 = vmatprep.subr.bf16.mxu0 %v1563
      %2477 = vmatpush1.bf16.msra.mxu0 %v1562
      %2478 = vmatprep.subr.bf16.mxu0 %v1567
      %2479 = vmatpush1.bf16.msra.mxu0 %v1566
      %2480 = vmatprep.subr.bf16.mxu0 %v1571
      %2481 = vmatpush1.bf16.msra.mxu0 %v1570
      %2482 = vmatprep.subr.bf16.mxu0 %v1575
      %2483 = vmatpush1.bf16.msra.mxu0 %v1574
      %2484 = vmatprep.subr.bf16.mxu0 %v1579
      %2485 = vmatpush1.bf16.msra.mxu0 %v1578
      %2486 = vmatprep.subr.bf16.mxu0 %v1583
      %2487 = vmatpush1.bf16.msra.mxu0 %v1582
      %2488 = vmatprep.subr.bf16.mxu0 %v1587
      %2489 = vmatpush1.bf16.msra.mxu0 %v1586
      %2490 = vmatprep.subr.bf16.mxu0 %v1591
      %2491 = vmatpush1.bf16.msra.mxu0 %v1590
      %2492 = vmatprep.subr.bf16.mxu0 %v1595
      %2493 = vmatpush1.bf16.msra.mxu0 %v1594
      %2494 = vmatprep.subr.bf16.mxu0 %v1599
      %2495 = vmatpush1.bf16.msra.mxu0 %v1598
      %2496 = vmatprep.subr.bf16.mxu0 %v1603
      %2497 = vmatpush1.bf16.msra.mxu0 %v1602
      %2498 = vmatprep.subr.bf16.mxu0 %v1607
      %2499 = vmatpush1.bf16.msra.mxu0 %v1606
      %2500 = vmatprep.subr.bf16.mxu0 %v1611
      %2501 = vmatpush1.bf16.msra.mxu0 %v1610
      %2502 = vmatprep.subr.bf16.mxu0 %v1615
      %2503 = vmatpush1.bf16.msra.mxu0 %v1614
      %2504 = vmatprep.subr.bf16.mxu0 %v1619
      %2505 = vmatpush1.bf16.msra.mxu0 %v1618
      %2506 = vmatprep.mubr.bf16.mxu0 %v803
      %2507 = vmatmul.mubr.bf16.gmra.mrb[0].mxu0 %v802
      %v2508 = vpop.f32.mrb[0].mxu0
      %v2509 = vadd.f32 %v2396, %v2508
      %v2510 = vpop.f32.mrb[0].mxu0
      %v2511 = vadd.f32 %v2398, %v2510
      %v2512 = vpop.f32.mrb[0].mxu0
      %v2513 = vadd.f32 %v2400, %v2512
      %v2514 = vpop.f32.mrb[0].mxu0
      %v2515 = vadd.f32 %v2402, %v2514
      %2516 = vmatprep.mubr.bf16.mxu0 %v810
      %2517 = vmatmul.mubr.bf16.gmra.mrb[0].mxu0 %v809
      %v2518 = vpop.f32.mrb[0].mxu0
      %v2519 = vadd.f32 %v2406, %v2518
      %v2520 = vpop.f32.mrb[0].mxu0
      %v2521 = vadd.f32 %v2408, %v2520
      %v2522 = vpop.f32.mrb[0].mxu0
      %v2523 = vadd.f32 %v2410, %v2522
      %v2524 = vpop.f32.mrb[0].mxu0
      %v2525 = vadd.f32 %v2412, %v2524
      %2526 = vmatprep.mubr.bf16.mxu0 %v817
      %2527 = vmatmul.mubr.bf16.gmra.mrb[0].mxu0 %v816
      %v2528 = vpop.f32.mrb[0].mxu0
      %v2529 = vadd.f32 %v2416, %v2528
      %v2530 = vpop.f32.mrb[0].mxu0
      %v2531 = vadd.f32 %v2418, %v2530
      %v2532 = vpop.f32.mrb[0].mxu0
      %v2533 = vadd.f32 %v2420, %v2532
      %v2534 = vpop.f32.mrb[0].mxu0
      %v2535 = vadd.f32 %v2422, %v2534
      %2536 = vmatprep.mubr.bf16.mxu0 %v824
      %2537 = vmatmul.mubr.bf16.gmra.mrb[0].mxu0 %v823
      %v2538 = vpop.f32.mrb[0].mxu0
      %v2539 = vadd.f32 %v2426, %v2538
      %v2540 = vpop.f32.mrb[0].mxu0
      %v2541 = vadd.f32 %v2428, %v2540
      %v2542 = vpop.f32.mrb[0].mxu0
      %v2543 = vadd.f32 %v2430, %v2542
      %v2544 = vpop.f32.mrb[0].mxu0
      %v2545 = vadd.f32 %v2432, %v2544
      %2546 = vmatprep.mubr.bf16.mxu0 %v831
      %2547 = vmatmul.mubr.bf16.gmra.mrb[0].mxu0 %v830
      %v2548 = vpop.f32.mrb[0].mxu0
      %v2549 = vadd.f32 %v2436, %v2548
      %v2550 = vpop.f32.mrb[0].mxu0
      %v2551 = vadd.f32 %v2438, %v2550
      %v2552 = vpop.f32.mrb[0].mxu0
      %v2553 = vadd.f32 %v2440, %v2552
      %v2554 = vpop.f32.mrb[0].mxu0
      %v2555 = vadd.f32 %v2442, %v2554
      %2556 = vmatprep.mubr.bf16.mxu0 %v838
      %2557 = vmatmul.mubr.bf16.gmra.mrb[0].mxu0 %v837
      %v2558 = vpop.f32.mrb[0].mxu0
      %v2559 = vadd.f32 %v2446, %v2558
      %v2560 = vpop.f32.mrb[0].mxu0
      %v2561 = vadd.f32 %v2448, %v2560
      %v2562 = vpop.f32.mrb[0].mxu0
      %v2563 = vadd.f32 %v2450, %v2562
      %v2564 = vpop.f32.mrb[0].mxu0
      %v2565 = vadd.f32 %v2452, %v2564
      %2566 = vmatprep.mubr.bf16.mxu0 %v845
      %2567 = vmatmul.mubr.bf16.gmra.mrb[0].mxu0 %v844
      %v2568 = vpop.f32.mrb[0].mxu0
      %v2569 = vadd.f32 %v2456, %v2568
      %v2570 = vpop.f32.mrb[0].mxu0
      %v2571 = vadd.f32 %v2458, %v2570
      %v2572 = vpop.f32.mrb[0].mxu0
      %v2573 = vadd.f32 %v2460, %v2572
      %v2574 = vpop.f32.mrb[0].mxu0
      %v2575 = vadd.f32 %v2462, %v2574
      %2576 = vmatprep.mubr.bf16.mxu0 %v852
      %2577 = vmatmul.mubr.bf16.gmra.mrb[0].mxu0 %v851
      %v2578 = vpop.f32.mrb[0].mxu0
      %v2579 = vadd.f32 %v2466, %v2578
      %v2580 = vpop.f32.mrb[0].mxu0
      %v2581 = vadd.f32 %v2468, %v2580
      %v2582 = vpop.f32.mrb[0].mxu0
      %v2583 = vadd.f32 %v2470, %v2582
      %v2584 = vpop.f32.mrb[0].mxu0
      %v2585 = vadd.f32 %v2472, %v2584
      %2586 = vdwg.mxu0
      %2587 = vmatprep.subr.bf16.mxu0 %v1623
      %2588 = vmatpush1.bf16.msra.mxu0 %v1622
      %2589 = vmatprep.subr.bf16.mxu0 %v1627
      %2590 = vmatpush1.bf16.msra.mxu0 %v1626
      %2591 = vmatprep.subr.bf16.mxu0 %v1631
      %2592 = vmatpush1.bf16.msra.mxu0 %v1630
      %2593 = vmatprep.subr.bf16.mxu0 %v1635
      %2594 = vmatpush1.bf16.msra.mxu0 %v1634
      %2595 = vmatprep.subr.bf16.mxu0 %v1639
      %2596 = vmatpush1.bf16.msra.mxu0 %v1638
      %2597 = vmatprep.subr.bf16.mxu0 %v1643
      %2598 = vmatpush1.bf16.msra.mxu0 %v1642
      %2599 = vmatprep.subr.bf16.mxu0 %v1647
      %2600 = vmatpush1.bf16.msra.mxu0 %v1646
      %2601 = vmatprep.subr.bf16.mxu0 %v1651
      %2602 = vmatpush1.bf16.msra.mxu0 %v1650
      %2603 = vmatprep.subr.bf16.mxu0 %v1655
      %2604 = vmatpush1.bf16.msra.mxu0 %v1654
      %2605 = vmatprep.subr.bf16.mxu0 %v1659
      %2606 = vmatpush1.bf16.msra.mxu0 %v1658
      %2607 = vmatprep.subr.bf16.mxu0 %v1663
      %2608 = vmatpush1.bf16.msra.mxu0 %v1662
      %2609 = vmatprep.subr.bf16.mxu0 %v1667
      %2610 = vmatpush1.bf16.msra.mxu0 %v1666
      %2611 = vmatprep.subr.bf16.mxu0 %v1671
      %2612 = vmatpush1.bf16.msra.mxu0 %v1670
      %2613 = vmatprep.subr.bf16.mxu0 %v1675
      %2614 = vmatpush1.bf16.msra.mxu0 %v1674
      %2615 = vmatprep.subr.bf16.mxu0 %v1679
      %2616 = vmatpush1.bf16.msra.mxu0 %v1678
      %2617 = vmatprep.subr.bf16.mxu0 %v1683
      %2618 = vmatpush1.bf16.msra.mxu0 %v1682
      %2619 = vmatprep.mubr.bf16.mxu0 %v805
      %2620 = vmatmul.mubr.bf16.gmra.mrb[0].mxu0 %v804
      %v2621 = vpop.f32.mrb[0].mxu0
      %v2622 = vadd.f32 %v2509, %v2621
      %v2623 = vpop.f32.mrb[0].mxu0
      %v2624 = vadd.f32 %v2511, %v2623
      %v2625 = vpop.f32.mrb[0].mxu0
      %v2626 = vadd.f32 %v2513, %v2625
      %v2627 = vpop.f32.mrb[0].mxu0
      %v2628 = vadd.f32 %v2515, %v2627
      %2629 = vmatprep.mubr.bf16.mxu0 %v812
      %2630 = vmatmul.mubr.bf16.gmra.mrb[0].mxu0 %v811
      %v2631 = vpop.f32.mrb[0].mxu0
      %v2632 = vadd.f32 %v2519, %v2631
      %v2633 = vpop.f32.mrb[0].mxu0
      %v2634 = vadd.f32 %v2521, %v2633
      %v2635 = vpop.f32.mrb[0].mxu0
      %v2636 = vadd.f32 %v2523, %v2635
      %v2637 = vpop.f32.mrb[0].mxu0
      %v2638 = vadd.f32 %v2525, %v2637
      %2639 = vmatprep.mubr.bf16.mxu0 %v819
      %2640 = vmatmul.mubr.bf16.gmra.mrb[0].mxu0 %v818
      %v2641 = vpop.f32.mrb[0].mxu0
      %v2642 = vadd.f32 %v2529, %v2641
      %v2643 = vpop.f32.mrb[0].mxu0
      %v2644 = vadd.f32 %v2531, %v2643
      %v2645 = vpop.f32.mrb[0].mxu0
      %v2646 = vadd.f32 %v2533, %v2645
      %v2647 = vpop.f32.mrb[0].mxu0
      %v2648 = vadd.f32 %v2535, %v2647
      %2649 = vmatprep.mubr.bf16.mxu0 %v826
      %2650 = vmatmul.mubr.bf16.gmra.mrb[0].mxu0 %v825
      %v2651 = vpop.f32.mrb[0].mxu0
      %v2652 = vadd.f32 %v2539, %v2651
      %v2653 = vpop.f32.mrb[0].mxu0
      %v2654 = vadd.f32 %v2541, %v2653
      %v2655 = vpop.f32.mrb[0].mxu0
      %v2656 = vadd.f32 %v2543, %v2655
      %v2657 = vpop.f32.mrb[0].mxu0
      %v2658 = vadd.f32 %v2545, %v2657
      %2659 = vmatprep.mubr.bf16.mxu0 %v833
      %2660 = vmatmul.mubr.bf16.gmra.mrb[0].mxu0 %v832
      %v2661 = vpop.f32.mrb[0].mxu0
      %v2662 = vadd.f32 %v2549, %v2661
      %v2663 = vpop.f32.mrb[0].mxu0
      %v2664 = vadd.f32 %v2551, %v2663
      %v2665 = vpop.f32.mrb[0].mxu0
      %v2666 = vadd.f32 %v2553, %v2665
      %v2667 = vpop.f32.mrb[0].mxu0
      %v2668 = vadd.f32 %v2555, %v2667
      %2669 = vmatprep.mubr.bf16.mxu0 %v840
      %2670 = vmatmul.mubr.bf16.gmra.mrb[0].mxu0 %v839
      %v2671 = vpop.f32.mrb[0].mxu0
      %v2672 = vadd.f32 %v2559, %v2671
      %v2673 = vpop.f32.mrb[0].mxu0
      %v2674 = vadd.f32 %v2561, %v2673
      %v2675 = vpop.f32.mrb[0].mxu0
      %v2676 = vadd.f32 %v2563, %v2675
      %v2677 = vpop.f32.mrb[0].mxu0
      %v2678 = vadd.f32 %v2565, %v2677
      %2679 = vmatprep.mubr.bf16.mxu0 %v847
      %2680 = vmatmul.mubr.bf16.gmra.mrb[0].mxu0 %v846
      %v2681 = vpop.f32.mrb[0].mxu0
      %v2682 = vadd.f32 %v2569, %v2681
      %v2683 = vpop.f32.mrb[0].mxu0
      %v2684 = vadd.f32 %v2571, %v2683
      %v2685 = vpop.f32.mrb[0].mxu0
      %v2686 = vadd.f32 %v2573, %v2685
      %v2687 = vpop.f32.mrb[0].mxu0
      %v2688 = vadd.f32 %v2575, %v2687
      %2689 = vmatprep.mubr.bf16.mxu0 %v854
      %2690 = vmatmul.mubr.bf16.gmra.mrb[0].mxu0 %v853
      %v2691 = vpop.f32.mrb[0].mxu0
      %v2692 = vadd.f32 %v2579, %v2691
      %v2693 = vpop.f32.mrb[0].mxu0
      %v2694 = vadd.f32 %v2581, %v2693
      %v2695 = vpop.f32.mrb[0].mxu0
      %v2696 = vadd.f32 %v2583, %v2695
      %v2697 = vpop.f32.mrb[0].mxu0
      %v2698 = vadd.f32 %v2585, %v2697
      %2699 = vdwg.mxu0
      %2700 = vmatprep.subr.bf16.mxu0 %v1687
      %2701 = vmatpush1.bf16.msra.mxu0 %v1686
      %2702 = vmatprep.subr.bf16.mxu0 0
      %2703 = vmatpush1.bf16.msra.mxu0 0
      %2704 = vmatprep.subr.bf16.mxu0 0
      %2705 = vmatpush1.bf16.msra.mxu0 0
      %2706 = vmatprep.subr.bf16.mxu0 0
      %2707 = vmatpush1.bf16.msra.mxu0 0
      %2708 = vmatprep.subr.bf16.mxu0 0
      %2709 = vmatpush1.bf16.msra.mxu0 0
      %2710 = vmatprep.subr.bf16.mxu0 0
      %2711 = vmatpush1.bf16.msra.mxu0 0
      %2712 = vmatprep.subr.bf16.mxu0 0
      %2713 = vmatpush1.bf16.msra.mxu0 0
      %2714 = vmatprep.subr.bf16.mxu0 0
      %2715 = vmatpush1.bf16.msra.mxu0 0
      %2716 = vmatprep.subr.bf16.mxu0 0
      %2717 = vmatpush1.bf16.msra.mxu0 0
      %2718 = vmatprep.subr.bf16.mxu0 0
      %2719 = vmatpush1.bf16.msra.mxu0 0
      %2720 = vmatprep.subr.bf16.mxu0 0
      %2721 = vmatpush1.bf16.msra.mxu0 0
      %2722 = vmatprep.subr.bf16.mxu0 0
      %2723 = vmatpush1.bf16.msra.mxu0 0
      %2724 = vmatprep.subr.bf16.mxu0 0
      %2725 = vmatpush1.bf16.msra.mxu0 0
      %2726 = vmatprep.subr.bf16.mxu0 0
      %2727 = vmatpush1.bf16.msra.mxu0 0
      %2728 = vmatprep.subr.bf16.mxu0 0
      %2729 = vmatpush1.bf16.msra.mxu0 0
      %2730 = vmatprep.subr.bf16.mxu0 0
      %2731 = vmatpush1.bf16.msra.mxu0 0
      %2732 = vmatprep.mubr.bf16.mxu0 0
      %2733 = vmatmul.mubr.bf16.gmra.mrb[0].mxu0 %v1886
      %v2734 = vpop.f32.mrb[0].mxu0
      %v2735 = vadd.f32 %v2622, %v2734
      %v2736 = vpop.f32.mrb[0].mxu0
      %v2737 = vadd.f32 %v2624, %v2736
      %v2738 = vpop.f32.mrb[0].mxu0
      %v2739 = vadd.f32 %v2626, %v2738
      %v2740 = vpop.f32.mrb[0].mxu0
      %v2741 = vadd.f32 %v2628, %v2740
      %2742 = vmatprep.mubr.bf16.mxu0 0
      %2743 = vmatmul.mubr.bf16.gmra.mrb[0].mxu0 %v1889
      %v2744 = vpop.f32.mrb[0].mxu0
      %v2745 = vadd.f32 %v2632, %v2744
      %v2746 = vpop.f32.mrb[0].mxu0
      %v2747 = vadd.f32 %v2634, %v2746
      %v2748 = vpop.f32.mrb[0].mxu0
      %v2749 = vadd.f32 %v2636, %v2748
      %v2750 = vpop.f32.mrb[0].mxu0
      %v2751 = vadd.f32 %v2638, %v2750
      %2752 = vmatprep.mubr.bf16.mxu0 0
      %2753 = vmatmul.mubr.bf16.gmra.mrb[0].mxu0 %v1892
      %v2754 = vpop.f32.mrb[0].mxu0
      %v2755 = vadd.f32 %v2642, %v2754
      %v2756 = vpop.f32.mrb[0].mxu0
      %v2757 = vadd.f32 %v2644, %v2756
      %v2758 = vpop.f32.mrb[0].mxu0
      %v2759 = vadd.f32 %v2646, %v2758
      %v2760 = vpop.f32.mrb[0].mxu0
      %v2761 = vadd.f32 %v2648, %v2760
      %2762 = vmatprep.mubr.bf16.mxu0 0
      %2763 = vmatmul.mubr.bf16.gmra.mrb[0].mxu0 %v1895
      %v2764 = vpop.f32.mrb[0].mxu0
      %v2765 = vadd.f32 %v2652, %v2764
      %v2766 = vpop.f32.mrb[0].mxu0
      %v2767 = vadd.f32 %v2654, %v2766
      %v2768 = vpop.f32.mrb[0].mxu0
      %v2769 = vadd.f32 %v2656, %v2768
      %v2770 = vpop.f32.mrb[0].mxu0
      %v2771 = vadd.f32 %v2658, %v2770
      %2772 = vmatprep.mubr.bf16.mxu0 0
      %2773 = vmatmul.mubr.bf16.gmra.mrb[0].mxu0 %v1898
      %v2774 = vpop.f32.mrb[0].mxu0
      %v2775 = vadd.f32 %v2662, %v2774
      %v2776 = vpop.f32.mrb[0].mxu0
      %v2777 = vadd.f32 %v2664, %v2776
      %v2778 = vpop.f32.mrb[0].mxu0
      %v2779 = vadd.f32 %v2666, %v2778
      %v2780 = vpop.f32.mrb[0].mxu0
      %v2781 = vadd.f32 %v2668, %v2780
      %2782 = vmatprep.mubr.bf16.mxu0 0
      %2783 = vmatmul.mubr.bf16.gmra.mrb[0].mxu0 %v1901
      %v2784 = vpop.f32.mrb[0].mxu0
      %v2785 = vadd.f32 %v2672, %v2784
      %v2786 = vpop.f32.mrb[0].mxu0
      %v2787 = vadd.f32 %v2674, %v2786
      %v2788 = vpop.f32.mrb[0].mxu0
      %v2789 = vadd.f32 %v2676, %v2788
      %v2790 = vpop.f32.mrb[0].mxu0
      %v2791 = vadd.f32 %v2678, %v2790
      %2792 = vmatprep.mubr.bf16.mxu0 0
      %2793 = vmatmul.mubr.bf16.gmra.mrb[0].mxu0 %v1904
      %v2794 = vpop.f32.mrb[0].mxu0
      %v2795 = vadd.f32 %v2682, %v2794
      %v2796 = vpop.f32.mrb[0].mxu0
      %v2797 = vadd.f32 %v2684, %v2796
      %v2798 = vpop.f32.mrb[0].mxu0
      %v2799 = vadd.f32 %v2686, %v2798
      %v2800 = vpop.f32.mrb[0].mxu0
      %v2801 = vadd.f32 %v2688, %v2800
      %2802 = vmatprep.mubr.bf16.mxu0 0
      %2803 = vmatmul.mubr.bf16.gmra.mrb[0].mxu0 %v1907
      %v2804 = vpop.f32.mrb[0].mxu0
      %v2805 = vadd.f32 %v2692, %v2804
      %v2806 = vpop.f32.mrb[0].mxu0
      %v2807 = vadd.f32 %v2694, %v2806
      %v2808 = vpop.f32.mrb[0].mxu0
      %v2809 = vadd.f32 %v2696, %v2808
      %v2810 = vpop.f32.mrb[0].mxu0
      %v2811 = vadd.f32 %v2698, %v2810
      %2812 = vdwg.mxu0
      %v2813 = vsub.f32 0.0, %v2283
      %v2814 = vsub.f32 0.0, %v2285
      %v2815 = vsub.f32 0.0, %v2735
      %v2816 = vsub.f32 0.0, %v2737
      %v2817 = vsub.f32 0.0, %v2287
      %v2818 = vsub.f32 0.0, %v2289
      %v2819 = vsub.f32 0.0, %v2739
      %v2820 = vsub.f32 0.0, %v2741
      %v2821 = vsub.f32 0.0, %v2293
      %v2822 = vsub.f32 0.0, %v2295
      %v2823 = vsub.f32 0.0, %v2745
      %v2824 = vsub.f32 0.0, %v2747
      %v2825 = vsub.f32 0.0, %v2297
      %v2826 = vsub.f32 0.0, %v2299
      %v2827 = vsub.f32 0.0, %v2749
      %v2828 = vsub.f32 0.0, %v2751
      %v2829 = vsub.f32 0.0, %v2303
      %v2830 = vsub.f32 0.0, %v2305
      %v2831 = vsub.f32 0.0, %v2755
      %v2832 = vsub.f32 0.0, %v2757
      %v2833 = vsub.f32 0.0, %v2307
      %v2834 = vsub.f32 0.0, %v2309
      %v2835 = vsub.f32 0.0, %v2759
      %v2836 = vsub.f32 0.0, %v2761
      %v2837 = vsub.f32 0.0, %v2313
      %v2838 = vsub.f32 0.0, %v2315
      %v2839 = vsub.f32 0.0, %v2765
      %v2840 = vsub.f32 0.0, %v2767
      %v2841 = vsub.f32 0.0, %v2317
      %v2842 = vsub.f32 0.0, %v2319
      %v2843 = vsub.f32 0.0, %v2769
      %v2844 = vsub.f32 0.0, %v2771
      %v2845 = vsub.f32 0.0, %v2323
      %v2846 = vsub.f32 0.0, %v2325
      %v2847 = vsub.f32 0.0, %v2775
      %v2848 = vsub.f32 0.0, %v2777
      %v2849 = vsub.f32 0.0, %v2327
      %v2850 = vsub.f32 0.0, %v2329
      %v2851 = vsub.f32 0.0, %v2779
      %v2852 = vsub.f32 0.0, %v2781
      %v2853 = vsub.f32 0.0, %v2333
      %v2854 = vsub.f32 0.0, %v2335
      %v2855 = vsub.f32 0.0, %v2785
      %v2856 = vsub.f32 0.0, %v2787
      %v2857 = vsub.f32 0.0, %v2337
      %v2858 = vsub.f32 0.0, %v2339
      %v2859 = vsub.f32 0.0, %v2789
      %v2860 = vsub.f32 0.0, %v2791
      %v2861 = vsub.f32 0.0, %v2343
      %v2862 = vsub.f32 0.0, %v2345
      %v2863 = vsub.f32 0.0, %v2795
      %v2864 = vsub.f32 0.0, %v2797
      %v2865 = vsub.f32 0.0, %v2347
      %v2866 = vsub.f32 0.0, %v2349
      %v2867 = vsub.f32 0.0, %v2799
      %v2868 = vsub.f32 0.0, %v2801
      %v2869 = vsub.f32 0.0, %v2353
      %v2870 = vsub.f32 0.0, %v2355
      %v2871 = vsub.f32 0.0, %v2805
      %v2872 = vsub.f32 0.0, %v2807
      %v2873 = vsub.f32 0.0, %v2357
      %v2874 = vsub.f32 0.0, %v2359
      %v2875 = vsub.f32 0.0, %v2809
      %v2876 = vsub.f32 0.0, %v2811
      %v2877 = vmul.f32 %v2813, 1.442695
      %v2878 = vpow.pop %v2877
      %v2879 = vmul.f32 %v2814, 1.442695
      %v2880 = vpow.pop %v2879
      %v2881 = vmul.f32 %v2815, 1.442695
      %v2882 = vpow.pop %v2881
      %v2883 = vmul.f32 %v2816, 1.442695
      %v2884 = vpow.pop %v2883
      %v2885 = vmul.f32 %v2817, 1.442695
      %v2886 = vpow.pop %v2885
      %v2887 = vmul.f32 %v2818, 1.442695
      %v2888 = vpow.pop %v2887
      %v2889 = vmul.f32 %v2819, 1.442695
      %v2890 = vpow.pop %v2889
      %v2891 = vmul.f32 %v2820, 1.442695
      %v2892 = vpow.pop %v2891
      %v2893 = vmul.f32 %v2821, 1.442695
      %v2894 = vpow.pop %v2893
      %v2895 = vmul.f32 %v2822, 1.442695
      %v2896 = vpow.pop %v2895
      %v2897 = vmul.f32 %v2823, 1.442695
      %v2898 = vpow.pop %v2897
      %v2899 = vmul.f32 %v2824, 1.442695
      %v2900 = vpow.pop %v2899
      %v2901 = vmul.f32 %v2825, 1.442695
      %v2902 = vpow.pop %v2901
      %v2903 = vmul.f32 %v2826, 1.442695
      %v2904 = vpow.pop %v2903
      %v2905 = vmul.f32 %v2827, 1.442695
      %v2906 = vpow.pop %v2905
      %v2907 = vmul.f32 %v2828, 1.442695
      %v2908 = vpow.pop %v2907
      %v2909 = vmul.f32 %v2829, 1.442695
      %v2910 = vpow.pop %v2909
      %v2911 = vmul.f32 %v2830, 1.442695
      %v2912 = vpow.pop %v2911
      %v2913 = vmul.f32 %v2831, 1.442695
      %v2914 = vpow.pop %v2913
      %v2915 = vmul.f32 %v2832, 1.442695
      %v2916 = vpow.pop %v2915
      %v2917 = vmul.f32 %v2833, 1.442695
      %v2918 = vpow.pop %v2917
      %v2919 = vmul.f32 %v2834, 1.442695
      %v2920 = vpow.pop %v2919
      %v2921 = vmul.f32 %v2835, 1.442695
      %v2922 = vpow.pop %v2921
      %v2923 = vmul.f32 %v2836, 1.442695
      %v2924 = vpow.pop %v2923
      %v2925 = vmul.f32 %v2837, 1.442695
      %v2926 = vpow.pop %v2925
      %v2927 = vmul.f32 %v2838, 1.442695
      %v2928 = vpow.pop %v2927
      %v2929 = vmul.f32 %v2839, 1.442695
      %v2930 = vpow.pop %v2929
      %v2931 = vmul.f32 %v2840, 1.442695
      %v2932 = vpow.pop %v2931
      %v2933 = vmul.f32 %v2841, 1.442695
      %v2934 = vpow.pop %v2933
      %v2935 = vmul.f32 %v2842, 1.442695
      %v2936 = vpow.pop %v2935
      %v2937 = vmul.f32 %v2843, 1.442695
      %v2938 = vpow.pop %v2937
      %v2939 = vmul.f32 %v2844, 1.442695
      %v2940 = vpow.pop %v2939
      %v2941 = vmul.f32 %v2845, 1.442695
      %v2942 = vpow.pop %v2941
      %v2943 = vmul.f32 %v2846, 1.442695
      %v2944 = vpow.pop %v2943
      %v2945 = vmul.f32 %v2847, 1.442695
      %v2946 = vpow.pop %v2945
      %v2947 = vmul.f32 %v2848, 1.442695
      %v2948 = vpow.pop %v2947
      %v2949 = vmul.f32 %v2849, 1.442695
      %v2950 = vpow.pop %v2949
      %v2951 = vmul.f32 %v2850, 1.442695
      %v2952 = vpow.pop %v2951
      %v2953 = vmul.f32 %v2851, 1.442695
      %v2954 = vpow.pop %v2953
      %v2955 = vmul.f32 %v2852, 1.442695
      %v2956 = vpow.pop %v2955
      %v2957 = vmul.f32 %v2853, 1.442695
      %v2958 = vpow.pop %v2957
      %v2959 = vmul.f32 %v2854, 1.442695
      %v2960 = vpow.pop %v2959
      %v2961 = vmul.f32 %v2855, 1.442695
      %v2962 = vpow.pop %v2961
      %v2963 = vmul.f32 %v2856, 1.442695
      %v2964 = vpow.pop %v2963
      %v2965 = vmul.f32 %v2857, 1.442695
      %v2966 = vpow.pop %v2965
      %v2967 = vmul.f32 %v2858, 1.442695
      %v2968 = vpow.pop %v2967
      %v2969 = vmul.f32 %v2859, 1.442695
      %v2970 = vpow.pop %v2969
      %v2971 = vmul.f32 %v2860, 1.442695
      %v2972 = vpow.pop %v2971
      %v2973 = vmul.f32 %v2861, 1.442695
      %v2974 = vpow.pop %v2973
      %v2975 = vmul.f32 %v2862, 1.442695
      %v2976 = vpow.pop %v2975
      %v2977 = vmul.f32 %v2863, 1.442695
      %v2978 = vpow.pop %v2977
      %v2979 = vmul.f32 %v2864, 1.442695
      %v2980 = vpow.pop %v2979
      %v2981 = vmul.f32 %v2865, 1.442695
      %v2982 = vpow.pop %v2981
      %v2983 = vmul.f32 %v2866, 1.442695
      %v2984 = vpow.pop %v2983
      %v2985 = vmul.f32 %v2867, 1.442695
      %v2986 = vpow.pop %v2985
      %v2987 = vmul.f32 %v2868, 1.442695
      %v2988 = vpow.pop %v2987
      %v2989 = vmul.f32 %v2869, 1.442695
      %v2990 = vpow.pop %v2989
      %v2991 = vmul.f32 %v2870, 1.442695
      %v2992 = vpow.pop %v2991
      %v2993 = vmul.f32 %v2871, 1.442695
      %v2994 = vpow.pop %v2993
      %v2995 = vmul.f32 %v2872, 1.442695
      %v2996 = vpow.pop %v2995
      %v2997 = vmul.f32 %v2873, 1.442695
      %v2998 = vpow.pop %v2997
      %v2999 = vmul.f32 %v2874, 1.442695
      %v3000 = vpow.pop %v2999
      %v3001 = vmul.f32 %v2875, 1.442695
      %v3002 = vpow.pop %v3001
      %v3003 = vmul.f32 %v2876, 1.442695
      %v3004 = vpow.pop %v3003
      %v3005 = vadd.f32 %v2878, 1.0
      %v3006 = vadd.f32 %v2880, 1.0
      %v3007 = vadd.f32 %v2882, 1.0
      %v3008 = vadd.f32 %v2884, 1.0
      %v3009 = vadd.f32 %v2886, 1.0
      %v3010 = vadd.f32 %v2888, 1.0
      %v3011 = vadd.f32 %v2890, 1.0
      %v3012 = vadd.f32 %v2892, 1.0
      %v3013 = vadd.f32 %v2894, 1.0
      %v3014 = vadd.f32 %v2896, 1.0
      %v3015 = vadd.f32 %v2898, 1.0
      %v3016 = vadd.f32 %v2900, 1.0
      %v3017 = vadd.f32 %v2902, 1.0
      %v3018 = vadd.f32 %v2904, 1.0
      %v3019 = vadd.f32 %v2906, 1.0
      %v3020 = vadd.f32 %v2908, 1.0
      %v3021 = vadd.f32 %v2910, 1.0
      %v3022 = vadd.f32 %v2912, 1.0
      %v3023 = vadd.f32 %v2914, 1.0
      %v3024 = vadd.f32 %v2916, 1.0
      %v3025 = vadd.f32 %v2918, 1.0
      %v3026 = vadd.f32 %v2920, 1.0
      %v3027 = vadd.f32 %v2922, 1.0
      %v3028 = vadd.f32 %v2924, 1.0
      %v3029 = vadd.f32 %v2926, 1.0
      %v3030 = vadd.f32 %v2928, 1.0
      %v3031 = vadd.f32 %v2930, 1.0
      %v3032 = vadd.f32 %v2932, 1.0
      %v3033 = vadd.f32 %v2934, 1.0
      %v3034 = vadd.f32 %v2936, 1.0
      %v3035 = vadd.f32 %v2938, 1.0
      %v3036 = vadd.f32 %v2940, 1.0
      %v3037 = vadd.f32 %v2942, 1.0
      %v3038 = vadd.f32 %v2944, 1.0
      %v3039 = vadd.f32 %v2946, 1.0
      %v3040 = vadd.f32 %v2948, 1.0
      %v3041 = vadd.f32 %v2950, 1.0
      %v3042 = vadd.f32 %v2952, 1.0
      %v3043 = vadd.f32 %v2954, 1.0
      %v3044 = vadd.f32 %v2956, 1.0
      %v3045 = vadd.f32 %v2958, 1.0
      %v3046 = vadd.f32 %v2960, 1.0
      %v3047 = vadd.f32 %v2962, 1.0
      %v3048 = vadd.f32 %v2964, 1.0
      %v3049 = vadd.f32 %v2966, 1.0
      %v3050 = vadd.f32 %v2968, 1.0
      %v3051 = vadd.f32 %v2970, 1.0
      %v3052 = vadd.f32 %v2972, 1.0
      %v3053 = vadd.f32 %v2974, 1.0
      %v3054 = vadd.f32 %v2976, 1.0
      %v3055 = vadd.f32 %v2978, 1.0
      %v3056 = vadd.f32 %v2980, 1.0
      %v3057 = vadd.f32 %v2982, 1.0
      %v3058 = vadd.f32 %v2984, 1.0
      %v3059 = vadd.f32 %v2986, 1.0
      %v3060 = vadd.f32 %v2988, 1.0
      %v3061 = vadd.f32 %v2990, 1.0
      %v3062 = vadd.f32 %v2992, 1.0
      %v3063 = vadd.f32 %v2994, 1.0
      %v3064 = vadd.f32 %v2996, 1.0
      %v3065 = vadd.f32 %v2998, 1.0
      %v3066 = vadd.f32 %v3000, 1.0
      %v3067 = vadd.f32 %v3002, 1.0
      %v3068 = vadd.f32 %v3004, 1.0
      %v3069 = vrcp.pop %v3005
      %v3070 = vrcp.pop %v3006
      %v3071 = vrcp.pop %v3007
      %v3072 = vrcp.pop %v3008
      %v3073 = vrcp.pop %v3009
      %v3074 = vrcp.pop %v3010
      %v3075 = vrcp.pop %v3011
      %v3076 = vrcp.pop %v3012
      %v3077 = vrcp.pop %v3013
      %v3078 = vrcp.pop %v3014
      %v3079 = vrcp.pop %v3015
      %v3080 = vrcp.pop %v3016
      %v3081 = vrcp.pop %v3017
      %v3082 = vrcp.pop %v3018
      %v3083 = vrcp.pop %v3019
      %v3084 = vrcp.pop %v3020
      %v3085 = vrcp.pop %v3021
      %v3086 = vrcp.pop %v3022
      %v3087 = vrcp.pop %v3023
      %v3088 = vrcp.pop %v3024
      %v3089 = vrcp.pop %v3025
      %v3090 = vrcp.pop %v3026
      %v3091 = vrcp.pop %v3027
      %v3092 = vrcp.pop %v3028
      %v3093 = vrcp.pop %v3029
      %v3094 = vrcp.pop %v3030
      %v3095 = vrcp.pop %v3031
      %v3096 = vrcp.pop %v3032
      %v3097 = vrcp.pop %v3033
      %v3098 = vrcp.pop %v3034
      %v3099 = vrcp.pop %v3035
      %v3100 = vrcp.pop %v3036
      %v3101 = vrcp.pop %v3037
      %v3102 = vrcp.pop %v3038
      %v3103 = vrcp.pop %v3039
      %v3104 = vrcp.pop %v3040
      %v3105 = vrcp.pop %v3041
      %v3106 = vrcp.pop %v3042
      %v3107 = vrcp.pop %v3043
      %v3108 = vrcp.pop %v3044
      %v3109 = vrcp.pop %v3045
      %v3110 = vrcp.pop %v3046
      %v3111 = vrcp.pop %v3047
      %v3112 = vrcp.pop %v3048
      %v3113 = vrcp.pop %v3049
      %v3114 = vrcp.pop %v3050
      %v3115 = vrcp.pop %v3051
      %v3116 = vrcp.pop %v3052
      %v3117 = vrcp.pop %v3053
      %v3118 = vrcp.pop %v3054
      %v3119 = vrcp.pop %v3055
      %v3120 = vrcp.pop %v3056
      %v3121 = vrcp.pop %v3057
      %v3122 = vrcp.pop %v3058
      %v3123 = vrcp.pop %v3059
      %v3124 = vrcp.pop %v3060
      %v3125 = vrcp.pop %v3061
      %v3126 = vrcp.pop %v3062
      %v3127 = vrcp.pop %v3063
      %v3128 = vrcp.pop %v3064
      %v3129 = vrcp.pop %v3065
      %v3130 = vrcp.pop %v3066
      %v3131 = vrcp.pop %v3067
      %v3132 = vrcp.pop %v3068
      %v3133 = vpack.c.bf16 %v3073, %v3069
      %v3134 = vpack.c.bf16 %v3074, %v3070
      %v3135 = vpack.c.bf16 %v3075, %v3071
      %v3136 = vpack.c.bf16 %v3076, %v3072
      %v3137 = vpack.c.bf16 %v3081, %v3077
      %v3138 = vpack.c.bf16 %v3082, %v3078
      %v3139 = vpack.c.bf16 %v3083, %v3079
      %v3140 = vpack.c.bf16 %v3084, %v3080
      %v3141 = vpack.c.bf16 %v3089, %v3085
      %v3142 = vpack.c.bf16 %v3090, %v3086
      %v3143 = vpack.c.bf16 %v3091, %v3087
      %v3144 = vpack.c.bf16 %v3092, %v3088
      %v3145 = vpack.c.bf16 %v3097, %v3093
      %v3146 = vpack.c.bf16 %v3098, %v3094
      %v3147 = vpack.c.bf16 %v3099, %v3095
      %v3148 = vpack.c.bf16 %v3100, %v3096
      %v3149 = vpack.c.bf16 %v3105, %v3101
      %v3150 = vpack.c.bf16 %v3106, %v3102
      %v3151 = vpack.c.bf16 %v3107, %v3103
      %v3152 = vpack.c.bf16 %v3108, %v3104
      %v3153 = vpack.c.bf16 %v3113, %v3109
      %v3154 = vpack.c.bf16 %v3114, %v3110
      %v3155 = vpack.c.bf16 %v3115, %v3111
      %v3156 = vpack.c.bf16 %v3116, %v3112
      %v3157 = vpack.c.bf16 %v3121, %v3117
      %v3158 = vpack.c.bf16 %v3122, %v3118
      %v3159 = vpack.c.bf16 %v3123, %v3119
      %v3160 = vpack.c.bf16 %v3124, %v3120
      %v3161 = vpack.c.bf16 %v3129, %v3125
      %v3162 = vpack.c.bf16 %v3130, %v3126
      %v3163 = vpack.c.bf16 %v3131, %v3127
      %v3164 = vpack.c.bf16 %v3132, %v3128
      %v3165 = vld [vmem:[%s3] sm:$0xff]
      %v3166 = vld [vmem:[%s3 + $0x8] sm:$0xff]
      %v3167 = vld [vmem:[%s3 + $0x10] sm:$0xff]
      %v3168 = vld [vmem:[%s3 + $0x18] sm:$0xff]
      %v3169 = vld [vmem:[%s3 + $0x20] sm:$0xff]
      %v3170 = vld [vmem:[%s3 + $0x28] sm:$0xff]
      %v3171 = vld [vmem:[%s3 + $0x30] sm:$0xff]
      %v3172 = vld [vmem:[%s3 + $0x38] sm:$0xff]
      %v3173 = vld [vmem:[%s3 + $0x40] sm:$0xff]
      %v3174 = vld [vmem:[%s3 + $0x48] sm:$0xff]
      %v3175 = vld [vmem:[%s3 + $0x50] sm:$0xff]
      %v3176 = vld [vmem:[%s3 + $0x58] sm:$0xff]
      %v3177 = vld [vmem:[%s3 + $0x60] sm:$0xff]
      %v3178 = vld [vmem:[%s3 + $0x68] sm:$0xff]
      %v3179 = vld [vmem:[%s3 + $0x70] sm:$0xff]
      %v3180 = vld [vmem:[%s3 + $0x78] sm:$0xff]
      %v3181 = vld [vmem:[%s3 + $0x80] sm:$0xff]
      %v3182 = vld [vmem:[%s3 + $0x88] sm:$0xff]
      %v3183 = vld [vmem:[%s3 + $0x90] sm:$0xff]
      %v3184 = vld [vmem:[%s3 + $0x98] sm:$0xff]
      %v3185 = vld [vmem:[%s3 + $0xa0] sm:$0xff]
      %v3186 = vld [vmem:[%s3 + $0xa8] sm:$0xff]
      %v3187 = vld [vmem:[%s3 + $0xb0] sm:$0xff]
      %v3188 = vld [vmem:[%s3 + $0xb8] sm:$0xff]
      %v3189 = vld [vmem:[%s3 + $0xc0] sm:$0xff]
      %v3190 = vld [vmem:[%s3 + $0xc8] sm:$0xff]
      %v3191 = vld [vmem:[%s3 + $0xd0] sm:$0xff]
      %v3192 = vld [vmem:[%s3 + $0xd8] sm:$0xff]
      %v3193 = vld [vmem:[%s3 + $0xe0] sm:$0xff]
      %v3194 = vld [vmem:[%s3 + $0xe8] sm:$0xff]
      %v3195 = vld [vmem:[%s3 + $0xf0] sm:$0xff]
      %v3196 = vld [vmem:[%s3 + $0xf8] sm:$0xff]
      %v3197 = vld [vmem:[%s3 + $0x100] sm:$0xff]
      %v3198 = vld [vmem:[%s3 + $0x108] sm:$0xff]
      %v3199 = vld [vmem:[%s3 + $0x110] sm:$0xff]
      %v3200 = vld [vmem:[%s3 + $0x118] sm:$0xff]
      %v3201 = vld [vmem:[%s3 + $0x120] sm:$0xff]
      %v3202 = vld [vmem:[%s3 + $0x128] sm:$0xff]
      %v3203 = vld [vmem:[%s3 + $0x130] sm:$0xff]
      %v3204 = vld [vmem:[%s3 + $0x138] sm:$0xff]
      %v3205 = vld [vmem:[%s3 + $0x140] sm:$0xff]
      %v3206 = vld [vmem:[%s3 + $0x148] sm:$0xff]
      %v3207 = vld [vmem:[%s3 + $0x150] sm:$0xff]
      %v3208 = vld [vmem:[%s3 + $0x158] sm:$0xff]
      %v3209 = vld [vmem:[%s3 + $0x160] sm:$0xff]
      %v3210 = vld [vmem:[%s3 + $0x168] sm:$0xff]
      %v3211 = vld [vmem:[%s3 + $0x170] sm:$0xff]
      %v3212 = vld [vmem:[%s3 + $0x178] sm:$0xff]
      %v3213 = vld [vmem:[%s3 + $0x180] sm:$0xff]
      %v3214 = vld [vmem:[%s3 + $0x188] sm:$0xff]
      %v3215 = vld [vmem:[%s4] sm:$0x3]
      %v3217 = vlaneseq
      %v3218 = vshrl.u32 %v3217, 7
      %v3219 = vsub.s32 0, %v3218
      %v3220 = vrot.slane %v3215, %v3219
      %v3221 = vlaneseq
      %v3222 = vshrl.u32 %v3221, 7
      %v3223 = vsub.s32 1, %v3222
      %v3224 = vrot.slane %v3215, %v3223
      %v3277 = vunpack.c.l.b16 %v3165
      %v3278 = vunpack.c.h.b16 %v3165
      %v3279 = vunpack.c.l.b16 %v3166
      %v3280 = vunpack.c.h.b16 %v3166
      %v3281 = vunpack.c.l.b16 %v3167
      %v3282 = vunpack.c.h.b16 %v3167
      %v3283 = vunpack.c.l.b16 %v3168
      %v3284 = vunpack.c.h.b16 %v3168
      %v3285 = vunpack.c.l.b16 %v3169
      %v3286 = vunpack.c.h.b16 %v3169
      %v3287 = vunpack.c.l.b16 %v3170
      %v3288 = vunpack.c.h.b16 %v3170
      %v3289 = vunpack.c.l.b16 %v3171
      %v3290 = vunpack.c.h.b16 %v3171
      %v3291 = vunpack.c.l.b16 %v3172
      %v3292 = vunpack.c.h.b16 %v3172
      %v3293 = vunpack.c.l.b16 %v3173
      %v3294 = vunpack.c.h.b16 %v3173
      %v3295 = vunpack.c.l.b16 %v3174
      %v3296 = vunpack.c.h.b16 %v3174
      %v3297 = vunpack.c.l.b16 %v3175
      %v3298 = vunpack.c.h.b16 %v3175
      %v3299 = vunpack.c.l.b16 %v3176
      %v3300 = vunpack.c.h.b16 %v3176
      %v3301 = vunpack.c.l.b16 %v3177
      %v3302 = vunpack.c.h.b16 %v3177
      %v3303 = vunpack.c.l.b16 %v3178
      %v3304 = vunpack.c.h.b16 %v3178
      %v3305 = vunpack.c.l.b16 %v3179
      %v3306 = vunpack.c.h.b16 %v3179
      %v3307 = vunpack.c.l.b16 %v3180
      %v3308 = vunpack.c.h.b16 %v3180
      %v3309 = vunpack.c.l.b16 %v3181
      %v3310 = vunpack.c.h.b16 %v3181
      %v3311 = vunpack.c.l.b16 %v3182
      %v3312 = vunpack.c.h.b16 %v3182
      %v3313 = vunpack.c.l.b16 %v3183
      %v3314 = vunpack.c.h.b16 %v3183
      %v3315 = vunpack.c.l.b16 %v3184
      %v3316 = vunpack.c.h.b16 %v3184
      %v3317 = vunpack.c.l.b16 %v3185
      %v3318 = vunpack.c.h.b16 %v3185
      %v3319 = vunpack.c.l.b16 %v3186
      %v3320 = vunpack.c.h.b16 %v3186
      %v3321 = vunpack.c.l.b16 %v3187
      %v3322 = vunpack.c.h.b16 %v3187
      %v3323 = vunpack.c.l.b16 %v3188
      %v3324 = vunpack.c.h.b16 %v3188
      %v3325 = vunpack.c.l.b16 %v3189
      %v3326 = vunpack.c.h.b16 %v3189
      %v3327 = vunpack.c.l.b16 %v3190
      %v3328 = vunpack.c.h.b16 %v3190
      %v3329 = vunpack.c.l.b16 %v3191
      %v3330 = vunpack.c.h.b16 %v3191
      %v3331 = vunpack.c.l.b16 %v3192
      %v3332 = vunpack.c.h.b16 %v3192
      %v3333 = vunpack.c.l.b16 %v3193
      %v3334 = vunpack.c.h.b16 %v3193
      %v3335 = vunpack.c.l.b16 %v3194
      %v3336 = vunpack.c.h.b16 %v3194
      %v3337 = vunpack.c.l.b16 %v3195
      %v3338 = vunpack.c.h.b16 %v3195
      %v3339 = vunpack.c.l.b16 %v3196
      %v3340 = vunpack.c.h.b16 %v3196
      %v3341 = vunpack.c.l.b16 %v3197
      %v3342 = vunpack.c.h.b16 %v3197
      %v3343 = vunpack.c.l.b16 %v3198
      %v3344 = vunpack.c.h.b16 %v3198
      %v3345 = vunpack.c.l.b16 %v3199
      %v3346 = vunpack.c.h.b16 %v3199
      %v3347 = vunpack.c.l.b16 %v3200
      %v3348 = vunpack.c.h.b16 %v3200
      %v3349 = vunpack.c.l.b16 %v3201
      %v3350 = vunpack.c.h.b16 %v3201
      %v3351 = vunpack.c.l.b16 %v3202
      %v3352 = vunpack.c.h.b16 %v3202
      %v3353 = vunpack.c.l.b16 %v3203
      %v3354 = vunpack.c.h.b16 %v3203
      %v3355 = vunpack.c.l.b16 %v3204
      %v3356 = vunpack.c.h.b16 %v3204
      %v3357 = vunpack.c.l.b16 %v3205
      %v3358 = vunpack.c.h.b16 %v3205
      %v3359 = vunpack.c.l.b16 %v3206
      %v3360 = vunpack.c.h.b16 %v3206
      %v3361 = vunpack.c.l.b16 %v3207
      %v3362 = vunpack.c.h.b16 %v3207
      %v3363 = vunpack.c.l.b16 %v3208
      %v3364 = vunpack.c.h.b16 %v3208
      %v3365 = vunpack.c.l.b16 %v3209
      %v3366 = vunpack.c.h.b16 %v3209
      %v3367 = vunpack.c.l.b16 %v3210
      %v3368 = vunpack.c.h.b16 %v3210
      %v3369 = vunpack.c.l.b16 %v3211
      %v3370 = vunpack.c.h.b16 %v3211
      %v3371 = vunpack.c.l.b16 %v3212
      %v3372 = vunpack.c.h.b16 %v3212
      %v3373 = vunpack.c.l.b16 %v3213
      %v3374 = vunpack.c.h.b16 %v3213
      %v3375 = vunpack.c.l.b16 %v3214
      %v3376 = vunpack.c.h.b16 %v3214
      %v3377 = vpack.c.b16 %v3279, %v3277
      %v3378 = vpack.c.b16 %v3280, %v3278
      %v3379 = vpack.c.b16 %v3283, %v3281
      %v3380 = vpack.c.b16 %v3284, %v3282
      %v3381 = vpack.c.b16 %v3287, %v3285
      %v3382 = vpack.c.b16 %v3288, %v3286
      %v3383 = vpack.c.b16 %v3291, %v3289
      %v3384 = vpack.c.b16 %v3292, %v3290
      %v3385 = vpack.c.b16 %v3295, %v3293
      %v3386 = vpack.c.b16 %v3296, %v3294
      %v3387 = vpack.c.b16 %v3299, %v3297
      %v3388 = vpack.c.b16 %v3300, %v3298
      %v3389 = vpack.c.b16 %v3303, %v3301
      %v3390 = vpack.c.b16 %v3304, %v3302
      %v3391 = vpack.c.b16 %v3307, %v3305
      %v3392 = vpack.c.b16 %v3308, %v3306
      %v3393 = vpack.c.b16 %v3311, %v3309
      %v3394 = vpack.c.b16 %v3312, %v3310
      %v3395 = vpack.c.b16 %v3315, %v3313
      %v3396 = vpack.c.b16 %v3316, %v3314
      %v3397 = vpack.c.b16 %v3319, %v3317
      %v3398 = vpack.c.b16 %v3320, %v3318
      %v3399 = vpack.c.b16 %v3323, %v3321
      %v3400 = vpack.c.b16 %v3324, %v3322
      %v3401 = vpack.c.b16 %v3327, %v3325
      %v3402 = vpack.c.b16 %v3328, %v3326
      %v3403 = vpack.c.b16 %v3331, %v3329
      %v3404 = vpack.c.b16 %v3332, %v3330
      %v3405 = vpack.c.b16 %v3335, %v3333
      %v3406 = vpack.c.b16 %v3336, %v3334
      %v3407 = vpack.c.b16 %v3339, %v3337
      %v3408 = vpack.c.b16 %v3340, %v3338
      %v3409 = vpack.c.b16 %v3343, %v3341
      %v3410 = vpack.c.b16 %v3344, %v3342
      %v3411 = vpack.c.b16 %v3347, %v3345
      %v3412 = vpack.c.b16 %v3348, %v3346
      %v3413 = vpack.c.b16 %v3351, %v3349
      %v3414 = vpack.c.b16 %v3352, %v3350
      %v3415 = vpack.c.b16 %v3355, %v3353
      %v3416 = vpack.c.b16 %v3356, %v3354
      %v3417 = vpack.c.b16 %v3359, %v3357
      %v3418 = vpack.c.b16 %v3360, %v3358
      %v3419 = vpack.c.b16 %v3363, %v3361
      %v3420 = vpack.c.b16 %v3364, %v3362
      %v3421 = vpack.c.b16 %v3367, %v3365
      %v3422 = vpack.c.b16 %v3368, %v3366
      %v3423 = vpack.c.b16 %v3371, %v3369
      %v3424 = vpack.c.b16 %v3372, %v3370
      %v3425 = vpack.c.b16 %v3375, %v3373
      %v3426 = vpack.c.b16 %v3376, %v3374
      %v3478 = vsel %vm1884, %v3136, 0
      %v3481 = vsel %vm1884, %v3140, 0
      %v3484 = vsel %vm1884, %v3144, 0
      %v3487 = vsel %vm1884, %v3148, 0
      %v3490 = vsel %vm1884, %v3152, 0
      %v3493 = vsel %vm1884, %v3156, 0
      %v3496 = vsel %vm1884, %v3160, 0
      %v3499 = vsel %vm1884, %v3164, 0
      %3501 = vmatprep.subr.bf16.mxu0 %v3378
      %3502 = vmatpush1.bf16.msra.mxu0 %v3377
      %3503 = vmatprep.subr.bf16.mxu0 %v3380
      %3504 = vmatpush1.bf16.msra.mxu0 %v3379
      %3505 = vmatprep.subr.bf16.mxu0 %v3382
      %3506 = vmatpush1.bf16.msra.mxu0 %v3381
      %3507 = vmatprep.subr.bf16.mxu0 %v3384
      %3508 = vmatpush1.bf16.msra.mxu0 %v3383
      %3509 = vmatprep.subr.bf16.mxu0 %v3386
      %3510 = vmatpush1.bf16.msra.mxu0 %v3385
      %3511 = vmatprep.subr.bf16.mxu0 %v3388
      %3512 = vmatpush1.bf16.msra.mxu0 %v3387
      %3513 = vmatprep.subr.bf16.mxu0 %v3390
      %3514 = vmatpush1.bf16.msra.mxu0 %v3389
      %3515 = vmatprep.subr.bf16.mxu0 %v3392
      %3516 = vmatpush1.bf16.msra.mxu0 %v3391
      %3517 = vmatprep.subr.bf16.mxu0 %v3394
      %3518 = vmatpush1.bf16.msra.mxu0 %v3393
      %3519 = vmatprep.subr.bf16.mxu0 %v3396
      %3520 = vmatpush1.bf16.msra.mxu0 %v3395
      %3521 = vmatprep.subr.bf16.mxu0 %v3398
      %3522 = vmatpush1.bf16.msra.mxu0 %v3397
      %3523 = vmatprep.subr.bf16.mxu0 %v3400
      %3524 = vmatpush1.bf16.msra.mxu0 %v3399
      %3525 = vmatprep.subr.bf16.mxu0 %v3402
      %3526 = vmatpush1.bf16.msra.mxu0 %v3401
      %3527 = vmatprep.subr.bf16.mxu0 %v3404
      %3528 = vmatpush1.bf16.msra.mxu0 %v3403
      %3529 = vmatprep.subr.bf16.mxu0 %v3406
      %3530 = vmatpush1.bf16.msra.mxu0 %v3405
      %3531 = vmatprep.subr.bf16.mxu0 %v3408
      %3532 = vmatpush1.bf16.msra.mxu0 %v3407
      %3533 = vmatprep.mubr.bf16.mxu0 %v3134
      %3534 = vmatmul.mubr.bf16.gmra.mrb[0].mxu0 %v3133
      %v3535 = vpop.f32.mrb[0].mxu0
      %v3536 = vadd.f32 %v3220, %v3535
      %v3537 = vpop.f32.mrb[0].mxu0
      %v3538 = vadd.f32 %v3224, %v3537
      %v3539 = vpop.f32.mrb[0].mxu0
      %v3540 = vadd.f32 %v3220, %v3539
      %v3541 = vpop.f32.mrb[0].mxu0
      %v3542 = vadd.f32 %v3224, %v3541
      %3543 = vmatprep.mubr.bf16.mxu0 %v3138
      %3544 = vmatmul.mubr.bf16.gmra.mrb[0].mxu0 %v3137
      %v3545 = vpop.f32.mrb[0].mxu0
      %v3546 = vadd.f32 %v3220, %v3545
      %v3547 = vpop.f32.mrb[0].mxu0
      %v3548 = vadd.f32 %v3224, %v3547
      %v3549 = vpop.f32.mrb[0].mxu0
      %v3550 = vadd.f32 %v3220, %v3549
      %v3551 = vpop.f32.mrb[0].mxu0
      %v3552 = vadd.f32 %v3224, %v3551
      %3553 = vmatprep.mubr.bf16.mxu0 %v3142
      %3554 = vmatmul.mubr.bf16.gmra.mrb[0].mxu0 %v3141
      %v3555 = vpop.f32.mrb[0].mxu0
      %v3556 = vadd.f32 %v3220, %v3555
      %v3557 = vpop.f32.mrb[0].mxu0
      %v3558 = vadd.f32 %v3224, %v3557
      %v3559 = vpop.f32.mrb[0].mxu0
      %v3560 = vadd.f32 %v3220, %v3559
      %v3561 = vpop.f32.mrb[0].mxu0
      %v3562 = vadd.f32 %v3224, %v3561
      %3563 = vmatprep.mubr.bf16.mxu0 %v3146
      %3564 = vmatmul.mubr.bf16.gmra.mrb[0].mxu0 %v3145
      %v3565 = vpop.f32.mrb[0].mxu0
      %v3566 = vadd.f32 %v3220, %v3565
      %v3567 = vpop.f32.mrb[0].mxu0
      %v3568 = vadd.f32 %v3224, %v3567
      %v3569 = vpop.f32.mrb[0].mxu0
      %v3570 = vadd.f32 %v3220, %v3569
      %v3571 = vpop.f32.mrb[0].mxu0
      %v3572 = vadd.f32 %v3224, %v3571
      %3573 = vmatprep.mubr.bf16.mxu0 %v3150
      %3574 = vmatmul.mubr.bf16.gmra.mrb[0].mxu0 %v3149
      %v3575 = vpop.f32.mrb[0].mxu0
      %v3576 = vadd.f32 %v3220, %v3575
      %v3577 = vpop.f32.mrb[0].mxu0
      %v3578 = vadd.f32 %v3224, %v3577
      %v3579 = vpop.f32.mrb[0].mxu0
      %v3580 = vadd.f32 %v3220, %v3579
      %v3581 = vpop.f32.mrb[0].mxu0
      %v3582 = vadd.f32 %v3224, %v3581
      %3583 = vmatprep.mubr.bf16.mxu0 %v3154
      %3584 = vmatmul.mubr.bf16.gmra.mrb[0].mxu0 %v3153
      %v3585 = vpop.f32.mrb[0].mxu0
      %v3586 = vadd.f32 %v3220, %v3585
      %v3587 = vpop.f32.mrb[0].mxu0
      %v3588 = vadd.f32 %v3224, %v3587
      %v3589 = vpop.f32.mrb[0].mxu0
      %v3590 = vadd.f32 %v3220, %v3589
      %v3591 = vpop.f32.mrb[0].mxu0
      %v3592 = vadd.f32 %v3224, %v3591
      %3593 = vmatprep.mubr.bf16.mxu0 %v3158
      %3594 = vmatmul.mubr.bf16.gmra.mrb[0].mxu0 %v3157
      %v3595 = vpop.f32.mrb[0].mxu0
      %v3596 = vadd.f32 %v3220, %v3595
      %v3597 = vpop.f32.mrb[0].mxu0
      %v3598 = vadd.f32 %v3224, %v3597
      %v3599 = vpop.f32.mrb[0].mxu0
      %v3600 = vadd.f32 %v3220, %v3599
      %v3601 = vpop.f32.mrb[0].mxu0
      %v3602 = vadd.f32 %v3224, %v3601
      %3603 = vmatprep.mubr.bf16.mxu0 %v3162
      %3604 = vmatmul.mubr.bf16.gmra.mrb[0].mxu0 %v3161
      %v3605 = vpop.f32.mrb[0].mxu0
      %v3606 = vadd.f32 %v3220, %v3605
      %v3607 = vpop.f32.mrb[0].mxu0
      %v3608 = vadd.f32 %v3224, %v3607
      %v3609 = vpop.f32.mrb[0].mxu0
      %v3610 = vadd.f32 %v3220, %v3609
      %v3611 = vpop.f32.mrb[0].mxu0
      %v3612 = vadd.f32 %v3224, %v3611
      %3613 = vdwg.mxu0
      %3614 = vmatprep.subr.bf16.mxu0 %v3410
      %3615 = vmatpush1.bf16.msra.mxu0 %v3409
      %3616 = vmatprep.subr.bf16.mxu0 %v3412
      %3617 = vmatpush1.bf16.msra.mxu0 %v3411
      %3618 = vmatprep.subr.bf16.mxu0 %v3414
      %3619 = vmatpush1.bf16.msra.mxu0 %v3413
      %3620 = vmatprep.subr.bf16.mxu0 %v3416
      %3621 = vmatpush1.bf16.msra.mxu0 %v3415
      %3622 = vmatprep.subr.bf16.mxu0 %v3418
      %3623 = vmatpush1.bf16.msra.mxu0 %v3417
      %3624 = vmatprep.subr.bf16.mxu0 %v3420
      %3625 = vmatpush1.bf16.msra.mxu0 %v3419
      %3626 = vmatprep.subr.bf16.mxu0 %v3422
      %3627 = vmatpush1.bf16.msra.mxu0 %v3421
      %3628 = vmatprep.subr.bf16.mxu0 %v3424
      %3629 = vmatpush1.bf16.msra.mxu0 %v3423
      %3630 = vmatprep.subr.bf16.mxu0 %v3426
      %3631 = vmatpush1.bf16.msra.mxu0 %v3425
      %3632 = vmatprep.subr.bf16.mxu0 0
      %3633 = vmatpush1.bf16.msra.mxu0 0
      %3634 = vmatprep.subr.bf16.mxu0 0
      %3635 = vmatpush1.bf16.msra.mxu0 0
      %3636 = vmatprep.subr.bf16.mxu0 0
      %3637 = vmatpush1.bf16.msra.mxu0 0
      %3638 = vmatprep.subr.bf16.mxu0 0
      %3639 = vmatpush1.bf16.msra.mxu0 0
      %3640 = vmatprep.subr.bf16.mxu0 0
      %3641 = vmatpush1.bf16.msra.mxu0 0
      %3642 = vmatprep.subr.bf16.mxu0 0
      %3643 = vmatpush1.bf16.msra.mxu0 0
      %3644 = vmatprep.subr.bf16.mxu0 0
      %3645 = vmatpush1.bf16.msra.mxu0 0
      %3646 = vmatprep.mubr.bf16.mxu0 %v3478
      %3647 = vmatmul.mubr.bf16.gmra.mrb[0].mxu0 %v3135
      %v3648 = vpop.f32.mrb[0].mxu0
      %v3649 = vadd.f32 %v3536, %v3648
      %v3650 = vpop.f32.mrb[0].mxu0
      %v3651 = vadd.f32 %v3538, %v3650
      %v3652 = vpop.f32.mrb[0].mxu0
      %v3653 = vadd.f32 %v3540, %v3652
      %v3654 = vpop.f32.mrb[0].mxu0
      %v3655 = vadd.f32 %v3542, %v3654
      %3656 = vmatprep.mubr.bf16.mxu0 %v3481
      %3657 = vmatmul.mubr.bf16.gmra.mrb[0].mxu0 %v3139
      %v3658 = vpop.f32.mrb[0].mxu0
      %v3659 = vadd.f32 %v3546, %v3658
      %v3660 = vpop.f32.mrb[0].mxu0
      %v3661 = vadd.f32 %v3548, %v3660
      %v3662 = vpop.f32.mrb[0].mxu0
      %v3663 = vadd.f32 %v3550, %v3662
      %v3664 = vpop.f32.mrb[0].mxu0
      %v3665 = vadd.f32 %v3552, %v3664
      %3666 = vmatprep.mubr.bf16.mxu0 %v3484
      %3667 = vmatmul.mubr.bf16.gmra.mrb[0].mxu0 %v3143
      %v3668 = vpop.f32.mrb[0].mxu0
      %v3669 = vadd.f32 %v3556, %v3668
      %v3670 = vpop.f32.mrb[0].mxu0
      %v3671 = vadd.f32 %v3558, %v3670
      %v3672 = vpop.f32.mrb[0].mxu0
      %v3673 = vadd.f32 %v3560, %v3672
      %v3674 = vpop.f32.mrb[0].mxu0
      %v3675 = vadd.f32 %v3562, %v3674
      %3676 = vmatprep.mubr.bf16.mxu0 %v3487
      %3677 = vmatmul.mubr.bf16.gmra.mrb[0].mxu0 %v3147
      %v3678 = vpop.f32.mrb[0].mxu0
      %v3679 = vadd.f32 %v3566, %v3678
      %v3680 = vpop.f32.mrb[0].mxu0
      %v3681 = vadd.f32 %v3568, %v3680
      %v3682 = vpop.f32.mrb[0].mxu0
      %v3683 = vadd.f32 %v3570, %v3682
      %v3684 = vpop.f32.mrb[0].mxu0
      %v3685 = vadd.f32 %v3572, %v3684
      %3686 = vmatprep.mubr.bf16.mxu0 %v3490
      %3687 = vmatmul.mubr.bf16.gmra.mrb[0].mxu0 %v3151
      %v3688 = vpop.f32.mrb[0].mxu0
      %v3689 = vadd.f32 %v3576, %v3688
      %v3690 = vpop.f32.mrb[0].mxu0
      %v3691 = vadd.f32 %v3578, %v3690
      %v3692 = vpop.f32.mrb[0].mxu0
      %v3693 = vadd.f32 %v3580, %v3692
      %v3694 = vpop.f32.mrb[0].mxu0
      %v3695 = vadd.f32 %v3582, %v3694
      %3696 = vmatprep.mubr.bf16.mxu0 %v3493
      %3697 = vmatmul.mubr.bf16.gmra.mrb[0].mxu0 %v3155
      %v3698 = vpop.f32.mrb[0].mxu0
      %v3699 = vadd.f32 %v3586, %v3698
      %v3700 = vpop.f32.mrb[0].mxu0
      %v3701 = vadd.f32 %v3588, %v3700
      %v3702 = vpop.f32.mrb[0].mxu0
      %v3703 = vadd.f32 %v3590, %v3702
      %v3704 = vpop.f32.mrb[0].mxu0
      %v3705 = vadd.f32 %v3592, %v3704
      %3706 = vmatprep.mubr.bf16.mxu0 %v3496
      %3707 = vmatmul.mubr.bf16.gmra.mrb[0].mxu0 %v3159
      %v3708 = vpop.f32.mrb[0].mxu0
      %v3709 = vadd.f32 %v3596, %v3708
      %v3710 = vpop.f32.mrb[0].mxu0
      %v3711 = vadd.f32 %v3598, %v3710
      %v3712 = vpop.f32.mrb[0].mxu0
      %v3713 = vadd.f32 %v3600, %v3712
      %v3714 = vpop.f32.mrb[0].mxu0
      %v3715 = vadd.f32 %v3602, %v3714
      %3716 = vmatprep.mubr.bf16.mxu0 %v3499
      %3717 = vmatmul.mubr.bf16.gmra.mrb[0].mxu0 %v3163
      %v3718 = vpop.f32.mrb[0].mxu0
      %v3719 = vadd.f32 %v3606, %v3718
      %v3720 = vpop.f32.mrb[0].mxu0
      %v3721 = vadd.f32 %v3608, %v3720
      %v3722 = vpop.f32.mrb[0].mxu0
      %v3723 = vadd.f32 %v3610, %v3722
      %v3724 = vpop.f32.mrb[0].mxu0
      %v3725 = vadd.f32 %v3612, %v3724
      %3726 = vdwg.mxu0
      %v3727 = vsub.f32 0.0, %v3649
      %v3728 = vsub.f32 0.0, %v3651
      %v3729 = vsub.f32 0.0, %v3653
      %v3730 = vsub.f32 0.0, %v3655
      %v3731 = vsub.f32 0.0, %v3659
      %v3732 = vsub.f32 0.0, %v3661
      %v3733 = vsub.f32 0.0, %v3663
      %v3734 = vsub.f32 0.0, %v3665
      %v3735 = vsub.f32 0.0, %v3669
      %v3736 = vsub.f32 0.0, %v3671
      %v3737 = vsub.f32 0.0, %v3673
      %v3738 = vsub.f32 0.0, %v3675
      %v3739 = vsub.f32 0.0, %v3679
      %v3740 = vsub.f32 0.0, %v3681
      %v3741 = vsub.f32 0.0, %v3683
      %v3742 = vsub.f32 0.0, %v3685
      %v3743 = vsub.f32 0.0, %v3689
      %v3744 = vsub.f32 0.0, %v3691
      %v3745 = vsub.f32 0.0, %v3693
      %v3746 = vsub.f32 0.0, %v3695
      %v3747 = vsub.f32 0.0, %v3699
      %v3748 = vsub.f32 0.0, %v3701
      %v3749 = vsub.f32 0.0, %v3703
      %v3750 = vsub.f32 0.0, %v3705
      %v3751 = vsub.f32 0.0, %v3709
      %v3752 = vsub.f32 0.0, %v3711
      %v3753 = vsub.f32 0.0, %v3713
      %v3754 = vsub.f32 0.0, %v3715
      %v3755 = vsub.f32 0.0, %v3719
      %v3756 = vsub.f32 0.0, %v3721
      %v3757 = vsub.f32 0.0, %v3723
      %v3758 = vsub.f32 0.0, %v3725
      %v3759 = vmul.f32 %v3727, 1.442695
      %v3760 = vpow.pop %v3759
      %v3761 = vmul.f32 %v3728, 1.442695
      %v3762 = vpow.pop %v3761
      %v3763 = vmul.f32 %v3729, 1.442695
      %v3764 = vpow.pop %v3763
      %v3765 = vmul.f32 %v3730, 1.442695
      %v3766 = vpow.pop %v3765
      %v3767 = vmul.f32 %v3731, 1.442695
      %v3768 = vpow.pop %v3767
      %v3769 = vmul.f32 %v3732, 1.442695
      %v3770 = vpow.pop %v3769
      %v3771 = vmul.f32 %v3733, 1.442695
      %v3772 = vpow.pop %v3771
      %v3773 = vmul.f32 %v3734, 1.442695
      %v3774 = vpow.pop %v3773
      %v3775 = vmul.f32 %v3735, 1.442695
      %v3776 = vpow.pop %v3775
      %v3777 = vmul.f32 %v3736, 1.442695
      %v3778 = vpow.pop %v3777
      %v3779 = vmul.f32 %v3737, 1.442695
      %v3780 = vpow.pop %v3779
      %v3781 = vmul.f32 %v3738, 1.442695
      %v3782 = vpow.pop %v3781
      %v3783 = vmul.f32 %v3739, 1.442695
      %v3784 = vpow.pop %v3783
      %v3785 = vmul.f32 %v3740, 1.442695
      %v3786 = vpow.pop %v3785
      %v3787 = vmul.f32 %v3741, 1.442695
      %v3788 = vpow.pop %v3787
      %v3789 = vmul.f32 %v3742, 1.442695
      %v3790 = vpow.pop %v3789
      %v3791 = vmul.f32 %v3743, 1.442695
      %v3792 = vpow.pop %v3791
      %v3793 = vmul.f32 %v3744, 1.442695
      %v3794 = vpow.pop %v3793
      %v3795 = vmul.f32 %v3745, 1.442695
      %v3796 = vpow.pop %v3795
      %v3797 = vmul.f32 %v3746, 1.442695
      %v3798 = vpow.pop %v3797
      %v3799 = vmul.f32 %v3747, 1.442695
      %v3800 = vpow.pop %v3799
      %v3801 = vmul.f32 %v3748, 1.442695
      %v3802 = vpow.pop %v3801
      %v3803 = vmul.f32 %v3749, 1.442695
      %v3804 = vpow.pop %v3803
      %v3805 = vmul.f32 %v3750, 1.442695
      %v3806 = vpow.pop %v3805
      %v3807 = vmul.f32 %v3751, 1.442695
      %v3808 = vpow.pop %v3807
      %v3809 = vmul.f32 %v3752, 1.442695
      %v3810 = vpow.pop %v3809
      %v3811 = vmul.f32 %v3753, 1.442695
      %v3812 = vpow.pop %v3811
      %v3813 = vmul.f32 %v3754, 1.442695
      %v3814 = vpow.pop %v3813
      %v3815 = vmul.f32 %v3755, 1.442695
      %v3816 = vpow.pop %v3815
      %v3817 = vmul.f32 %v3756, 1.442695
      %v3818 = vpow.pop %v3817
      %v3819 = vmul.f32 %v3757, 1.442695
      %v3820 = vpow.pop %v3819
      %v3821 = vmul.f32 %v3758, 1.442695
      %v3822 = vpow.pop %v3821
      %v3823 = vadd.f32 %v3760, 1.0
      %v3824 = vadd.f32 %v3762, 1.0
      %v3825 = vadd.f32 %v3764, 1.0
      %v3826 = vadd.f32 %v3766, 1.0
      %v3827 = vadd.f32 %v3768, 1.0
      %v3828 = vadd.f32 %v3770, 1.0
      %v3829 = vadd.f32 %v3772, 1.0
      %v3830 = vadd.f32 %v3774, 1.0
      %v3831 = vadd.f32 %v3776, 1.0
      %v3832 = vadd.f32 %v3778, 1.0
      %v3833 = vadd.f32 %v3780, 1.0
      %v3834 = vadd.f32 %v3782, 1.0
      %v3835 = vadd.f32 %v3784, 1.0
      %v3836 = vadd.f32 %v3786, 1.0
      %v3837 = vadd.f32 %v3788, 1.0
      %v3838 = vadd.f32 %v3790, 1.0
      %v3839 = vadd.f32 %v3792, 1.0
      %v3840 = vadd.f32 %v3794, 1.0
      %v3841 = vadd.f32 %v3796, 1.0
      %v3842 = vadd.f32 %v3798, 1.0
      %v3843 = vadd.f32 %v3800, 1.0
      %v3844 = vadd.f32 %v3802, 1.0
      %v3845 = vadd.f32 %v3804, 1.0
      %v3846 = vadd.f32 %v3806, 1.0
      %v3847 = vadd.f32 %v3808, 1.0
      %v3848 = vadd.f32 %v3810, 1.0
      %v3849 = vadd.f32 %v3812, 1.0
      %v3850 = vadd.f32 %v3814, 1.0
      %v3851 = vadd.f32 %v3816, 1.0
      %v3852 = vadd.f32 %v3818, 1.0
      %v3853 = vadd.f32 %v3820, 1.0
      %v3854 = vadd.f32 %v3822, 1.0
      %v3855 = vrcp.pop %v3823
      %v3856 = vrcp.pop %v3824
      %v3857 = vrcp.pop %v3825
      %v3858 = vrcp.pop %v3826
      %v3859 = vrcp.pop %v3827
      %v3860 = vrcp.pop %v3828
      %v3861 = vrcp.pop %v3829
      %v3862 = vrcp.pop %v3830
      %v3863 = vrcp.pop %v3831
      %v3864 = vrcp.pop %v3832
      %v3865 = vrcp.pop %v3833
      %v3866 = vrcp.pop %v3834
      %v3867 = vrcp.pop %v3835
      %v3868 = vrcp.pop %v3836
      %v3869 = vrcp.pop %v3837
      %v3870 = vrcp.pop %v3838
      %v3871 = vrcp.pop %v3839
      %v3872 = vrcp.pop %v3840
      %v3873 = vrcp.pop %v3841
      %v3874 = vrcp.pop %v3842
      %v3875 = vrcp.pop %v3843
      %v3876 = vrcp.pop %v3844
      %v3877 = vrcp.pop %v3845
      %v3878 = vrcp.pop %v3846
      %v3879 = vrcp.pop %v3847
      %v3880 = vrcp.pop %v3848
      %v3881 = vrcp.pop %v3849
      %v3882 = vrcp.pop %v3850
      %v3883 = vrcp.pop %v3851
      %v3884 = vrcp.pop %v3852
      %v3885 = vrcp.pop %v3853
      %v3886 = vrcp.pop %v3854
      %v3887 = vpack.c.bf16 %v3857, %v3855
      %v3888 = vpack.c.bf16 %v3858, %v3856
      %v3889 = vpack.c.bf16 %v3861, %v3859
      %v3890 = vpack.c.bf16 %v3862, %v3860
      %v3891 = vpack.c.bf16 %v3865, %v3863
      %v3892 = vpack.c.bf16 %v3866, %v3864
      %v3893 = vpack.c.bf16 %v3869, %v3867
      %v3894 = vpack.c.bf16 %v3870, %v3868
      %v3895 = vpack.c.bf16 %v3873, %v3871
      %v3896 = vpack.c.bf16 %v3874, %v3872
      %v3897 = vpack.c.bf16 %v3877, %v3875
      %v3898 = vpack.c.bf16 %v3878, %v3876
      %v3899 = vpack.c.bf16 %v3881, %v3879
      %v3900 = vpack.c.bf16 %v3882, %v3880
      %v3901 = vpack.c.bf16 %v3885, %v3883
      %v3902 = vpack.c.bf16 %v3886, %v3884
      %v3903 = vld [vmem:[%s5] sm:$0xff]
      %v3904 = vld [vmem:[%s5 + $0x8] sm:$0xff]
      %v3905 = vld [vmem:[%s5 + $0x10] sm:$0xff]
      %v3906 = vld [vmem:[%s5 + $0x18] sm:$0xff]
      %v3907 = vld [vmem:[%s5 + $0x20] sm:$0xff]
      %v3908 = vld [vmem:[%s5 + $0x28] sm:$0xff]
      %v3909 = vld [vmem:[%s5 + $0x30] sm:$0xff]
      %v3910 = vld [vmem:[%s5 + $0x38] sm:$0xff]
      %v3911 = vld [vmem:[%s5 + $0x40] sm:$0xff]
      %v3912 = vld [vmem:[%s5 + $0x48] sm:$0xff]
      %v3913 = vld [vmem:[%s5 + $0x50] sm:$0xff]
      %v3914 = vld [vmem:[%s5 + $0x58] sm:$0xff]
      %v3915 = vld [vmem:[%s5 + $0x60] sm:$0xff]
      %v3916 = vld [vmem:[%s5 + $0x68] sm:$0xff]
      %v3917 = vld [vmem:[%s5 + $0x70] sm:$0xff]
      %v3918 = vld [vmem:[%s5 + $0x78] sm:$0xff]
      %v3919 = vld [vmem:[%s5 + $0x80] sm:$0xff]
      %v3920 = vld [vmem:[%s5 + $0x88] sm:$0xff]
      %v3921 = vld [vmem:[%s5 + $0x90] sm:$0xff]
      %v3922 = vld [vmem:[%s5 + $0x98] sm:$0xff]
      %v3923 = vld [vmem:[%s5 + $0xa0] sm:$0xff]
      %v3924 = vld [vmem:[%s5 + $0xa8] sm:$0xff]
      %v3925 = vld [vmem:[%s5 + $0xb0] sm:$0xff]
      %v3926 = vld [vmem:[%s5 + $0xb8] sm:$0xff]
      %v3927 = vld [vmem:[%s5 + $0xc0] sm:$0xff]
      %v3928 = vld [vmem:[%s5 + $0xc8] sm:$0xff]
      %v3929 = vld [vmem:[%s5 + $0xd0] sm:$0xff]
      %v3930 = vld [vmem:[%s5 + $0xd8] sm:$0xff]
      %v3931 = vld [vmem:[%s5 + $0xe0] sm:$0xff]
      %v3932 = vld [vmem:[%s5 + $0xe8] sm:$0xff]
      %v3933 = vld [vmem:[%s5 + $0xf0] sm:$0xff]
      %v3934 = vld [vmem:[%s5 + $0xf8] sm:$0xff]
      %v3935 = vld [vmem:[%s5 + $0x100] sm:$0xff]
      %v3936 = vld [vmem:[%s5 + $0x108] sm:$0xff]
      %v3937 = vld [vmem:[%s5 + $0x110] sm:$0xff]
      %v3938 = vld [vmem:[%s5 + $0x118] sm:$0xff]
      %v3939 = vld [vmem:[%s5 + $0x120] sm:$0xff]
      %v3940 = vld [vmem:[%s5 + $0x128] sm:$0xff]
      %v3941 = vld [vmem:[%s5 + $0x130] sm:$0xff]
      %v3942 = vld [vmem:[%s5 + $0x138] sm:$0xff]
      %v3943 = vld [vmem:[%s5 + $0x140] sm:$0xff]
      %v3944 = vld [vmem:[%s5 + $0x148] sm:$0xff]
      %v3945 = vld [vmem:[%s5 + $0x150] sm:$0xff]
      %v3946 = vld [vmem:[%s5 + $0x158] sm:$0xff]
      %v3947 = vld [vmem:[%s5 + $0x160] sm:$0xff]
      %v3948 = vld [vmem:[%s5 + $0x168] sm:$0xff]
      %v3949 = vld [vmem:[%s5 + $0x170] sm:$0xff]
      %v3950 = vld [vmem:[%s5 + $0x178] sm:$0xff]
      %v3951 = vld [vmem:[%s5 + $0x180] sm:$0xff]
      %v3952 = vld [vmem:[%s5 + $0x188] sm:$0xff]
      %v3953 = vld [vmem:[%s5 + $0x190] sm:$0xff]
      %v3954 = vld [vmem:[%s5 + $0x198] sm:$0xff]
      %v3955 = vld [vmem:[%s5 + $0x1a0] sm:$0xff]
      %v3956 = vld [vmem:[%s5 + $0x1a8] sm:$0xff]
      %v3957 = vld [vmem:[%s5 + $0x1b0] sm:$0xff]
      %v3958 = vld [vmem:[%s5 + $0x1b8] sm:$0xff]
      %v3959 = vld [vmem:[%s5 + $0x1c0] sm:$0xff]
      %v3960 = vld [vmem:[%s5 + $0x1c8] sm:$0xff]
      %v3961 = vld [vmem:[%s5 + $0x1d0] sm:$0xff]
      %v3962 = vld [vmem:[%s5 + $0x1d8] sm:$0xff]
      %v3963 = vld [vmem:[%s5 + $0x1e0] sm:$0xff]
      %v3964 = vld [vmem:[%s5 + $0x1e8] sm:$0xff]
      %v3965 = vld [vmem:[%s5 + $0x1f0] sm:$0xff]
      %v3966 = vld [vmem:[%s5 + $0x1f8] sm:$0xff]
      %v3967 = vld [vmem:[%s6] sm:$0xf]
      %v3969 = vlaneseq
      %v3970 = vshrl.u32 %v3969, 7
      %v3971 = vsub.s32 0, %v3970
      %v3972 = vrot.slane %v3967, %v3971
      %v3973 = vlaneseq
      %v3974 = vshrl.u32 %v3973, 7
      %v3975 = vsub.s32 1, %v3974
      %v3976 = vrot.slane %v3967, %v3975
      %v3977 = vlaneseq
      %v3978 = vshrl.u32 %v3977, 7
      %v3979 = vsub.s32 2, %v3978
      %v3980 = vrot.slane %v3967, %v3979
      %v3981 = vlaneseq
      %v3982 = vshrl.u32 %v3981, 7
      %v3983 = vsub.s32 3, %v3982
      %v3984 = vrot.slane %v3967, %v3983
      %v4053 = vunpack.c.l.b16 %v3903
      %v4054 = vunpack.c.h.b16 %v3903
      %v4055 = vunpack.c.l.b16 %v3904
      %v4056 = vunpack.c.h.b16 %v3904
      %v4057 = vunpack.c.l.b16 %v3905
      %v4058 = vunpack.c.h.b16 %v3905
      %v4059 = vunpack.c.l.b16 %v3906
      %v4060 = vunpack.c.h.b16 %v3906
      %v4061 = vunpack.c.l.b16 %v3907
      %v4062 = vunpack.c.h.b16 %v3907
      %v4063 = vunpack.c.l.b16 %v3908
      %v4064 = vunpack.c.h.b16 %v3908
      %v4065 = vunpack.c.l.b16 %v3909
      %v4066 = vunpack.c.h.b16 %v3909
      %v4067 = vunpack.c.l.b16 %v3910
      %v4068 = vunpack.c.h.b16 %v3910
      %v4069 = vunpack.c.l.b16 %v3911
      %v4070 = vunpack.c.h.b16 %v3911
      %v4071 = vunpack.c.l.b16 %v3912
      %v4072 = vunpack.c.h.b16 %v3912
      %v4073 = vunpack.c.l.b16 %v3913
      %v4074 = vunpack.c.h.b16 %v3913
      %v4075 = vunpack.c.l.b16 %v3914
      %v4076 = vunpack.c.h.b16 %v3914
      %v4077 = vunpack.c.l.b16 %v3915
      %v4078 = vunpack.c.h.b16 %v3915
      %v4079 = vunpack.c.l.b16 %v3916
      %v4080 = vunpack.c.h.b16 %v3916
      %v4081 = vunpack.c.l.b16 %v3917
      %v4082 = vunpack.c.h.b16 %v3917
      %v4083 = vunpack.c.l.b16 %v3918
      %v4084 = vunpack.c.h.b16 %v3918
      %v4085 = vunpack.c.l.b16 %v3919
      %v4086 = vunpack.c.h.b16 %v3919
      %v4087 = vunpack.c.l.b16 %v3920
      %v4088 = vunpack.c.h.b16 %v3920
      %v4089 = vunpack.c.l.b16 %v3921
      %v4090 = vunpack.c.h.b16 %v3921
      %v4091 = vunpack.c.l.b16 %v3922
      %v4092 = vunpack.c.h.b16 %v3922
      %v4093 = vunpack.c.l.b16 %v3923
      %v4094 = vunpack.c.h.b16 %v3923
      %v4095 = vunpack.c.l.b16 %v3924
      %v4096 = vunpack.c.h.b16 %v3924
      %v4097 = vunpack.c.l.b16 %v3925
      %v4098 = vunpack.c.h.b16 %v3925
      %v4099 = vunpack.c.l.b16 %v3926
      %v4100 = vunpack.c.h.b16 %v3926
      %v4101 = vunpack.c.l.b16 %v3927
      %v4102 = vunpack.c.h.b16 %v3927
      %v4103 = vunpack.c.l.b16 %v3928
      %v4104 = vunpack.c.h.b16 %v3928
      %v4105 = vunpack.c.l.b16 %v3929
      %v4106 = vunpack.c.h.b16 %v3929
      %v4107 = vunpack.c.l.b16 %v3930
      %v4108 = vunpack.c.h.b16 %v3930
      %v4109 = vunpack.c.l.b16 %v3931
      %v4110 = vunpack.c.h.b16 %v3931
      %v4111 = vunpack.c.l.b16 %v3932
      %v4112 = vunpack.c.h.b16 %v3932
      %v4113 = vunpack.c.l.b16 %v3933
      %v4114 = vunpack.c.h.b16 %v3933
      %v4115 = vunpack.c.l.b16 %v3934
      %v4116 = vunpack.c.h.b16 %v3934
      %v4117 = vunpack.c.l.b16 %v3935
      %v4118 = vunpack.c.h.b16 %v3935
      %v4119 = vunpack.c.l.b16 %v3936
      %v4120 = vunpack.c.h.b16 %v3936
      %v4121 = vunpack.c.l.b16 %v3937
      %v4122 = vunpack.c.h.b16 %v3937
      %v4123 = vunpack.c.l.b16 %v3938
      %v4124 = vunpack.c.h.b16 %v3938
      %v4125 = vunpack.c.l.b16 %v3939
      %v4126 = vunpack.c.h.b16 %v3939
      %v4127 = vunpack.c.l.b16 %v3940
      %v4128 = vunpack.c.h.b16 %v3940
      %v4129 = vunpack.c.l.b16 %v3941
      %v4130 = vunpack.c.h.b16 %v3941
      %v4131 = vunpack.c.l.b16 %v3942
      %v4132 = vunpack.c.h.b16 %v3942
      %v4133 = vunpack.c.l.b16 %v3943
      %v4134 = vunpack.c.h.b16 %v3943
      %v4135 = vunpack.c.l.b16 %v3944
      %v4136 = vunpack.c.h.b16 %v3944
      %v4137 = vunpack.c.l.b16 %v3945
      %v4138 = vunpack.c.h.b16 %v3945
      %v4139 = vunpack.c.l.b16 %v3946
      %v4140 = vunpack.c.h.b16 %v3946
      %v4141 = vunpack.c.l.b16 %v3947
      %v4142 = vunpack.c.h.b16 %v3947
      %v4143 = vunpack.c.l.b16 %v3948
      %v4144 = vunpack.c.h.b16 %v3948
      %v4145 = vunpack.c.l.b16 %v3949
      %v4146 = vunpack.c.h.b16 %v3949
      %v4147 = vunpack.c.l.b16 %v3950
      %v4148 = vunpack.c.h.b16 %v3950
      %v4149 = vunpack.c.l.b16 %v3951
      %v4150 = vunpack.c.h.b16 %v3951
      %v4151 = vunpack.c.l.b16 %v3952
      %v4152 = vunpack.c.h.b16 %v3952
      %v4153 = vunpack.c.l.b16 %v3953
      %v4154 = vunpack.c.h.b16 %v3953
      %v4155 = vunpack.c.l.b16 %v3954
      %v4156 = vunpack.c.h.b16 %v3954
      %v4157 = vunpack.c.l.b16 %v3955
      %v4158 = vunpack.c.h.b16 %v3955
      %v4159 = vunpack.c.l.b16 %v3956
      %v4160 = vunpack.c.h.b16 %v3956
      %v4161 = vunpack.c.l.b16 %v3957
      %v4162 = vunpack.c.h.b16 %v3957
      %v4163 = vunpack.c.l.b16 %v3958
      %v4164 = vunpack.c.h.b16 %v3958
      %v4165 = vunpack.c.l.b16 %v3959
      %v4166 = vunpack.c.h.b16 %v3959
      %v4167 = vunpack.c.l.b16 %v3960
      %v4168 = vunpack.c.h.b16 %v3960
      %v4169 = vunpack.c.l.b16 %v3961
      %v4170 = vunpack.c.h.b16 %v3961
      %v4171 = vunpack.c.l.b16 %v3962
      %v4172 = vunpack.c.h.b16 %v3962
      %v4173 = vunpack.c.l.b16 %v3963
      %v4174 = vunpack.c.h.b16 %v3963
      %v4175 = vunpack.c.l.b16 %v3964
      %v4176 = vunpack.c.h.b16 %v3964
      %v4177 = vunpack.c.l.b16 %v3965
      %v4178 = vunpack.c.h.b16 %v3965
      %v4179 = vunpack.c.l.b16 %v3966
      %v4180 = vunpack.c.h.b16 %v3966
      %v4181 = vpack.c.b16 %v4057, %v4053
      %v4182 = vpack.c.b16 %v4058, %v4054
      %v4183 = vpack.c.b16 %v4059, %v4055
      %v4184 = vpack.c.b16 %v4060, %v4056
      %v4185 = vpack.c.b16 %v4065, %v4061
      %v4186 = vpack.c.b16 %v4066, %v4062
      %v4187 = vpack.c.b16 %v4067, %v4063
      %v4188 = vpack.c.b16 %v4068, %v4064
      %v4189 = vpack.c.b16 %v4073, %v4069
      %v4190 = vpack.c.b16 %v4074, %v4070
      %v4191 = vpack.c.b16 %v4075, %v4071
      %v4192 = vpack.c.b16 %v4076, %v4072
      %v4193 = vpack.c.b16 %v4081, %v4077
      %v4194 = vpack.c.b16 %v4082, %v4078
      %v4195 = vpack.c.b16 %v4083, %v4079
      %v4196 = vpack.c.b16 %v4084, %v4080
      %v4197 = vpack.c.b16 %v4089, %v4085
      %v4198 = vpack.c.b16 %v4090, %v4086
      %v4199 = vpack.c.b16 %v4091, %v4087
      %v4200 = vpack.c.b16 %v4092, %v4088
      %v4201 = vpack.c.b16 %v4097, %v4093
      %v4202 = vpack.c.b16 %v4098, %v4094
      %v4203 = vpack.c.b16 %v4099, %v4095
      %v4204 = vpack.c.b16 %v4100, %v4096
      %v4205 = vpack.c.b16 %v4105, %v4101
      %v4206 = vpack.c.b16 %v4106, %v4102
      %v4207 = vpack.c.b16 %v4107, %v4103
      %v4208 = vpack.c.b16 %v4108, %v4104
      %v4209 = vpack.c.b16 %v4113, %v4109
      %v4210 = vpack.c.b16 %v4114, %v4110
      %v4211 = vpack.c.b16 %v4115, %v4111
      %v4212 = vpack.c.b16 %v4116, %v4112
      %v4213 = vpack.c.b16 %v4121, %v4117
      %v4214 = vpack.c.b16 %v4122, %v4118
      %v4215 = vpack.c.b16 %v4123, %v4119
      %v4216 = vpack.c.b16 %v4124, %v4120
      %v4217 = vpack.c.b16 %v4129, %v4125
      %v4218 = vpack.c.b16 %v4130, %v4126
      %v4219 = vpack.c.b16 %v4131, %v4127
      %v4220 = vpack.c.b16 %v4132, %v4128
      %v4221 = vpack.c.b16 %v4137, %v4133
      %v4222 = vpack.c.b16 %v4138, %v4134
      %v4223 = vpack.c.b16 %v4139, %v4135
      %v4224 = vpack.c.b16 %v4140, %v4136
      %v4225 = vpack.c.b16 %v4145, %v4141
      %v4226 = vpack.c.b16 %v4146, %v4142
      %v4227 = vpack.c.b16 %v4147, %v4143
      %v4228 = vpack.c.b16 %v4148, %v4144
      %v4229 = vpack.c.b16 %v4153, %v4149
      %v4230 = vpack.c.b16 %v4154, %v4150
      %v4231 = vpack.c.b16 %v4155, %v4151
      %v4232 = vpack.c.b16 %v4156, %v4152
      %v4233 = vpack.c.b16 %v4161, %v4157
      %v4234 = vpack.c.b16 %v4162, %v4158
      %v4235 = vpack.c.b16 %v4163, %v4159
      %v4236 = vpack.c.b16 %v4164, %v4160
      %v4237 = vpack.c.b16 %v4169, %v4165
      %v4238 = vpack.c.b16 %v4170, %v4166
      %v4239 = vpack.c.b16 %v4171, %v4167
      %v4240 = vpack.c.b16 %v4172, %v4168
      %v4241 = vpack.c.b16 %v4177, %v4173
      %v4242 = vpack.c.b16 %v4178, %v4174
      %v4243 = vpack.c.b16 %v4179, %v4175
      %v4244 = vpack.c.b16 %v4180, %v4176
      %4309 = vmatprep.subr.bf16.mxu0 %v4182
      %4310 = vmatpush1.bf16.msra.mxu0 %v4181
      %4311 = vmatprep.subr.bf16.mxu0 %v4186
      %4312 = vmatpush1.bf16.msra.mxu0 %v4185
      %4313 = vmatprep.subr.bf16.mxu0 %v4190
      %4314 = vmatpush1.bf16.msra.mxu0 %v4189
      %4315 = vmatprep.subr.bf16.mxu0 %v4194
      %4316 = vmatpush1.bf16.msra.mxu0 %v4193
      %4317 = vmatprep.subr.bf16.mxu0 %v4198
      %4318 = vmatpush1.bf16.msra.mxu0 %v4197
      %4319 = vmatprep.subr.bf16.mxu0 %v4202
      %4320 = vmatpush1.bf16.msra.mxu0 %v4201
      %4321 = vmatprep.subr.bf16.mxu0 %v4206
      %4322 = vmatpush1.bf16.msra.mxu0 %v4205
      %4323 = vmatprep.subr.bf16.mxu0 %v4210
      %4324 = vmatpush1.bf16.msra.mxu0 %v4209
      %4325 = vmatprep.subr.bf16.mxu0 %v4214
      %4326 = vmatpush1.bf16.msra.mxu0 %v4213
      %4327 = vmatprep.subr.bf16.mxu0 %v4218
      %4328 = vmatpush1.bf16.msra.mxu0 %v4217
      %4329 = vmatprep.subr.bf16.mxu0 %v4222
      %4330 = vmatpush1.bf16.msra.mxu0 %v4221
      %4331 = vmatprep.subr.bf16.mxu0 %v4226
      %4332 = vmatpush1.bf16.msra.mxu0 %v4225
      %4333 = vmatprep.subr.bf16.mxu0 %v4230
      %4334 = vmatpush1.bf16.msra.mxu0 %v4229
      %4335 = vmatprep.subr.bf16.mxu0 %v4234
      %4336 = vmatpush1.bf16.msra.mxu0 %v4233
      %4337 = vmatprep.subr.bf16.mxu0 %v4238
      %4338 = vmatpush1.bf16.msra.mxu0 %v4237
      %4339 = vmatprep.subr.bf16.mxu0 %v4242
      %4340 = vmatpush1.bf16.msra.mxu0 %v4241
      %4341 = vmatprep.mubr.bf16.mxu0 %v3888
      %4342 = vmatmul.mubr.bf16.gmra.mrb[0].mxu0 %v3887
      %v4343 = vpop.f32.mrb[0].mxu0
      %v4344 = vadd.f32 %v3972, %v4343
      %v4345 = vpop.f32.mrb[0].mxu0
      %v4346 = vadd.f32 %v3976, %v4345
      %v4347 = vpop.f32.mrb[0].mxu0
      %v4348 = vadd.f32 %v3972, %v4347
      %v4349 = vpop.f32.mrb[0].mxu0
      %v4350 = vadd.f32 %v3976, %v4349
      %4351 = vmatprep.mubr.bf16.mxu0 %v3890
      %4352 = vmatmul.mubr.bf16.gmra.mrb[0].mxu0 %v3889
      %v4353 = vpop.f32.mrb[0].mxu0
      %v4354 = vadd.f32 %v3972, %v4353
      %v4355 = vpop.f32.mrb[0].mxu0
      %v4356 = vadd.f32 %v3976, %v4355
      %v4357 = vpop.f32.mrb[0].mxu0
      %v4358 = vadd.f32 %v3972, %v4357
      %v4359 = vpop.f32.mrb[0].mxu0
      %v4360 = vadd.f32 %v3976, %v4359
      %4361 = vmatprep.mubr.bf16.mxu0 %v3892
      %4362 = vmatmul.mubr.bf16.gmra.mrb[0].mxu0 %v3891
      %v4363 = vpop.f32.mrb[0].mxu0
      %v4364 = vadd.f32 %v3972, %v4363
      %v4365 = vpop.f32.mrb[0].mxu0
      %v4366 = vadd.f32 %v3976, %v4365
      %v4367 = vpop.f32.mrb[0].mxu0
      %v4368 = vadd.f32 %v3972, %v4367
      %v4369 = vpop.f32.mrb[0].mxu0
      %v4370 = vadd.f32 %v3976, %v4369
      %4371 = vmatprep.mubr.bf16.mxu0 %v3894
      %4372 = vmatmul.mubr.bf16.gmra.mrb[0].mxu0 %v3893
      %v4373 = vpop.f32.mrb[0].mxu0
      %v4374 = vadd.f32 %v3972, %v4373
      %v4375 = vpop.f32.mrb[0].mxu0
      %v4376 = vadd.f32 %v3976, %v4375
      %v4377 = vpop.f32.mrb[0].mxu0
      %v4378 = vadd.f32 %v3972, %v4377
      %v4379 = vpop.f32.mrb[0].mxu0
      %v4380 = vadd.f32 %v3976, %v4379
      %4381 = vmatprep.mubr.bf16.mxu0 %v3896
      %4382 = vmatmul.mubr.bf16.gmra.mrb[0].mxu0 %v3895
      %v4383 = vpop.f32.mrb[0].mxu0
      %v4384 = vadd.f32 %v3972, %v4383
      %v4385 = vpop.f32.mrb[0].mxu0
      %v4386 = vadd.f32 %v3976, %v4385
      %v4387 = vpop.f32.mrb[0].mxu0
      %v4388 = vadd.f32 %v3972, %v4387
      %v4389 = vpop.f32.mrb[0].mxu0
      %v4390 = vadd.f32 %v3976, %v4389
      %4391 = vmatprep.mubr.bf16.mxu0 %v3898
      %4392 = vmatmul.mubr.bf16.gmra.mrb[0].mxu0 %v3897
      %v4393 = vpop.f32.mrb[0].mxu0
      %v4394 = vadd.f32 %v3972, %v4393
      %v4395 = vpop.f32.mrb[0].mxu0
      %v4396 = vadd.f32 %v3976, %v4395
      %v4397 = vpop.f32.mrb[0].mxu0
      %v4398 = vadd.f32 %v3972, %v4397
      %v4399 = vpop.f32.mrb[0].mxu0
      %v4400 = vadd.f32 %v3976, %v4399
      %4401 = vmatprep.mubr.bf16.mxu0 %v3900
      %4402 = vmatmul.mubr.bf16.gmra.mrb[0].mxu0 %v3899
      %v4403 = vpop.f32.mrb[0].mxu0
      %v4404 = vadd.f32 %v3972, %v4403
      %v4405 = vpop.f32.mrb[0].mxu0
      %v4406 = vadd.f32 %v3976, %v4405
      %v4407 = vpop.f32.mrb[0].mxu0
      %v4408 = vadd.f32 %v3972, %v4407
      %v4409 = vpop.f32.mrb[0].mxu0
      %v4410 = vadd.f32 %v3976, %v4409
      %4411 = vmatprep.mubr.bf16.mxu0 %v3902
      %4412 = vmatmul.mubr.bf16.gmra.mrb[0].mxu0 %v3901
      %v4413 = vpop.f32.mrb[0].mxu0
      %v4414 = vadd.f32 %v3972, %v4413
      %v4415 = vpop.f32.mrb[0].mxu0
      %v4416 = vadd.f32 %v3976, %v4415
      %v4417 = vpop.f32.mrb[0].mxu0
      %v4418 = vadd.f32 %v3972, %v4417
      %v4419 = vpop.f32.mrb[0].mxu0
      %v4420 = vadd.f32 %v3976, %v4419
      %4421 = vdwg.mxu0
      %4422 = vmatprep.subr.bf16.mxu0 %v4184
      %4423 = vmatpush1.bf16.msra.mxu0 %v4183
      %4424 = vmatprep.subr.bf16.mxu0 %v4188
      %4425 = vmatpush1.bf16.msra.mxu0 %v4187
      %4426 = vmatprep.subr.bf16.mxu0 %v4192
      %4427 = vmatpush1.bf16.msra.mxu0 %v4191
      %4428 = vmatprep.subr.bf16.mxu0 %v4196
      %4429 = vmatpush1.bf16.msra.mxu0 %v4195
      %4430 = vmatprep.subr.bf16.mxu0 %v4200
      %4431 = vmatpush1.bf16.msra.mxu0 %v4199
      %4432 = vmatprep.subr.bf16.mxu0 %v4204
      %4433 = vmatpush1.bf16.msra.mxu0 %v4203
      %4434 = vmatprep.subr.bf16.mxu0 %v4208
      %4435 = vmatpush1.bf16.msra.mxu0 %v4207
      %4436 = vmatprep.subr.bf16.mxu0 %v4212
      %4437 = vmatpush1.bf16.msra.mxu0 %v4211
      %4438 = vmatprep.subr.bf16.mxu0 %v4216
      %4439 = vmatpush1.bf16.msra.mxu0 %v4215
      %4440 = vmatprep.subr.bf16.mxu0 %v4220
      %4441 = vmatpush1.bf16.msra.mxu0 %v4219
      %4442 = vmatprep.subr.bf16.mxu0 %v4224
      %4443 = vmatpush1.bf16.msra.mxu0 %v4223
      %4444 = vmatprep.subr.bf16.mxu0 %v4228
      %4445 = vmatpush1.bf16.msra.mxu0 %v4227
      %4446 = vmatprep.subr.bf16.mxu0 %v4232
      %4447 = vmatpush1.bf16.msra.mxu0 %v4231
      %4448 = vmatprep.subr.bf16.mxu0 %v4236
      %4449 = vmatpush1.bf16.msra.mxu0 %v4235
      %4450 = vmatprep.subr.bf16.mxu0 %v4240
      %4451 = vmatpush1.bf16.msra.mxu0 %v4239
      %4452 = vmatprep.subr.bf16.mxu0 %v4244
      %4453 = vmatpush1.bf16.msra.mxu0 %v4243
      %4454 = vmatprep.mubr.bf16.mxu0 %v3888
      %4455 = vmatmul.mubr.bf16.gmra.mrb[0].mxu0 %v3887
      %v4456 = vpop.f32.mrb[0].mxu0
      %v4457 = vadd.f32 %v3980, %v4456
      %v4458 = vpop.f32.mrb[0].mxu0
      %v4459 = vadd.f32 %v3984, %v4458
      %v4460 = vpop.f32.mrb[0].mxu0
      %v4461 = vadd.f32 %v3980, %v4460
      %v4462 = vpop.f32.mrb[0].mxu0
      %v4463 = vadd.f32 %v3984, %v4462
      %4464 = vmatprep.mubr.bf16.mxu0 %v3890
      %4465 = vmatmul.mubr.bf16.gmra.mrb[0].mxu0 %v3889
      %v4466 = vpop.f32.mrb[0].mxu0
      %v4467 = vadd.f32 %v3980, %v4466
      %v4468 = vpop.f32.mrb[0].mxu0
      %v4469 = vadd.f32 %v3984, %v4468
      %v4470 = vpop.f32.mrb[0].mxu0
      %v4471 = vadd.f32 %v3980, %v4470
      %v4472 = vpop.f32.mrb[0].mxu0
      %v4473 = vadd.f32 %v3984, %v4472
      %4474 = vmatprep.mubr.bf16.mxu0 %v3892
      %4475 = vmatmul.mubr.bf16.gmra.mrb[0].mxu0 %v3891
      %v4476 = vpop.f32.mrb[0].mxu0
      %v4477 = vadd.f32 %v3980, %v4476
      %v4478 = vpop.f32.mrb[0].mxu0
      %v4479 = vadd.f32 %v3984, %v4478
      %v4480 = vpop.f32.mrb[0].mxu0
      %v4481 = vadd.f32 %v3980, %v4480
      %v4482 = vpop.f32.mrb[0].mxu0
      %v4483 = vadd.f32 %v3984, %v4482
      %4484 = vmatprep.mubr.bf16.mxu0 %v3894
      %4485 = vmatmul.mubr.bf16.gmra.mrb[0].mxu0 %v3893
      %v4486 = vpop.f32.mrb[0].mxu0
      %v4487 = vadd.f32 %v3980, %v4486
      %v4488 = vpop.f32.mrb[0].mxu0
      %v4489 = vadd.f32 %v3984, %v4488
      %v4490 = vpop.f32.mrb[0].mxu0
      %v4491 = vadd.f32 %v3980, %v4490
      %v4492 = vpop.f32.mrb[0].mxu0
      %v4493 = vadd.f32 %v3984, %v4492
      %4494 = vmatprep.mubr.bf16.mxu0 %v3896
      %4495 = vmatmul.mubr.bf16.gmra.mrb[0].mxu0 %v3895
      %v4496 = vpop.f32.mrb[0].mxu0
      %v4497 = vadd.f32 %v3980, %v4496
      %v4498 = vpop.f32.mrb[0].mxu0
      %v4499 = vadd.f32 %v3984, %v4498
      %v4500 = vpop.f32.mrb[0].mxu0
      %v4501 = vadd.f32 %v3980, %v4500
      %v4502 = vpop.f32.mrb[0].mxu0
      %v4503 = vadd.f32 %v3984, %v4502
      %4504 = vmatprep.mubr.bf16.mxu0 %v3898
      %4505 = vmatmul.mubr.bf16.gmra.mrb[0].mxu0 %v3897
      %v4506 = vpop.f32.mrb[0].mxu0
      %v4507 = vadd.f32 %v3980, %v4506
      %v4508 = vpop.f32.mrb[0].mxu0
      %v4509 = vadd.f32 %v3984, %v4508
      %v4510 = vpop.f32.mrb[0].mxu0
      %v4511 = vadd.f32 %v3980, %v4510
      %v4512 = vpop.f32.mrb[0].mxu0
      %v4513 = vadd.f32 %v3984, %v4512
      %4514 = vmatprep.mubr.bf16.mxu0 %v3900
      %4515 = vmatmul.mubr.bf16.gmra.mrb[0].mxu0 %v3899
      %v4516 = vpop.f32.mrb[0].mxu0
      %v4517 = vadd.f32 %v3980, %v4516
      %v4518 = vpop.f32.mrb[0].mxu0
      %v4519 = vadd.f32 %v3984, %v4518
      %v4520 = vpop.f32.mrb[0].mxu0
      %v4521 = vadd.f32 %v3980, %v4520
      %v4522 = vpop.f32.mrb[0].mxu0
      %v4523 = vadd.f32 %v3984, %v4522
      %4524 = vmatprep.mubr.bf16.mxu0 %v3902
      %4525 = vmatmul.mubr.bf16.gmra.mrb[0].mxu0 %v3901
      %v4526 = vpop.f32.mrb[0].mxu0
      %v4527 = vadd.f32 %v3980, %v4526
      %v4528 = vpop.f32.mrb[0].mxu0
      %v4529 = vadd.f32 %v3984, %v4528
      %v4530 = vpop.f32.mrb[0].mxu0
      %v4531 = vadd.f32 %v3980, %v4530
      %v4532 = vpop.f32.mrb[0].mxu0
      %v4533 = vadd.f32 %v3984, %v4532
      %4534 = vdwg.mxu0
      %v4535 = vsub.f32 0.0, %v4344
      %v4536 = vsub.f32 0.0, %v4346
      %v4537 = vsub.f32 0.0, %v4457
      %v4538 = vsub.f32 0.0, %v4459
      %v4539 = vsub.f32 0.0, %v4348
      %v4540 = vsub.f32 0.0, %v4350
      %v4541 = vsub.f32 0.0, %v4461
      %v4542 = vsub.f32 0.0, %v4463
      %v4543 = vsub.f32 0.0, %v4354
      %v4544 = vsub.f32 0.0, %v4356
      %v4545 = vsub.f32 0.0, %v4467
      %v4546 = vsub.f32 0.0, %v4469
      %v4547 = vsub.f32 0.0, %v4358
      %v4548 = vsub.f32 0.0, %v4360
      %v4549 = vsub.f32 0.0, %v4471
      %v4550 = vsub.f32 0.0, %v4473
      %v4551 = vsub.f32 0.0, %v4364
      %v4552 = vsub.f32 0.0, %v4366
      %v4553 = vsub.f32 0.0, %v4477
      %v4554 = vsub.f32 0.0, %v4479
      %v4555 = vsub.f32 0.0, %v4368
      %v4556 = vsub.f32 0.0, %v4370
      %v4557 = vsub.f32 0.0, %v4481
      %v4558 = vsub.f32 0.0, %v4483
      %v4559 = vsub.f32 0.0, %v4374
      %v4560 = vsub.f32 0.0, %v4376
      %v4561 = vsub.f32 0.0, %v4487
      %v4562 = vsub.f32 0.0, %v4489
      %v4563 = vsub.f32 0.0, %v4378
      %v4564 = vsub.f32 0.0, %v4380
      %v4565 = vsub.f32 0.0, %v4491
      %v4566 = vsub.f32 0.0, %v4493
      %v4567 = vsub.f32 0.0, %v4384
      %v4568 = vsub.f32 0.0, %v4386
      %v4569 = vsub.f32 0.0, %v4497
      %v4570 = vsub.f32 0.0, %v4499
      %v4571 = vsub.f32 0.0, %v4388
      %v4572 = vsub.f32 0.0, %v4390
      %v4573 = vsub.f32 0.0, %v4501
      %v4574 = vsub.f32 0.0, %v4503
      %v4575 = vsub.f32 0.0, %v4394
      %v4576 = vsub.f32 0.0, %v4396
      %v4577 = vsub.f32 0.0, %v4507
      %v4578 = vsub.f32 0.0, %v4509
      %v4579 = vsub.f32 0.0, %v4398
      %v4580 = vsub.f32 0.0, %v4400
      %v4581 = vsub.f32 0.0, %v4511
      %v4582 = vsub.f32 0.0, %v4513
      %v4583 = vsub.f32 0.0, %v4404
      %v4584 = vsub.f32 0.0, %v4406
      %v4585 = vsub.f32 0.0, %v4517
      %v4586 = vsub.f32 0.0, %v4519
      %v4587 = vsub.f32 0.0, %v4408
      %v4588 = vsub.f32 0.0, %v4410
      %v4589 = vsub.f32 0.0, %v4521
      %v4590 = vsub.f32 0.0, %v4523
      %v4591 = vsub.f32 0.0, %v4414
      %v4592 = vsub.f32 0.0, %v4416
      %v4593 = vsub.f32 0.0, %v4527
      %v4594 = vsub.f32 0.0, %v4529
      %v4595 = vsub.f32 0.0, %v4418
      %v4596 = vsub.f32 0.0, %v4420
      %v4597 = vsub.f32 0.0, %v4531
      %v4598 = vsub.f32 0.0, %v4533
      %v4599 = vmul.f32 %v4535, 1.442695
      %v4600 = vpow.pop %v4599
      %v4601 = vmul.f32 %v4536, 1.442695
      %v4602 = vpow.pop %v4601
      %v4603 = vmul.f32 %v4537, 1.442695
      %v4604 = vpow.pop %v4603
      %v4605 = vmul.f32 %v4538, 1.442695
      %v4606 = vpow.pop %v4605
      %v4607 = vmul.f32 %v4539, 1.442695
      %v4608 = vpow.pop %v4607
      %v4609 = vmul.f32 %v4540, 1.442695
      %v4610 = vpow.pop %v4609
      %v4611 = vmul.f32 %v4541, 1.442695
      %v4612 = vpow.pop %v4611
      %v4613 = vmul.f32 %v4542, 1.442695
      %v4614 = vpow.pop %v4613
      %v4615 = vmul.f32 %v4543, 1.442695
      %v4616 = vpow.pop %v4615
      %v4617 = vmul.f32 %v4544, 1.442695
      %v4618 = vpow.pop %v4617
      %v4619 = vmul.f32 %v4545, 1.442695
      %v4620 = vpow.pop %v4619
      %v4621 = vmul.f32 %v4546, 1.442695
      %v4622 = vpow.pop %v4621
      %v4623 = vmul.f32 %v4547, 1.442695
      %v4624 = vpow.pop %v4623
      %v4625 = vmul.f32 %v4548, 1.442695
      %v4626 = vpow.pop %v4625
      %v4627 = vmul.f32 %v4549, 1.442695
      %v4628 = vpow.pop %v4627
      %v4629 = vmul.f32 %v4550, 1.442695
      %v4630 = vpow.pop %v4629
      %v4631 = vmul.f32 %v4551, 1.442695
      %v4632 = vpow.pop %v4631
      %v4633 = vmul.f32 %v4552, 1.442695
      %v4634 = vpow.pop %v4633
      %v4635 = vmul.f32 %v4553, 1.442695
      %v4636 = vpow.pop %v4635
      %v4637 = vmul.f32 %v4554, 1.442695
      %v4638 = vpow.pop %v4637
      %v4639 = vmul.f32 %v4555, 1.442695
      %v4640 = vpow.pop %v4639
      %v4641 = vmul.f32 %v4556, 1.442695
      %v4642 = vpow.pop %v4641
      %v4643 = vmul.f32 %v4557, 1.442695
      %v4644 = vpow.pop %v4643
      %v4645 = vmul.f32 %v4558, 1.442695
      %v4646 = vpow.pop %v4645
      %v4647 = vmul.f32 %v4559, 1.442695
      %v4648 = vpow.pop %v4647
      %v4649 = vmul.f32 %v4560, 1.442695
      %v4650 = vpow.pop %v4649
      %v4651 = vmul.f32 %v4561, 1.442695
      %v4652 = vpow.pop %v4651
      %v4653 = vmul.f32 %v4562, 1.442695
      %v4654 = vpow.pop %v4653
      %v4655 = vmul.f32 %v4563, 1.442695
      %v4656 = vpow.pop %v4655
      %v4657 = vmul.f32 %v4564, 1.442695
      %v4658 = vpow.pop %v4657
      %v4659 = vmul.f32 %v4565, 1.442695
      %v4660 = vpow.pop %v4659
      %v4661 = vmul.f32 %v4566, 1.442695
      %v4662 = vpow.pop %v4661
      %v4663 = vmul.f32 %v4567, 1.442695
      %v4664 = vpow.pop %v4663
      %v4665 = vmul.f32 %v4568, 1.442695
      %v4666 = vpow.pop %v4665
      %v4667 = vmul.f32 %v4569, 1.442695
      %v4668 = vpow.pop %v4667
      %v4669 = vmul.f32 %v4570, 1.442695
      %v4670 = vpow.pop %v4669
      %v4671 = vmul.f32 %v4571, 1.442695
      %v4672 = vpow.pop %v4671
      %v4673 = vmul.f32 %v4572, 1.442695
      %v4674 = vpow.pop %v4673
      %v4675 = vmul.f32 %v4573, 1.442695
      %v4676 = vpow.pop %v4675
      %v4677 = vmul.f32 %v4574, 1.442695
      %v4678 = vpow.pop %v4677
      %v4679 = vmul.f32 %v4575, 1.442695
      %v4680 = vpow.pop %v4679
      %v4681 = vmul.f32 %v4576, 1.442695
      %v4682 = vpow.pop %v4681
      %v4683 = vmul.f32 %v4577, 1.442695
      %v4684 = vpow.pop %v4683
      %v4685 = vmul.f32 %v4578, 1.442695
      %v4686 = vpow.pop %v4685
      %v4687 = vmul.f32 %v4579, 1.442695
      %v4688 = vpow.pop %v4687
      %v4689 = vmul.f32 %v4580, 1.442695
      %v4690 = vpow.pop %v4689
      %v4691 = vmul.f32 %v4581, 1.442695
      %v4692 = vpow.pop %v4691
      %v4693 = vmul.f32 %v4582, 1.442695
      %v4694 = vpow.pop %v4693
      %v4695 = vmul.f32 %v4583, 1.442695
      %v4696 = vpow.pop %v4695
      %v4697 = vmul.f32 %v4584, 1.442695
      %v4698 = vpow.pop %v4697
      %v4699 = vmul.f32 %v4585, 1.442695
      %v4700 = vpow.pop %v4699
      %v4701 = vmul.f32 %v4586, 1.442695
      %v4702 = vpow.pop %v4701
      %v4703 = vmul.f32 %v4587, 1.442695
      %v4704 = vpow.pop %v4703
      %v4705 = vmul.f32 %v4588, 1.442695
      %v4706 = vpow.pop %v4705
      %v4707 = vmul.f32 %v4589, 1.442695
      %v4708 = vpow.pop %v4707
      %v4709 = vmul.f32 %v4590, 1.442695
      %v4710 = vpow.pop %v4709
      %v4711 = vmul.f32 %v4591, 1.442695
      %v4712 = vpow.pop %v4711
      %v4713 = vmul.f32 %v4592, 1.442695
      %v4714 = vpow.pop %v4713
      %v4715 = vmul.f32 %v4593, 1.442695
      %v4716 = vpow.pop %v4715
      %v4717 = vmul.f32 %v4594, 1.442695
      %v4718 = vpow.pop %v4717
      %v4719 = vmul.f32 %v4595, 1.442695
      %v4720 = vpow.pop %v4719
      %v4721 = vmul.f32 %v4596, 1.442695
      %v4722 = vpow.pop %v4721
      %v4723 = vmul.f32 %v4597, 1.442695
      %v4724 = vpow.pop %v4723
      %v4725 = vmul.f32 %v4598, 1.442695
      %v4726 = vpow.pop %v4725
      %v4727 = vadd.f32 %v4600, 1.0
      %v4728 = vadd.f32 %v4602, 1.0
      %v4729 = vadd.f32 %v4604, 1.0
      %v4730 = vadd.f32 %v4606, 1.0
      %v4731 = vadd.f32 %v4608, 1.0
      %v4732 = vadd.f32 %v4610, 1.0
      %v4733 = vadd.f32 %v4612, 1.0
      %v4734 = vadd.f32 %v4614, 1.0
      %v4735 = vadd.f32 %v4616, 1.0
      %v4736 = vadd.f32 %v4618, 1.0
      %v4737 = vadd.f32 %v4620, 1.0
      %v4738 = vadd.f32 %v4622, 1.0
      %v4739 = vadd.f32 %v4624, 1.0
      %v4740 = vadd.f32 %v4626, 1.0
      %v4741 = vadd.f32 %v4628, 1.0
      %v4742 = vadd.f32 %v4630, 1.0
      %v4743 = vadd.f32 %v4632, 1.0
      %v4744 = vadd.f32 %v4634, 1.0
      %v4745 = vadd.f32 %v4636, 1.0
      %v4746 = vadd.f32 %v4638, 1.0
      %v4747 = vadd.f32 %v4640, 1.0
      %v4748 = vadd.f32 %v4642, 1.0
      %v4749 = vadd.f32 %v4644, 1.0
      %v4750 = vadd.f32 %v4646, 1.0
      %v4751 = vadd.f32 %v4648, 1.0
      %v4752 = vadd.f32 %v4650, 1.0
      %v4753 = vadd.f32 %v4652, 1.0
      %v4754 = vadd.f32 %v4654, 1.0
      %v4755 = vadd.f32 %v4656, 1.0
      %v4756 = vadd.f32 %v4658, 1.0
      %v4757 = vadd.f32 %v4660, 1.0
      %v4758 = vadd.f32 %v4662, 1.0
      %v4759 = vadd.f32 %v4664, 1.0
      %v4760 = vadd.f32 %v4666, 1.0
      %v4761 = vadd.f32 %v4668, 1.0
      %v4762 = vadd.f32 %v4670, 1.0
      %v4763 = vadd.f32 %v4672, 1.0
      %v4764 = vadd.f32 %v4674, 1.0
      %v4765 = vadd.f32 %v4676, 1.0
      %v4766 = vadd.f32 %v4678, 1.0
      %v4767 = vadd.f32 %v4680, 1.0
      %v4768 = vadd.f32 %v4682, 1.0
      %v4769 = vadd.f32 %v4684, 1.0
      %v4770 = vadd.f32 %v4686, 1.0
      %v4771 = vadd.f32 %v4688, 1.0
      %v4772 = vadd.f32 %v4690, 1.0
      %v4773 = vadd.f32 %v4692, 1.0
      %v4774 = vadd.f32 %v4694, 1.0
      %v4775 = vadd.f32 %v4696, 1.0
      %v4776 = vadd.f32 %v4698, 1.0
      %v4777 = vadd.f32 %v4700, 1.0
      %v4778 = vadd.f32 %v4702, 1.0
      %v4779 = vadd.f32 %v4704, 1.0
      %v4780 = vadd.f32 %v4706, 1.0
      %v4781 = vadd.f32 %v4708, 1.0
      %v4782 = vadd.f32 %v4710, 1.0
      %v4783 = vadd.f32 %v4712, 1.0
      %v4784 = vadd.f32 %v4714, 1.0
      %v4785 = vadd.f32 %v4716, 1.0
      %v4786 = vadd.f32 %v4718, 1.0
      %v4787 = vadd.f32 %v4720, 1.0
      %v4788 = vadd.f32 %v4722, 1.0
      %v4789 = vadd.f32 %v4724, 1.0
      %v4790 = vadd.f32 %v4726, 1.0
      %v4791 = vrcp.pop %v4727
      %v4792 = vrcp.pop %v4728
      %v4793 = vrcp.pop %v4729
      %v4794 = vrcp.pop %v4730
      %v4795 = vrcp.pop %v4731
      %v4796 = vrcp.pop %v4732
      %v4797 = vrcp.pop %v4733
      %v4798 = vrcp.pop %v4734
      %v4799 = vrcp.pop %v4735
      %v4800 = vrcp.pop %v4736
      %v4801 = vrcp.pop %v4737
      %v4802 = vrcp.pop %v4738
      %v4803 = vrcp.pop %v4739
      %v4804 = vrcp.pop %v4740
      %v4805 = vrcp.pop %v4741
      %v4806 = vrcp.pop %v4742
      %v4807 = vrcp.pop %v4743
      %v4808 = vrcp.pop %v4744
      %v4809 = vrcp.pop %v4745
      %v4810 = vrcp.pop %v4746
      %v4811 = vrcp.pop %v4747
      %v4812 = vrcp.pop %v4748
      %v4813 = vrcp.pop %v4749
      %v4814 = vrcp.pop %v4750
      %v4815 = vrcp.pop %v4751
      %v4816 = vrcp.pop %v4752
      %v4817 = vrcp.pop %v4753
      %v4818 = vrcp.pop %v4754
      %v4819 = vrcp.pop %v4755
      %v4820 = vrcp.pop %v4756
      %v4821 = vrcp.pop %v4757
      %v4822 = vrcp.pop %v4758
      %v4823 = vrcp.pop %v4759
      %v4824 = vrcp.pop %v4760
      %v4825 = vrcp.pop %v4761
      %v4826 = vrcp.pop %v4762
      %v4827 = vrcp.pop %v4763
      %v4828 = vrcp.pop %v4764
      %v4829 = vrcp.pop %v4765
      %v4830 = vrcp.pop %v4766
      %v4831 = vrcp.pop %v4767
      %v4832 = vrcp.pop %v4768
      %v4833 = vrcp.pop %v4769
      %v4834 = vrcp.pop %v4770
      %v4835 = vrcp.pop %v4771
      %v4836 = vrcp.pop %v4772
      %v4837 = vrcp.pop %v4773
      %v4838 = vrcp.pop %v4774
      %v4839 = vrcp.pop %v4775
      %v4840 = vrcp.pop %v4776
      %v4841 = vrcp.pop %v4777
      %v4842 = vrcp.pop %v4778
      %v4843 = vrcp.pop %v4779
      %v4844 = vrcp.pop %v4780
      %v4845 = vrcp.pop %v4781
      %v4846 = vrcp.pop %v4782
      %v4847 = vrcp.pop %v4783
      %v4848 = vrcp.pop %v4784
      %v4849 = vrcp.pop %v4785
      %v4850 = vrcp.pop %v4786
      %v4851 = vrcp.pop %v4787
      %v4852 = vrcp.pop %v4788
      %v4853 = vrcp.pop %v4789
      %v4854 = vrcp.pop %v4790
      %v4855 = vpack.c.bf16 %v4795, %v4791
      %v4856 = vpack.c.bf16 %v4796, %v4792
      %v4857 = vpack.c.bf16 %v4797, %v4793
      %v4858 = vpack.c.bf16 %v4798, %v4794
      %v4859 = vpack.c.bf16 %v4803, %v4799
      %v4860 = vpack.c.bf16 %v4804, %v4800
      %v4861 = vpack.c.bf16 %v4805, %v4801
      %v4862 = vpack.c.bf16 %v4806, %v4802
      %v4863 = vpack.c.bf16 %v4811, %v4807
      %v4864 = vpack.c.bf16 %v4812, %v4808
      %v4865 = vpack.c.bf16 %v4813, %v4809
      %v4866 = vpack.c.bf16 %v4814, %v4810
      %v4867 = vpack.c.bf16 %v4819, %v4815
      %v4868 = vpack.c.bf16 %v4820, %v4816
      %v4869 = vpack.c.bf16 %v4821, %v4817
      %v4870 = vpack.c.bf16 %v4822, %v4818
      %v4871 = vpack.c.bf16 %v4827, %v4823
      %v4872 = vpack.c.bf16 %v4828, %v4824
      %v4873 = vpack.c.bf16 %v4829, %v4825
      %v4874 = vpack.c.bf16 %v4830, %v4826
      %v4875 = vpack.c.bf16 %v4835, %v4831
      %v4876 = vpack.c.bf16 %v4836, %v4832
      %v4877 = vpack.c.bf16 %v4837, %v4833
      %v4878 = vpack.c.bf16 %v4838, %v4834
      %v4879 = vpack.c.bf16 %v4843, %v4839
      %v4880 = vpack.c.bf16 %v4844, %v4840
      %v4881 = vpack.c.bf16 %v4845, %v4841
      %v4882 = vpack.c.bf16 %v4846, %v4842
      %v4883 = vpack.c.bf16 %v4851, %v4847
      %v4884 = vpack.c.bf16 %v4852, %v4848
      %v4885 = vpack.c.bf16 %v4853, %v4849
      %v4886 = vpack.c.bf16 %v4854, %v4850
      %v4887 = vld [vmem:[%s7] sm:$0xff]
      %v4888 = vld [vmem:[%s7 + $0x8] sm:$0xff]
      %v4889 = vld [vmem:[%s7 + $0x10] sm:$0xff]
      %v4890 = vld [vmem:[%s7 + $0x18] sm:$0xf]
      %v4891 = vld [vmem:[%s7 + $0x1c] sm:$0xff]
      %v4892 = vld [vmem:[%s7 + $0x24] sm:$0xff]
      %v4893 = vld [vmem:[%s7 + $0x2c] sm:$0xff]
      %v4894 = vld [vmem:[%s7 + $0x34] sm:$0xf]
      %v4895 = vld [vmem:[%s7 + $0x38] sm:$0xff]
      %v4896 = vld [vmem:[%s7 + $0x40] sm:$0xff]
      %v4897 = vld [vmem:[%s7 + $0x48] sm:$0xff]
      %v4898 = vld [vmem:[%s7 + $0x50] sm:$0xf]
      %v4899 = vld [vmem:[%s7 + $0x54] sm:$0xff]
      %v4900 = vld [vmem:[%s7 + $0x5c] sm:$0xff]
      %v4901 = vld [vmem:[%s7 + $0x64] sm:$0xff]
      %v4902 = vld [vmem:[%s7 + $0x6c] sm:$0xf]
      %v4903 = vld [vmem:[%s7 + $0x70] sm:$0xff]
      %v4904 = vld [vmem:[%s7 + $0x78] sm:$0xff]
      %v4905 = vld [vmem:[%s7 + $0x80] sm:$0xff]
      %v4906 = vld [vmem:[%s7 + $0x88] sm:$0xf]
      %v4907 = vld [vmem:[%s7 + $0x8c] sm:$0xff]
      %v4908 = vld [vmem:[%s7 + $0x94] sm:$0xff]
      %v4909 = vld [vmem:[%s7 + $0x9c] sm:$0xff]
      %v4910 = vld [vmem:[%s7 + $0xa4] sm:$0xf]
      %v4911 = vld [vmem:[%s7 + $0xa8] sm:$0xff]
      %v4912 = vld [vmem:[%s7 + $0xb0] sm:$0xff]
      %v4913 = vld [vmem:[%s7 + $0xb8] sm:$0xff]
      %v4914 = vld [vmem:[%s7 + $0xc0] sm:$0xf]
      %v4915 = vld [vmem:[%s7 + $0xc4] sm:$0xff]
      %v4916 = vld [vmem:[%s7 + $0xcc] sm:$0xff]
      %v4917 = vld [vmem:[%s7 + $0xd4] sm:$0xff]
      %v4918 = vld [vmem:[%s7 + $0xdc] sm:$0xf]
      %v4919 = vld [vmem:[%s7 + $0xe0] sm:$0xff]
      %v4920 = vld [vmem:[%s7 + $0xe8] sm:$0xff]
      %v4921 = vld [vmem:[%s7 + $0xf0] sm:$0xff]
      %v4922 = vld [vmem:[%s7 + $0xf8] sm:$0xf]
      %v4923 = vld [vmem:[%s7 + $0xfc] sm:$0xff]
      %v4924 = vld [vmem:[%s7 + $0x104] sm:$0xff]
      %v4925 = vld [vmem:[%s7 + $0x10c] sm:$0xff]
      %v4926 = vld [vmem:[%s7 + $0x114] sm:$0xf]
      %v4927 = vld [vmem:[%s7 + $0x118] sm:$0xff]
      %v4928 = vld [vmem:[%s7 + $0x120] sm:$0xff]
      %v4929 = vld [vmem:[%s7 + $0x128] sm:$0xff]
      %v4930 = vld [vmem:[%s7 + $0x130] sm:$0xf]
      %v4931 = vld [vmem:[%s7 + $0x134] sm:$0xff]
      %v4932 = vld [vmem:[%s7 + $0x13c] sm:$0xff]
      %v4933 = vld [vmem:[%s7 + $0x144] sm:$0xff]
      %v4934 = vld [vmem:[%s7 + $0x14c] sm:$0xf]
      %v4935 = vld [vmem:[%s7 + $0x150] sm:$0xff]
      %v4936 = vld [vmem:[%s7 + $0x158] sm:$0xff]
      %v4937 = vld [vmem:[%s7 + $0x160] sm:$0xff]
      %v4938 = vld [vmem:[%s7 + $0x168] sm:$0xf]
      %v4939 = vld [vmem:[%s7 + $0x16c] sm:$0xff]
      %v4940 = vld [vmem:[%s7 + $0x174] sm:$0xff]
      %v4941 = vld [vmem:[%s7 + $0x17c] sm:$0xff]
      %v4942 = vld [vmem:[%s7 + $0x184] sm:$0xf]
      %v4943 = vld [vmem:[%s7 + $0x188] sm:$0xff]
      %v4944 = vld [vmem:[%s7 + $0x190] sm:$0xff]
      %v4945 = vld [vmem:[%s7 + $0x198] sm:$0xff]
      %v4946 = vld [vmem:[%s7 + $0x1a0] sm:$0xf]
      %v4947 = vld [vmem:[%s7 + $0x1a4] sm:$0xff]
      %v4948 = vld [vmem:[%s7 + $0x1ac] sm:$0xff]
      %v4949 = vld [vmem:[%s7 + $0x1b4] sm:$0xff]
      %v4950 = vld [vmem:[%s7 + $0x1bc] sm:$0xf]
      %v4951 = vld [vmem:[%s7 + $0x1c0] sm:$0xff]
      %v4952 = vld [vmem:[%s7 + $0x1c8] sm:$0xff]
      %v4953 = vld [vmem:[%s7 + $0x1d0] sm:$0xff]
      %v4954 = vld [vmem:[%s7 + $0x1d8] sm:$0xf]
      %v4955 = vld [vmem:[%s7 + $0x1dc] sm:$0xff]
      %v4956 = vld [vmem:[%s7 + $0x1e4] sm:$0xff]
      %v4957 = vld [vmem:[%s7 + $0x1ec] sm:$0xff]
      %v4958 = vld [vmem:[%s7 + $0x1f4] sm:$0xf]
      %v4959 = vld [vmem:[%s7 + $0x1f8] sm:$0xff]
      %v4960 = vld [vmem:[%s7 + $0x200] sm:$0xff]
      %v4961 = vld [vmem:[%s7 + $0x208] sm:$0xff]
      %v4962 = vld [vmem:[%s7 + $0x210] sm:$0xf]
      %v4963 = vld [vmem:[%s7 + $0x214] sm:$0xff]
      %v4964 = vld [vmem:[%s7 + $0x21c] sm:$0xff]
      %v4965 = vld [vmem:[%s7 + $0x224] sm:$0xff]
      %v4966 = vld [vmem:[%s7 + $0x22c] sm:$0xf]
      %v4967 = vld [vmem:[%s7 + $0x230] sm:$0xff]
      %v4968 = vld [vmem:[%s7 + $0x238] sm:$0xff]
      %v4969 = vld [vmem:[%s7 + $0x240] sm:$0xff]
      %v4970 = vld [vmem:[%s7 + $0x248] sm:$0xf]
      %v4971 = vld [vmem:[%s7 + $0x24c] sm:$0xff]
      %v4972 = vld [vmem:[%s7 + $0x254] sm:$0xff]
      %v4973 = vld [vmem:[%s7 + $0x25c] sm:$0xff]
      %v4974 = vld [vmem:[%s7 + $0x264] sm:$0xf]
      %v4975 = vld [vmem:[%s7 + $0x268] sm:$0xff]
      %v4976 = vld [vmem:[%s7 + $0x270] sm:$0xff]
      %v4977 = vld [vmem:[%s7 + $0x278] sm:$0xff]
      %v4978 = vld [vmem:[%s7 + $0x280] sm:$0xf]
      %v4979 = vld [vmem:[%s7 + $0x284] sm:$0xff]
      %v4980 = vld [vmem:[%s7 + $0x28c] sm:$0xff]
      %v4981 = vld [vmem:[%s7 + $0x294] sm:$0xff]
      %v4982 = vld [vmem:[%s7 + $0x29c] sm:$0xf]
      %v4983 = vld [vmem:[%s7 + $0x2a0] sm:$0xff]
      %v4984 = vld [vmem:[%s7 + $0x2a8] sm:$0xff]
      %v4985 = vld [vmem:[%s7 + $0x2b0] sm:$0xff]
      %v4986 = vld [vmem:[%s7 + $0x2b8] sm:$0xf]
      %v4987 = vld [vmem:[%s7 + $0x2bc] sm:$0xff]
      %v4988 = vld [vmem:[%s7 + $0x2c4] sm:$0xff]
      %v4989 = vld [vmem:[%s7 + $0x2cc] sm:$0xff]
      %v4990 = vld [vmem:[%s7 + $0x2d4] sm:$0xf]
      %v4991 = vld [vmem:[%s7 + $0x2d8] sm:$0xff]
      %v4992 = vld [vmem:[%s7 + $0x2e0] sm:$0xff]
      %v4993 = vld [vmem:[%s7 + $0x2e8] sm:$0xff]
      %v4994 = vld [vmem:[%s7 + $0x2f0] sm:$0xf]
      %v4995 = vld [vmem:[%s7 + $0x2f4] sm:$0xff]
      %v4996 = vld [vmem:[%s7 + $0x2fc] sm:$0xff]
      %v4997 = vld [vmem:[%s7 + $0x304] sm:$0xff]
      %v4998 = vld [vmem:[%s7 + $0x30c] sm:$0xf]
      %v4999 = vld [vmem:[%s7 + $0x310] sm:$0xff]
      %v5000 = vld [vmem:[%s7 + $0x318] sm:$0xff]
      %v5001 = vld [vmem:[%s7 + $0x320] sm:$0xff]
      %v5002 = vld [vmem:[%s7 + $0x328] sm:$0xf]
      %v5003 = vld [vmem:[%s7 + $0x32c] sm:$0xff]
      %v5004 = vld [vmem:[%s7 + $0x334] sm:$0xff]
      %v5005 = vld [vmem:[%s7 + $0x33c] sm:$0xff]
      %v5006 = vld [vmem:[%s7 + $0x344] sm:$0xf]
      %v5007 = vld [vmem:[%s7 + $0x348] sm:$0xff]
      %v5008 = vld [vmem:[%s7 + $0x350] sm:$0xff]
      %v5009 = vld [vmem:[%s7 + $0x358] sm:$0xff]
      %v5010 = vld [vmem:[%s7 + $0x360] sm:$0xf]
      %v5011 = vld [vmem:[%s7 + $0x364] sm:$0xff]
      %v5012 = vld [vmem:[%s7 + $0x36c] sm:$0xff]
      %v5013 = vld [vmem:[%s7 + $0x374] sm:$0xff]
      %v5014 = vld [vmem:[%s7 + $0x37c] sm:$0xf]
      %v5015 = vld [vmem:[%s7 + $0x380] sm:$0xff]
      %v5016 = vld [vmem:[%s7 + $0x388] sm:$0xff]
      %v5017 = vld [vmem:[%s7 + $0x390] sm:$0xff]
      %v5018 = vld [vmem:[%s7 + $0x398] sm:$0xf]
      %v5019 = vld [vmem:[%s7 + $0x39c] sm:$0xff]
      %v5020 = vld [vmem:[%s7 + $0x3a4] sm:$0xff]
      %v5021 = vld [vmem:[%s7 + $0x3ac] sm:$0xff]
      %v5022 = vld [vmem:[%s7 + $0x3b4] sm:$0xf]
      %v5023 = vld [vmem:[%s7 + $0x3b8] sm:$0xff]
      %v5024 = vld [vmem:[%s7 + $0x3c0] sm:$0xff]
      %v5025 = vld [vmem:[%s7 + $0x3c8] sm:$0xff]
      %v5026 = vld [vmem:[%s7 + $0x3d0] sm:$0xf]
      %v5027 = vld [vmem:[%s7 + $0x3d4] sm:$0xff]
      %v5028 = vld [vmem:[%s7 + $0x3dc] sm:$0xff]
      %v5029 = vld [vmem:[%s7 + $0x3e4] sm:$0xff]
      %v5030 = vld [vmem:[%s7 + $0x3ec] sm:$0xf]
      %v5031 = vld [vmem:[%s7 + $0x3f0] sm:$0xff]
      %v5032 = vld [vmem:[%s7 + $0x3f8] sm:$0xff]
      %v5033 = vld [vmem:[%s7 + $0x400] sm:$0xff]
      %v5034 = vld [vmem:[%s7 + $0x408] sm:$0xf]
      %v5035 = vld [vmem:[%s7 + $0x40c] sm:$0xff]
      %v5036 = vld [vmem:[%s7 + $0x414] sm:$0xff]
      %v5037 = vld [vmem:[%s7 + $0x41c] sm:$0xff]
      %v5038 = vld [vmem:[%s7 + $0x424] sm:$0xf]
      %v5039 = vld [vmem:[%s7 + $0x428] sm:$0xff]
      %v5040 = vld [vmem:[%s7 + $0x430] sm:$0xff]
      %v5041 = vld [vmem:[%s7 + $0x438] sm:$0xff]
      %v5042 = vld [vmem:[%s7 + $0x440] sm:$0xf]
      %v5043 = vld [vmem:[%s7 + $0x444] sm:$0xff]
      %v5044 = vld [vmem:[%s7 + $0x44c] sm:$0xff]
      %v5045 = vld [vmem:[%s7 + $0x454] sm:$0xff]
      %v5046 = vld [vmem:[%s7 + $0x45c] sm:$0xf]
      %v5047 = vld [vmem:[%s7 + $0x460] sm:$0xff]
      %v5048 = vld [vmem:[%s7 + $0x468] sm:$0xff]
      %v5049 = vld [vmem:[%s7 + $0x470] sm:$0xff]
      %v5050 = vld [vmem:[%s7 + $0x478] sm:$0xf]
      %v5051 = vld [vmem:[%s7 + $0x47c] sm:$0xff]
      %v5052 = vld [vmem:[%s7 + $0x484] sm:$0xff]
      %v5053 = vld [vmem:[%s7 + $0x48c] sm:$0xff]
      %v5054 = vld [vmem:[%s7 + $0x494] sm:$0xf]
      %v5055 = vld [vmem:[%s7 + $0x498] sm:$0xff]
      %v5056 = vld [vmem:[%s7 + $0x4a0] sm:$0xff]
      %v5057 = vld [vmem:[%s7 + $0x4a8] sm:$0xff]
      %v5058 = vld [vmem:[%s7 + $0x4b0] sm:$0xf]
      %v5059 = vld [vmem:[%s7 + $0x4b4] sm:$0xff]
      %v5060 = vld [vmem:[%s7 + $0x4bc] sm:$0xff]
      %v5061 = vld [vmem:[%s7 + $0x4c4] sm:$0xff]
      %v5062 = vld [vmem:[%s7 + $0x4cc] sm:$0xf]
      %v5063 = vld [vmem:[%s7 + $0x4d0] sm:$0xff]
      %v5064 = vld [vmem:[%s7 + $0x4d8] sm:$0xff]
      %v5065 = vld [vmem:[%s7 + $0x4e0] sm:$0xff]
      %v5066 = vld [vmem:[%s7 + $0x4e8] sm:$0xf]
      %v5067 = vld [vmem:[%s7 + $0x4ec] sm:$0xff]
      %v5068 = vld [vmem:[%s7 + $0x4f4] sm:$0xff]
      %v5069 = vld [vmem:[%s7 + $0x4fc] sm:$0xff]
      %v5070 = vld [vmem:[%s7 + $0x504] sm:$0xf]
      %v5071 = vld [vmem:[%s7 + $0x508] sm:$0xff]
      %v5072 = vld [vmem:[%s7 + $0x510] sm:$0xff]
      %v5073 = vld [vmem:[%s7 + $0x518] sm:$0xff]
      %v5074 = vld [vmem:[%s7 + $0x520] sm:$0xf]
      %v5075 = vld [vmem:[%s7 + $0x524] sm:$0xff]
      %v5076 = vld [vmem:[%s7 + $0x52c] sm:$0xff]
      %v5077 = vld [vmem:[%s7 + $0x534] sm:$0xff]
      %v5078 = vld [vmem:[%s7 + $0x53c] sm:$0xf]
      %v5079 = vld [vmem:[%s7 + $0x540] sm:$0xff]
      %v5080 = vld [vmem:[%s7 + $0x548] sm:$0xff]
      %v5081 = vld [vmem:[%s7 + $0x550] sm:$0xff]
      %v5082 = vld [vmem:[%s7 + $0x558] sm:$0xf]
      %v5083 = vld [vmem:[%s7 + $0x55c] sm:$0xff]
      %v5084 = vld [vmem:[%s7 + $0x564] sm:$0xff]
      %v5085 = vld [vmem:[%s7 + $0x56c] sm:$0xff]
      %v5086 = vld [vmem:[%s7 + $0x574] sm:$0xf]
      %v5087 = vld [vmem:[%s8] sm:$0x7f]
      %v5089 = vlaneseq
      %v5090 = vshrl.u32 %v5089, 7
      %v5091 = vsub.s32 0, %v5090
      %v5092 = vrot.slane %v5087, %v5091
      %v5093 = vlaneseq
      %v5094 = vshrl.u32 %v5093, 7
      %v5095 = vsub.s32 1, %v5094
      %v5096 = vrot.slane %v5087, %v5095
      %v5097 = vlaneseq
      %v5098 = vshrl.u32 %v5097, 7
      %v5099 = vsub.s32 2, %v5098
      %v5100 = vrot.slane %v5087, %v5099
      %v5101 = vlaneseq
      %v5102 = vshrl.u32 %v5101, 7
      %v5103 = vsub.s32 3, %v5102
      %v5104 = vrot.slane %v5087, %v5103
      %v5105 = vlaneseq
      %v5106 = vshrl.u32 %v5105, 7
      %v5107 = vsub.s32 4, %v5106
      %v5108 = vrot.slane %v5087, %v5107
      %v5109 = vlaneseq
      %v5110 = vshrl.u32 %v5109, 7
      %v5111 = vsub.s32 5, %v5110
      %v5112 = vrot.slane %v5087, %v5111
      %v5113 = vlaneseq
      %v5114 = vshrl.u32 %v5113, 7
      %v5115 = vsub.s32 6, %v5114
      %v5116 = vrot.slane %v5087, %v5115
      %v5324 = vunpack.c.l.b16 %v4887
      %v5325 = vunpack.c.h.b16 %v4887
      %v5326 = vunpack.c.l.b16 %v4888
      %v5327 = vunpack.c.h.b16 %v4888
      %v5328 = vunpack.c.l.b16 %v4889
      %v5329 = vunpack.c.h.b16 %v4889
      %v5330 = vunpack.c.l.b16 %v4890
      %v5331 = vunpack.c.l.b16 %v4891
      %v5332 = vunpack.c.h.b16 %v4891
      %v5333 = vunpack.c.l.b16 %v4892
      %v5334 = vunpack.c.h.b16 %v4892
      %v5335 = vunpack.c.l.b16 %v4893
      %v5336 = vunpack.c.h.b16 %v4893
      %v5337 = vunpack.c.l.b16 %v4894
      %v5338 = vunpack.c.l.b16 %v4895
      %v5339 = vunpack.c.h.b16 %v4895
      %v5340 = vunpack.c.l.b16 %v4896
      %v5341 = vunpack.c.h.b16 %v4896
      %v5342 = vunpack.c.l.b16 %v4897
      %v5343 = vunpack.c.h.b16 %v4897
      %v5344 = vunpack.c.l.b16 %v4898
      %v5345 = vunpack.c.l.b16 %v4899
      %v5346 = vunpack.c.h.b16 %v4899
      %v5347 = vunpack.c.l.b16 %v4900
      %v5348 = vunpack.c.h.b16 %v4900
      %v5349 = vunpack.c.l.b16 %v4901
      %v5350 = vunpack.c.h.b16 %v4901
      %v5351 = vunpack.c.l.b16 %v4902
      %v5352 = vunpack.c.l.b16 %v4903
      %v5353 = vunpack.c.h.b16 %v4903
      %v5354 = vunpack.c.l.b16 %v4904
      %v5355 = vunpack.c.h.b16 %v4904
      %v5356 = vunpack.c.l.b16 %v4905
      %v5357 = vunpack.c.h.b16 %v4905
      %v5358 = vunpack.c.l.b16 %v4906
      %v5359 = vunpack.c.l.b16 %v4907
      %v5360 = vunpack.c.h.b16 %v4907
      %v5361 = vunpack.c.l.b16 %v4908
      %v5362 = vunpack.c.h.b16 %v4908
      %v5363 = vunpack.c.l.b16 %v4909
      %v5364 = vunpack.c.h.b16 %v4909
      %v5365 = vunpack.c.l.b16 %v4910
      %v5366 = vunpack.c.l.b16 %v4911
      %v5367 = vunpack.c.h.b16 %v4911
      %v5368 = vunpack.c.l.b16 %v4912
      %v5369 = vunpack.c.h.b16 %v4912
      %v5370 = vunpack.c.l.b16 %v4913
      %v5371 = vunpack.c.h.b16 %v4913
      %v5372 = vunpack.c.l.b16 %v4914
      %v5373 = vunpack.c.l.b16 %v4915
      %v5374 = vunpack.c.h.b16 %v4915
      %v5375 = vunpack.c.l.b16 %v4916
      %v5376 = vunpack.c.h.b16 %v4916
      %v5377 = vunpack.c.l.b16 %v4917
      %v5378 = vunpack.c.h.b16 %v4917
      %v5379 = vunpack.c.l.b16 %v4918
      %v5380 = vunpack.c.l.b16 %v4919
      %v5381 = vunpack.c.h.b16 %v4919
      %v5382 = vunpack.c.l.b16 %v4920
      %v5383 = vunpack.c.h.b16 %v4920
      %v5384 = vunpack.c.l.b16 %v4921
      %v5385 = vunpack.c.h.b16 %v4921
      %v5386 = vunpack.c.l.b16 %v4922
      %v5387 = vunpack.c.l.b16 %v4923
      %v5388 = vunpack.c.h.b16 %v4923
      %v5389 = vunpack.c.l.b16 %v4924
      %v5390 = vunpack.c.h.b16 %v4924
      %v5391 = vunpack.c.l.b16 %v4925
      %v5392 = vunpack.c.h.b16 %v4925
      %v5393 = vunpack.c.l.b16 %v4926
      %v5394 = vunpack.c.l.b16 %v4927
      %v5395 = vunpack.c.h.b16 %v4927
      %v5396 = vunpack.c.l.b16 %v4928
      %v5397 = vunpack.c.h.b16 %v4928
      %v5398 = vunpack.c.l.b16 %v4929
      %v5399 = vunpack.c.h.b16 %v4929
      %v5400 = vunpack.c.l.b16 %v4930
      %v5401 = vunpack.c.l.b16 %v4931
      %v5402 = vunpack.c.h.b16 %v4931
      %v5403 = vunpack.c.l.b16 %v4932
      %v5404 = vunpack.c.h.b16 %v4932
      %v5405 = vunpack.c.l.b16 %v4933
      %v5406 = vunpack.c.h.b16 %v4933
      %v5407 = vunpack.c.l.b16 %v4934
      %v5408 = vunpack.c.l.b16 %v4935
      %v5409 = vunpack.c.h.b16 %v4935
      %v5410 = vunpack.c.l.b16 %v4936
      %v5411 = vunpack.c.h.b16 %v4936
      %v5412 = vunpack.c.l.b16 %v4937
      %v5413 = vunpack.c.h.b16 %v4937
      %v5414 = vunpack.c.l.b16 %v4938
      %v5415 = vunpack.c.l.b16 %v4939
      %v5416 = vunpack.c.h.b16 %v4939
      %v5417 = vunpack.c.l.b16 %v4940
      %v5418 = vunpack.c.h.b16 %v4940
      %v5419 = vunpack.c.l.b16 %v4941
      %v5420 = vunpack.c.h.b16 %v4941
      %v5421 = vunpack.c.l.b16 %v4942
      %v5422 = vunpack.c.l.b16 %v4943
      %v5423 = vunpack.c.h.b16 %v4943
      %v5424 = vunpack.c.l.b16 %v4944
      %v5425 = vunpack.c.h.b16 %v4944
      %v5426 = vunpack.c.l.b16 %v4945
      %v5427 = vunpack.c.h.b16 %v4945
      %v5428 = vunpack.c.l.b16 %v4946
      %v5429 = vunpack.c.l.b16 %v4947
      %v5430 = vunpack.c.h.b16 %v4947
      %v5431 = vunpack.c.l.b16 %v4948
      %v5432 = vunpack.c.h.b16 %v4948
      %v5433 = vunpack.c.l.b16 %v4949
      %v5434 = vunpack.c.h.b16 %v4949
      %v5435 = vunpack.c.l.b16 %v4950
      %v5436 = vunpack.c.l.b16 %v4951
      %v5437 = vunpack.c.h.b16 %v4951
      %v5438 = vunpack.c.l.b16 %v4952
      %v5439 = vunpack.c.h.b16 %v4952
      %v5440 = vunpack.c.l.b16 %v4953
      %v5441 = vunpack.c.h.b16 %v4953
      %v5442 = vunpack.c.l.b16 %v4954
      %v5443 = vunpack.c.l.b16 %v4955
      %v5444 = vunpack.c.h.b16 %v4955
      %v5445 = vunpack.c.l.b16 %v4956
      %v5446 = vunpack.c.h.b16 %v4956
      %v5447 = vunpack.c.l.b16 %v4957
      %v5448 = vunpack.c.h.b16 %v4957
      %v5449 = vunpack.c.l.b16 %v4958
      %v5450 = vunpack.c.l.b16 %v4959
      %v5451 = vunpack.c.h.b16 %v4959
      %v5452 = vunpack.c.l.b16 %v4960
      %v5453 = vunpack.c.h.b16 %v4960
      %v5454 = vunpack.c.l.b16 %v4961
      %v5455 = vunpack.c.h.b16 %v4961
      %v5456 = vunpack.c.l.b16 %v4962
      %v5457 = vunpack.c.l.b16 %v4963
      %v5458 = vunpack.c.h.b16 %v4963
      %v5459 = vunpack.c.l.b16 %v4964
      %v5460 = vunpack.c.h.b16 %v4964
      %v5461 = vunpack.c.l.b16 %v4965
      %v5462 = vunpack.c.h.b16 %v4965
      %v5463 = vunpack.c.l.b16 %v4966
      %v5464 = vunpack.c.l.b16 %v4967
      %v5465 = vunpack.c.h.b16 %v4967
      %v5466 = vunpack.c.l.b16 %v4968
      %v5467 = vunpack.c.h.b16 %v4968
      %v5468 = vunpack.c.l.b16 %v4969
      %v5469 = vunpack.c.h.b16 %v4969
      %v5470 = vunpack.c.l.b16 %v4970
      %v5471 = vunpack.c.l.b16 %v4971
      %v5472 = vunpack.c.h.b16 %v4971
      %v5473 = vunpack.c.l.b16 %v4972
      %v5474 = vunpack.c.h.b16 %v4972
      %v5475 = vunpack.c.l.b16 %v4973
      %v5476 = vunpack.c.h.b16 %v4973
      %v5477 = vunpack.c.l.b16 %v4974
      %v5478 = vunpack.c.l.b16 %v4975
      %v5479 = vunpack.c.h.b16 %v4975
      %v5480 = vunpack.c.l.b16 %v4976
      %v5481 = vunpack.c.h.b16 %v4976
      %v5482 = vunpack.c.l.b16 %v4977
      %v5483 = vunpack.c.h.b16 %v4977
      %v5484 = vunpack.c.l.b16 %v4978
      %v5485 = vunpack.c.l.b16 %v4979
      %v5486 = vunpack.c.h.b16 %v4979
      %v5487 = vunpack.c.l.b16 %v4980
      %v5488 = vunpack.c.h.b16 %v4980
      %v5489 = vunpack.c.l.b16 %v4981
      %v5490 = vunpack.c.h.b16 %v4981
      %v5491 = vunpack.c.l.b16 %v4982
      %v5492 = vunpack.c.l.b16 %v4983
      %v5493 = vunpack.c.h.b16 %v4983
      %v5494 = vunpack.c.l.b16 %v4984
      %v5495 = vunpack.c.h.b16 %v4984
      %v5496 = vunpack.c.l.b16 %v4985
      %v5497 = vunpack.c.h.b16 %v4985
      %v5498 = vunpack.c.l.b16 %v4986
      %v5499 = vunpack.c.l.b16 %v4987
      %v5500 = vunpack.c.h.b16 %v4987
      %v5501 = vunpack.c.l.b16 %v4988
      %v5502 = vunpack.c.h.b16 %v4988
      %v5503 = vunpack.c.l.b16 %v4989
      %v5504 = vunpack.c.h.b16 %v4989
      %v5505 = vunpack.c.l.b16 %v4990
      %v5506 = vunpack.c.l.b16 %v4991
      %v5507 = vunpack.c.h.b16 %v4991
      %v5508 = vunpack.c.l.b16 %v4992
      %v5509 = vunpack.c.h.b16 %v4992
      %v5510 = vunpack.c.l.b16 %v4993
      %v5511 = vunpack.c.h.b16 %v4993
      %v5512 = vunpack.c.l.b16 %v4994
      %v5513 = vunpack.c.l.b16 %v4995
      %v5514 = vunpack.c.h.b16 %v4995
      %v5515 = vunpack.c.l.b16 %v4996
      %v5516 = vunpack.c.h.b16 %v4996
      %v5517 = vunpack.c.l.b16 %v4997
      %v5518 = vunpack.c.h.b16 %v4997
      %v5519 = vunpack.c.l.b16 %v4998
      %v5520 = vunpack.c.l.b16 %v4999
      %v5521 = vunpack.c.h.b16 %v4999
      %v5522 = vunpack.c.l.b16 %v5000
      %v5523 = vunpack.c.h.b16 %v5000
      %v5524 = vunpack.c.l.b16 %v5001
      %v5525 = vunpack.c.h.b16 %v5001
      %v5526 = vunpack.c.l.b16 %v5002
      %v5527 = vunpack.c.l.b16 %v5003
      %v5528 = vunpack.c.h.b16 %v5003
      %v5529 = vunpack.c.l.b16 %v5004
      %v5530 = vunpack.c.h.b16 %v5004
      %v5531 = vunpack.c.l.b16 %v5005
      %v5532 = vunpack.c.h.b16 %v5005
      %v5533 = vunpack.c.l.b16 %v5006
      %v5534 = vunpack.c.l.b16 %v5007
      %v5535 = vunpack.c.h.b16 %v5007
      %v5536 = vunpack.c.l.b16 %v5008
      %v5537 = vunpack.c.h.b16 %v5008
      %v5538 = vunpack.c.l.b16 %v5009
      %v5539 = vunpack.c.h.b16 %v5009
      %v5540 = vunpack.c.l.b16 %v5010
      %v5541 = vunpack.c.l.b16 %v5011
      %v5542 = vunpack.c.h.b16 %v5011
      %v5543 = vunpack.c.l.b16 %v5012
      %v5544 = vunpack.c.h.b16 %v5012
      %v5545 = vunpack.c.l.b16 %v5013
      %v5546 = vunpack.c.h.b16 %v5013
      %v5547 = vunpack.c.l.b16 %v5014
      %v5548 = vunpack.c.l.b16 %v5015
      %v5549 = vunpack.c.h.b16 %v5015
      %v5550 = vunpack.c.l.b16 %v5016
      %v5551 = vunpack.c.h.b16 %v5016
      %v5552 = vunpack.c.l.b16 %v5017
      %v5553 = vunpack.c.h.b16 %v5017
      %v5554 = vunpack.c.l.b16 %v5018
      %v5555 = vunpack.c.l.b16 %v5019
      %v5556 = vunpack.c.h.b16 %v5019
      %v5557 = vunpack.c.l.b16 %v5020
      %v5558 = vunpack.c.h.b16 %v5020
      %v5559 = vunpack.c.l.b16 %v5021
      %v5560 = vunpack.c.h.b16 %v5021
      %v5561 = vunpack.c.l.b16 %v5022
      %v5562 = vunpack.c.l.b16 %v5023
      %v5563 = vunpack.c.h.b16 %v5023
      %v5564 = vunpack.c.l.b16 %v5024
      %v5565 = vunpack.c.h.b16 %v5024
      %v5566 = vunpack.c.l.b16 %v5025
      %v5567 = vunpack.c.h.b16 %v5025
      %v5568 = vunpack.c.l.b16 %v5026
      %v5569 = vunpack.c.l.b16 %v5027
      %v5570 = vunpack.c.h.b16 %v5027
      %v5571 = vunpack.c.l.b16 %v5028
      %v5572 = vunpack.c.h.b16 %v5028
      %v5573 = vunpack.c.l.b16 %v5029
      %v5574 = vunpack.c.h.b16 %v5029
      %v5575 = vunpack.c.l.b16 %v5030
      %v5576 = vunpack.c.l.b16 %v5031
      %v5577 = vunpack.c.h.b16 %v5031
      %v5578 = vunpack.c.l.b16 %v5032
      %v5579 = vunpack.c.h.b16 %v5032
      %v5580 = vunpack.c.l.b16 %v5033
      %v5581 = vunpack.c.h.b16 %v5033
      %v5582 = vunpack.c.l.b16 %v5034
      %v5583 = vunpack.c.l.b16 %v5035
      %v5584 = vunpack.c.h.b16 %v5035
      %v5585 = vunpack.c.l.b16 %v5036
      %v5586 = vunpack.c.h.b16 %v5036
      %v5587 = vunpack.c.l.b16 %v5037
      %v5588 = vunpack.c.h.b16 %v5037
      %v5589 = vunpack.c.l.b16 %v5038
      %v5590 = vunpack.c.l.b16 %v5039
      %v5591 = vunpack.c.h.b16 %v5039
      %v5592 = vunpack.c.l.b16 %v5040
      %v5593 = vunpack.c.h.b16 %v5040
      %v5594 = vunpack.c.l.b16 %v5041
      %v5595 = vunpack.c.h.b16 %v5041
      %v5596 = vunpack.c.l.b16 %v5042
      %v5597 = vunpack.c.l.b16 %v5043
      %v5598 = vunpack.c.h.b16 %v5043
      %v5599 = vunpack.c.l.b16 %v5044
      %v5600 = vunpack.c.h.b16 %v5044
      %v5601 = vunpack.c.l.b16 %v5045
      %v5602 = vunpack.c.h.b16 %v5045
      %v5603 = vunpack.c.l.b16 %v5046
      %v5604 = vunpack.c.l.b16 %v5047
      %v5605 = vunpack.c.h.b16 %v5047
      %v5606 = vunpack.c.l.b16 %v5048
      %v5607 = vunpack.c.h.b16 %v5048
      %v5608 = vunpack.c.l.b16 %v5049
      %v5609 = vunpack.c.h.b16 %v5049
      %v5610 = vunpack.c.l.b16 %v5050
      %v5611 = vunpack.c.l.b16 %v5051
      %v5612 = vunpack.c.h.b16 %v5051
      %v5613 = vunpack.c.l.b16 %v5052
      %v5614 = vunpack.c.h.b16 %v5052
      %v5615 = vunpack.c.l.b16 %v5053
      %v5616 = vunpack.c.h.b16 %v5053
      %v5617 = vunpack.c.l.b16 %v5054
      %v5618 = vunpack.c.l.b16 %v5055
      %v5619 = vunpack.c.h.b16 %v5055
      %v5620 = vunpack.c.l.b16 %v5056
      %v5621 = vunpack.c.h.b16 %v5056
      %v5622 = vunpack.c.l.b16 %v5057
      %v5623 = vunpack.c.h.b16 %v5057
      %v5624 = vunpack.c.l.b16 %v5058
      %v5625 = vunpack.c.l.b16 %v5059
      %v5626 = vunpack.c.h.b16 %v5059
      %v5627 = vunpack.c.l.b16 %v5060
      %v5628 = vunpack.c.h.b16 %v5060
      %v5629 = vunpack.c.l.b16 %v5061
      %v5630 = vunpack.c.h.b16 %v5061
      %v5631 = vunpack.c.l.b16 %v5062
      %v5632 = vunpack.c.l.b16 %v5063
      %v5633 = vunpack.c.h.b16 %v5063
      %v5634 = vunpack.c.l.b16 %v5064
      %v5635 = vunpack.c.h.b16 %v5064
      %v5636 = vunpack.c.l.b16 %v5065
      %v5637 = vunpack.c.h.b16 %v5065
      %v5638 = vunpack.c.l.b16 %v5066
      %v5639 = vunpack.c.l.b16 %v5067
      %v5640 = vunpack.c.h.b16 %v5067
      %v5641 = vunpack.c.l.b16 %v5068
      %v5642 = vunpack.c.h.b16 %v5068
      %v5643 = vunpack.c.l.b16 %v5069
      %v5644 = vunpack.c.h.b16 %v5069
      %v5645 = vunpack.c.l.b16 %v5070
      %v5646 = vunpack.c.l.b16 %v5071
      %v5647 = vunpack.c.h.b16 %v5071
      %v5648 = vunpack.c.l.b16 %v5072
      %v5649 = vunpack.c.h.b16 %v5072
      %v5650 = vunpack.c.l.b16 %v5073
      %v5651 = vunpack.c.h.b16 %v5073
      %v5652 = vunpack.c.l.b16 %v5074
      %v5653 = vunpack.c.l.b16 %v5075
      %v5654 = vunpack.c.h.b16 %v5075
      %v5655 = vunpack.c.l.b16 %v5076
      %v5656 = vunpack.c.h.b16 %v5076
      %v5657 = vunpack.c.l.b16 %v5077
      %v5658 = vunpack.c.h.b16 %v5077
      %v5659 = vunpack.c.l.b16 %v5078
      %v5660 = vunpack.c.l.b16 %v5079
      %v5661 = vunpack.c.h.b16 %v5079
      %v5662 = vunpack.c.l.b16 %v5080
      %v5663 = vunpack.c.h.b16 %v5080
      %v5664 = vunpack.c.l.b16 %v5081
      %v5665 = vunpack.c.h.b16 %v5081
      %v5666 = vunpack.c.l.b16 %v5082
      %v5667 = vunpack.c.l.b16 %v5083
      %v5668 = vunpack.c.h.b16 %v5083
      %v5669 = vunpack.c.l.b16 %v5084
      %v5670 = vunpack.c.h.b16 %v5084
      %v5671 = vunpack.c.l.b16 %v5085
      %v5672 = vunpack.c.h.b16 %v5085
      %v5673 = vunpack.c.l.b16 %v5086
      %v5674 = vpack.c.b16 %v5331, %v5324
      %v5675 = vpack.c.b16 %v5332, %v5325
      %v5676 = vpack.c.b16 %v5333, %v5326
      %v5677 = vpack.c.b16 %v5334, %v5327
      %v5678 = vpack.c.b16 %v5335, %v5328
      %v5679 = vpack.c.b16 %v5336, %v5329
      %v5680 = vpack.c.b16 %v5337, %v5330
      %v5681 = vpack.c.b16 %v5345, %v5338
      %v5682 = vpack.c.b16 %v5346, %v5339
      %v5683 = vpack.c.b16 %v5347, %v5340
      %v5684 = vpack.c.b16 %v5348, %v5341
      %v5685 = vpack.c.b16 %v5349, %v5342
      %v5686 = vpack.c.b16 %v5350, %v5343
      %v5687 = vpack.c.b16 %v5351, %v5344
      %v5688 = vpack.c.b16 %v5359, %v5352
      %v5689 = vpack.c.b16 %v5360, %v5353
      %v5690 = vpack.c.b16 %v5361, %v5354
      %v5691 = vpack.c.b16 %v5362, %v5355
      %v5692 = vpack.c.b16 %v5363, %v5356
      %v5693 = vpack.c.b16 %v5364, %v5357
      %v5694 = vpack.c.b16 %v5365, %v5358
      %v5695 = vpack.c.b16 %v5373, %v5366
      %v5696 = vpack.c.b16 %v5374, %v5367
      %v5697 = vpack.c.b16 %v5375, %v5368
      %v5698 = vpack.c.b16 %v5376, %v5369
      %v5699 = vpack.c.b16 %v5377, %v5370
      %v5700 = vpack.c.b16 %v5378, %v5371
      %v5701 = vpack.c.b16 %v5379, %v5372
      %v5702 = vpack.c.b16 %v5387, %v5380
      %v5703 = vpack.c.b16 %v5388, %v5381
      %v5704 = vpack.c.b16 %v5389, %v5382
      %v5705 = vpack.c.b16 %v5390, %v5383
      %v5706 = vpack.c.b16 %v5391, %v5384
      %v5707 = vpack.c.b16 %v5392, %v5385
      %v5708 = vpack.c.b16 %v5393, %v5386
      %v5709 = vpack.c.b16 %v5401, %v5394
      %v5710 = vpack.c.b16 %v5402, %v5395
      %v5711 = vpack.c.b16 %v5403, %v5396
      %v5712 = vpack.c.b16 %v5404, %v5397
      %v5713 = vpack.c.b16 %v5405, %v5398
      %v5714 = vpack.c.b16 %v5406, %v5399
      %v5715 = vpack.c.b16 %v5407, %v5400
      %v5716 = vpack.c.b16 %v5415, %v5408
      %v5717 = vpack.c.b16 %v5416, %v5409
      %v5718 = vpack.c.b16 %v5417, %v5410
      %v5719 = vpack.c.b16 %v5418, %v5411
      %v5720 = vpack.c.b16 %v5419, %v5412
      %v5721 = vpack.c.b16 %v5420, %v5413
      %v5722 = vpack.c.b16 %v5421, %v5414
      %v5723 = vpack.c.b16 %v5429, %v5422
      %v5724 = vpack.c.b16 %v5430, %v5423
      %v5725 = vpack.c.b16 %v5431, %v5424
      %v5726 = vpack.c.b16 %v5432, %v5425
      %v5727 = vpack.c.b16 %v5433, %v5426
      %v5728 = vpack.c.b16 %v5434, %v5427
      %v5729 = vpack.c.b16 %v5435, %v5428
      %v5730 = vpack.c.b16 %v5443, %v5436
      %v5731 = vpack.c.b16 %v5444, %v5437
      %v5732 = vpack.c.b16 %v5445, %v5438
      %v5733 = vpack.c.b16 %v5446, %v5439
      %v5734 = vpack.c.b16 %v5447, %v5440
      %v5735 = vpack.c.b16 %v5448, %v5441
      %v5736 = vpack.c.b16 %v5449, %v5442
      %v5737 = vpack.c.b16 %v5457, %v5450
      %v5738 = vpack.c.b16 %v5458, %v5451
      %v5739 = vpack.c.b16 %v5459, %v5452
      %v5740 = vpack.c.b16 %v5460, %v5453
      %v5741 = vpack.c.b16 %v5461, %v5454
      %v5742 = vpack.c.b16 %v5462, %v5455
      %v5743 = vpack.c.b16 %v5463, %v5456
      %v5744 = vpack.c.b16 %v5471, %v5464
      %v5745 = vpack.c.b16 %v5472, %v5465
      %v5746 = vpack.c.b16 %v5473, %v5466
      %v5747 = vpack.c.b16 %v5474, %v5467
      %v5748 = vpack.c.b16 %v5475, %v5468
      %v5749 = vpack.c.b16 %v5476, %v5469
      %v5750 = vpack.c.b16 %v5477, %v5470
      %v5751 = vpack.c.b16 %v5485, %v5478
      %v5752 = vpack.c.b16 %v5486, %v5479
      %v5753 = vpack.c.b16 %v5487, %v5480
      %v5754 = vpack.c.b16 %v5488, %v5481
      %v5755 = vpack.c.b16 %v5489, %v5482
      %v5756 = vpack.c.b16 %v5490, %v5483
      %v5757 = vpack.c.b16 %v5491, %v5484
      %v5758 = vpack.c.b16 %v5499, %v5492
      %v5759 = vpack.c.b16 %v5500, %v5493
      %v5760 = vpack.c.b16 %v5501, %v5494
      %v5761 = vpack.c.b16 %v5502, %v5495
      %v5762 = vpack.c.b16 %v5503, %v5496
      %v5763 = vpack.c.b16 %v5504, %v5497
      %v5764 = vpack.c.b16 %v5505, %v5498
      %v5765 = vpack.c.b16 %v5513, %v5506
      %v5766 = vpack.c.b16 %v5514, %v5507
      %v5767 = vpack.c.b16 %v5515, %v5508
      %v5768 = vpack.c.b16 %v5516, %v5509
      %v5769 = vpack.c.b16 %v5517, %v5510
      %v5770 = vpack.c.b16 %v5518, %v5511
      %v5771 = vpack.c.b16 %v5519, %v5512
      %v5772 = vpack.c.b16 %v5527, %v5520
      %v5773 = vpack.c.b16 %v5528, %v5521
      %v5774 = vpack.c.b16 %v5529, %v5522
      %v5775 = vpack.c.b16 %v5530, %v5523
      %v5776 = vpack.c.b16 %v5531, %v5524
      %v5777 = vpack.c.b16 %v5532, %v5525
      %v5778 = vpack.c.b16 %v5533, %v5526
      %v5779 = vpack.c.b16 %v5541, %v5534
      %v5780 = vpack.c.b16 %v5542, %v5535
      %v5781 = vpack.c.b16 %v5543, %v5536
      %v5782 = vpack.c.b16 %v5544, %v5537
      %v5783 = vpack.c.b16 %v5545, %v5538
      %v5784 = vpack.c.b16 %v5546, %v5539
      %v5785 = vpack.c.b16 %v5547, %v5540
      %v5786 = vpack.c.b16 %v5555, %v5548
      %v5787 = vpack.c.b16 %v5556, %v5549
      %v5788 = vpack.c.b16 %v5557, %v5550
      %v5789 = vpack.c.b16 %v5558, %v5551
      %v5790 = vpack.c.b16 %v5559, %v5552
      %v5791 = vpack.c.b16 %v5560, %v5553
      %v5792 = vpack.c.b16 %v5561, %v5554
      %v5793 = vpack.c.b16 %v5569, %v5562
      %v5794 = vpack.c.b16 %v5570, %v5563
      %v5795 = vpack.c.b16 %v5571, %v5564
      %v5796 = vpack.c.b16 %v5572, %v5565
      %v5797 = vpack.c.b16 %v5573, %v5566
      %v5798 = vpack.c.b16 %v5574, %v5567
      %v5799 = vpack.c.b16 %v5575, %v5568
      %v5800 = vpack.c.b16 %v5583, %v5576
      %v5801 = vpack.c.b16 %v5584, %v5577
      %v5802 = vpack.c.b16 %v5585, %v5578
      %v5803 = vpack.c.b16 %v5586, %v5579
      %v5804 = vpack.c.b16 %v5587, %v5580
      %v5805 = vpack.c.b16 %v5588, %v5581
      %v5806 = vpack.c.b16 %v5589, %v5582
      %v5807 = vpack.c.b16 %v5597, %v5590
      %v5808 = vpack.c.b16 %v5598, %v5591
      %v5809 = vpack.c.b16 %v5599, %v5592
      %v5810 = vpack.c.b16 %v5600, %v5593
      %v5811 = vpack.c.b16 %v5601, %v5594
      %v5812 = vpack.c.b16 %v5602, %v5595
      %v5813 = vpack.c.b16 %v5603, %v5596
      %v5814 = vpack.c.b16 %v5611, %v5604
      %v5815 = vpack.c.b16 %v5612, %v5605
      %v5816 = vpack.c.b16 %v5613, %v5606
      %v5817 = vpack.c.b16 %v5614, %v5607
      %v5818 = vpack.c.b16 %v5615, %v5608
      %v5819 = vpack.c.b16 %v5616, %v5609
      %v5820 = vpack.c.b16 %v5617, %v5610
      %v5821 = vpack.c.b16 %v5625, %v5618
      %v5822 = vpack.c.b16 %v5626, %v5619
      %v5823 = vpack.c.b16 %v5627, %v5620
      %v5824 = vpack.c.b16 %v5628, %v5621
      %v5825 = vpack.c.b16 %v5629, %v5622
      %v5826 = vpack.c.b16 %v5630, %v5623
      %v5827 = vpack.c.b16 %v5631, %v5624
      %v5828 = vpack.c.b16 %v5639, %v5632
      %v5829 = vpack.c.b16 %v5640, %v5633
      %v5830 = vpack.c.b16 %v5641, %v5634
      %v5831 = vpack.c.b16 %v5642, %v5635
      %v5832 = vpack.c.b16 %v5643, %v5636
      %v5833 = vpack.c.b16 %v5644, %v5637
      %v5834 = vpack.c.b16 %v5645, %v5638
      %v5835 = vpack.c.b16 %v5653, %v5646
      %v5836 = vpack.c.b16 %v5654, %v5647
      %v5837 = vpack.c.b16 %v5655, %v5648
      %v5838 = vpack.c.b16 %v5656, %v5649
      %v5839 = vpack.c.b16 %v5657, %v5650
      %v5840 = vpack.c.b16 %v5658, %v5651
      %v5841 = vpack.c.b16 %v5659, %v5652
      %v5842 = vpack.c.b16 %v5667, %v5660
      %v5843 = vpack.c.b16 %v5668, %v5661
      %v5844 = vpack.c.b16 %v5669, %v5662
      %v5845 = vpack.c.b16 %v5670, %v5663
      %v5846 = vpack.c.b16 %v5671, %v5664
      %v5847 = vpack.c.b16 %v5672, %v5665
      %v5848 = vpack.c.b16 %v5673, %v5666
      %v6025 = vsel %vm1884, %v4858, 0
      %v6028 = vsel %vm1884, %v4862, 0
      %v6031 = vsel %vm1884, %v4866, 0
      %v6034 = vsel %vm1884, %v4870, 0
      %v6037 = vsel %vm1884, %v4874, 0
      %v6040 = vsel %vm1884, %v4878, 0
      %v6043 = vsel %vm1884, %v4882, 0
      %v6046 = vsel %vm1884, %v4886, 0
      %6048 = vmatprep.subr.bf16.mxu0 %v5675
      %6049 = vmatpush1.bf16.msra.mxu0 %v5674
      %6050 = vmatprep.subr.bf16.mxu0 %v5682
      %6051 = vmatpush1.bf16.msra.mxu0 %v5681
      %6052 = vmatprep.subr.bf16.mxu0 %v5689
      %6053 = vmatpush1.bf16.msra.mxu0 %v5688
      %6054 = vmatprep.subr.bf16.mxu0 %v5696
      %6055 = vmatpush1.bf16.msra.mxu0 %v5695
      %6056 = vmatprep.subr.bf16.mxu0 %v5703
      %6057 = vmatpush1.bf16.msra.mxu0 %v5702
      %6058 = vmatprep.subr.bf16.mxu0 %v5710
      %6059 = vmatpush1.bf16.msra.mxu0 %v5709
      %6060 = vmatprep.subr.bf16.mxu0 %v5717
      %6061 = vmatpush1.bf16.msra.mxu0 %v5716
      %6062 = vmatprep.subr.bf16.mxu0 %v5724
      %6063 = vmatpush1.bf16.msra.mxu0 %v5723
      %6064 = vmatprep.subr.bf16.mxu0 %v5731
      %6065 = vmatpush1.bf16.msra.mxu0 %v5730
      %6066 = vmatprep.subr.bf16.mxu0 %v5738
      %6067 = vmatpush1.bf16.msra.mxu0 %v5737
      %6068 = vmatprep.subr.bf16.mxu0 %v5745
      %6069 = vmatpush1.bf16.msra.mxu0 %v5744
      %6070 = vmatprep.subr.bf16.mxu0 %v5752
      %6071 = vmatpush1.bf16.msra.mxu0 %v5751
      %6072 = vmatprep.subr.bf16.mxu0 %v5759
      %6073 = vmatpush1.bf16.msra.mxu0 %v5758
      %6074 = vmatprep.subr.bf16.mxu0 %v5766
      %6075 = vmatpush1.bf16.msra.mxu0 %v5765
      %6076 = vmatprep.subr.bf16.mxu0 %v5773
      %6077 = vmatpush1.bf16.msra.mxu0 %v5772
      %6078 = vmatprep.subr.bf16.mxu0 %v5780
      %6079 = vmatpush1.bf16.msra.mxu0 %v5779
      %6080 = vmatprep.mubr.bf16.mxu0 %v4856
      %6081 = vmatmul.mubr.bf16.gmra.mrb[0].mxu0 %v4855
      %v6082 = vpop.f32.mrb[0].mxu0
      %v6083 = vadd.f32 %v5092, %v6082
      %v6084 = vpop.f32.mrb[0].mxu0
      %v6085 = vadd.f32 %v5096, %v6084
      %v6086 = vpop.f32.mrb[0].mxu0
      %v6087 = vadd.f32 %v5092, %v6086
      %v6088 = vpop.f32.mrb[0].mxu0
      %v6089 = vadd.f32 %v5096, %v6088
      %6090 = vmatprep.mubr.bf16.mxu0 %v4860
      %6091 = vmatmul.mubr.bf16.gmra.mrb[0].mxu0 %v4859
      %v6092 = vpop.f32.mrb[0].mxu0
      %v6093 = vadd.f32 %v5092, %v6092
      %v6094 = vpop.f32.mrb[0].mxu0
      %v6095 = vadd.f32 %v5096, %v6094
      %v6096 = vpop.f32.mrb[0].mxu0
      %v6097 = vadd.f32 %v5092, %v6096
      %v6098 = vpop.f32.mrb[0].mxu0
      %v6099 = vadd.f32 %v5096, %v6098
      %6100 = vmatprep.mubr.bf16.mxu0 %v4864
      %6101 = vmatmul.mubr.bf16.gmra.mrb[0].mxu0 %v4863
      %v6102 = vpop.f32.mrb[0].mxu0
      %v6103 = vadd.f32 %v5092, %v6102
      %v6104 = vpop.f32.mrb[0].mxu0
      %v6105 = vadd.f32 %v5096, %v6104
      %v6106 = vpop.f32.mrb[0].mxu0
      %v6107 = vadd.f32 %v5092, %v6106
      %v6108 = vpop.f32.mrb[0].mxu0
      %v6109 = vadd.f32 %v5096, %v6108
      %6110 = vmatprep.mubr.bf16.mxu0 %v4868
      %6111 = vmatmul.mubr.bf16.gmra.mrb[0].mxu0 %v4867
      %v6112 = vpop.f32.mrb[0].mxu0
      %v6113 = vadd.f32 %v5092, %v6112
      %v6114 = vpop.f32.mrb[0].mxu0
      %v6115 = vadd.f32 %v5096, %v6114
      %v6116 = vpop.f32.mrb[0].mxu0
      %v6117 = vadd.f32 %v5092, %v6116
      %v6118 = vpop.f32.mrb[0].mxu0
      %v6119 = vadd.f32 %v5096, %v6118
      %6120 = vmatprep.mubr.bf16.mxu0 %v4872
      %6121 = vmatmul.mubr.bf16.gmra.mrb[0].mxu0 %v4871
      %v6122 = vpop.f32.mrb[0].mxu0
      %v6123 = vadd.f32 %v5092, %v6122
      %v6124 = vpop.f32.mrb[0].mxu0
      %v6125 = vadd.f32 %v5096, %v6124
      %v6126 = vpop.f32.mrb[0].mxu0
      %v6127 = vadd.f32 %v5092, %v6126
      %v6128 = vpop.f32.mrb[0].mxu0
      %v6129 = vadd.f32 %v5096, %v6128
      %6130 = vmatprep.mubr.bf16.mxu0 %v4876
      %6131 = vmatmul.mubr.bf16.gmra.mrb[0].mxu0 %v4875
      %v6132 = vpop.f32.mrb[0].mxu0
      %v6133 = vadd.f32 %v5092, %v6132
      %v6134 = vpop.f32.mrb[0].mxu0
      %v6135 = vadd.f32 %v5096, %v6134
      %v6136 = vpop.f32.mrb[0].mxu0
      %v6137 = vadd.f32 %v5092, %v6136
      %v6138 = vpop.f32.mrb[0].mxu0
      %v6139 = vadd.f32 %v5096, %v6138
      %6140 = vmatprep.mubr.bf16.mxu0 %v4880
      %6141 = vmatmul.mubr.bf16.gmra.mrb[0].mxu0 %v4879
      %v6142 = vpop.f32.mrb[0].mxu0
      %v6143 = vadd.f32 %v5092, %v6142
      %v6144 = vpop.f32.mrb[0].mxu0
      %v6145 = vadd.f32 %v5096, %v6144
      %v6146 = vpop.f32.mrb[0].mxu0
      %v6147 = vadd.f32 %v5092, %v6146
      %v6148 = vpop.f32.mrb[0].mxu0
      %v6149 = vadd.f32 %v5096, %v6148
      %6150 = vmatprep.mubr.bf16.mxu0 %v4884
      %6151 = vmatmul.mubr.bf16.gmra.mrb[0].mxu0 %v4883
      %v6152 = vpop.f32.mrb[0].mxu0
      %v6153 = vadd.f32 %v5092, %v6152
      %v6154 = vpop.f32.mrb[0].mxu0
      %v6155 = vadd.f32 %v5096, %v6154
      %v6156 = vpop.f32.mrb[0].mxu0
      %v6157 = vadd.f32 %v5092, %v6156
      %v6158 = vpop.f32.mrb[0].mxu0
      %v6159 = vadd.f32 %v5096, %v6158
      %6160 = vdwg.mxu0
      %6161 = vmatprep.subr.bf16.mxu0 %v5787
      %6162 = vmatpush1.bf16.msra.mxu0 %v5786
      %6163 = vmatprep.subr.bf16.mxu0 %v5794
      %6164 = vmatpush1.bf16.msra.mxu0 %v5793
      %6165 = vmatprep.subr.bf16.mxu0 %v5801
      %6166 = vmatpush1.bf16.msra.mxu0 %v5800
      %6167 = vmatprep.subr.bf16.mxu0 %v5808
      %6168 = vmatpush1.bf16.msra.mxu0 %v5807
      %6169 = vmatprep.subr.bf16.mxu0 %v5815
      %6170 = vmatpush1.bf16.msra.mxu0 %v5814
      %6171 = vmatprep.subr.bf16.mxu0 %v5822
      %6172 = vmatpush1.bf16.msra.mxu0 %v5821
      %6173 = vmatprep.subr.bf16.mxu0 %v5829
      %6174 = vmatpush1.bf16.msra.mxu0 %v5828
      %6175 = vmatprep.subr.bf16.mxu0 %v5836
      %6176 = vmatpush1.bf16.msra.mxu0 %v5835
      %6177 = vmatprep.subr.bf16.mxu0 %v5843
      %6178 = vmatpush1.bf16.msra.mxu0 %v5842
      %6179 = vmatprep.subr.bf16.mxu0 0
      %6180 = vmatpush1.bf16.msra.mxu0 0
      %6181 = vmatprep.subr.bf16.mxu0 0
      %6182 = vmatpush1.bf16.msra.mxu0 0
      %6183 = vmatprep.subr.bf16.mxu0 0
      %6184 = vmatpush1.bf16.msra.mxu0 0
      %6185 = vmatprep.subr.bf16.mxu0 0
      %6186 = vmatpush1.bf16.msra.mxu0 0
      %6187 = vmatprep.subr.bf16.mxu0 0
      %6188 = vmatpush1.bf16.msra.mxu0 0
      %6189 = vmatprep.subr.bf16.mxu0 0
      %6190 = vmatpush1.bf16.msra.mxu0 0
      %6191 = vmatprep.subr.bf16.mxu0 0
      %6192 = vmatpush1.bf16.msra.mxu0 0
      %6193 = vmatprep.mubr.bf16.mxu0 %v6025
      %6194 = vmatmul.mubr.bf16.gmra.mrb[0].mxu0 %v4857
      %v6195 = vpop.f32.mrb[0].mxu0
      %v6196 = vadd.f32 %v6083, %v6195
      %v6197 = vpop.f32.mrb[0].mxu0
      %v6198 = vadd.f32 %v6085, %v6197
      %v6199 = vpop.f32.mrb[0].mxu0
      %v6200 = vadd.f32 %v6087, %v6199
      %v6201 = vpop.f32.mrb[0].mxu0
      %v6202 = vadd.f32 %v6089, %v6201
      %6203 = vmatprep.mubr.bf16.mxu0 %v6028
      %6204 = vmatmul.mubr.bf16.gmra.mrb[0].mxu0 %v4861
      %v6205 = vpop.f32.mrb[0].mxu0
      %v6206 = vadd.f32 %v6093, %v6205
      %v6207 = vpop.f32.mrb[0].mxu0
      %v6208 = vadd.f32 %v6095, %v6207
      %v6209 = vpop.f32.mrb[0].mxu0
      %v6210 = vadd.f32 %v6097, %v6209
      %v6211 = vpop.f32.mrb[0].mxu0
      %v6212 = vadd.f32 %v6099, %v6211
      %6213 = vmatprep.mubr.bf16.mxu0 %v6031
      %6214 = vmatmul.mubr.bf16.gmra.mrb[0].mxu0 %v4865
      %v6215 = vpop.f32.mrb[0].mxu0
      %v6216 = vadd.f32 %v6103, %v6215
      %v6217 = vpop.f32.mrb[0].mxu0
      %v6218 = vadd.f32 %v6105, %v6217
      %v6219 = vpop.f32.mrb[0].mxu0
      %v6220 = vadd.f32 %v6107, %v6219
      %v6221 = vpop.f32.mrb[0].mxu0
      %v6222 = vadd.f32 %v6109, %v6221
      %6223 = vmatprep.mubr.bf16.mxu0 %v6034
      %6224 = vmatmul.mubr.bf16.gmra.mrb[0].mxu0 %v4869
      %v6225 = vpop.f32.mrb[0].mxu0
      %v6226 = vadd.f32 %v6113, %v6225
      %v6227 = vpop.f32.mrb[0].mxu0
      %v6228 = vadd.f32 %v6115, %v6227
      %v6229 = vpop.f32.mrb[0].mxu0
      %v6230 = vadd.f32 %v6117, %v6229
      %v6231 = vpop.f32.mrb[0].mxu0
      %v6232 = vadd.f32 %v6119, %v6231
      %6233 = vmatprep.mubr.bf16.mxu0 %v6037
      %6234 = vmatmul.mubr.bf16.gmra.mrb[0].mxu0 %v4873
      %v6235 = vpop.f32.mrb[0].mxu0
      %v6236 = vadd.f32 %v6123, %v6235
      %v6237 = vpop.f32.mrb[0].mxu0
      %v6238 = vadd.f32 %v6125, %v6237
      %v6239 = vpop.f32.mrb[0].mxu0
      %v6240 = vadd.f32 %v6127, %v6239
      %v6241 = vpop.f32.mrb[0].mxu0
      %v6242 = vadd.f32 %v6129, %v6241
      %6243 = vmatprep.mubr.bf16.mxu0 %v6040
      %6244 = vmatmul.mubr.bf16.gmra.mrb[0].mxu0 %v4877
      %v6245 = vpop.f32.mrb[0].mxu0
      %v6246 = vadd.f32 %v6133, %v6245
      %v6247 = vpop.f32.mrb[0].mxu0
      %v6248 = vadd.f32 %v6135, %v6247
      %v6249 = vpop.f32.mrb[0].mxu0
      %v6250 = vadd.f32 %v6137, %v6249
      %v6251 = vpop.f32.mrb[0].mxu0
      %v6252 = vadd.f32 %v6139, %v6251
      %6253 = vmatprep.mubr.bf16.mxu0 %v6043
      %6254 = vmatmul.mubr.bf16.gmra.mrb[0].mxu0 %v4881
      %v6255 = vpop.f32.mrb[0].mxu0
      %v6256 = vadd.f32 %v6143, %v6255
      %v6257 = vpop.f32.mrb[0].mxu0
      %v6258 = vadd.f32 %v6145, %v6257
      %v6259 = vpop.f32.mrb[0].mxu0
      %v6260 = vadd.f32 %v6147, %v6259
      %v6261 = vpop.f32.mrb[0].mxu0
      %v6262 = vadd.f32 %v6149, %v6261
      %6263 = vmatprep.mubr.bf16.mxu0 %v6046
      %6264 = vmatmul.mubr.bf16.gmra.mrb[0].mxu0 %v4885
      %v6265 = vpop.f32.mrb[0].mxu0
      %v6266 = vadd.f32 %v6153, %v6265
      %v6267 = vpop.f32.mrb[0].mxu0
      %v6268 = vadd.f32 %v6155, %v6267
      %v6269 = vpop.f32.mrb[0].mxu0
      %v6270 = vadd.f32 %v6157, %v6269
      %v6271 = vpop.f32.mrb[0].mxu0
      %v6272 = vadd.f32 %v6159, %v6271
      %6273 = vdwg.mxu0
      %6274 = vmatprep.subr.bf16.mxu0 %v5677
      %6275 = vmatpush1.bf16.msra.mxu0 %v5676
      %6276 = vmatprep.subr.bf16.mxu0 %v5684
      %6277 = vmatpush1.bf16.msra.mxu0 %v5683
      %6278 = vmatprep.subr.bf16.mxu0 %v5691
      %6279 = vmatpush1.bf16.msra.mxu0 %v5690
      %6280 = vmatprep.subr.bf16.mxu0 %v5698
      %6281 = vmatpush1.bf16.msra.mxu0 %v5697
      %6282 = vmatprep.subr.bf16.mxu0 %v5705
      %6283 = vmatpush1.bf16.msra.mxu0 %v5704
      %6284 = vmatprep.subr.bf16.mxu0 %v5712
      %6285 = vmatpush1.bf16.msra.mxu0 %v5711
      %6286 = vmatprep.subr.bf16.mxu0 %v5719
      %6287 = vmatpush1.bf16.msra.mxu0 %v5718
      %6288 = vmatprep.subr.bf16.mxu0 %v5726
      %6289 = vmatpush1.bf16.msra.mxu0 %v5725
      %6290 = vmatprep.subr.bf16.mxu0 %v5733
      %6291 = vmatpush1.bf16.msra.mxu0 %v5732
      %6292 = vmatprep.subr.bf16.mxu0 %v5740
      %6293 = vmatpush1.bf16.msra.mxu0 %v5739
      %6294 = vmatprep.subr.bf16.mxu0 %v5747
      %6295 = vmatpush1.bf16.msra.mxu0 %v5746
      %6296 = vmatprep.subr.bf16.mxu0 %v5754
      %6297 = vmatpush1.bf16.msra.mxu0 %v5753
      %6298 = vmatprep.subr.bf16.mxu0 %v5761
      %6299 = vmatpush1.bf16.msra.mxu0 %v5760
      %6300 = vmatprep.subr.bf16.mxu0 %v5768
      %6301 = vmatpush1.bf16.msra.mxu0 %v5767
      %6302 = vmatprep.subr.bf16.mxu0 %v5775
      %6303 = vmatpush1.bf16.msra.mxu0 %v5774
      %6304 = vmatprep.subr.bf16.mxu0 %v5782
      %6305 = vmatpush1.bf16.msra.mxu0 %v5781
      %6306 = vmatprep.mubr.bf16.mxu0 %v4856
      %6307 = vmatmul.mubr.bf16.gmra.mrb[0].mxu0 %v4855
      %v6308 = vpop.f32.mrb[0].mxu0
      %v6309 = vadd.f32 %v5100, %v6308
      %v6310 = vpop.f32.mrb[0].mxu0
      %v6311 = vadd.f32 %v5104, %v6310
      %v6312 = vpop.f32.mrb[0].mxu0
      %v6313 = vadd.f32 %v5100, %v6312
      %v6314 = vpop.f32.mrb[0].mxu0
      %v6315 = vadd.f32 %v5104, %v6314
      %6316 = vmatprep.mubr.bf16.mxu0 %v4860
      %6317 = vmatmul.mubr.bf16.gmra.mrb[0].mxu0 %v4859
      %v6318 = vpop.f32.mrb[0].mxu0
      %v6319 = vadd.f32 %v5100, %v6318
      %v6320 = vpop.f32.mrb[0].mxu0
      %v6321 = vadd.f32 %v5104, %v6320
      %v6322 = vpop.f32.mrb[0].mxu0
      %v6323 = vadd.f32 %v5100, %v6322
      %v6324 = vpop.f32.mrb[0].mxu0
      %v6325 = vadd.f32 %v5104, %v6324
      %6326 = vmatprep.mubr.bf16.mxu0 %v4864
      %6327 = vmatmul.mubr.bf16.gmra.mrb[0].mxu0 %v4863
      %v6328 = vpop.f32.mrb[0].mxu0
      %v6329 = vadd.f32 %v5100, %v6328
      %v6330 = vpop.f32.mrb[0].mxu0
      %v6331 = vadd.f32 %v5104, %v6330
      %v6332 = vpop.f32.mrb[0].mxu0
      %v6333 = vadd.f32 %v5100, %v6332
      %v6334 = vpop.f32.mrb[0].mxu0
      %v6335 = vadd.f32 %v5104, %v6334
      %6336 = vmatprep.mubr.bf16.mxu0 %v4868
      %6337 = vmatmul.mubr.bf16.gmra.mrb[0].mxu0 %v4867
      %v6338 = vpop.f32.mrb[0].mxu0
      %v6339 = vadd.f32 %v5100, %v6338
      %v6340 = vpop.f32.mrb[0].mxu0
      %v6341 = vadd.f32 %v5104, %v6340
      %v6342 = vpop.f32.mrb[0].mxu0
      %v6343 = vadd.f32 %v5100, %v6342
      %v6344 = vpop.f32.mrb[0].mxu0
      %v6345 = vadd.f32 %v5104, %v6344
      %6346 = vmatprep.mubr.bf16.mxu0 %v4872
      %6347 = vmatmul.mubr.bf16.gmra.mrb[0].mxu0 %v4871
      %v6348 = vpop.f32.mrb[0].mxu0
      %v6349 = vadd.f32 %v5100, %v6348
      %v6350 = vpop.f32.mrb[0].mxu0
      %v6351 = vadd.f32 %v5104, %v6350
      %v6352 = vpop.f32.mrb[0].mxu0
      %v6353 = vadd.f32 %v5100, %v6352
      %v6354 = vpop.f32.mrb[0].mxu0
      %v6355 = vadd.f32 %v5104, %v6354
      %6356 = vmatprep.mubr.bf16.mxu0 %v4876
      %6357 = vmatmul.mubr.bf16.gmra.mrb[0].mxu0 %v4875
      %v6358 = vpop.f32.mrb[0].mxu0
      %v6359 = vadd.f32 %v5100, %v6358
      %v6360 = vpop.f32.mrb[0].mxu0
      %v6361 = vadd.f32 %v5104, %v6360
      %v6362 = vpop.f32.mrb[0].mxu0
      %v6363 = vadd.f32 %v5100, %v6362
      %v6364 = vpop.f32.mrb[0].mxu0
      %v6365 = vadd.f32 %v5104, %v6364
      %6366 = vmatprep.mubr.bf16.mxu0 %v4880
      %6367 = vmatmul.mubr.bf16.gmra.mrb[0].mxu0 %v4879
      %v6368 = vpop.f32.mrb[0].mxu0
      %v6369 = vadd.f32 %v5100, %v6368
      %v6370 = vpop.f32.mrb[0].mxu0
      %v6371 = vadd.f32 %v5104, %v6370
      %v6372 = vpop.f32.mrb[0].mxu0
      %v6373 = vadd.f32 %v5100, %v6372
      %v6374 = vpop.f32.mrb[0].mxu0
      %v6375 = vadd.f32 %v5104, %v6374
      %6376 = vmatprep.mubr.bf16.mxu0 %v4884
      %6377 = vmatmul.mubr.bf16.gmra.mrb[0].mxu0 %v4883
      %v6378 = vpop.f32.mrb[0].mxu0
      %v6379 = vadd.f32 %v5100, %v6378
      %v6380 = vpop.f32.mrb[0].mxu0
      %v6381 = vadd.f32 %v5104, %v6380
      %v6382 = vpop.f32.mrb[0].mxu0
      %v6383 = vadd.f32 %v5100, %v6382
      %v6384 = vpop.f32.mrb[0].mxu0
      %v6385 = vadd.f32 %v5104, %v6384
      %6386 = vdwg.mxu0
      %6387 = vmatprep.subr.bf16.mxu0 %v5789
      %6388 = vmatpush1.bf16.msra.mxu0 %v5788
      %6389 = vmatprep.subr.bf16.mxu0 %v5796
      %6390 = vmatpush1.bf16.msra.mxu0 %v5795
      %6391 = vmatprep.subr.bf16.mxu0 %v5803
      %6392 = vmatpush1.bf16.msra.mxu0 %v5802
      %6393 = vmatprep.subr.bf16.mxu0 %v5810
      %6394 = vmatpush1.bf16.msra.mxu0 %v5809
      %6395 = vmatprep.subr.bf16.mxu0 %v5817
      %6396 = vmatpush1.bf16.msra.mxu0 %v5816
      %6397 = vmatprep.subr.bf16.mxu0 %v5824
      %6398 = vmatpush1.bf16.msra.mxu0 %v5823
      %6399 = vmatprep.subr.bf16.mxu0 %v5831
      %6400 = vmatpush1.bf16.msra.mxu0 %v5830
      %6401 = vmatprep.subr.bf16.mxu0 %v5838
      %6402 = vmatpush1.bf16.msra.mxu0 %v5837
      %6403 = vmatprep.subr.bf16.mxu0 %v5845
      %6404 = vmatpush1.bf16.msra.mxu0 %v5844
      %6405 = vmatprep.subr.bf16.mxu0 0
      %6406 = vmatpush1.bf16.msra.mxu0 0
      %6407 = vmatprep.subr.bf16.mxu0 0
      %6408 = vmatpush1.bf16.msra.mxu0 0
      %6409 = vmatprep.subr.bf16.mxu0 0
      %6410 = vmatpush1.bf16.msra.mxu0 0
      %6411 = vmatprep.subr.bf16.mxu0 0
      %6412 = vmatpush1.bf16.msra.mxu0 0
      %6413 = vmatprep.subr.bf16.mxu0 0
      %6414 = vmatpush1.bf16.msra.mxu0 0
      %6415 = vmatprep.subr.bf16.mxu0 0
      %6416 = vmatpush1.bf16.msra.mxu0 0
      %6417 = vmatprep.subr.bf16.mxu0 0
      %6418 = vmatpush1.bf16.msra.mxu0 0
      %6419 = vmatprep.mubr.bf16.mxu0 %v6025
      %6420 = vmatmul.mubr.bf16.gmra.mrb[0].mxu0 %v4857
      %v6421 = vpop.f32.mrb[0].mxu0
      %v6422 = vadd.f32 %v6309, %v6421
      %v6423 = vpop.f32.mrb[0].mxu0
      %v6424 = vadd.f32 %v6311, %v6423
      %v6425 = vpop.f32.mrb[0].mxu0
      %v6426 = vadd.f32 %v6313, %v6425
      %v6427 = vpop.f32.mrb[0].mxu0
      %v6428 = vadd.f32 %v6315, %v6427
      %6429 = vmatprep.mubr.bf16.mxu0 %v6028
      %6430 = vmatmul.mubr.bf16.gmra.mrb[0].mxu0 %v4861
      %v6431 = vpop.f32.mrb[0].mxu0
      %v6432 = vadd.f32 %v6319, %v6431
      %v6433 = vpop.f32.mrb[0].mxu0
      %v6434 = vadd.f32 %v6321, %v6433
      %v6435 = vpop.f32.mrb[0].mxu0
      %v6436 = vadd.f32 %v6323, %v6435
      %v6437 = vpop.f32.mrb[0].mxu0
      %v6438 = vadd.f32 %v6325, %v6437
      %6439 = vmatprep.mubr.bf16.mxu0 %v6031
      %6440 = vmatmul.mubr.bf16.gmra.mrb[0].mxu0 %v4865
      %v6441 = vpop.f32.mrb[0].mxu0
      %v6442 = vadd.f32 %v6329, %v6441
      %v6443 = vpop.f32.mrb[0].mxu0
      %v6444 = vadd.f32 %v6331, %v6443
      %v6445 = vpop.f32.mrb[0].mxu0
      %v6446 = vadd.f32 %v6333, %v6445
      %v6447 = vpop.f32.mrb[0].mxu0
      %v6448 = vadd.f32 %v6335, %v6447
      %6449 = vmatprep.mubr.bf16.mxu0 %v6034
      %6450 = vmatmul.mubr.bf16.gmra.mrb[0].mxu0 %v4869
      %v6451 = vpop.f32.mrb[0].mxu0
      %v6452 = vadd.f32 %v6339, %v6451
      %v6453 = vpop.f32.mrb[0].mxu0
      %v6454 = vadd.f32 %v6341, %v6453
      %v6455 = vpop.f32.mrb[0].mxu0
      %v6456 = vadd.f32 %v6343, %v6455
      %v6457 = vpop.f32.mrb[0].mxu0
      %v6458 = vadd.f32 %v6345, %v6457
      %6459 = vmatprep.mubr.bf16.mxu0 %v6037
      %6460 = vmatmul.mubr.bf16.gmra.mrb[0].mxu0 %v4873
      %v6461 = vpop.f32.mrb[0].mxu0
      %v6462 = vadd.f32 %v6349, %v6461
      %v6463 = vpop.f32.mrb[0].mxu0
      %v6464 = vadd.f32 %v6351, %v6463
      %v6465 = vpop.f32.mrb[0].mxu0
      %v6466 = vadd.f32 %v6353, %v6465
      %v6467 = vpop.f32.mrb[0].mxu0
      %v6468 = vadd.f32 %v6355, %v6467
      %6469 = vmatprep.mubr.bf16.mxu0 %v6040
      %6470 = vmatmul.mubr.bf16.gmra.mrb[0].mxu0 %v4877
      %v6471 = vpop.f32.mrb[0].mxu0
      %v6472 = vadd.f32 %v6359, %v6471
      %v6473 = vpop.f32.mrb[0].mxu0
      %v6474 = vadd.f32 %v6361, %v6473
      %v6475 = vpop.f32.mrb[0].mxu0
      %v6476 = vadd.f32 %v6363, %v6475
      %v6477 = vpop.f32.mrb[0].mxu0
      %v6478 = vadd.f32 %v6365, %v6477
      %6479 = vmatprep.mubr.bf16.mxu0 %v6043
      %6480 = vmatmul.mubr.bf16.gmra.mrb[0].mxu0 %v4881
      %v6481 = vpop.f32.mrb[0].mxu0
      %v6482 = vadd.f32 %v6369, %v6481
      %v6483 = vpop.f32.mrb[0].mxu0
      %v6484 = vadd.f32 %v6371, %v6483
      %v6485 = vpop.f32.mrb[0].mxu0
      %v6486 = vadd.f32 %v6373, %v6485
      %v6487 = vpop.f32.mrb[0].mxu0
      %v6488 = vadd.f32 %v6375, %v6487
      %6489 = vmatprep.mubr.bf16.mxu0 %v6046
      %6490 = vmatmul.mubr.bf16.gmra.mrb[0].mxu0 %v4885
      %v6491 = vpop.f32.mrb[0].mxu0
      %v6492 = vadd.f32 %v6379, %v6491
      %v6493 = vpop.f32.mrb[0].mxu0
      %v6494 = vadd.f32 %v6381, %v6493
      %v6495 = vpop.f32.mrb[0].mxu0
      %v6496 = vadd.f32 %v6383, %v6495
      %v6497 = vpop.f32.mrb[0].mxu0
      %v6498 = vadd.f32 %v6385, %v6497
      %6499 = vdwg.mxu0
      %6500 = vmatprep.subr.bf16.mxu0 %v5679
      %6501 = vmatpush1.bf16.msra.mxu0 %v5678
      %6502 = vmatprep.subr.bf16.mxu0 %v5686
      %6503 = vmatpush1.bf16.msra.mxu0 %v5685
      %6504 = vmatprep.subr.bf16.mxu0 %v5693
      %6505 = vmatpush1.bf16.msra.mxu0 %v5692
      %6506 = vmatprep.subr.bf16.mxu0 %v5700
      %6507 = vmatpush1.bf16.msra.mxu0 %v5699
      %6508 = vmatprep.subr.bf16.mxu0 %v5707
      %6509 = vmatpush1.bf16.msra.mxu0 %v5706
      %6510 = vmatprep.subr.bf16.mxu0 %v5714
      %6511 = vmatpush1.bf16.msra.mxu0 %v5713
      %6512 = vmatprep.subr.bf16.mxu0 %v5721
      %6513 = vmatpush1.bf16.msra.mxu0 %v5720
      %6514 = vmatprep.subr.bf16.mxu0 %v5728
      %6515 = vmatpush1.bf16.msra.mxu0 %v5727
      %6516 = vmatprep.subr.bf16.mxu0 %v5735
      %6517 = vmatpush1.bf16.msra.mxu0 %v5734
      %6518 = vmatprep.subr.bf16.mxu0 %v5742
      %6519 = vmatpush1.bf16.msra.mxu0 %v5741
      %6520 = vmatprep.subr.bf16.mxu0 %v5749
      %6521 = vmatpush1.bf16.msra.mxu0 %v5748
      %6522 = vmatprep.subr.bf16.mxu0 %v5756
      %6523 = vmatpush1.bf16.msra.mxu0 %v5755
      %6524 = vmatprep.subr.bf16.mxu0 %v5763
      %6525 = vmatpush1.bf16.msra.mxu0 %v5762
      %6526 = vmatprep.subr.bf16.mxu0 %v5770
      %6527 = vmatpush1.bf16.msra.mxu0 %v5769
      %6528 = vmatprep.subr.bf16.mxu0 %v5777
      %6529 = vmatpush1.bf16.msra.mxu0 %v5776
      %6530 = vmatprep.subr.bf16.mxu0 %v5784
      %6531 = vmatpush1.bf16.msra.mxu0 %v5783
      %6532 = vmatprep.mubr.bf16.mxu0 %v4856
      %6533 = vmatmul.mubr.bf16.gmra.mrb[0].mxu0 %v4855
      %v6534 = vpop.f32.mrb[0].mxu0
      %v6535 = vadd.f32 %v5108, %v6534
      %v6536 = vpop.f32.mrb[0].mxu0
      %v6537 = vadd.f32 %v5112, %v6536
      %v6538 = vpop.f32.mrb[0].mxu0
      %v6539 = vadd.f32 %v5108, %v6538
      %v6540 = vpop.f32.mrb[0].mxu0
      %v6541 = vadd.f32 %v5112, %v6540
      %6542 = vmatprep.mubr.bf16.mxu0 %v4860
      %6543 = vmatmul.mubr.bf16.gmra.mrb[0].mxu0 %v4859
      %v6544 = vpop.f32.mrb[0].mxu0
      %v6545 = vadd.f32 %v5108, %v6544
      %v6546 = vpop.f32.mrb[0].mxu0
      %v6547 = vadd.f32 %v5112, %v6546
      %v6548 = vpop.f32.mrb[0].mxu0
      %v6549 = vadd.f32 %v5108, %v6548
      %v6550 = vpop.f32.mrb[0].mxu0
      %v6551 = vadd.f32 %v5112, %v6550
      %6552 = vmatprep.mubr.bf16.mxu0 %v4864
      %6553 = vmatmul.mubr.bf16.gmra.mrb[0].mxu0 %v4863
      %v6554 = vpop.f32.mrb[0].mxu0
      %v6555 = vadd.f32 %v5108, %v6554
      %v6556 = vpop.f32.mrb[0].mxu0
      %v6557 = vadd.f32 %v5112, %v6556
      %v6558 = vpop.f32.mrb[0].mxu0
      %v6559 = vadd.f32 %v5108, %v6558
      %v6560 = vpop.f32.mrb[0].mxu0
      %v6561 = vadd.f32 %v5112, %v6560
      %6562 = vmatprep.mubr.bf16.mxu0 %v4868
      %6563 = vmatmul.mubr.bf16.gmra.mrb[0].mxu0 %v4867
      %v6564 = vpop.f32.mrb[0].mxu0
      %v6565 = vadd.f32 %v5108, %v6564
      %v6566 = vpop.f32.mrb[0].mxu0
      %v6567 = vadd.f32 %v5112, %v6566
      %v6568 = vpop.f32.mrb[0].mxu0
      %v6569 = vadd.f32 %v5108, %v6568
      %v6570 = vpop.f32.mrb[0].mxu0
      %v6571 = vadd.f32 %v5112, %v6570
      %6572 = vmatprep.mubr.bf16.mxu0 %v4872
      %6573 = vmatmul.mubr.bf16.gmra.mrb[0].mxu0 %v4871
      %v6574 = vpop.f32.mrb[0].mxu0
      %v6575 = vadd.f32 %v5108, %v6574
      %v6576 = vpop.f32.mrb[0].mxu0
      %v6577 = vadd.f32 %v5112, %v6576
      %v6578 = vpop.f32.mrb[0].mxu0
      %v6579 = vadd.f32 %v5108, %v6578
      %v6580 = vpop.f32.mrb[0].mxu0
      %v6581 = vadd.f32 %v5112, %v6580
      %6582 = vmatprep.mubr.bf16.mxu0 %v4876
      %6583 = vmatmul.mubr.bf16.gmra.mrb[0].mxu0 %v4875
      %v6584 = vpop.f32.mrb[0].mxu0
      %v6585 = vadd.f32 %v5108, %v6584
      %v6586 = vpop.f32.mrb[0].mxu0
      %v6587 = vadd.f32 %v5112, %v6586
      %v6588 = vpop.f32.mrb[0].mxu0
      %v6589 = vadd.f32 %v5108, %v6588
      %v6590 = vpop.f32.mrb[0].mxu0
      %v6591 = vadd.f32 %v5112, %v6590
      %6592 = vmatprep.mubr.bf16.mxu0 %v4880
      %6593 = vmatmul.mubr.bf16.gmra.mrb[0].mxu0 %v4879
      %v6594 = vpop.f32.mrb[0].mxu0
      %v6595 = vadd.f32 %v5108, %v6594
      %v6596 = vpop.f32.mrb[0].mxu0
      %v6597 = vadd.f32 %v5112, %v6596
      %v6598 = vpop.f32.mrb[0].mxu0
      %v6599 = vadd.f32 %v5108, %v6598
      %v6600 = vpop.f32.mrb[0].mxu0
      %v6601 = vadd.f32 %v5112, %v6600
      %6602 = vmatprep.mubr.bf16.mxu0 %v4884
      %6603 = vmatmul.mubr.bf16.gmra.mrb[0].mxu0 %v4883
      %v6604 = vpop.f32.mrb[0].mxu0
      %v6605 = vadd.f32 %v5108, %v6604
      %v6606 = vpop.f32.mrb[0].mxu0
      %v6607 = vadd.f32 %v5112, %v6606
      %v6608 = vpop.f32.mrb[0].mxu0
      %v6609 = vadd.f32 %v5108, %v6608
      %v6610 = vpop.f32.mrb[0].mxu0
      %v6611 = vadd.f32 %v5112, %v6610
      %6612 = vdwg.mxu0
      %6613 = vmatprep.subr.bf16.mxu0 %v5791
      %6614 = vmatpush1.bf16.msra.mxu0 %v5790
      %6615 = vmatprep.subr.bf16.mxu0 %v5798
      %6616 = vmatpush1.bf16.msra.mxu0 %v5797
      %6617 = vmatprep.subr.bf16.mxu0 %v5805
      %6618 = vmatpush1.bf16.msra.mxu0 %v5804
      %6619 = vmatprep.subr.bf16.mxu0 %v5812
      %6620 = vmatpush1.bf16.msra.mxu0 %v5811
      %6621 = vmatprep.subr.bf16.mxu0 %v5819
      %6622 = vmatpush1.bf16.msra.mxu0 %v5818
      %6623 = vmatprep.subr.bf16.mxu0 %v5826
      %6624 = vmatpush1.bf16.msra.mxu0 %v5825
      %6625 = vmatprep.subr.bf16.mxu0 %v5833
      %6626 = vmatpush1.bf16.msra.mxu0 %v5832
      %6627 = vmatprep.subr.bf16.mxu0 %v5840
      %6628 = vmatpush1.bf16.msra.mxu0 %v5839
      %6629 = vmatprep.subr.bf16.mxu0 %v5847
      %6630 = vmatpush1.bf16.msra.mxu0 %v5846
      %6631 = vmatprep.subr.bf16.mxu0 0
      %6632 = vmatpush1.bf16.msra.mxu0 0
      %6633 = vmatprep.subr.bf16.mxu0 0
      %6634 = vmatpush1.bf16.msra.mxu0 0
      %6635 = vmatprep.subr.bf16.mxu0 0
      %6636 = vmatpush1.bf16.msra.mxu0 0
      %6637 = vmatprep.subr.bf16.mxu0 0
      %6638 = vmatpush1.bf16.msra.mxu0 0
      %6639 = vmatprep.subr.bf16.mxu0 0
      %6640 = vmatpush1.bf16.msra.mxu0 0
      %6641 = vmatprep.subr.bf16.mxu0 0
      %6642 = vmatpush1.bf16.msra.mxu0 0
      %6643 = vmatprep.subr.bf16.mxu0 0
      %6644 = vmatpush1.bf16.msra.mxu0 0
      %6645 = vmatprep.mubr.bf16.mxu0 %v6025
      %6646 = vmatmul.mubr.bf16.gmra.mrb[0].mxu0 %v4857
      %v6647 = vpop.f32.mrb[0].mxu0
      %v6648 = vadd.f32 %v6535, %v6647
      %v6649 = vpop.f32.mrb[0].mxu0
      %v6650 = vadd.f32 %v6537, %v6649
      %v6651 = vpop.f32.mrb[0].mxu0
      %v6652 = vadd.f32 %v6539, %v6651
      %v6653 = vpop.f32.mrb[0].mxu0
      %v6654 = vadd.f32 %v6541, %v6653
      %6655 = vmatprep.mubr.bf16.mxu0 %v6028
      %6656 = vmatmul.mubr.bf16.gmra.mrb[0].mxu0 %v4861
      %v6657 = vpop.f32.mrb[0].mxu0
      %v6658 = vadd.f32 %v6545, %v6657
      %v6659 = vpop.f32.mrb[0].mxu0
      %v6660 = vadd.f32 %v6547, %v6659
      %v6661 = vpop.f32.mrb[0].mxu0
      %v6662 = vadd.f32 %v6549, %v6661
      %v6663 = vpop.f32.mrb[0].mxu0
      %v6664 = vadd.f32 %v6551, %v6663
      %6665 = vmatprep.mubr.bf16.mxu0 %v6031
      %6666 = vmatmul.mubr.bf16.gmra.mrb[0].mxu0 %v4865
      %v6667 = vpop.f32.mrb[0].mxu0
      %v6668 = vadd.f32 %v6555, %v6667
      %v6669 = vpop.f32.mrb[0].mxu0
      %v6670 = vadd.f32 %v6557, %v6669
      %v6671 = vpop.f32.mrb[0].mxu0
      %v6672 = vadd.f32 %v6559, %v6671
      %v6673 = vpop.f32.mrb[0].mxu0
      %v6674 = vadd.f32 %v6561, %v6673
      %6675 = vmatprep.mubr.bf16.mxu0 %v6034
      %6676 = vmatmul.mubr.bf16.gmra.mrb[0].mxu0 %v4869
      %v6677 = vpop.f32.mrb[0].mxu0
      %v6678 = vadd.f32 %v6565, %v6677
      %v6679 = vpop.f32.mrb[0].mxu0
      %v6680 = vadd.f32 %v6567, %v6679
      %v6681 = vpop.f32.mrb[0].mxu0
      %v6682 = vadd.f32 %v6569, %v6681
      %v6683 = vpop.f32.mrb[0].mxu0
      %v6684 = vadd.f32 %v6571, %v6683
      %6685 = vmatprep.mubr.bf16.mxu0 %v6037
      %6686 = vmatmul.mubr.bf16.gmra.mrb[0].mxu0 %v4873
      %v6687 = vpop.f32.mrb[0].mxu0
      %v6688 = vadd.f32 %v6575, %v6687
      %v6689 = vpop.f32.mrb[0].mxu0
      %v6690 = vadd.f32 %v6577, %v6689
      %v6691 = vpop.f32.mrb[0].mxu0
      %v6692 = vadd.f32 %v6579, %v6691
      %v6693 = vpop.f32.mrb[0].mxu0
      %v6694 = vadd.f32 %v6581, %v6693
      %6695 = vmatprep.mubr.bf16.mxu0 %v6040
      %6696 = vmatmul.mubr.bf16.gmra.mrb[0].mxu0 %v4877
      %v6697 = vpop.f32.mrb[0].mxu0
      %v6698 = vadd.f32 %v6585, %v6697
      %v6699 = vpop.f32.mrb[0].mxu0
      %v6700 = vadd.f32 %v6587, %v6699
      %v6701 = vpop.f32.mrb[0].mxu0
      %v6702 = vadd.f32 %v6589, %v6701
      %v6703 = vpop.f32.mrb[0].mxu0
      %v6704 = vadd.f32 %v6591, %v6703
      %6705 = vmatprep.mubr.bf16.mxu0 %v6043
      %6706 = vmatmul.mubr.bf16.gmra.mrb[0].mxu0 %v4881
      %v6707 = vpop.f32.mrb[0].mxu0
      %v6708 = vadd.f32 %v6595, %v6707
      %v6709 = vpop.f32.mrb[0].mxu0
      %v6710 = vadd.f32 %v6597, %v6709
      %v6711 = vpop.f32.mrb[0].mxu0
      %v6712 = vadd.f32 %v6599, %v6711
      %v6713 = vpop.f32.mrb[0].mxu0
      %v6714 = vadd.f32 %v6601, %v6713
      %6715 = vmatprep.mubr.bf16.mxu0 %v6046
      %6716 = vmatmul.mubr.bf16.gmra.mrb[0].mxu0 %v4885
      %v6717 = vpop.f32.mrb[0].mxu0
      %v6718 = vadd.f32 %v6605, %v6717
      %v6719 = vpop.f32.mrb[0].mxu0
      %v6720 = vadd.f32 %v6607, %v6719
      %v6721 = vpop.f32.mrb[0].mxu0
      %v6722 = vadd.f32 %v6609, %v6721
      %v6723 = vpop.f32.mrb[0].mxu0
      %v6724 = vadd.f32 %v6611, %v6723
      %6725 = vdwg.mxu0
      %6726 = vmatprep.subr.bf16.mxu0 0
      %6727 = vmatpush1.bf16.msra.mxu0 %v5680
      %6728 = vmatprep.subr.bf16.mxu0 0
      %6729 = vmatpush1.bf16.msra.mxu0 %v5687
      %6730 = vmatprep.subr.bf16.mxu0 0
      %6731 = vmatpush1.bf16.msra.mxu0 %v5694
      %6732 = vmatprep.subr.bf16.mxu0 0
      %6733 = vmatpush1.bf16.msra.mxu0 %v5701
      %6734 = vmatprep.subr.bf16.mxu0 0
      %6735 = vmatpush1.bf16.msra.mxu0 %v5708
      %6736 = vmatprep.subr.bf16.mxu0 0
      %6737 = vmatpush1.bf16.msra.mxu0 %v5715
      %6738 = vmatprep.subr.bf16.mxu0 0
      %6739 = vmatpush1.bf16.msra.mxu0 %v5722
      %6740 = vmatprep.subr.bf16.mxu0 0
      %6741 = vmatpush1.bf16.msra.mxu0 %v5729
      %6742 = vmatprep.subr.bf16.mxu0 0
      %6743 = vmatpush1.bf16.msra.mxu0 %v5736
      %6744 = vmatprep.subr.bf16.mxu0 0
      %6745 = vmatpush1.bf16.msra.mxu0 %v5743
      %6746 = vmatprep.subr.bf16.mxu0 0
      %6747 = vmatpush1.bf16.msra.mxu0 %v5750
      %6748 = vmatprep.subr.bf16.mxu0 0
      %6749 = vmatpush1.bf16.msra.mxu0 %v5757
      %6750 = vmatprep.subr.bf16.mxu0 0
      %6751 = vmatpush1.bf16.msra.mxu0 %v5764
      %6752 = vmatprep.subr.bf16.mxu0 0
      %6753 = vmatpush1.bf16.msra.mxu0 %v5771
      %6754 = vmatprep.subr.bf16.mxu0 0
      %6755 = vmatpush1.bf16.msra.mxu0 %v5778
      %6756 = vmatprep.subr.bf16.mxu0 0
      %6757 = vmatpush1.bf16.msra.mxu0 %v5785
      %6758 = vmatprep.mubr.bf16.mxu0 %v4856
      %6759 = vmatmul.mubr.bf16.gmra.mrb[0].mxu0 %v4855
      %v6760 = vpop.f32.mrb[0].mxu0
      %v6761 = vadd.f32 %v5116, %v6760
      %v6762 = vpop.f32.mrb[0].mxu0
      %v6763 = vpop.f32.mrb[0].mxu0
      %v6764 = vadd.f32 %v5116, %v6763
      %v6765 = vpop.f32.mrb[0].mxu0
      %6766 = vmatprep.mubr.bf16.mxu0 %v4860
      %6767 = vmatmul.mubr.bf16.gmra.mrb[0].mxu0 %v4859
      %v6768 = vpop.f32.mrb[0].mxu0
      %v6769 = vadd.f32 %v5116, %v6768
      %v6770 = vpop.f32.mrb[0].mxu0
      %v6771 = vpop.f32.mrb[0].mxu0
      %v6772 = vadd.f32 %v5116, %v6771
      %v6773 = vpop.f32.mrb[0].mxu0
      %6774 = vmatprep.mubr.bf16.mxu0 %v4864
      %6775 = vmatmul.mubr.bf16.gmra.mrb[0].mxu0 %v4863
      %v6776 = vpop.f32.mrb[0].mxu0
      %v6777 = vadd.f32 %v5116, %v6776
      %v6778 = vpop.f32.mrb[0].mxu0
      %v6779 = vpop.f32.mrb[0].mxu0
      %v6780 = vadd.f32 %v5116, %v6779
      %v6781 = vpop.f32.mrb[0].mxu0
      %6782 = vmatprep.mubr.bf16.mxu0 %v4868
      %6783 = vmatmul.mubr.bf16.gmra.mrb[0].mxu0 %v4867
      %v6784 = vpop.f32.mrb[0].mxu0
      %v6785 = vadd.f32 %v5116, %v6784
      %v6786 = vpop.f32.mrb[0].mxu0
      %v6787 = vpop.f32.mrb[0].mxu0
      %v6788 = vadd.f32 %v5116, %v6787
      %v6789 = vpop.f32.mrb[0].mxu0
      %6790 = vmatprep.mubr.bf16.mxu0 %v4872
      %6791 = vmatmul.mubr.bf16.gmra.mrb[0].mxu0 %v4871
      %v6792 = vpop.f32.mrb[0].mxu0
      %v6793 = vadd.f32 %v5116, %v6792
      %v6794 = vpop.f32.mrb[0].mxu0
      %v6795 = vpop.f32.mrb[0].mxu0
      %v6796 = vadd.f32 %v5116, %v6795
      %v6797 = vpop.f32.mrb[0].mxu0
      %6798 = vmatprep.mubr.bf16.mxu0 %v4876
      %6799 = vmatmul.mubr.bf16.gmra.mrb[0].mxu0 %v4875
      %v6800 = vpop.f32.mrb[0].mxu0
      %v6801 = vadd.f32 %v5116, %v6800
      %v6802 = vpop.f32.mrb[0].mxu0
      %v6803 = vpop.f32.mrb[0].mxu0
      %v6804 = vadd.f32 %v5116, %v6803
      %v6805 = vpop.f32.mrb[0].mxu0
      %6806 = vmatprep.mubr.bf16.mxu0 %v4880
      %6807 = vmatmul.mubr.bf16.gmra.mrb[0].mxu0 %v4879
      %v6808 = vpop.f32.mrb[0].mxu0
      %v6809 = vadd.f32 %v5116, %v6808
      %v6810 = vpop.f32.mrb[0].mxu0
      %v6811 = vpop.f32.mrb[0].mxu0
      %v6812 = vadd.f32 %v5116, %v6811
      %v6813 = vpop.f32.mrb[0].mxu0
      %6814 = vmatprep.mubr.bf16.mxu0 %v4884
      %6815 = vmatmul.mubr.bf16.gmra.mrb[0].mxu0 %v4883
      %v6816 = vpop.f32.mrb[0].mxu0
      %v6817 = vadd.f32 %v5116, %v6816
      %v6818 = vpop.f32.mrb[0].mxu0
      %v6819 = vpop.f32.mrb[0].mxu0
      %v6820 = vadd.f32 %v5116, %v6819
      %v6821 = vpop.f32.mrb[0].mxu0
      %6822 = vdwg.mxu0
      %6823 = vmatprep.subr.bf16.mxu0 0
      %6824 = vmatpush1.bf16.msra.mxu0 %v5792
      %6825 = vmatprep.subr.bf16.mxu0 0
      %6826 = vmatpush1.bf16.msra.mxu0 %v5799
      %6827 = vmatprep.subr.bf16.mxu0 0
      %6828 = vmatpush1.bf16.msra.mxu0 %v5806
      %6829 = vmatprep.subr.bf16.mxu0 0
      %6830 = vmatpush1.bf16.msra.mxu0 %v5813
      %6831 = vmatprep.subr.bf16.mxu0 0
      %6832 = vmatpush1.bf16.msra.mxu0 %v5820
      %6833 = vmatprep.subr.bf16.mxu0 0
      %6834 = vmatpush1.bf16.msra.mxu0 %v5827
      %6835 = vmatprep.subr.bf16.mxu0 0
      %6836 = vmatpush1.bf16.msra.mxu0 %v5834
      %6837 = vmatprep.subr.bf16.mxu0 0
      %6838 = vmatpush1.bf16.msra.mxu0 %v5841
      %6839 = vmatprep.subr.bf16.mxu0 0
      %6840 = vmatpush1.bf16.msra.mxu0 %v5848
      %6841 = vmatprep.subr.bf16.mxu0 0
      %6842 = vmatpush1.bf16.msra.mxu0 0
      %6843 = vmatprep.subr.bf16.mxu0 0
      %6844 = vmatpush1.bf16.msra.mxu0 0
      %6845 = vmatprep.subr.bf16.mxu0 0
      %6846 = vmatpush1.bf16.msra.mxu0 0
      %6847 = vmatprep.subr.bf16.mxu0 0
      %6848 = vmatpush1.bf16.msra.mxu0 0
      %6849 = vmatprep.subr.bf16.mxu0 0
      %6850 = vmatpush1.bf16.msra.mxu0 0
      %6851 = vmatprep.subr.bf16.mxu0 0
      %6852 = vmatpush1.bf16.msra.mxu0 0
      %6853 = vmatprep.subr.bf16.mxu0 0
      %6854 = vmatpush1.bf16.msra.mxu0 0
      %6855 = vmatprep.mubr.bf16.mxu0 %v6025
      %6856 = vmatmul.mubr.bf16.gmra.mrb[0].mxu0 %v4857
      %v6857 = vpop.f32.mrb[0].mxu0
      %v6858 = vadd.f32 %v6761, %v6857
      %v6859 = vpop.f32.mrb[0].mxu0
      %v6860 = vpop.f32.mrb[0].mxu0
      %v6861 = vadd.f32 %v6764, %v6860
      %v6862 = vpop.f32.mrb[0].mxu0
      %6863 = vmatprep.mubr.bf16.mxu0 %v6028
      %6864 = vmatmul.mubr.bf16.gmra.mrb[0].mxu0 %v4861
      %v6865 = vpop.f32.mrb[0].mxu0
      %v6866 = vadd.f32 %v6769, %v6865
      %v6867 = vpop.f32.mrb[0].mxu0
      %v6868 = vpop.f32.mrb[0].mxu0
      %v6869 = vadd.f32 %v6772, %v6868
      %v6870 = vpop.f32.mrb[0].mxu0
      %6871 = vmatprep.mubr.bf16.mxu0 %v6031
      %6872 = vmatmul.mubr.bf16.gmra.mrb[0].mxu0 %v4865
      %v6873 = vpop.f32.mrb[0].mxu0
      %v6874 = vadd.f32 %v6777, %v6873
      %v6875 = vpop.f32.mrb[0].mxu0
      %v6876 = vpop.f32.mrb[0].mxu0
      %v6877 = vadd.f32 %v6780, %v6876
      %v6878 = vpop.f32.mrb[0].mxu0
      %6879 = vmatprep.mubr.bf16.mxu0 %v6034
      %6880 = vmatmul.mubr.bf16.gmra.mrb[0].mxu0 %v4869
      %v6881 = vpop.f32.mrb[0].mxu0
      %v6882 = vadd.f32 %v6785, %v6881
      %v6883 = vpop.f32.mrb[0].mxu0
      %v6884 = vpop.f32.mrb[0].mxu0
      %v6885 = vadd.f32 %v6788, %v6884
      %v6886 = vpop.f32.mrb[0].mxu0
      %6887 = vmatprep.mubr.bf16.mxu0 %v6037
      %6888 = vmatmul.mubr.bf16.gmra.mrb[0].mxu0 %v4873
      %v6889 = vpop.f32.mrb[0].mxu0
      %v6890 = vadd.f32 %v6793, %v6889
      %v6891 = vpop.f32.mrb[0].mxu0
      %v6892 = vpop.f32.mrb[0].mxu0
      %v6893 = vadd.f32 %v6796, %v6892
      %v6894 = vpop.f32.mrb[0].mxu0
      %6895 = vmatprep.mubr.bf16.mxu0 %v6040
      %6896 = vmatmul.mubr.bf16.gmra.mrb[0].mxu0 %v4877
      %v6897 = vpop.f32.mrb[0].mxu0
      %v6898 = vadd.f32 %v6801, %v6897
      %v6899 = vpop.f32.mrb[0].mxu0
      %v6900 = vpop.f32.mrb[0].mxu0
      %v6901 = vadd.f32 %v6804, %v6900
      %v6902 = vpop.f32.mrb[0].mxu0
      %6903 = vmatprep.mubr.bf16.mxu0 %v6043
      %6904 = vmatmul.mubr.bf16.gmra.mrb[0].mxu0 %v4881
      %v6905 = vpop.f32.mrb[0].mxu0
      %v6906 = vadd.f32 %v6809, %v6905
      %v6907 = vpop.f32.mrb[0].mxu0
      %v6908 = vpop.f32.mrb[0].mxu0
      %v6909 = vadd.f32 %v6812, %v6908
      %v6910 = vpop.f32.mrb[0].mxu0
      %6911 = vmatprep.mubr.bf16.mxu0 %v6046
      %6912 = vmatmul.mubr.bf16.gmra.mrb[0].mxu0 %v4885
      %v6913 = vpop.f32.mrb[0].mxu0
      %v6914 = vadd.f32 %v6817, %v6913
      %v6915 = vpop.f32.mrb[0].mxu0
      %v6916 = vpop.f32.mrb[0].mxu0
      %v6917 = vadd.f32 %v6820, %v6916
      %v6918 = vpop.f32.mrb[0].mxu0
      %6919 = vdwg.mxu0
      %v6920 = vsub.f32 0.0, %v6196
      %v6921 = vsub.f32 0.0, %v6198
      %v6922 = vsub.f32 0.0, %v6422
      %v6923 = vsub.f32 0.0, %v6424
      %v6924 = vsub.f32 0.0, %v6648
      %v6925 = vsub.f32 0.0, %v6650
      %v6926 = vsub.f32 0.0, %v6858
      %v6927 = vsub.f32 0.0, %v6200
      %v6928 = vsub.f32 0.0, %v6202
      %v6929 = vsub.f32 0.0, %v6426
      %v6930 = vsub.f32 0.0, %v6428
      %v6931 = vsub.f32 0.0, %v6652
      %v6932 = vsub.f32 0.0, %v6654
      %v6933 = vsub.f32 0.0, %v6861
      %v6934 = vsub.f32 0.0, %v6206
      %v6935 = vsub.f32 0.0, %v6208
      %v6936 = vsub.f32 0.0, %v6432
      %v6937 = vsub.f32 0.0, %v6434
      %v6938 = vsub.f32 0.0, %v6658
      %v6939 = vsub.f32 0.0, %v6660
      %v6940 = vsub.f32 0.0, %v6866
      %v6941 = vsub.f32 0.0, %v6210
      %v6942 = vsub.f32 0.0, %v6212
      %v6943 = vsub.f32 0.0, %v6436
      %v6944 = vsub.f32 0.0, %v6438
      %v6945 = vsub.f32 0.0, %v6662
      %v6946 = vsub.f32 0.0, %v6664
      %v6947 = vsub.f32 0.0, %v6869
      %v6948 = vsub.f32 0.0, %v6216
      %v6949 = vsub.f32 0.0, %v6218
      %v6950 = vsub.f32 0.0, %v6442
      %v6951 = vsub.f32 0.0, %v6444
      %v6952 = vsub.f32 0.0, %v6668
      %v6953 = vsub.f32 0.0, %v6670
      %v6954 = vsub.f32 0.0, %v6874
      %v6955 = vsub.f32 0.0, %v6220
      %v6956 = vsub.f32 0.0, %v6222
      %v6957 = vsub.f32 0.0, %v6446
      %v6958 = vsub.f32 0.0, %v6448
      %v6959 = vsub.f32 0.0, %v6672
      %v6960 = vsub.f32 0.0, %v6674
      %v6961 = vsub.f32 0.0, %v6877
      %v6962 = vsub.f32 0.0, %v6226
      %v6963 = vsub.f32 0.0, %v6228
      %v6964 = vsub.f32 0.0, %v6452
      %v6965 = vsub.f32 0.0, %v6454
      %v6966 = vsub.f32 0.0, %v6678
      %v6967 = vsub.f32 0.0, %v6680
      %v6968 = vsub.f32 0.0, %v6882
      %v6969 = vsub.f32 0.0, %v6230
      %v6970 = vsub.f32 0.0, %v6232
      %v6971 = vsub.f32 0.0, %v6456
      %v6972 = vsub.f32 0.0, %v6458
      %v6973 = vsub.f32 0.0, %v6682
      %v6974 = vsub.f32 0.0, %v6684
      %v6975 = vsub.f32 0.0, %v6885
      %v6976 = vsub.f32 0.0, %v6236
      %v6977 = vsub.f32 0.0, %v6238
      %v6978 = vsub.f32 0.0, %v6462
      %v6979 = vsub.f32 0.0, %v6464
      %v6980 = vsub.f32 0.0, %v6688
      %v6981 = vsub.f32 0.0, %v6690
      %v6982 = vsub.f32 0.0, %v6890
      %v6983 = vsub.f32 0.0, %v6240
      %v6984 = vsub.f32 0.0, %v6242
      %v6985 = vsub.f32 0.0, %v6466
      %v6986 = vsub.f32 0.0, %v6468
      %v6987 = vsub.f32 0.0, %v6692
      %v6988 = vsub.f32 0.0, %v6694
      %v6989 = vsub.f32 0.0, %v6893
      %v6990 = vsub.f32 0.0, %v6246
      %v6991 = vsub.f32 0.0, %v6248
      %v6992 = vsub.f32 0.0, %v6472
      %v6993 = vsub.f32 0.0, %v6474
      %v6994 = vsub.f32 0.0, %v6698
      %v6995 = vsub.f32 0.0, %v6700
      %v6996 = vsub.f32 0.0, %v6898
      %v6997 = vsub.f32 0.0, %v6250
      %v6998 = vsub.f32 0.0, %v6252
      %v6999 = vsub.f32 0.0, %v6476
      %v7000 = vsub.f32 0.0, %v6478
      %v7001 = vsub.f32 0.0, %v6702
      %v7002 = vsub.f32 0.0, %v6704
      %v7003 = vsub.f32 0.0, %v6901
      %v7004 = vsub.f32 0.0, %v6256
      %v7005 = vsub.f32 0.0, %v6258
      %v7006 = vsub.f32 0.0, %v6482
      %v7007 = vsub.f32 0.0, %v6484
      %v7008 = vsub.f32 0.0, %v6708
      %v7009 = vsub.f32 0.0, %v6710
      %v7010 = vsub.f32 0.0, %v6906
      %v7011 = vsub.f32 0.0, %v6260
      %v7012 = vsub.f32 0.0, %v6262
      %v7013 = vsub.f32 0.0, %v6486
      %v7014 = vsub.f32 0.0, %v6488
      %v7015 = vsub.f32 0.0, %v6712
      %v7016 = vsub.f32 0.0, %v6714
      %v7017 = vsub.f32 0.0, %v6909
      %v7018 = vsub.f32 0.0, %v6266
      %v7019 = vsub.f32 0.0, %v6268
      %v7020 = vsub.f32 0.0, %v6492
      %v7021 = vsub.f32 0.0, %v6494
      %v7022 = vsub.f32 0.0, %v6718
      %v7023 = vsub.f32 0.0, %v6720
      %v7024 = vsub.f32 0.0, %v6914
      %v7025 = vsub.f32 0.0, %v6270
      %v7026 = vsub.f32 0.0, %v6272
      %v7027 = vsub.f32 0.0, %v6496
      %v7028 = vsub.f32 0.0, %v6498
      %v7029 = vsub.f32 0.0, %v6722
      %v7030 = vsub.f32 0.0, %v6724
      %v7031 = vsub.f32 0.0, %v6917
      %v7032 = vmul.f32 %v6920, 1.442695
      %v7033 = vpow.pop %v7032
      %v7034 = vmul.f32 %v6921, 1.442695
      %v7035 = vpow.pop %v7034
      %v7036 = vmul.f32 %v6922, 1.442695
      %v7037 = vpow.pop %v7036
      %v7038 = vmul.f32 %v6923, 1.442695
      %v7039 = vpow.pop %v7038
      %v7040 = vmul.f32 %v6924, 1.442695
      %v7041 = vpow.pop %v7040
      %v7042 = vmul.f32 %v6925, 1.442695
      %v7043 = vpow.pop %v7042
      %v7044 = vmul.f32 %v6926, 1.442695
      %v7045 = vpow.pop %v7044
      %v7046 = vmul.f32 %v6927, 1.442695
      %v7047 = vpow.pop %v7046
      %v7048 = vmul.f32 %v6928, 1.442695
      %v7049 = vpow.pop %v7048
      %v7050 = vmul.f32 %v6929, 1.442695
      %v7051 = vpow.pop %v7050
      %v7052 = vmul.f32 %v6930, 1.442695
      %v7053 = vpow.pop %v7052
      %v7054 = vmul.f32 %v6931, 1.442695
      %v7055 = vpow.pop %v7054
      %v7056 = vmul.f32 %v6932, 1.442695
      %v7057 = vpow.pop %v7056
      %v7058 = vmul.f32 %v6933, 1.442695
      %v7059 = vpow.pop %v7058
      %v7060 = vmul.f32 %v6934, 1.442695
      %v7061 = vpow.pop %v7060
      %v7062 = vmul.f32 %v6935, 1.442695
      %v7063 = vpow.pop %v7062
      %v7064 = vmul.f32 %v6936, 1.442695
      %v7065 = vpow.pop %v7064
      %v7066 = vmul.f32 %v6937, 1.442695
      %v7067 = vpow.pop %v7066
      %v7068 = vmul.f32 %v6938, 1.442695
      %v7069 = vpow.pop %v7068
      %v7070 = vmul.f32 %v6939, 1.442695
      %v7071 = vpow.pop %v7070
      %v7072 = vmul.f32 %v6940, 1.442695
      %v7073 = vpow.pop %v7072
      %v7074 = vmul.f32 %v6941, 1.442695
      %v7075 = vpow.pop %v7074
      %v7076 = vmul.f32 %v6942, 1.442695
      %v7077 = vpow.pop %v7076
      %v7078 = vmul.f32 %v6943, 1.442695
      %v7079 = vpow.pop %v7078
      %v7080 = vmul.f32 %v6944, 1.442695
      %v7081 = vpow.pop %v7080
      %v7082 = vmul.f32 %v6945, 1.442695
      %v7083 = vpow.pop %v7082
      %v7084 = vmul.f32 %v6946, 1.442695
      %v7085 = vpow.pop %v7084
      %v7086 = vmul.f32 %v6947, 1.442695
      %v7087 = vpow.pop %v7086
      %v7088 = vmul.f32 %v6948, 1.442695
      %v7089 = vpow.pop %v7088
      %v7090 = vmul.f32 %v6949, 1.442695
      %v7091 = vpow.pop %v7090
      %v7092 = vmul.f32 %v6950, 1.442695
      %v7093 = vpow.pop %v7092
      %v7094 = vmul.f32 %v6951, 1.442695
      %v7095 = vpow.pop %v7094
      %v7096 = vmul.f32 %v6952, 1.442695
      %v7097 = vpow.pop %v7096
      %v7098 = vmul.f32 %v6953, 1.442695
      %v7099 = vpow.pop %v7098
      %v7100 = vmul.f32 %v6954, 1.442695
      %v7101 = vpow.pop %v7100
      %v7102 = vmul.f32 %v6955, 1.442695
      %v7103 = vpow.pop %v7102
      %v7104 = vmul.f32 %v6956, 1.442695
      %v7105 = vpow.pop %v7104
      %v7106 = vmul.f32 %v6957, 1.442695
      %v7107 = vpow.pop %v7106
      %v7108 = vmul.f32 %v6958, 1.442695
      %v7109 = vpow.pop %v7108
      %v7110 = vmul.f32 %v6959, 1.442695
      %v7111 = vpow.pop %v7110
      %v7112 = vmul.f32 %v6960, 1.442695
      %v7113 = vpow.pop %v7112
      %v7114 = vmul.f32 %v6961, 1.442695
      %v7115 = vpow.pop %v7114
      %v7116 = vmul.f32 %v6962, 1.442695
      %v7117 = vpow.pop %v7116
      %v7118 = vmul.f32 %v6963, 1.442695
      %v7119 = vpow.pop %v7118
      %v7120 = vmul.f32 %v6964, 1.442695
      %v7121 = vpow.pop %v7120
      %v7122 = vmul.f32 %v6965, 1.442695
      %v7123 = vpow.pop %v7122
      %v7124 = vmul.f32 %v6966, 1.442695
      %v7125 = vpow.pop %v7124
      %v7126 = vmul.f32 %v6967, 1.442695
      %v7127 = vpow.pop %v7126
      %v7128 = vmul.f32 %v6968, 1.442695
      %v7129 = vpow.pop %v7128
      %v7130 = vmul.f32 %v6969, 1.442695
      %v7131 = vpow.pop %v7130
      %v7132 = vmul.f32 %v6970, 1.442695
      %v7133 = vpow.pop %v7132
      %v7134 = vmul.f32 %v6971, 1.442695
      %v7135 = vpow.pop %v7134
      %v7136 = vmul.f32 %v6972, 1.442695
      %v7137 = vpow.pop %v7136
      %v7138 = vmul.f32 %v6973, 1.442695
      %v7139 = vpow.pop %v7138
      %v7140 = vmul.f32 %v6974, 1.442695
      %v7141 = vpow.pop %v7140
      %v7142 = vmul.f32 %v6975, 1.442695
      %v7143 = vpow.pop %v7142
      %v7144 = vmul.f32 %v6976, 1.442695
      %v7145 = vpow.pop %v7144
      %v7146 = vmul.f32 %v6977, 1.442695
      %v7147 = vpow.pop %v7146
      %v7148 = vmul.f32 %v6978, 1.442695
      %v7149 = vpow.pop %v7148
      %v7150 = vmul.f32 %v6979, 1.442695
      %v7151 = vpow.pop %v7150
      %v7152 = vmul.f32 %v6980, 1.442695
      %v7153 = vpow.pop %v7152
      %v7154 = vmul.f32 %v6981, 1.442695
      %v7155 = vpow.pop %v7154
      %v7156 = vmul.f32 %v6982, 1.442695
      %v7157 = vpow.pop %v7156
      %v7158 = vmul.f32 %v6983, 1.442695
      %v7159 = vpow.pop %v7158
      %v7160 = vmul.f32 %v6984, 1.442695
      %v7161 = vpow.pop %v7160
      %v7162 = vmul.f32 %v6985, 1.442695
      %v7163 = vpow.pop %v7162
      %v7164 = vmul.f32 %v6986, 1.442695
      %v7165 = vpow.pop %v7164
      %v7166 = vmul.f32 %v6987, 1.442695
      %v7167 = vpow.pop %v7166
      %v7168 = vmul.f32 %v6988, 1.442695
      %v7169 = vpow.pop %v7168
      %v7170 = vmul.f32 %v6989, 1.442695
      %v7171 = vpow.pop %v7170
      %v7172 = vmul.f32 %v6990, 1.442695
      %v7173 = vpow.pop %v7172
      %v7174 = vmul.f32 %v6991, 1.442695
      %v7175 = vpow.pop %v7174
      %v7176 = vmul.f32 %v6992, 1.442695
      %v7177 = vpow.pop %v7176
      %v7178 = vmul.f32 %v6993, 1.442695
      %v7179 = vpow.pop %v7178
      %v7180 = vmul.f32 %v6994, 1.442695
      %v7181 = vpow.pop %v7180
      %v7182 = vmul.f32 %v6995, 1.442695
      %v7183 = vpow.pop %v7182
      %v7184 = vmul.f32 %v6996, 1.442695
      %v7185 = vpow.pop %v7184
      %v7186 = vmul.f32 %v6997, 1.442695
      %v7187 = vpow.pop %v7186
      %v7188 = vmul.f32 %v6998, 1.442695
      %v7189 = vpow.pop %v7188
      %v7190 = vmul.f32 %v6999, 1.442695
      %v7191 = vpow.pop %v7190
      %v7192 = vmul.f32 %v7000, 1.442695
      %v7193 = vpow.pop %v7192
      %v7194 = vmul.f32 %v7001, 1.442695
      %v7195 = vpow.pop %v7194
      %v7196 = vmul.f32 %v7002, 1.442695
      %v7197 = vpow.pop %v7196
      %v7198 = vmul.f32 %v7003, 1.442695
      %v7199 = vpow.pop %v7198
      %v7200 = vmul.f32 %v7004, 1.442695
      %v7201 = vpow.pop %v7200
      %v7202 = vmul.f32 %v7005, 1.442695
      %v7203 = vpow.pop %v7202
      %v7204 = vmul.f32 %v7006, 1.442695
      %v7205 = vpow.pop %v7204
      %v7206 = vmul.f32 %v7007, 1.442695
      %v7207 = vpow.pop %v7206
      %v7208 = vmul.f32 %v7008, 1.442695
      %v7209 = vpow.pop %v7208
      %v7210 = vmul.f32 %v7009, 1.442695
      %v7211 = vpow.pop %v7210
      %v7212 = vmul.f32 %v7010, 1.442695
      %v7213 = vpow.pop %v7212
      %v7214 = vmul.f32 %v7011, 1.442695
      %v7215 = vpow.pop %v7214
      %v7216 = vmul.f32 %v7012, 1.442695
      %v7217 = vpow.pop %v7216
      %v7218 = vmul.f32 %v7013, 1.442695
      %v7219 = vpow.pop %v7218
      %v7220 = vmul.f32 %v7014, 1.442695
      %v7221 = vpow.pop %v7220
      %v7222 = vmul.f32 %v7015, 1.442695
      %v7223 = vpow.pop %v7222
      %v7224 = vmul.f32 %v7016, 1.442695
      %v7225 = vpow.pop %v7224
      %v7226 = vmul.f32 %v7017, 1.442695
      %v7227 = vpow.pop %v7226
      %v7228 = vmul.f32 %v7018, 1.442695
      %v7229 = vpow.pop %v7228
      %v7230 = vmul.f32 %v7019, 1.442695
      %v7231 = vpow.pop %v7230
      %v7232 = vmul.f32 %v7020, 1.442695
      %v7233 = vpow.pop %v7232
      %v7234 = vmul.f32 %v7021, 1.442695
      %v7235 = vpow.pop %v7234
      %v7236 = vmul.f32 %v7022, 1.442695
      %v7237 = vpow.pop %v7236
      %v7238 = vmul.f32 %v7023, 1.442695
      %v7239 = vpow.pop %v7238
      %v7240 = vmul.f32 %v7024, 1.442695
      %v7241 = vpow.pop %v7240
      %v7242 = vmul.f32 %v7025, 1.442695
      %v7243 = vpow.pop %v7242
      %v7244 = vmul.f32 %v7026, 1.442695
      %v7245 = vpow.pop %v7244
      %v7246 = vmul.f32 %v7027, 1.442695
      %v7247 = vpow.pop %v7246
      %v7248 = vmul.f32 %v7028, 1.442695
      %v7249 = vpow.pop %v7248
      %v7250 = vmul.f32 %v7029, 1.442695
      %v7251 = vpow.pop %v7250
      %v7252 = vmul.f32 %v7030, 1.442695
      %v7253 = vpow.pop %v7252
      %v7254 = vmul.f32 %v7031, 1.442695
      %v7255 = vpow.pop %v7254
      %v7256 = vadd.f32 %v7033, 1.0
      %v7257 = vadd.f32 %v7035, 1.0
      %v7258 = vadd.f32 %v7037, 1.0
      %v7259 = vadd.f32 %v7039, 1.0
      %v7260 = vadd.f32 %v7041, 1.0
      %v7261 = vadd.f32 %v7043, 1.0
      %v7262 = vadd.f32 %v7045, 1.0
      %v7263 = vadd.f32 %v7047, 1.0
      %v7264 = vadd.f32 %v7049, 1.0
      %v7265 = vadd.f32 %v7051, 1.0
      %v7266 = vadd.f32 %v7053, 1.0
      %v7267 = vadd.f32 %v7055, 1.0
      %v7268 = vadd.f32 %v7057, 1.0
      %v7269 = vadd.f32 %v7059, 1.0
      %v7270 = vadd.f32 %v7061, 1.0
      %v7271 = vadd.f32 %v7063, 1.0
      %v7272 = vadd.f32 %v7065, 1.0
      %v7273 = vadd.f32 %v7067, 1.0
      %v7274 = vadd.f32 %v7069, 1.0
      %v7275 = vadd.f32 %v7071, 1.0
      %v7276 = vadd.f32 %v7073, 1.0
      %v7277 = vadd.f32 %v7075, 1.0
      %v7278 = vadd.f32 %v7077, 1.0
      %v7279 = vadd.f32 %v7079, 1.0
      %v7280 = vadd.f32 %v7081, 1.0
      %v7281 = vadd.f32 %v7083, 1.0
      %v7282 = vadd.f32 %v7085, 1.0
      %v7283 = vadd.f32 %v7087, 1.0
      %v7284 = vadd.f32 %v7089, 1.0
      %v7285 = vadd.f32 %v7091, 1.0
      %v7286 = vadd.f32 %v7093, 1.0
      %v7287 = vadd.f32 %v7095, 1.0
      %v7288 = vadd.f32 %v7097, 1.0
      %v7289 = vadd.f32 %v7099, 1.0
      %v7290 = vadd.f32 %v7101, 1.0
      %v7291 = vadd.f32 %v7103, 1.0
      %v7292 = vadd.f32 %v7105, 1.0
      %v7293 = vadd.f32 %v7107, 1.0
      %v7294 = vadd.f32 %v7109, 1.0
      %v7295 = vadd.f32 %v7111, 1.0
      %v7296 = vadd.f32 %v7113, 1.0
      %v7297 = vadd.f32 %v7115, 1.0
      %v7298 = vadd.f32 %v7117, 1.0
      %v7299 = vadd.f32 %v7119, 1.0
      %v7300 = vadd.f32 %v7121, 1.0
      %v7301 = vadd.f32 %v7123, 1.0
      %v7302 = vadd.f32 %v7125, 1.0
      %v7303 = vadd.f32 %v7127, 1.0
      %v7304 = vadd.f32 %v7129, 1.0
      %v7305 = vadd.f32 %v7131, 1.0
      %v7306 = vadd.f32 %v7133, 1.0
      %v7307 = vadd.f32 %v7135, 1.0
      %v7308 = vadd.f32 %v7137, 1.0
      %v7309 = vadd.f32 %v7139, 1.0
      %v7310 = vadd.f32 %v7141, 1.0
      %v7311 = vadd.f32 %v7143, 1.0
      %v7312 = vadd.f32 %v7145, 1.0
      %v7313 = vadd.f32 %v7147, 1.0
      %v7314 = vadd.f32 %v7149, 1.0
      %v7315 = vadd.f32 %v7151, 1.0
      %v7316 = vadd.f32 %v7153, 1.0
      %v7317 = vadd.f32 %v7155, 1.0
      %v7318 = vadd.f32 %v7157, 1.0
      %v7319 = vadd.f32 %v7159, 1.0
      %v7320 = vadd.f32 %v7161, 1.0
      %v7321 = vadd.f32 %v7163, 1.0
      %v7322 = vadd.f32 %v7165, 1.0
      %v7323 = vadd.f32 %v7167, 1.0
      %v7324 = vadd.f32 %v7169, 1.0
      %v7325 = vadd.f32 %v7171, 1.0
      %v7326 = vadd.f32 %v7173, 1.0
      %v7327 = vadd.f32 %v7175, 1.0
      %v7328 = vadd.f32 %v7177, 1.0
      %v7329 = vadd.f32 %v7179, 1.0
      %v7330 = vadd.f32 %v7181, 1.0
      %v7331 = vadd.f32 %v7183, 1.0
      %v7332 = vadd.f32 %v7185, 1.0
      %v7333 = vadd.f32 %v7187, 1.0
      %v7334 = vadd.f32 %v7189, 1.0
      %v7335 = vadd.f32 %v7191, 1.0
      %v7336 = vadd.f32 %v7193, 1.0
      %v7337 = vadd.f32 %v7195, 1.0
      %v7338 = vadd.f32 %v7197, 1.0
      %v7339 = vadd.f32 %v7199, 1.0
      %v7340 = vadd.f32 %v7201, 1.0
      %v7341 = vadd.f32 %v7203, 1.0
      %v7342 = vadd.f32 %v7205, 1.0
      %v7343 = vadd.f32 %v7207, 1.0
      %v7344 = vadd.f32 %v7209, 1.0
      %v7345 = vadd.f32 %v7211, 1.0
      %v7346 = vadd.f32 %v7213, 1.0
      %v7347 = vadd.f32 %v7215, 1.0
      %v7348 = vadd.f32 %v7217, 1.0
      %v7349 = vadd.f32 %v7219, 1.0
      %v7350 = vadd.f32 %v7221, 1.0
      %v7351 = vadd.f32 %v7223, 1.0
      %v7352 = vadd.f32 %v7225, 1.0
      %v7353 = vadd.f32 %v7227, 1.0
      %v7354 = vadd.f32 %v7229, 1.0
      %v7355 = vadd.f32 %v7231, 1.0
      %v7356 = vadd.f32 %v7233, 1.0
      %v7357 = vadd.f32 %v7235, 1.0
      %v7358 = vadd.f32 %v7237, 1.0
      %v7359 = vadd.f32 %v7239, 1.0
      %v7360 = vadd.f32 %v7241, 1.0
      %v7361 = vadd.f32 %v7243, 1.0
      %v7362 = vadd.f32 %v7245, 1.0
      %v7363 = vadd.f32 %v7247, 1.0
      %v7364 = vadd.f32 %v7249, 1.0
      %v7365 = vadd.f32 %v7251, 1.0
      %v7366 = vadd.f32 %v7253, 1.0
      %v7367 = vadd.f32 %v7255, 1.0
      %v7368 = vrcp.pop %v7256
      %v7369 = vrcp.pop %v7257
      %v7370 = vrcp.pop %v7258
      %v7371 = vrcp.pop %v7259
      %v7372 = vrcp.pop %v7260
      %v7373 = vrcp.pop %v7261
      %v7374 = vrcp.pop %v7262
      %v7375 = vrcp.pop %v7263
      %v7376 = vrcp.pop %v7264
      %v7377 = vrcp.pop %v7265
      %v7378 = vrcp.pop %v7266
      %v7379 = vrcp.pop %v7267
      %v7380 = vrcp.pop %v7268
      %v7381 = vrcp.pop %v7269
      %v7382 = vrcp.pop %v7270
      %v7383 = vrcp.pop %v7271
      %v7384 = vrcp.pop %v7272
      %v7385 = vrcp.pop %v7273
      %v7386 = vrcp.pop %v7274
      %v7387 = vrcp.pop %v7275
      %v7388 = vrcp.pop %v7276
      %v7389 = vrcp.pop %v7277
      %v7390 = vrcp.pop %v7278
      %v7391 = vrcp.pop %v7279
      %v7392 = vrcp.pop %v7280
      %v7393 = vrcp.pop %v7281
      %v7394 = vrcp.pop %v7282
      %v7395 = vrcp.pop %v7283
      %v7396 = vrcp.pop %v7284
      %v7397 = vrcp.pop %v7285
      %v7398 = vrcp.pop %v7286
      %v7399 = vrcp.pop %v7287
      %v7400 = vrcp.pop %v7288
      %v7401 = vrcp.pop %v7289
      %v7402 = vrcp.pop %v7290
      %v7403 = vrcp.pop %v7291
      %v7404 = vrcp.pop %v7292
      %v7405 = vrcp.pop %v7293
      %v7406 = vrcp.pop %v7294
      %v7407 = vrcp.pop %v7295
      %v7408 = vrcp.pop %v7296
      %v7409 = vrcp.pop %v7297
      %v7410 = vrcp.pop %v7298
      %v7411 = vrcp.pop %v7299
      %v7412 = vrcp.pop %v7300
      %v7413 = vrcp.pop %v7301
      %v7414 = vrcp.pop %v7302
      %v7415 = vrcp.pop %v7303
      %v7416 = vrcp.pop %v7304
      %v7417 = vrcp.pop %v7305
      %v7418 = vrcp.pop %v7306
      %v7419 = vrcp.pop %v7307
      %v7420 = vrcp.pop %v7308
      %v7421 = vrcp.pop %v7309
      %v7422 = vrcp.pop %v7310
      %v7423 = vrcp.pop %v7311
      %v7424 = vrcp.pop %v7312
      %v7425 = vrcp.pop %v7313
      %v7426 = vrcp.pop %v7314
      %v7427 = vrcp.pop %v7315
      %v7428 = vrcp.pop %v7316
      %v7429 = vrcp.pop %v7317
      %v7430 = vrcp.pop %v7318
      %v7431 = vrcp.pop %v7319
      %v7432 = vrcp.pop %v7320
      %v7433 = vrcp.pop %v7321
      %v7434 = vrcp.pop %v7322
      %v7435 = vrcp.pop %v7323
      %v7436 = vrcp.pop %v7324
      %v7437 = vrcp.pop %v7325
      %v7438 = vrcp.pop %v7326
      %v7439 = vrcp.pop %v7327
      %v7440 = vrcp.pop %v7328
      %v7441 = vrcp.pop %v7329
      %v7442 = vrcp.pop %v7330
      %v7443 = vrcp.pop %v7331
      %v7444 = vrcp.pop %v7332
      %v7445 = vrcp.pop %v7333
      %v7446 = vrcp.pop %v7334
      %v7447 = vrcp.pop %v7335
      %v7448 = vrcp.pop %v7336
      %v7449 = vrcp.pop %v7337
      %v7450 = vrcp.pop %v7338
      %v7451 = vrcp.pop %v7339
      %v7452 = vrcp.pop %v7340
      %v7453 = vrcp.pop %v7341
      %v7454 = vrcp.pop %v7342
      %v7455 = vrcp.pop %v7343
      %v7456 = vrcp.pop %v7344
      %v7457 = vrcp.pop %v7345
      %v7458 = vrcp.pop %v7346
      %v7459 = vrcp.pop %v7347
      %v7460 = vrcp.pop %v7348
      %v7461 = vrcp.pop %v7349
      %v7462 = vrcp.pop %v7350
      %v7463 = vrcp.pop %v7351
      %v7464 = vrcp.pop %v7352
      %v7465 = vrcp.pop %v7353
      %v7466 = vrcp.pop %v7354
      %v7467 = vrcp.pop %v7355
      %v7468 = vrcp.pop %v7356
      %v7469 = vrcp.pop %v7357
      %v7470 = vrcp.pop %v7358
      %v7471 = vrcp.pop %v7359
      %v7472 = vrcp.pop %v7360
      %v7473 = vrcp.pop %v7361
      %v7474 = vrcp.pop %v7362
      %v7475 = vrcp.pop %v7363
      %v7476 = vrcp.pop %v7364
      %v7477 = vrcp.pop %v7365
      %v7478 = vrcp.pop %v7366
      %v7479 = vrcp.pop %v7367
      %7480 = vst [vmem:[%s339] sm:$0xff] %v7368
      %7481 = vst [vmem:[%s339 + $0x8] sm:$0xff] %v7369
      %7482 = vst [vmem:[%s339 + $0x10] sm:$0xff] %v7370
      %7483 = vst [vmem:[%s339 + $0x18] sm:$0xff] %v7371
      %7484 = vst [vmem:[%s339 + $0x20] sm:$0xff] %v7372
      %7485 = vst [vmem:[%s339 + $0x28] sm:$0xff] %v7373
      %7486 = vst.msk [vmem:[%s339 + $0x30] sm:$0xff] %vm1884, %v7374
      %7487 = vst [vmem:[%s339 + $0x38] sm:$0xff] %v7375
      %7488 = vst [vmem:[%s339 + $0x40] sm:$0xff] %v7376
      %7489 = vst [vmem:[%s339 + $0x48] sm:$0xff] %v7377
      %7490 = vst [vmem:[%s339 + $0x50] sm:$0xff] %v7378
      %7491 = vst [vmem:[%s339 + $0x58] sm:$0xff] %v7379
      %7492 = vst [vmem:[%s339 + $0x60] sm:$0xff] %v7380
      %7493 = vst.msk [vmem:[%s339 + $0x68] sm:$0xff] %vm1884, %v7381
      %7494 = vst [vmem:[%s339 + $0x70] sm:$0xff] %v7382
      %7495 = vst [vmem:[%s339 + $0x78] sm:$0xff] %v7383
      %7496 = vst [vmem:[%s339 + $0x80] sm:$0xff] %v7384
      %7497 = vst [vmem:[%s339 + $0x88] sm:$0xff] %v7385
      %7498 = vst [vmem:[%s339 + $0x90] sm:$0xff] %v7386
      %7499 = vst [vmem:[%s339 + $0x98] sm:$0xff] %v7387
      %7500 = vst.msk [vmem:[%s339 + $0xa0] sm:$0xff] %vm1884, %v7388
      %7501 = vst [vmem:[%s339 + $0xa8] sm:$0xff] %v7389
      %7502 = vst [vmem:[%s339 + $0xb0] sm:$0xff] %v7390
      %7503 = vst [vmem:[%s339 + $0xb8] sm:$0xff] %v7391
      %7504 = vst [vmem:[%s339 + $0xc0] sm:$0xff] %v7392
      %7505 = vst [vmem:[%s339 + $0xc8] sm:$0xff] %v7393
      %7506 = vst [vmem:[%s339 + $0xd0] sm:$0xff] %v7394
      %7507 = vst.msk [vmem:[%s339 + $0xd8] sm:$0xff] %vm1884, %v7395
      %7508 = vst [vmem:[%s339 + $0xe0] sm:$0xff] %v7396
      %7509 = vst [vmem:[%s339 + $0xe8] sm:$0xff] %v7397
      %7510 = vst [vmem:[%s339 + $0xf0] sm:$0xff] %v7398
      %7511 = vst [vmem:[%s339 + $0xf8] sm:$0xff] %v7399
      %7512 = vst [vmem:[%s339 + $0x100] sm:$0xff] %v7400
      %7513 = vst [vmem:[%s339 + $0x108] sm:$0xff] %v7401
      %7514 = vst.msk [vmem:[%s339 + $0x110] sm:$0xff] %vm1884, %v7402
      %7515 = vst [vmem:[%s339 + $0x118] sm:$0xff] %v7403
      %7516 = vst [vmem:[%s339 + $0x120] sm:$0xff] %v7404
      %7517 = vst [vmem:[%s339 + $0x128] sm:$0xff] %v7405
      %7518 = vst [vmem:[%s339 + $0x130] sm:$0xff] %v7406
      %7519 = vst [vmem:[%s339 + $0x138] sm:$0xff] %v7407
      %7520 = vst [vmem:[%s339 + $0x140] sm:$0xff] %v7408
      %7521 = vst.msk [vmem:[%s339 + $0x148] sm:$0xff] %vm1884, %v7409
      %7522 = vst [vmem:[%s339 + $0x150] sm:$0xff] %v7410
      %7523 = vst [vmem:[%s339 + $0x158] sm:$0xff] %v7411
      %7524 = vst [vmem:[%s339 + $0x160] sm:$0xff] %v7412
      %7525 = vst [vmem:[%s339 + $0x168] sm:$0xff] %v7413
      %7526 = vst [vmem:[%s339 + $0x170] sm:$0xff] %v7414
      %7527 = vst [vmem:[%s339 + $0x178] sm:$0xff] %v7415
      %7528 = vst.msk [vmem:[%s339 + $0x180] sm:$0xff] %vm1884, %v7416
      %7529 = vst [vmem:[%s339 + $0x188] sm:$0xff] %v7417
      %7530 = vst [vmem:[%s339 + $0x190] sm:$0xff] %v7418
      %7531 = vst [vmem:[%s339 + $0x198] sm:$0xff] %v7419
      %7532 = vst [vmem:[%s339 + $0x1a0] sm:$0xff] %v7420
      %7533 = vst [vmem:[%s339 + $0x1a8] sm:$0xff] %v7421
      %7534 = vst [vmem:[%s339 + $0x1b0] sm:$0xff] %v7422
      %7535 = vst.msk [vmem:[%s339 + $0x1b8] sm:$0xff] %vm1884, %v7423
      %7536 = vst [vmem:[%s339 + $0x1c0] sm:$0xff] %v7424
      %7537 = vst [vmem:[%s339 + $0x1c8] sm:$0xff] %v7425
      %7538 = vst [vmem:[%s339 + $0x1d0] sm:$0xff] %v7426
      %7539 = vst [vmem:[%s339 + $0x1d8] sm:$0xff] %v7427
      %7540 = vst [vmem:[%s339 + $0x1e0] sm:$0xff] %v7428
      %7541 = vst [vmem:[%s339 + $0x1e8] sm:$0xff] %v7429
      %7542 = vst.msk [vmem:[%s339 + $0x1f0] sm:$0xff] %vm1884, %v7430
      %7543 = vst [vmem:[%s339 + $0x1f8] sm:$0xff] %v7431
      %7544 = vst [vmem:[%s339 + $0x200] sm:$0xff] %v7432
      %7545 = vst [vmem:[%s339 + $0x208] sm:$0xff] %v7433
      %7546 = vst [vmem:[%s339 + $0x210] sm:$0xff] %v7434
      %7547 = vst [vmem:[%s339 + $0x218] sm:$0xff] %v7435
      %7548 = vst [vmem:[%s339 + $0x220] sm:$0xff] %v7436
      %7549 = vst.msk [vmem:[%s339 + $0x228] sm:$0xff] %vm1884, %v7437
      %7550 = vst [vmem:[%s339 + $0x230] sm:$0xff] %v7438
      %7551 = vst [vmem:[%s339 + $0x238] sm:$0xff] %v7439
      %7552 = vst [vmem:[%s339 + $0x240] sm:$0xff] %v7440
      %7553 = vst [vmem:[%s339 + $0x248] sm:$0xff] %v7441
      %7554 = vst [vmem:[%s339 + $0x250] sm:$0xff] %v7442
      %7555 = vst [vmem:[%s339 + $0x258] sm:$0xff] %v7443
      %7556 = vst.msk [vmem:[%s339 + $0x260] sm:$0xff] %vm1884, %v7444
      %7557 = vst [vmem:[%s339 + $0x268] sm:$0xff] %v7445
      %7558 = vst [vmem:[%s339 + $0x270] sm:$0xff] %v7446
      %7559 = vst [vmem:[%s339 + $0x278] sm:$0xff] %v7447
      %7560 = vst [vmem:[%s339 + $0x280] sm:$0xff] %v7448
      %7561 = vst [vmem:[%s339 + $0x288] sm:$0xff] %v7449
      %7562 = vst [vmem:[%s339 + $0x290] sm:$0xff] %v7450
      %7563 = vst.msk [vmem:[%s339 + $0x298] sm:$0xff] %vm1884, %v7451
      %7564 = vst [vmem:[%s339 + $0x2a0] sm:$0xff] %v7452
      %7565 = vst [vmem:[%s339 + $0x2a8] sm:$0xff] %v7453
      %7566 = vst [vmem:[%s339 + $0x2b0] sm:$0xff] %v7454
      %7567 = vst [vmem:[%s339 + $0x2b8] sm:$0xff] %v7455
      %7568 = vst [vmem:[%s339 + $0x2c0] sm:$0xff] %v7456
      %7569 = vst [vmem:[%s339 + $0x2c8] sm:$0xff] %v7457
      %7570 = vst.msk [vmem:[%s339 + $0x2d0] sm:$0xff] %vm1884, %v7458
      %7571 = vst [vmem:[%s339 + $0x2d8] sm:$0xff] %v7459
      %7572 = vst [vmem:[%s339 + $0x2e0] sm:$0xff] %v7460
      %7573 = vst [vmem:[%s339 + $0x2e8] sm:$0xff] %v7461
      %7574 = vst [vmem:[%s339 + $0x2f0] sm:$0xff] %v7462
      %7575 = vst [vmem:[%s339 + $0x2f8] sm:$0xff] %v7463
      %7576 = vst [vmem:[%s339 + $0x300] sm:$0xff] %v7464
      %7577 = vst.msk [vmem:[%s339 + $0x308] sm:$0xff] %vm1884, %v7465
      %7578 = vst [vmem:[%s339 + $0x310] sm:$0xff] %v7466
      %7579 = vst [vmem:[%s339 + $0x318] sm:$0xff] %v7467
      %7580 = vst [vmem:[%s339 + $0x320] sm:$0xff] %v7468
      %7581 = vst [vmem:[%s339 + $0x328] sm:$0xff] %v7469
      %7582 = vst [vmem:[%s339 + $0x330] sm:$0xff] %v7470
      %7583 = vst [vmem:[%s339 + $0x338] sm:$0xff] %v7471
      %7584 = vst.msk [vmem:[%s339 + $0x340] sm:$0xff] %vm1884, %v7472
      %7585 = vst [vmem:[%s339 + $0x348] sm:$0xff] %v7473
      %7586 = vst [vmem:[%s339 + $0x350] sm:$0xff] %v7474
      %7587 = vst [vmem:[%s339 + $0x358] sm:$0xff] %v7475
      %7588 = vst [vmem:[%s339 + $0x360] sm:$0xff] %v7476
      %7589 = vst [vmem:[%s339 + $0x368] sm:$0xff] %v7477
      %7590 = vst [vmem:[%s339 + $0x370] sm:$0xff] %v7478
      %7591 = vst.msk [vmem:[%s339 + $0x378] sm:$0xff] %vm1884, %v7479
      %s7592 = smul.u32 16, %s20
      %p7593 = scmp.lt.s32.totalorder %s7592, 31
      %s7594 = scalar_select %p7593, %s7592, 31
      %s7595 = smul.addr %s7594, 7
      %s7596 = smul.addr %s7595, 8
      %s7597 = scalar_lea.vmem %s9, %s7596
      // Predicated region
      $region57: #{tpu_custom_call.1} parent=55 // pred_check
        %p7598 = pneg %p232
      $region58: #{tpu_custom_call.1} parent=55 // pred_check_branch
        %7600 = sbr.rel (%p7598) target = $region60
      $region59: #{tpu_custom_call.1} parent=55 // pred_region
        %s7601 = smul.u32 16, %s20
      $region60: #{tpu_custom_call.1} parent=55 // pred_fallthru
        _
    $region56: #{tpu_custom_call.1} parent=5 // pred_fallthru
      _
    %p7602 = scmp.le.s32.totalorder 2, %s15
    // Predicated region
    $region61: #{tpu_custom_call.1} parent=5 // pred_check
      %p7603 = pneg %p7602
    $region62: #{tpu_custom_call.1} parent=5 // pred_check_branch
      %7605 = sbr.rel (%p7603) target = $region64
    $region63: #{tpu_custom_call.1} parent=5 // pred_region
      %s7606 = ssub.s32 %s15, 2
      // Predicated region
      $region65: #{tpu_custom_call.1} parent=63 // pred_check
        %p7607 = pneg %p238
      $region66: #{tpu_custom_call.1} parent=63 // pred_check_branch
        %7609 = sbr.rel (%p7607) target = $region68
      $region67: #{tpu_custom_call.1} parent=63 // pred_region
        %s7610 = smul.u32 16, %s21
        %p7611 = scmp.lt.s32.totalorder %s7610, 31
        %s7612 = scalar_select %p7611, %s7610, 31
        %s7613 = smul.addr %s7612, 7
        %s7614 = smul.addr %s7613, 8
        %s7615 = scalar_lea.vmem %s9, %s7614
      $region68: #{tpu_custom_call.1} parent=63 // pred_fallthru
        _
    $region64: #{tpu_custom_call.1} parent=5 // pred_fallthru
      _
  $region6: #{tpu_custom_call.1} parent=0 // loop_footer
    %s19 = sadd.s32 1, %s15
  $region7: #{tpu_custom_call.1} parent=0 // loop_footer_branch
    %14 = sbr.rel target = $region3
  $region8: #{tpu_custom_call.1} parent=0 // loop_exit
    _

</llo_original>
